<compile_context>
chip_gen: v7x
topology: tpu7x:2x2x1
jax: 0.10.0
libtpu: 0.0.40
codegen_flags: <defaults>
</compile_context>

<pallas_src>
import functools

import jax
import jax.numpy as jnp
from jax.experimental import pallas as pl
from jax.experimental.pallas import tpu as pltpu

HEADS = 2
IN_F = 512
OUT_F = 256               # per-head channels of GATConv(512, 256, heads=2)
GAT_OUT = HEADS * OUT_F   # 512 (concat=True)
HID_A = 256               # densea: Linear(512, 256)
HID_1 = 64                # dense1: Linear(256, 64)
OUT_D = 3                 # dense2: Linear(64, 3)
LANE = 128                # TPU lane width; tail layers padded to this
ATT_SLOPE = 0.2           # GATConv attention LeakyReLU (PyG default)
ACT_SLOPE = 0.01          # F.leaky_relu default negative_slope
NEG_BIG = -1e30           # finite "masked" logit (bf16-representable)
TILE_D = 128              # destination-row tile (stages 1/2/3 rows)
TILE_S = 256              # source-column tile (stage-2 online softmax)
TILE_C = 256              # column tile (stage 3)
PAD = 256                 # node-count padding multiple (lcm of the tiles)


def _lrelu(x, slope):
    return jnp.where(x > 0, x, slope * x)


def _nbytes(*arrays):
    return sum(int(a.size) * a.dtype.itemsize for a in arrays)


def _mk_params(dim_sem, est_bytes):
    """Generation-aware VMEM budget: capacity from get_tpu_info (8 MiB headroom),
    estimate + 32 MiB compiler-scratch slack, never below 32 MiB."""
    try:
        cap = int(pltpu.get_tpu_info().vmem_capacity_bytes)
    except Exception:
        cap = 64 << 20  # conservative (v7x per-TC VMEM)
    limit = int(min(cap - (8 << 20), max(int(est_bytes) + (32 << 20), 32 << 20)))
    return pltpu.CompilerParams(dimension_semantics=dim_sem,
                                vmem_limit_bytes=limit)


def _att_dtype():
    """bf16 attention elementwise chain on v6e/v7x (bf16 VPU/EUP); f32 on v5e/older."""
    try:
        kind = jax.devices()[0].device_kind.lower()
    except Exception:
        return jnp.float32
    for old in ("v2", "v3", "v4", "v5"):
        if old in kind:
            return jnp.float32
    return jnp.bfloat16


# ---------------------------------------------------------------------------
# Stage 1: shared linear transform + per-head attention scores
# ---------------------------------------------------------------------------
def gat_prep_kernel(x_ref, w_ref, a_ref, xp_ref, sc_ref, asrct_ref):
    # x_ref: [T, 512] f32 (cast to bf16 here, hidden under the MXU matmul)
    x = x_ref[...].astype(jnp.bfloat16)
    xp = jnp.dot(x, w_ref[...], preferred_element_type=jnp.float32)          # [T, 512]
    xp_ref[...] = xp.astype(jnp.bfloat16)
    # Block-diagonal attention matmul: lane h -> a_src head h, lane HEADS+h -> a_dst head h.
    sc = jnp.dot(xp, a_ref[...], preferred_element_type=jnp.float32)         # [T, 128]
    sc_ref[...] = sc
    # Hoist the a_src [N,1] -> [1,N] transpose out of the per-tile attention loop.
    asrct_ref[...] = jnp.transpose(sc)[:8, :]                                # [8, T]


# ---------------------------------------------------------------------------
# Stage 2: online-softmax attention over src tiles + aggregation + MLP tail
# ---------------------------------------------------------------------------
def gat_attn_mlp_kernel(adj_ref, xp_ref, sc_ref, asrct_ref, bg_ref,
                        wa_ref, ba_ref, w1_ref, b1_ref, w2_ref, b2_ref,
                        za_ref, zb_ref,
                        m_sc, l_sc, acc_sc, *, att_dtype):
    j = pl.program_id(1)

    @pl.when(j == 0)
    def _():
        m_sc[...] = jnp.full(m_sc.shape, -jnp.inf, jnp.float32)
        l_sc[...] = jnp.zeros(l_sc.shape, jnp.float32)
        acc_sc[...] = jnp.zeros(acc_sc.shape, jnp.float32)

    adj = adj_ref[...] != 0                              # [T, TS] bool (int8 stream)
    xp = xp_ref[...]                                     # [TS, 512] bf16 (src tile)
    sc = sc_ref[...].astype(att_dtype)                   # [T, 128]  dst scores
    asrct = asrct_ref[...].astype(att_dtype)             # [8, TS]   a_src rows
    neg_big = jnp.asarray(NEG_BIG, att_dtype)

    for h in range(HEADS):
        a_dst = sc[:, HEADS + h:HEADS + h + 1]           # [T, 1]
        a_src = asrct[h:h + 1, :]                        # [1, TS]
        e = a_dst + a_src                                # [T, TS]
        e = jnp.where(e > 0, e, ATT_SLOPE * e)           # LeakyReLU(0.2)
        e = jnp.where(adj, e, neg_big)                   # mask non-edges in-kernel
        m_prev = m_sc[h]                                 # [T, 1] f32 running max
        m_new = jnp.maximum(
            m_prev, jnp.max(e, axis=-1, keepdims=True).astype(jnp.float32))
        corr = jnp.exp(m_prev - m_new)                   # [T, 1] f32
        p = jnp.exp(e - m_new.astype(att_dtype))         # [T, TS] (bf16 on v6e/v7x)
        l_sc[h] = corr * l_sc[h] + jnp.sum(p.astype(jnp.float32),
                                           axis=-1, keepdims=True)
        xh = xp[:, h * OUT_F:(h + 1) * OUT_F]            # [TS, 256] bf16
        acc_sc[h] = corr * acc_sc[h] + jnp.dot(p.astype(jnp.bfloat16), xh,
                                               preferred_element_type=jnp.float32)
        m_sc[h] = m_new

    @pl.when(j == pl.num_programs(1) - 1)
    def _():
        heads = [acc_sc[h] * pl.reciprocal(l_sc[h], approx=True)
                 for h in range(HEADS)]
        h_cat = jnp.concatenate(heads, axis=-1) + bg_ref[...]                # [T, 512]
        h_cat = _lrelu(h_cat, ACT_SLOPE)
        # TODO(synk): Dropout(p=0.3) is treated as eval-mode identity (no RNG mask).
        y = jnp.dot(h_cat.astype(jnp.bfloat16), wa_ref[...],
                    preferred_element_type=jnp.float32) + ba_ref[...]        # [T, 256]
        y = _lrelu(y, ACT_SLOPE)
        y = jnp.dot(y.astype(jnp.bfloat16), w1_ref[...],
                    preferred_element_type=jnp.float32) + b1_ref[...]        # [T, 128] (64 used)
        y = _lrelu(y, ACT_SLOPE)
        z = jnp.dot(y.astype(jnp.bfloat16), w2_ref[...],
                    preferred_element_type=jnp.float32) + b2_ref[...]        # [T, 128] (3 used)

        # cdist factors (kept f32 deliberately to limit cancellation error):
        # zA = [z, ||z||^2, 1, 0...], zB = [-2z, 1, ||z||^2, 0...]
        sq = jnp.sum(z * z, axis=-1, keepdims=True)                          # [T, 1]
        lane = jax.lax.broadcasted_iota(jnp.int32, (1, LANE), 1)
        sq_col = lane == OUT_D
        one_col = lane == OUT_D + 1
        za_ref[...] = z + jnp.where(sq_col, sq, 0.0) + jnp.where(one_col, 1.0, 0.0)
        zb_ref[...] = -2.0 * z + jnp.where(sq_col, 1.0, 0.0) + jnp.where(one_col, sq, 0.0)


# ---------------------------------------------------------------------------
# Stage 3: pairwise Euclidean distance (lane-dense MXU contraction, 2-D grid)
# ---------------------------------------------------------------------------
def cdist_kernel(za_ref, zb_ref, out_ref):
    d2 = jax.lax.dot_general(za_ref[...], zb_ref[...],
                             dimension_numbers=(((1,), (1,)), ((), ())),
                             preferred_element_type=jnp.float32)             # [T, TC]
    out_ref[...] = jnp.sqrt(jnp.maximum(d2, 0.0))


# ---------------------------------------------------------------------------
# Wrapper
# ---------------------------------------------------------------------------
def gatnet_forward(x, edge_index, params):
    """x: [N, 512] float32; edge_index: [2, E] int32 (row 0 = src, row 1 = dst)."""
    N = x.shape[0]
    Np = ((N + PAD - 1) // PAD) * PAD              # pad node count to tile lcm

    # int8 adjacency (row = dst, col = src); the -1e30 select happens in-kernel.
    # TODO(synk): duplicate edges collapse to one entry; PyG's edge-list softmax
    # would count them separately on multigraphs.
    src, dst = edge_index[0], edge_index[1]
    adj = jnp.zeros((Np, Np), jnp.int8).at[dst, src].set(1)
    diag = jnp.arange(Np)
    adj = adj.at[diag, diag].set(1)                # add_self_loops=True

    x_p = x if Np == N else jnp.zeros((Np, IN_F), x.dtype).at[:N].set(x)

    # Weight prep: bf16 MXU operands, block-diagonal attention matrix, lane-padded tail.
    w_gat = params["w_gat"].astype(jnp.bfloat16)                   # [512, 512]
    a_att = jnp.zeros((GAT_OUT, LANE), jnp.float32)
    for h in range(HEADS):
        a_att = a_att.at[h * OUT_F:(h + 1) * OUT_F, h].set(params["att_src"][h])
        a_att = a_att.at[h * OUT_F:(h + 1) * OUT_F, HEADS + h].set(params["att_dst"][h])
    b_gat = params["b_gat"].reshape(1, GAT_OUT)
    wa = params["wa"].astype(jnp.bfloat16)                         # [512, 256]
    ba = params["ba"].reshape(1, HID_A)
    w1p = jnp.zeros((HID_A, LANE), jnp.float32).at[:, :HID_1].set(params["w1"]).astype(jnp.bfloat16)
    b1p = jnp.zeros((1, LANE), jnp.float32).at[:, :HID_1].set(params["b1"][None, :])
    w2p = jnp.zeros((LANE, LANE), jnp.float32).at[:HID_1, :OUT_D].set(params["w2"]).astype(jnp.bfloat16)
    b2p = jnp.zeros((1, LANE), jnp.float32).at[:, :OUT_D].set(params["b2"][None, :])

    att_dtype = _att_dtype()
    once = pl.Buffered(1)   # single-buffer grid-invariant weight blocks

    # ---- stage 1 ----
    grid1 = (Np // TILE_D,)
    vm1 = (_nbytes(w_gat, a_att)
           + 2 * TILE_D * (IN_F * 4 + GAT_OUT * 2 + LANE * 4) + 2 * 8 * TILE_D * 4)
    xp, sc, asrct = pl.pallas_call(
        gat_prep_kernel,
        out_shape=(jax.ShapeDtypeStruct((Np, GAT_OUT), jnp.bfloat16),
                   jax.ShapeDtypeStruct((Np, LANE), jnp.float32),
                   jax.ShapeDtypeStruct((8, Np), jnp.float32)),
        grid=grid1,
        in_specs=[pl.BlockSpec((TILE_D, IN_F), lambda i: (i, 0)),
                  pl.BlockSpec((IN_F, GAT_OUT), lambda i: (0, 0), pipeline_mode=once),
                  pl.BlockSpec((GAT_OUT, LANE), lambda i: (0, 0), pipeline_mode=once)],
        out_specs=(pl.BlockSpec((TILE_D, GAT_OUT), lambda i: (i, 0)),
                   pl.BlockSpec((TILE_D, LANE), lambda i: (i, 0)),
                   pl.BlockSpec((8, TILE_D), lambda i: (0, i))),
        compiler_params=_mk_params(("parallel",), vm1),
    )(x_p, w_gat, a_att)

    # ---- stage 2 ----
    grid2 = (Np // TILE_D, Np // TILE_S)
    kernel2 = functools.partial(gat_attn_mlp_kernel, att_dtype=att_dtype)
    vm2 = (_nbytes(b_gat, wa, ba, w1p, b1p, w2p, b2p)                       # Buffered(1)
           + 2 * (TILE_D * TILE_S * 1 + TILE_S * GAT_OUT * 2               # adj + xp
                  + TILE_D * LANE * 4 + 8 * TILE_S * 4                     # sc + asrct
                  + 2 * TILE_D * LANE * 4)                                  # za/zb out blocks
           + HEADS * TILE_D * (2 + OUT_F) * 4                               # scratch m/l/acc
           + 4 * TILE_D * TILE_S * 4)                                       # live temporaries
    za, zb = pl.pallas_call(
        kernel2,
        out_shape=(jax.ShapeDtypeStruct((Np, LANE), jnp.float32),
                   jax.ShapeDtypeStruct((Np, LANE), jnp.float32)),
        grid=grid2,
        in_specs=[pl.BlockSpec((TILE_D, TILE_S), lambda i, j: (i, j)),       # adjacency tile
                  pl.BlockSpec((TILE_S, GAT_OUT), lambda i, j: (j, 0)),      # xp (src tile)
                  pl.BlockSpec((TILE_D, LANE), lambda i, j: (i, 0)),         # dst scores
                  pl.BlockSpec((8, TILE_S), lambda i, j: (0, j)),            # a_src^T (src tile)
                  pl.BlockSpec((1, GAT_OUT), lambda i, j: (0, 0), pipeline_mode=once),
                  pl.BlockSpec((GAT_OUT, HID_A), lambda i, j: (0, 0), pipeline_mode=once),
                  pl.BlockSpec((1, HID_A), lambda i, j: (0, 0), pipeline_mode=once),
                  pl.BlockSpec((HID_A, LANE), lambda i, j: (0, 0), pipeline_mode=once),
                  pl.BlockSpec((1, LANE), lambda i, j: (0, 0), pipeline_mode=once),
                  pl.BlockSpec((LANE, LANE), lambda i, j: (0, 0), pipeline_mode=once),
                  pl.BlockSpec((1, LANE), lambda i, j: (0, 0), pipeline_mode=once)],
        out_specs=(pl.BlockSpec((TILE_D, LANE), lambda i, j: (i, 0)),
                   pl.BlockSpec((TILE_D, LANE), lambda i, j: (i, 0))),
        scratch_shapes=[pltpu.VMEM((HEADS, TILE_D, 1), jnp.float32),         # running max
                        pltpu.VMEM((HEADS, TILE_D, 1), jnp.float32),         # denominator
                        pltpu.VMEM((HEADS, TILE_D, OUT_F), jnp.float32)],    # weighted sum
        compiler_params=_mk_params(("parallel", "arbitrary"), vm2),
    )(adj, xp, sc, asrct, b_gat, wa, ba, w1p, b1p, w2p, b2p)

    # ---- stage 3 ----
    grid3 = (Np // TILE_D, Np // TILE_C)
    vm3 = 2 * (TILE_D * LANE * 4 + TILE_C * LANE * 4 + TILE_D * TILE_C * 4)
    out = pl.pallas_call(
        cdist_kernel,
        out_shape=jax.ShapeDtypeStruct((Np, Np), jnp.float32),
        grid=grid3,
        in_specs=[pl.BlockSpec((TILE_D, LANE), lambda i, j: (i, 0)),
                  pl.BlockSpec((TILE_C, LANE), lambda i, j: (j, 0))],
        out_specs=pl.BlockSpec((TILE_D, TILE_C), lambda i, j: (i, j)),
        compiler_params=_mk_params(("parallel", "parallel"), vm3),
    )(za, zb)

    return out if Np == N else out[:N, :N]


def init_params(key):
    ks = jax.random.split(key, 10)

    def g(k, shape, scale=0.05):
        return jax.random.normal(k, shape, jnp.float32) * scale

    return {
        # GATConv(512, 256, heads=2, concat=True)
        "w_gat":   g(ks[0], (IN_F, GAT_OUT)),
        "att_src": g(ks[1], (HEADS, OUT_F)),
        "att_dst": g(ks[2], (HEADS, OUT_F)),
        "b_gat":   g(ks[3], (GAT_OUT,)),
        # densea: Linear(512, 256)
        "wa": g(ks[4], (GAT_OUT, HID_A)),
        "ba": g(ks[5], (HID_A,)),
        # dense1: Linear(256, 64)
        "w1": g(ks[6], (HID_A, HID_1)),
        "b1": g(ks[7], (HID_1,)),
        # dense2: Linear(64, 3)
        "w2": g(ks[8], (HID_1, OUT_D)),
        "b2": g(ks[9], (OUT_D,)),
    }


if __name__ == "__main__":
    key = jax.random.PRNGKey(0)
    kp, kx, ke = jax.random.split(key, 3)

    N, E = 256, 1024
    params = init_params(kp)
    x = jax.random.normal(kx, (N, IN_F), jnp.float32)
    edge_index = jax.random.randint(ke, (2, E), 0, N, dtype=jnp.int32)

    out = jax.jit(gatnet_forward)(x, edge_index, params)
    jax.block_until_ready(out)
    assert out.shape == (N, N) and out.dtype == jnp.float32
    assert bool(jnp.all(jnp.isfinite(out)))
    print("KERNEL_OK")
</pallas_src>

<mosaic_0001>
module attributes {stable_mosaic.version = 11 : i64} {
  func.func @gat_prep_kernel(%arg0: i32, %arg1: memref<128x512xf32, #tpu.memory_space<vmem>>, %arg2: memref<512x512xbf16, #tpu.memory_space<vmem>>, %arg3: memref<512x128xf32, #tpu.memory_space<vmem>>, %arg4: memref<128x512xbf16, #tpu.memory_space<vmem>>, %arg5: memref<128x128xf32, #tpu.memory_space<vmem>>, %arg6: memref<8x128xf32, #tpu.memory_space<vmem>>) attributes {dimension_semantics = [#tpu.dimension_semantics<parallel>], iteration_bounds = array<i64: 2>, scalar_prefetch = 0 : i64, scratch_operands = 0 : i64, tpu.core_type = #tpu.core_type<tc>, window_params = [{transform_indices = @transform_0, window_bounds = array<i64: 128, 512>}, {pipeline_mode = #tpu.pipeline_mode<synchronous>, transform_indices = @transform_1, window_bounds = array<i64: 512, 512>}, {pipeline_mode = #tpu.pipeline_mode<synchronous>, transform_indices = @transform_2, window_bounds = array<i64: 512, 128>}, {transform_indices = @transform_3, window_bounds = array<i64: 128, 512>}, {transform_indices = @transform_4, window_bounds = array<i64: 128, 128>}, {transform_indices = @transform_5, window_bounds = array<i64: 8, 128>}]} {
    %c0 = arith.constant 0 : index
    %c0_0 = arith.constant 0 : index
    %0 = vector.load %arg1[%c0, %c0_0] : memref<128x512xf32, #tpu.memory_space<vmem>>, vector<128x512xf32>
    %1 = arith.truncf %0 : vector<128x512xf32> to vector<128x512xbf16>
    %c0_1 = arith.constant 0 : index
    %c0_2 = arith.constant 0 : index
    %2 = vector.load %arg2[%c0_1, %c0_2] : memref<512x512xbf16, #tpu.memory_space<vmem>>, vector<512x512xbf16>
    %cst = arith.constant dense<0.000000e+00> : vector<128x512xf32>
    %3 = tpu.matmul %1, %2, %cst {dimension_numbers = #tpu.dot_dimension_numbers<[1], [0], [0], [1], [0, 0, 1, 1], [], []>} : vector<128x512xbf16>, vector<512x512xbf16>, vector<128x512xf32> -> vector<128x512xf32>
    %4 = arith.truncf %3 : vector<128x512xf32> to vector<128x512xbf16>
    %c0_3 = arith.constant 0 : index
    %c0_4 = arith.constant 0 : index
    %5 = vector.load %arg4[%c0_3, %c0_4] : memref<128x512xbf16, #tpu.memory_space<vmem>>, vector<128x512xbf16>
    tpu.vector_store %arg4[%c0_3, %c0_4], %4 {strides = array<i32>} : memref<128x512xbf16, #tpu.memory_space<vmem>>, vector<128x512xbf16>,
    %c0_5 = arith.constant 0 : index
    %c0_6 = arith.constant 0 : index
    %6 = vector.load %arg3[%c0_5, %c0_6] : memref<512x128xf32, #tpu.memory_space<vmem>>, vector<512x128xf32>
    %cst_7 = arith.constant dense<0.000000e+00> : vector<128x128xf32>
    %7 = tpu.matmul %3, %6, %cst_7 {dimension_numbers = #tpu.dot_dimension_numbers<[1], [0], [0], [1], [0, 0, 1, 1], [], []>} : vector<128x512xf32>, vector<512x128xf32>, vector<128x128xf32> -> vector<128x128xf32>
    %c0_8 = arith.constant 0 : index
    %c0_9 = arith.constant 0 : index
    %8 = vector.load %arg5[%c0_8, %c0_9] : memref<128x128xf32, #tpu.memory_space<vmem>>, vector<128x128xf32>
    tpu.vector_store %arg5[%c0_8, %c0_9], %7 {strides = array<i32>} : memref<128x128xf32, #tpu.memory_space<vmem>>, vector<128x128xf32>,
    %9 = tpu.transpose %7, [1, 0] : vector<128x128xf32> -> vector<128x128xf32>
    %10 = vector.extract_strided_slice %9 {offsets = [0, 0], sizes = [8, 128], strides = [1, 1]} : vector<128x128xf32> to vector<8x128xf32>
    %c0_10 = arith.constant 0 : index
    %c0_11 = arith.constant 0 : index
    %11 = vector.load %arg6[%c0_10, %c0_11] : memref<8x128xf32, #tpu.memory_space<vmem>>, vector<8x128xf32>
    tpu.vector_store %arg6[%c0_10, %c0_11], %10 {strides = array<i32>} : memref<8x128xf32, #tpu.memory_space<vmem>>, vector<8x128xf32>,
    return
  }
  func.func @transform_0(%arg0: i32) -> (i32, i32) {
    %c0_i32 = arith.constant 0 : i32
    %c0_i32_0 = arith.constant 0 : i32
    return %arg0, %c0_i32 : i32, i32
  }
  func.func @transform_1(%arg0: i32) -> (i32, i32) {
    %c0_i32 = arith.constant 0 : i32
    %c0_i32_0 = arith.constant 0 : i32
    %c0_i32_1 = arith.constant 0 : i32
    return %c0_i32, %c0_i32_0 : i32, i32
  }
  func.func @transform_2(%arg0: i32) -> (i32, i32) {
    %c0_i32 = arith.constant 0 : i32
    %c0_i32_0 = arith.constant 0 : i32
    %c0_i32_1 = arith.constant 0 : i32
    return %c0_i32, %c0_i32_0 : i32, i32
  }
  func.func @transform_3(%arg0: i32) -> (i32, i32) {
    %c0_i32 = arith.constant 0 : i32
    %c0_i32_0 = arith.constant 0 : i32
    return %arg0, %c0_i32 : i32, i32
  }
  func.func @transform_4(%arg0: i32) -> (i32, i32) {
    %c0_i32 = arith.constant 0 : i32
    %c0_i32_0 = arith.constant 0 : i32
    return %arg0, %c0_i32 : i32, i32
  }
  func.func @transform_5(%arg0: i32) -> (i32, i32) {
    %c0_i32 = arith.constant 0 : i32
    %c0_i32_0 = arith.constant 0 : i32
    return %c0_i32, %arg0 : i32, i32
  }
}

module attributes {stable_mosaic.version = 11 : i64} {
  func.func @gat_attn_mlp_kernel(%arg0: i32, %arg1: i32, %arg2: memref<128x256xi8, #tpu.memory_space<vmem>>, %arg3: memref<256x512xbf16, #tpu.memory_space<vmem>>, %arg4: memref<128x128xf32, #tpu.memory_space<vmem>>, %arg5: memref<8x256xf32, #tpu.memory_space<vmem>>, %arg6: memref<1x512xf32, #tpu.memory_space<vmem>>, %arg7: memref<512x256xbf16, #tpu.memory_space<vmem>>, %arg8: memref<1x256xf32, #tpu.memory_space<vmem>>, %arg9: memref<256x128xbf16, #tpu.memory_space<vmem>>, %arg10: memref<1x128xf32, #tpu.memory_space<vmem>>, %arg11: memref<128x128xbf16, #tpu.memory_space<vmem>>, %arg12: memref<1x128xf32, #tpu.memory_space<vmem>>, %arg13: memref<128x128xf32, #tpu.memory_space<vmem>>, %arg14: memref<128x128xf32, #tpu.memory_space<vmem>>, %arg15: memref<2x128x1xf32, #tpu.memory_space<vmem>>, %arg16: memref<2x128x1xf32, #tpu.memory_space<vmem>>, %arg17: memref<2x128x256xf32, #tpu.memory_space<vmem>>) attributes {dimension_semantics = [#tpu.dimension_semantics<parallel>, #tpu.dimension_semantics<arbitrary>], iteration_bounds = array<i64: 2, 1>, scalar_prefetch = 0 : i64, scratch_operands = 3 : i64, tpu.core_type = #tpu.core_type<tc>, window_params = [{transform_indices = @transform_0, window_bounds = array<i64: 128, 256>}, {transform_indices = @transform_1, window_bounds = array<i64: 256, 512>}, {transform_indices = @transform_2, window_bounds = array<i64: 128, 128>}, {transform_indices = @transform_3, window_bounds = array<i64: 8, 256>}, {pipeline_mode = #tpu.pipeline_mode<synchronous>, transform_indices = @transform_4, window_bounds = array<i64: 1, 512>}, {pipeline_mode = #tpu.pipeline_mode<synchronous>, transform_indices = @transform_5, window_bounds = array<i64: 512, 256>}, {pipeline_mode = #tpu.pipeline_mode<synchronous>, transform_indices = @transform_6, window_bounds = array<i64: 1, 256>}, {pipeline_mode = #tpu.pipeline_mode<synchronous>, transform_indices = @transform_7, window_bounds = array<i64: 256, 128>}, {pipeline_mode = #tpu.pipeline_mode<synchronous>, transform_indices = @transform_8, window_bounds = array<i64: 1, 128>}, {pipeline_mode = #tpu.pipeline_mode<synchronous>, transform_indices = @transform_9, window_bounds = array<i64: 128, 128>}, {pipeline_mode = #tpu.pipeline_mode<synchronous>, transform_indices = @transform_10, window_bounds = array<i64: 1, 128>}, {transform_indices = @transform_11, window_bounds = array<i64: 128, 128>}, {transform_indices = @transform_12, window_bounds = array<i64: 128, 128>}]} {
    %c0_i32 = arith.constant 0 : i32
    %0 = arith.cmpi eq, %arg1, %c0_i32 : i32
    %1 = arith.extui %0 : i1 to i32
    %c0_i32_0 = arith.constant 0 : i32
    %2 = arith.cmpi ne, %1, %c0_i32_0 : i32
    scf.if %2 {
      %cst_56 = arith.constant 0xFF800000 : f32
      %108 = vector.broadcast %cst_56 : f32 to vector<2x128x1xf32>
      %c0_57 = arith.constant 0 : index
      %c0_58 = arith.constant 0 : index
      %c0_59 = arith.constant 0 : index
      %109 = vector.load %arg15[%c0_57, %c0_58, %c0_59] : memref<2x128x1xf32, #tpu.memory_space<vmem>>, vector<2x128x1xf32>
      tpu.vector_store %arg15[%c0_57, %c0_58, %c0_59], %108 {strides = array<i32>} : memref<2x128x1xf32, #tpu.memory_space<vmem>>, vector<2x128x1xf32>,
      %cst_60 = arith.constant 0.000000e+00 : f32
      %110 = vector.broadcast %cst_60 : f32 to vector<2x128x1xf32>
      %c0_61 = arith.constant 0 : index
      %c0_62 = arith.constant 0 : index
      %c0_63 = arith.constant 0 : index
      %111 = vector.load %arg16[%c0_61, %c0_62, %c0_63] : memref<2x128x1xf32, #tpu.memory_space<vmem>>, vector<2x128x1xf32>
      tpu.vector_store %arg16[%c0_61, %c0_62, %c0_63], %110 {strides = array<i32>} : memref<2x128x1xf32, #tpu.memory_space<vmem>>, vector<2x128x1xf32>,
      %cst_64 = arith.constant 0.000000e+00 : f32
      %112 = vector.broadcast %cst_64 : f32 to vector<2x128x256xf32>
      %c0_65 = arith.constant 0 : index
      %c0_66 = arith.constant 0 : index
      %c0_67 = arith.constant 0 : index
      %113 = vector.load %arg17[%c0_65, %c0_66, %c0_67] : memref<2x128x256xf32, #tpu.memory_space<vmem>>, vector<2x128x256xf32>
      tpu.vector_store %arg17[%c0_65, %c0_66, %c0_67], %112 {strides = array<i32>} : memref<2x128x256xf32, #tpu.memory_space<vmem>>, vector<2x128x256xf32>,
    } else {
    }
    %c0 = arith.constant 0 : index
    %c0_1 = arith.constant 0 : index
    %3 = vector.load %arg2[%c0, %c0_1] : memref<128x256xi8, #tpu.memory_space<vmem>>, vector<128x256xi8>
    %c0_i8 = arith.constant 0 : i8
    %4 = vector.broadcast %c0_i8 : i8 to vector<128x256xi8>
    %5 = arith.cmpi ne, %3, %4 : vector<128x256xi8>
    %c0_2 = arith.constant 0 : index
    %c0_3 = arith.constant 0 : index
    %6 = vector.load %arg3[%c0_2, %c0_3] : memref<256x512xbf16, #tpu.memory_space<vmem>>, vector<256x512xbf16>
    %c0_4 = arith.constant 0 : index
    %c0_5 = arith.constant 0 : index
    %7 = vector.load %arg4[%c0_4, %c0_5] : memref<128x128xf32, #tpu.memory_space<vmem>>, vector<128x128xf32>
    %8 = arith.truncf %7 : vector<128x128xf32> to vector<128x128xbf16>
    %c0_6 = arith.constant 0 : index
    %c0_7 = arith.constant 0 : index
    %9 = vector.load %arg5[%c0_6, %c0_7] : memref<8x256xf32, #tpu.memory_space<vmem>>, vector<8x256xf32>
    %10 = arith.truncf %9 : vector<8x256xf32> to vector<8x256xbf16>
    %11 = vector.extract_strided_slice %8 {offsets = [0, 2], sizes = [128, 1], strides = [1, 1]} : vector<128x128xbf16> to vector<128x1xbf16>
    %12 = vector.extract_strided_slice %10 {offsets = [0, 0], sizes = [1, 256], strides = [1, 1]} : vector<8x256xbf16> to vector<1x256xbf16>
    %13 = vector.broadcast %11 : vector<128x1xbf16> to vector<128x256xbf16>
    %14 = vector.broadcast %12 : vector<1x256xbf16> to vector<128x256xbf16>
    %15 = arith.addf %13, %14 : vector<128x256xbf16>
    %cst = arith.constant 0.000000e+00 : bf16
    %16 = vector.broadcast %cst : bf16 to vector<128x256xbf16>
    %17 = arith.cmpf ogt, %15, %16 : vector<128x256xbf16>
    %cst_8 = arith.constant 2.001950e-01 : bf16
    %18 = vector.broadcast %cst_8 : bf16 to vector<128x256xbf16>
    %19 = arith.mulf %18, %15 : vector<128x256xbf16>
    %20 = arith.select %17, %15, %19 : vector<128x256xi1>, vector<128x256xbf16>
    %cst_9 = arith.constant -1.000260e+30 : bf16
    %21 = vector.broadcast %cst_9 : bf16 to vector<128x256xbf16>
    %22 = arith.select %5, %20, %21 : vector<128x256xi1>, vector<128x256xbf16>
    %c0_10 = arith.constant 0 : index
    %c0_11 = arith.constant 0 : index
    %c0_12 = arith.constant 0 : index
    %23 = vector.load %arg15[%c0_10, %c0_11, %c0_12] : memref<2x128x1xf32, #tpu.memory_space<vmem>>, vector<1x128x1xf32>
    %24 = vector.shape_cast %23 : vector<1x128x1xf32> to vector<128x1xf32>
    %cst_13 = arith.constant dense<0xFF80> : vector<128xbf16>
    %25 = vector.multi_reduction <maximumf>, %22, %cst_13 [1] : vector<128x256xbf16> to vector<128xbf16>
    %26 = vector.shape_cast %25 : vector<128xbf16> to vector<128x1xbf16>
    %27 = arith.extf %26 : vector<128x1xbf16> to vector<128x1xf32>
    %28 = arith.maximumf %24, %27 : vector<128x1xf32>
    %29 = arith.subf %24, %28 : vector<128x1xf32>
    %30 = math.exp %29 : vector<128x1xf32>
    %31 = arith.truncf %28 : vector<128x1xf32> to vector<128x1xbf16>
    %32 = vector.broadcast %31 : vector<128x1xbf16> to vector<128x256xbf16>
    %33 = arith.subf %22, %32 : vector<128x256xbf16>
    %34 = math.exp %33 : vector<128x256xbf16>
    %c0_14 = arith.constant 0 : index
    %c0_15 = arith.constant 0 : index
    %c0_16 = arith.constant 0 : index
    %35 = vector.load %arg16[%c0_14, %c0_15, %c0_16] : memref<2x128x1xf32, #tpu.memory_space<vmem>>, vector<1x128x1xf32>
    %36 = vector.shape_cast %35 : vector<1x128x1xf32> to vector<128x1xf32>
    %37 = arith.mulf %30, %36 : vector<128x1xf32>
    %38 = arith.extf %34 : vector<128x256xbf16> to vector<128x256xf32>
    %cst_17 = arith.constant dense<0.000000e+00> : vector<128xf32>
    %39 = vector.multi_reduction <add>, %38, %cst_17 [1] : vector<128x256xf32> to vector<128xf32>
    %40 = vector.shape_cast %39 : vector<128xf32> to vector<128x1xf32>
    %41 = arith.addf %37, %40 : vector<128x1xf32>
    %c0_18 = arith.constant 0 : index
    %c0_19 = arith.constant 0 : index
    %c0_20 = arith.constant 0 : index
    %42 = vector.load %arg16[%c0_18, %c0_19, %c0_20] : memref<2x128x1xf32, #tpu.memory_space<vmem>>, vector<1x128x1xf32>
    %43 = vector.shape_cast %42 : vector<1x128x1xf32> to vector<128x1xf32>
    %44 = vector.shape_cast %41 : vector<128x1xf32> to vector<1x128x1xf32>
    tpu.vector_store %arg16[%c0_18, %c0_19, %c0_20], %44 {strides = array<i32>} : memref<2x128x1xf32, #tpu.memory_space<vmem>>, vector<1x128x1xf32>,
    %45 = vector.extract_strided_slice %6 {offsets = [0, 0], sizes = [256, 256], strides = [1, 1]} : vector<256x512xbf16> to vector<256x256xbf16>
    %c0_21 = arith.constant 0 : index
    %c0_22 = arith.constant 0 : index
    %c0_23 = arith.constant 0 : index
    %46 = vector.load %arg17[%c0_21, %c0_22, %c0_23] : memref<2x128x256xf32, #tpu.memory_space<vmem>>, vector<1x128x256xf32>
    %47 = vector.shape_cast %46 : vector<1x128x256xf32> to vector<128x256xf32>
    %48 = vector.broadcast %30 : vector<128x1xf32> to vector<128x256xf32>
    %49 = arith.mulf %48, %47 : vector<128x256xf32>
    %cst_24 = arith.constant dense<0.000000e+00> : vector<128x256xf32>
    %50 = tpu.matmul %34, %45, %cst_24 {dimension_numbers = #tpu.dot_dimension_numbers<[1], [0], [0], [1], [0, 0, 1, 1], [], []>} : vector<128x256xbf16>, vector<256x256xbf16>, vector<128x256xf32> -> vector<128x256xf32>
    %51 = arith.addf %49, %50 : vector<128x256xf32>
    %c0_25 = arith.constant 0 : index
    %c0_26 = arith.constant 0 : index
    %c0_27 = arith.constant 0 : index
    %52 = vector.load %arg17[%c0_25, %c0_26, %c0_27] : memref<2x128x256xf32, #tpu.memory_space<vmem>>, vector<1x128x256xf32>
    %53 = vector.shape_cast %52 : vector<1x128x256xf32> to vector<128x256xf32>
    %54 = vector.shape_cast %51 : vector<128x256xf32> to vector<1x128x256xf32>
    tpu.vector_store %arg17[%c0_25, %c0_26, %c0_27], %54 {strides = array<i32>} : memref<2x128x256xf32, #tpu.memory_space<vmem>>, vector<1x128x256xf32>,
    %c0_28 = arith.constant 0 : index
    %c0_29 = arith.constant 0 : index
    %c0_30 = arith.constant 0 : index
    %55 = vector.load %arg15[%c0_28, %c0_29, %c0_30] : memref<2x128x1xf32, #tpu.memory_space<vmem>>, vector<1x128x1xf32>
    %56 = vector.shape_cast %55 : vector<1x128x1xf32> to vector<128x1xf32>
    %57 = vector.shape_cast %28 : vector<128x1xf32> to vector<1x128x1xf32>
    tpu.vector_store %arg15[%c0_28, %c0_29, %c0_30], %57 {strides = array<i32>} : memref<2x128x1xf32, #tpu.memory_space<vmem>>, vector<1x128x1xf32>,
    %58 = vector.extract_strided_slice %8 {offsets = [0, 3], sizes = [128, 1], strides = [1, 1]} : vector<128x128xbf16> to vector<128x1xbf16>
    %59 = vector.extract_strided_slice %10 {offsets = [1, 0], sizes = [1, 256], strides = [1, 1]} : vector<8x256xbf16> to vector<1x256xbf16>
    %60 = vector.broadcast %58 : vector<128x1xbf16> to vector<128x256xbf16>
    %61 = vector.broadcast %59 : vector<1x256xbf16> to vector<128x256xbf16>
    %62 = arith.addf %60, %61 : vector<128x256xbf16>
    %cst_31 = arith.constant 0.000000e+00 : bf16
    %63 = vector.broadcast %cst_31 : bf16 to vector<128x256xbf16>
    %64 = arith.cmpf ogt, %62, %63 : vector<128x256xbf16>
    %cst_32 = arith.constant 2.001950e-01 : bf16
    %65 = vector.broadcast %cst_32 : bf16 to vector<128x256xbf16>
    %66 = arith.mulf %65, %62 : vector<128x256xbf16>
    %67 = arith.select %64, %62, %66 : vector<128x256xi1>, vector<128x256xbf16>
    %cst_33 = arith.constant -1.000260e+30 : bf16
    %68 = vector.broadcast %cst_33 : bf16 to vector<128x256xbf16>
    %69 = arith.select %5, %67, %68 : vector<128x256xi1>, vector<128x256xbf16>
    %c1 = arith.constant 1 : index
    %c0_34 = arith.constant 0 : index
    %c0_35 = arith.constant 0 : index
    %70 = vector.load %arg15[%c1, %c0_34, %c0_35] : memref<2x128x1xf32, #tpu.memory_space<vmem>>, vector<1x128x1xf32>
    %71 = vector.shape_cast %70 : vector<1x128x1xf32> to vector<128x1xf32>
    %cst_36 = arith.constant dense<0xFF80> : vector<128xbf16>
    %72 = vector.multi_reduction <maximumf>, %69, %cst_36 [1] : vector<128x256xbf16> to vector<128xbf16>
    %73 = vector.shape_cast %72 : vector<128xbf16> to vector<128x1xbf16>
    %74 = arith.extf %73 : vector<128x1xbf16> to vector<128x1xf32>
    %75 = arith.maximumf %71, %74 : vector<128x1xf32>
    %76 = arith.subf %71, %75 : vector<128x1xf32>
    %77 = math.exp %76 : vector<128x1xf32>
    %78 = arith.truncf %75 : vector<128x1xf32> to vector<128x1xbf16>
    %79 = vector.broadcast %78 : vector<128x1xbf16> to vector<128x256xbf16>
    %80 = arith.subf %69, %79 : vector<128x256xbf16>
    %81 = math.exp %80 : vector<128x256xbf16>
    %c1_37 = arith.constant 1 : index
    %c0_38 = arith.constant 0 : index
    %c0_39 = arith.constant 0 : index
    %82 = vector.load %arg16[%c1_37, %c0_38, %c0_39] : memref<2x128x1xf32, #tpu.memory_space<vmem>>, vector<1x128x1xf32>
    %83 = vector.shape_cast %82 : vector<1x128x1xf32> to vector<128x1xf32>
    %84 = arith.mulf %77, %83 : vector<128x1xf32>
    %85 = arith.extf %81 : vector<128x256xbf16> to vector<128x256xf32>
    %cst_40 = arith.constant dense<0.000000e+00> : vector<128xf32>
    %86 = vector.multi_reduction <add>, %85, %cst_40 [1] : vector<128x256xf32> to vector<128xf32>
    %87 = vector.shape_cast %86 : vector<128xf32> to vector<128x1xf32>
    %88 = arith.addf %84, %87 : vector<128x1xf32>
    %c1_41 = arith.constant 1 : index
    %c0_42 = arith.constant 0 : index
    %c0_43 = arith.constant 0 : index
    %89 = vector.load %arg16[%c1_41, %c0_42, %c0_43] : memref<2x128x1xf32, #tpu.memory_space<vmem>>, vector<1x128x1xf32>
    %90 = vector.shape_cast %89 : vector<1x128x1xf32> to vector<128x1xf32>
    %91 = vector.shape_cast %88 : vector<128x1xf32> to vector<1x128x1xf32>
    tpu.vector_store %arg16[%c1_41, %c0_42, %c0_43], %91 {strides = array<i32>} : memref<2x128x1xf32, #tpu.memory_space<vmem>>, vector<1x128x1xf32>,
    %92 = vector.extract_strided_slice %6 {offsets = [0, 256], sizes = [256, 256], strides = [1, 1]} : vector<256x512xbf16> to vector<256x256xbf16>
    %c1_44 = arith.constant 1 : index
    %c0_45 = arith.constant 0 : index
    %c0_46 = arith.constant 0 : index
    %93 = vector.load %arg17[%c1_44, %c0_45, %c0_46] : memref<2x128x256xf32, #tpu.memory_space<vmem>>, vector<1x128x256xf32>
    %94 = vector.shape_cast %93 : vector<1x128x256xf32> to vector<128x256xf32>
    %95 = vector.broadcast %77 : vector<128x1xf32> to vector<128x256xf32>
    %96 = arith.mulf %95, %94 : vector<128x256xf32>
    %cst_47 = arith.constant dense<0.000000e+00> : vector<128x256xf32>
    %97 = tpu.matmul %81, %92, %cst_47 {dimension_numbers = #tpu.dot_dimension_numbers<[1], [0], [0], [1], [0, 0, 1, 1], [], []>} : vector<128x256xbf16>, vector<256x256xbf16>, vector<128x256xf32> -> vector<128x256xf32>
    %98 = arith.addf %96, %97 : vector<128x256xf32>
    %c1_48 = arith.constant 1 : index
    %c0_49 = arith.constant 0 : index
    %c0_50 = arith.constant 0 : index
    %99 = vector.load %arg17[%c1_48, %c0_49, %c0_50] : memref<2x128x256xf32, #tpu.memory_space<vmem>>, vector<1x128x256xf32>
    %100 = vector.shape_cast %99 : vector<1x128x256xf32> to vector<128x256xf32>
    %101 = vector.shape_cast %98 : vector<128x256xf32> to vector<1x128x256xf32>
    tpu.vector_store %arg17[%c1_48, %c0_49, %c0_50], %101 {strides = array<i32>} : memref<2x128x256xf32, #tpu.memory_space<vmem>>, vector<1x128x256xf32>,
    %c1_51 = arith.constant 1 : index
    %c0_52 = arith.constant 0 : index
    %c0_53 = arith.constant 0 : index
    %102 = vector.load %arg15[%c1_51, %c0_52, %c0_53] : memref<2x128x1xf32, #tpu.memory_space<vmem>>, vector<1x128x1xf32>
    %103 = vector.shape_cast %102 : vector<1x128x1xf32> to vector<128x1xf32>
    %104 = vector.shape_cast %75 : vector<128x1xf32> to vector<1x128x1xf32>
    tpu.vector_store %arg15[%c1_51, %c0_52, %c0_53], %104 {strides = array<i32>} : memref<2x128x1xf32, #tpu.memory_space<vmem>>, vector<1x128x1xf32>,
    %c0_i32_54 = arith.constant 0 : i32
    %105 = arith.cmpi eq, %arg1, %c0_i32_54 : i32
    %106 = arith.extui %105 : i1 to i32
    %c0_i32_55 = arith.constant 0 : i32
    %107 = arith.cmpi ne, %106, %c0_i32_55 : i32
    scf.if %107 {
      %c0_56 = arith.constant 0 : index
      %c0_57 = arith.constant 0 : index
      %c0_58 = arith.constant 0 : index
      %108 = vector.load %arg17[%c0_56, %c0_57, %c0_58] : memref<2x128x256xf32, #tpu.memory_space<vmem>>, vector<1x128x256xf32>
      %109 = vector.shape_cast %108 : vector<1x128x256xf32> to vector<128x256xf32>
      %c0_59 = arith.constant 0 : index
      %c0_60 = arith.constant 0 : index
      %c0_61 = arith.constant 0 : index
      %110 = vector.load %arg16[%c0_59, %c0_60, %c0_61] : memref<2x128x1xf32, #tpu.memory_space<vmem>>, vector<1x128x1xf32>
      %111 = vector.shape_cast %110 : vector<1x128x1xf32> to vector<128x1xf32>
      %112 = tpu.reciprocal %111 {approx = true} : vector<128x1xf32> -> vector<128x1xf32>
      %113 = vector.broadcast %112 : vector<128x1xf32> to vector<128x256xf32>
      %114 = arith.mulf %109, %113 : vector<128x256xf32>
      %c1_62 = arith.constant 1 : index
      %c0_63 = arith.constant 0 : index
      %c0_64 = arith.constant 0 : index
      %115 = vector.load %arg17[%c1_62, %c0_63, %c0_64] : memref<2x128x256xf32, #tpu.memory_space<vmem>>, vector<1x128x256xf32>
      %116 = vector.shape_cast %115 : vector<1x128x256xf32> to vector<128x256xf32>
      %c1_65 = arith.constant 1 : index
      %c0_66 = arith.constant 0 : index
      %c0_67 = arith.constant 0 : index
      %117 = vector.load %arg16[%c1_65, %c0_66, %c0_67] : memref<2x128x1xf32, #tpu.memory_space<vmem>>, vector<1x128x1xf32>
      %118 = vector.shape_cast %117 : vector<1x128x1xf32> to vector<128x1xf32>
      %119 = tpu.reciprocal %118 {approx = true} : vector<128x1xf32> -> vector<128x1xf32>
      %120 = vector.broadcast %119 : vector<128x1xf32> to vector<128x256xf32>
      %121 = arith.mulf %116, %120 : vector<128x256xf32>
      %122 = tpu.concatenate %114, %121 in 1 : vector<128x256xf32>, vector<128x256xf32> -> vector<128x512xf32>
      %c0_68 = arith.constant 0 : index
      %c0_69 = arith.constant 0 : index
      %123 = vector.load %arg6[%c0_68, %c0_69] : memref<1x512xf32, #tpu.memory_space<vmem>>, vector<1x512xf32>
      %124 = vector.broadcast %123 : vector<1x512xf32> to vector<128x512xf32>
      %125 = arith.addf %122, %124 : vector<128x512xf32>
      %cst_70 = arith.constant 0.000000e+00 : f32
      %126 = vector.broadcast %cst_70 : f32 to vector<128x512xf32>
      %127 = arith.cmpf ogt, %125, %126 : vector<128x512xf32>
      %cst_71 = arith.constant 0.00999999977 : f32
      %128 = vector.broadcast %cst_71 : f32 to vector<128x512xf32>
      %129 = arith.mulf %128, %125 : vector<128x512xf32>
      %130 = arith.select %127, %125, %129 : vector<128x512xi1>, vector<128x512xf32>
      %131 = arith.truncf %130 : vector<128x512xf32> to vector<128x512xbf16>
      %c0_72 = arith.constant 0 : index
      %c0_73 = arith.constant 0 : index
      %132 = vector.load %arg7[%c0_72, %c0_73] : memref<512x256xbf16, #tpu.memory_space<vmem>>, vector<512x256xbf16>
      %cst_74 = arith.constant dense<0.000000e+00> : vector<128x256xf32>
      %133 = tpu.matmul %131, %132, %cst_74 {dimension_numbers = #tpu.dot_dimension_numbers<[1], [0], [0], [1], [0, 0, 1, 1], [], []>} : vector<128x512xbf16>, vector<512x256xbf16>, vector<128x256xf32> -> vector<128x256xf32>
      %c0_75 = arith.constant 0 : index
      %c0_76 = arith.constant 0 : index
      %134 = vector.load %arg8[%c0_75, %c0_76] : memref<1x256xf32, #tpu.memory_space<vmem>>, vector<1x256xf32>
      %135 = vector.broadcast %134 : vector<1x256xf32> to vector<128x256xf32>
      %136 = arith.addf %133, %135 : vector<128x256xf32>
      %cst_77 = arith.constant 0.000000e+00 : f32
      %137 = vector.broadcast %cst_77 : f32 to vector<128x256xf32>
      %138 = arith.cmpf ogt, %136, %137 : vector<128x256xf32>
      %cst_78 = arith.constant 0.00999999977 : f32
      %139 = vector.broadcast %cst_78 : f32 to vector<128x256xf32>
      %140 = arith.mulf %139, %136 : vector<128x256xf32>
      %141 = arith.select %138, %136, %140 : vector<128x256xi1>, vector<128x256xf32>
      %142 = arith.truncf %141 : vector<128x256xf32> to vector<128x256xbf16>
      %c0_79 = arith.constant 0 : index
      %c0_80 = arith.constant 0 : index
      %143 = vector.load %arg9[%c0_79, %c0_80] : memref<256x128xbf16, #tpu.memory_space<vmem>>, vector<256x128xbf16>
      %cst_81 = arith.constant dense<0.000000e+00> : vector<128x128xf32>
      %144 = tpu.matmul %142, %143, %cst_81 {dimension_numbers = #tpu.dot_dimension_numbers<[1], [0], [0], [1], [0, 0, 1, 1], [], []>} : vector<128x256xbf16>, vector<256x128xbf16>, vector<128x128xf32> -> vector<128x128xf32>
      %c0_82 = arith.constant 0 : index
      %c0_83 = arith.constant 0 : index
      %145 = vector.load %arg10[%c0_82, %c0_83] : memref<1x128xf32, #tpu.memory_space<vmem>>, vector<1x128xf32>
      %146 = vector.broadcast %145 : vector<1x128xf32> to vector<128x128xf32>
      %147 = arith.addf %144, %146 : vector<128x128xf32>
      %cst_84 = arith.constant 0.000000e+00 : f32
      %148 = vector.broadcast %cst_84 : f32 to vector<128x128xf32>
      %149 = arith.cmpf ogt, %147, %148 : vector<128x128xf32>
      %cst_85 = arith.constant 0.00999999977 : f32
      %150 = vector.broadcast %cst_85 : f32 to vector<128x128xf32>
      %151 = arith.mulf %150, %147 : vector<128x128xf32>
      %152 = arith.select %149, %147, %151 : vector<128x128xi1>, vector<128x128xf32>
      %153 = arith.truncf %152 : vector<128x128xf32> to vector<128x128xbf16>
      %c0_86 = arith.constant 0 : index
      %c0_87 = arith.constant 0 : index
      %154 = vector.load %arg11[%c0_86, %c0_87] : memref<128x128xbf16, #tpu.memory_space<vmem>>, vector<128x128xbf16>
      %cst_88 = arith.constant dense<0.000000e+00> : vector<128x128xf32>
      %155 = tpu.matmul %153, %154, %cst_88 {dimension_numbers = #tpu.dot_dimension_numbers<[1], [0], [0], [1], [0, 0, 1, 1], [], []>} : vector<128x128xbf16>, vector<128x128xbf16>, vector<128x128xf32> -> vector<128x128xf32>
      %c0_89 = arith.constant 0 : index
      %c0_90 = arith.constant 0 : index
      %156 = vector.load %arg12[%c0_89, %c0_90] : memref<1x128xf32, #tpu.memory_space<vmem>>, vector<1x128xf32>
      %157 = vector.broadcast %156 : vector<1x128xf32> to vector<128x128xf32>
      %158 = arith.addf %155, %157 : vector<128x128xf32>
      %159 = arith.mulf %158, %158 : vector<128x128xf32>
      %cst_91 = arith.constant dense<0.000000e+00> : vector<128xf32>
      %160 = vector.multi_reduction <add>, %159, %cst_91 [1] : vector<128x128xf32> to vector<128xf32>
      %161 = vector.shape_cast %160 : vector<128xf32> to vector<128x1xf32>
      %162 = tpu.iota {dimensions = array<i32: 1>} : vector<1x128xi32>
      %c3_i32 = arith.constant 3 : i32
      %163 = vector.broadcast %c3_i32 : i32 to vector<1x128xi32>
      %164 = arith.cmpi eq, %162, %163 : vector<1x128xi32>
      %c4_i32 = arith.constant 4 : i32
      %165 = vector.broadcast %c4_i32 : i32 to vector<1x128xi32>
      %166 = arith.cmpi eq, %162, %165 : vector<1x128xi32>
      %cst_92 = arith.constant 0.000000e+00 : f32
      %167 = vector.shape_cast %164 : vector<1x128xi1> to vector<1x128xi1>
      %168 = vector.broadcast %167 : vector<1x128xi1> to vector<128x128xi1>
      %169 = vector.shape_cast %161 : vector<128x1xf32> to vector<128x1xf32>
      %170 = vector.broadcast %169 : vector<128x1xf32> to vector<128x128xf32>
      %171 = vector.broadcast %cst_92 : f32 to vector<128x128xf32>
      %172 = arith.select %168, %170, %171 : vector<128x128xi1>, vector<128x128xf32>
      %173 = arith.addf %158, %172 : vector<128x128xf32>
      %cst_93 = arith.constant 1.000000e+00 : f32
      %cst_94 = arith.constant 0.000000e+00 : f32
      %174 = vector.broadcast %cst_93 : f32 to vector<1x128xf32>
      %175 = vector.broadcast %cst_94 : f32 to vector<1x128xf32>
      %176 = arith.select %166, %174, %175 : vector<1x128xi1>, vector<1x128xf32>
      %177 = vector.broadcast %176 : vector<1x128xf32> to vector<128x128xf32>
      %178 = arith.addf %173, %177 : vector<128x128xf32>
      %c0_95 = arith.constant 0 : index
      %c0_96 = arith.constant 0 : index
      %179 = vector.load %arg13[%c0_95, %c0_96] : memref<128x128xf32, #tpu.memory_space<vmem>>, vector<128x128xf32>
      tpu.vector_store %arg13[%c0_95, %c0_96], %178 {strides = array<i32>} : memref<128x128xf32, #tpu.memory_space<vmem>>, vector<128x128xf32>,
      %cst_97 = arith.constant -2.000000e+00 : f32
      %180 = vector.broadcast %cst_97 : f32 to vector<128x128xf32>
      %181 = arith.mulf %180, %158 : vector<128x128xf32>
      %cst_98 = arith.constant 1.000000e+00 : f32
      %cst_99 = arith.constant 0.000000e+00 : f32
      %182 = vector.broadcast %cst_98 : f32 to vector<1x128xf32>
      %183 = vector.broadcast %cst_99 : f32 to vector<1x128xf32>
      %184 = arith.select %164, %182, %183 : vector<1x128xi1>, vector<1x128xf32>
      %185 = vector.broadcast %184 : vector<1x128xf32> to vector<128x128xf32>
      %186 = arith.addf %181, %185 : vector<128x128xf32>
      %cst_100 = arith.constant 0.000000e+00 : f32
      %187 = vector.shape_cast %166 : vector<1x128xi1> to vector<1x128xi1>
      %188 = vector.broadcast %187 : vector<1x128xi1> to vector<128x128xi1>
      %189 = vector.shape_cast %161 : vector<128x1xf32> to vector<128x1xf32>
      %190 = vector.broadcast %189 : vector<128x1xf32> to vector<128x128xf32>
      %191 = vector.broadcast %cst_100 : f32 to vector<128x128xf32>
      %192 = arith.select %188, %190, %191 : vector<128x128xi1>, vector<128x128xf32>
      %193 = arith.addf %186, %192 : vector<128x128xf32>
      %c0_101 = arith.constant 0 : index
      %c0_102 = arith.constant 0 : index
      %194 = vector.load %arg14[%c0_101, %c0_102] : memref<128x128xf32, #tpu.memory_space<vmem>>, vector<128x128xf32>
      tpu.vector_store %arg14[%c0_101, %c0_102], %193 {strides = array<i32>} : memref<128x128xf32, #tpu.memory_space<vmem>>, vector<128x128xf32>,
    } else {
    }
    return
  }
  func.func @transform_0(%arg0: i32, %arg1: i32) -> (i32, i32) {
    %c0_i32 = arith.constant 0 : i32
    return %arg0, %arg1 : i32, i32
  }
  func.func @transform_1(%arg0: i32, %arg1: i32) -> (i32, i32) {
    %c0_i32 = arith.constant 0 : i32
    %c0_i32_0 = arith.constant 0 : i32
    return %arg1, %c0_i32 : i32, i32
  }
  func.func @transform_2(%arg0: i32, %arg1: i32) -> (i32, i32) {
    %c0_i32 = arith.constant 0 : i32
    %c0_i32_0 = arith.constant 0 : i32
    return %arg0, %c0_i32 : i32, i32
  }
  func.func @transform_3(%arg0: i32, %arg1: i32) -> (i32, i32) {
    %c0_i32 = arith.constant 0 : i32
    %c0_i32_0 = arith.constant 0 : i32
    return %c0_i32, %arg1 : i32, i32
  }
  func.func @transform_4(%arg0: i32, %arg1: i32) -> (i32, i32) {
    %c0_i32 = arith.constant 0 : i32
    %c0_i32_0 = arith.constant 0 : i32
    %c0_i32_1 = arith.constant 0 : i32
    return %c0_i32, %c0_i32_0 : i32, i32
  }
  func.func @transform_5(%arg0: i32, %arg1: i32) -> (i32, i32) {
    %c0_i32 = arith.constant 0 : i32
    %c0_i32_0 = arith.constant 0 : i32
    %c0_i32_1 = arith.constant 0 : i32
    return %c0_i32, %c0_i32_0 : i32, i32
  }
  func.func @transform_6(%arg0: i32, %arg1: i32) -> (i32, i32) {
    %c0_i32 = arith.constant 0 : i32
    %c0_i32_0 = arith.constant 0 : i32
    %c0_i32_1 = arith.constant 0 : i32
    return %c0_i32, %c0_i32_0 : i32, i32
  }
  func.func @transform_7(%arg0: i32, %arg1: i32) -> (i32, i32) {
    %c0_i32 = arith.constant 0 : i32
    %c0_i32_0 = arith.constant 0 : i32
    %c0_i32_1 = arith.constant 0 : i32
    return %c0_i32, %c0_i32_0 : i32, i32
  }
  func.func @transform_8(%arg0: i32, %arg1: i32) -> (i32, i32) {
    %c0_i32 = arith.constant 0 : i32
    %c0_i32_0 = arith.constant 0 : i32
    %c0_i32_1 = arith.constant 0 : i32
    return %c0_i32, %c0_i32_0 : i32, i32
  }
  func.func @transform_9(%arg0: i32, %arg1: i32) -> (i32, i32) {
    %c0_i32 = arith.constant 0 : i32
    %c0_i32_0 = arith.constant 0 : i32
    %c0_i32_1 = arith.constant 0 : i32
    return %c0_i32, %c0_i32_0 : i32, i32
  }
  func.func @transform_10(%arg0: i32, %arg1: i32) -> (i32, i32) {
    %c0_i32 = arith.constant 0 : i32
    %c0_i32_0 = arith.constant 0 : i32
    %c0_i32_1 = arith.constant 0 : i32
    return %c0_i32, %c0_i32_0 : i32, i32
  }
  func.func @transform_11(%arg0: i32, %arg1: i32) -> (i32, i32) {
    %c0_i32 = arith.constant 0 : i32
    %c0_i32_0 = arith.constant 0 : i32
    return %arg0, %c0_i32 : i32, i32
  }
  func.func @transform_12(%arg0: i32, %arg1: i32) -> (i32, i32) {
    %c0_i32 = arith.constant 0 : i32
    %c0_i32_0 = arith.constant 0 : i32
    return %arg0, %c0_i32 : i32, i32
  }
}

module attributes {stable_mosaic.version = 11 : i64} {
  func.func @cdist_kernel(%arg0: i32, %arg1: i32, %arg2: memref<128x128xf32, #tpu.memory_space<vmem>>, %arg3: memref<256x128xf32, #tpu.memory_space<vmem>>, %arg4: memref<128x256xf32, #tpu.memory_space<vmem>>) attributes {dimension_semantics = [#tpu.dimension_semantics<parallel>, #tpu.dimension_semantics<parallel>], iteration_bounds = array<i64: 2, 1>, scalar_prefetch = 0 : i64, scratch_operands = 0 : i64, tpu.core_type = #tpu.core_type<tc>, window_params = [{transform_indices = @transform_0, window_bounds = array<i64: 128, 128>}, {transform_indices = @transform_1, window_bounds = array<i64: 256, 128>}, {transform_indices = @transform_2, window_bounds = array<i64: 128, 256>}]} {
    %c0 = arith.constant 0 : index
    %c0_0 = arith.constant 0 : index
    %0 = vector.load %arg2[%c0, %c0_0] : memref<128x128xf32, #tpu.memory_space<vmem>>, vector<128x128xf32>
    %c0_1 = arith.constant 0 : index
    %c0_2 = arith.constant 0 : index
    %1 = vector.load %arg3[%c0_1, %c0_2] : memref<256x128xf32, #tpu.memory_space<vmem>>, vector<256x128xf32>
    %cst = arith.constant dense<0.000000e+00> : vector<128x256xf32>
    %2 = tpu.matmul %0, %1, %cst {dimension_numbers = #tpu.dot_dimension_numbers<[1], [1], [0], [0], [0, 0, 1, 0], [], []>} : vector<128x128xf32>, vector<256x128xf32>, vector<128x256xf32> -> vector<128x256xf32>
    %cst_3 = arith.constant 0.000000e+00 : f32
    %3 = vector.broadcast %cst_3 : f32 to vector<128x256xf32>
    %4 = arith.maximumf %2, %3 : vector<128x256xf32>
    %5 = math.sqrt %4 : vector<128x256xf32>
    %c0_4 = arith.constant 0 : index
    %c0_5 = arith.constant 0 : index
    %6 = vector.load %arg4[%c0_4, %c0_5] : memref<128x256xf32, #tpu.memory_space<vmem>>, vector<128x256xf32>
    tpu.vector_store %arg4[%c0_4, %c0_5], %5 {strides = array<i32>} : memref<128x256xf32, #tpu.memory_space<vmem>>, vector<128x256xf32>,
    return
  }
  func.func @transform_0(%arg0: i32, %arg1: i32) -> (i32, i32) {
    %c0_i32 = arith.constant 0 : i32
    %c0_i32_0 = arith.constant 0 : i32
    return %arg0, %c0_i32 : i32, i32
  }
  func.func @transform_1(%arg0: i32, %arg1: i32) -> (i32, i32) {
    %c0_i32 = arith.constant 0 : i32
    %c0_i32_0 = arith.constant 0 : i32
    return %arg1, %c0_i32 : i32, i32
  }
  func.func @transform_2(%arg0: i32, %arg1: i32) -> (i32, i32) {
    %c0_i32 = arith.constant 0 : i32
    return %arg0, %arg1 : i32, i32
  }
}

</mosaic_0001>

<llo_original>
// kernel: gatnet_forward.3
$region0: #{gatnet_forward.3}
  #allocation0 [shape = 'u32[]', space=smem, size = 0x4, offset = 0x4, fixed_abs, tag = 'smem constant byte address 0x4 - core index']
  #allocation1 [shape = 'u32[144,128]{1,0:T(1,128)}', space=vmem, size = 0x12000, scoped, tag = 'internal scratch']
  %s0 = inlined_call_operand.vmem [shape: f32[256,512], index: 0, kind: input, shape index: {}]
  %s1 = inlined_call_operand.vmem [shape: bf16[512,512], index: 1, kind: input, shape index: {}]
  %s2 = inlined_call_operand.vmem [shape: f32[512,128], index: 2, kind: input, shape index: {}]
  %s3 = inlined_call_operand.vmem [shape: bf16[256,512], index: 3, kind: output, shape index: {0}]
  %s4 = inlined_call_operand.vmem [shape: f32[256,128], index: 4, kind: output, shape index: {1}]
  %s5 = inlined_call_operand.vmem [shape: f32[8,256], index: 5, kind: output, shape index: {2}]
  %6 = xla_tuple %s3, %s4, %s5
  %s7 = sld [smem:[#allocation0]]
  $region61: #{gatnet_forward.3} parent=0
    _
  %s9 = ssub.s32 1, %s7
  %s10 = scalar_select 0, %s9, %s7
  loop: start=0, step=1, limit=4
  $region2: #{gatnet_forward.3} parent=0 // loop_pre_header
    _
  $region3: #{gatnet_forward.3} parent=0 // loop_header
    %s12 = sphi 0, %s16
    %p13 = scmp.ge.s32.totalorder %s12, 4
    %s22 = sphi 0, %s24
    %s25 = sphi 0, %s22
    %s26 = sphi 0, %s25
    %s42 = sphi 0, %s26
    %s46 = sphi 0, %s46
    %s48 = sphi 0, %s46
    %s49 = sphi 0, %s48
    %s63 = sphi 0, %s49
    %s67 = sphi 0, %s67
    %s69 = sphi 0, %s67
    %s70 = sphi 0, %s69
    %s84 = sphi 0, %s70
    %s90 = sphi 0, %s92
    %s93 = sphi 0, %s90
    %s94 = sphi 0, %s93
    %s110 = sphi 0, %s94
    %s116 = sphi 0, %s118
    %s119 = sphi 0, %s116
    %s120 = sphi 0, %s119
    %s136 = sphi 0, %s120
    %s142 = sphi 0, %s144
    %s145 = sphi 0, %s142
    %s146 = sphi 0, %s145
    %s162 = sphi 0, %s146
  $region4: #{gatnet_forward.3} parent=0 // loop_header_branch
    %15 = sbr.rel (%p13) target = $region8
  $region5: #{gatnet_forward.3} parent=0 // loop_body
    %s17 = ssub.s32 %s12, 1
    %s18 = ssub.s32 %s12, 2
    %s19 = sadd.s32 %s12, 1
    %s20 = ssub.s32 %s12, %s19
    %p21 = scmp.eq.s32.totalorder %s20, 0
    %s23 = sadd.s32 %s22, 1
    %s24 = scalar_select %p21, %s22, %s23
    %p27 = pneg %p21
    %p28 = scmp.eq.s32.totalorder %s12, 1
    %p29 = por %p27, %p28
    %p30 = scmp.ne.s32.totalorder %s22, %s25
    %p31 = scmp.eq.s32.totalorder %s12, 0
    %p32 = por %p30, %p31
    %p33 = scmp.ne.s32.totalorder %s22, %s25
    %p34 = scmp.eq.s32.totalorder %s17, 1
    %p35 = por %p33, %p34
    %p36 = scmp.ne.s32.totalorder %s25, %s26
    %p37 = scmp.eq.s32.totalorder %s17, 0
    %p38 = por %p36, %p37
    %p39 = scmp.ne.s32.totalorder %s25, %s26
    %p40 = scmp.eq.s32.totalorder %s18, 1
    %p41 = por %p39, %p40
    %p43 = scmp.ne.s32.totalorder %s26, %s42
    %p44 = scmp.eq.s32.totalorder %s18, 0
    %p45 = por %p43, %p44
    %s47 = sadd.s32 %s46, 1
    %p50 = scmp.eq.s32.totalorder %s12, 1
    %p51 = scmp.ne.s32.totalorder %s46, %s48
    %p52 = scmp.eq.s32.totalorder %s12, 0
    %p53 = por %p51, %p52
    %p54 = scmp.ne.s32.totalorder %s46, %s48
    %p55 = scmp.eq.s32.totalorder %s17, 1
    %p56 = por %p54, %p55
    %p57 = scmp.ne.s32.totalorder %s48, %s49
    %p58 = scmp.eq.s32.totalorder %s17, 0
    %p59 = por %p57, %p58
    %p60 = scmp.ne.s32.totalorder %s48, %s49
    %p61 = scmp.eq.s32.totalorder %s18, 1
    %p62 = por %p60, %p61
    %p64 = scmp.ne.s32.totalorder %s49, %s63
    %p65 = scmp.eq.s32.totalorder %s18, 0
    %p66 = por %p64, %p65
    %s68 = sadd.s32 %s67, 1
    %p71 = scmp.eq.s32.totalorder %s12, 1
    %p72 = scmp.ne.s32.totalorder %s67, %s69
    %p73 = scmp.eq.s32.totalorder %s12, 0
    %p74 = por %p72, %p73
    %p75 = scmp.ne.s32.totalorder %s67, %s69
    %p76 = scmp.eq.s32.totalorder %s17, 1
    %p77 = por %p75, %p76
    %p78 = scmp.ne.s32.totalorder %s69, %s70
    %p79 = scmp.eq.s32.totalorder %s17, 0
    %p80 = por %p78, %p79
    %p81 = scmp.ne.s32.totalorder %s69, %s70
    %p82 = scmp.eq.s32.totalorder %s18, 1
    %p83 = por %p81, %p82
    %p85 = scmp.ne.s32.totalorder %s70, %s84
    %p86 = scmp.eq.s32.totalorder %s18, 0
    %p87 = por %p85, %p86
    %s88 = ssub.s32 %s12, %s19
    %p89 = scmp.eq.s32.totalorder %s88, 0
    %s91 = sadd.s32 %s90, 1
    %s92 = scalar_select %p89, %s90, %s91
    %p95 = pneg %p89
    %p96 = scmp.eq.s32.totalorder %s12, 1
    %p97 = por %p95, %p96
    %p98 = scmp.ne.s32.totalorder %s90, %s93
    %p99 = scmp.eq.s32.totalorder %s12, 0
    %p100 = por %p98, %p99
    %p101 = scmp.ne.s32.totalorder %s90, %s93
    %p102 = scmp.eq.s32.totalorder %s17, 1
    %p103 = por %p101, %p102
    %p104 = scmp.ne.s32.totalorder %s93, %s94
    %p105 = scmp.eq.s32.totalorder %s17, 0
    %p106 = por %p104, %p105
    %p107 = scmp.ne.s32.totalorder %s93, %s94
    %p108 = scmp.eq.s32.totalorder %s18, 1
    %p109 = por %p107, %p108
    %p111 = scmp.ne.s32.totalorder %s94, %s110
    %p112 = scmp.eq.s32.totalorder %s18, 0
    %p113 = por %p111, %p112
    %s114 = ssub.s32 %s12, %s19
    %p115 = scmp.eq.s32.totalorder %s114, 0
    %s117 = sadd.s32 %s116, 1
    %s118 = scalar_select %p115, %s116, %s117
    %p121 = pneg %p115
    %p122 = scmp.eq.s32.totalorder %s12, 1
    %p123 = por %p121, %p122
    %p124 = scmp.ne.s32.totalorder %s116, %s119
    %p125 = scmp.eq.s32.totalorder %s12, 0
    %p126 = por %p124, %p125
    %p127 = scmp.ne.s32.totalorder %s116, %s119
    %p128 = scmp.eq.s32.totalorder %s17, 1
    %p129 = por %p127, %p128
    %p130 = scmp.ne.s32.totalorder %s119, %s120
    %p131 = scmp.eq.s32.totalorder %s17, 0
    %p132 = por %p130, %p131
    %p133 = scmp.ne.s32.totalorder %s119, %s120
    %p134 = scmp.eq.s32.totalorder %s18, 1
    %p135 = por %p133, %p134
    %p137 = scmp.ne.s32.totalorder %s120, %s136
    %p138 = scmp.eq.s32.totalorder %s18, 0
    %p139 = por %p137, %p138
    %s140 = ssub.s32 %s12, %s19
    %p141 = scmp.eq.s32.totalorder %s140, 0
    %s143 = sadd.s32 %s142, 1
    %s144 = scalar_select %p141, %s142, %s143
    %p147 = pneg %p141
    %p148 = scmp.eq.s32.totalorder %s12, 1
    %p149 = por %p147, %p148
    %p150 = scmp.ne.s32.totalorder %s142, %s145
    %p151 = scmp.eq.s32.totalorder %s12, 0
    %p152 = por %p150, %p151
    %p153 = scmp.ne.s32.totalorder %s142, %s145
    %p154 = scmp.eq.s32.totalorder %s17, 1
    %p155 = por %p153, %p154
    %p156 = scmp.ne.s32.totalorder %s145, %s146
    %p157 = scmp.eq.s32.totalorder %s17, 0
    %p158 = por %p156, %p157
    %p159 = scmp.ne.s32.totalorder %s145, %s146
    %p160 = scmp.eq.s32.totalorder %s18, 1
    %p161 = por %p159, %p160
    %p163 = scmp.ne.s32.totalorder %s146, %s162
    %p164 = scmp.eq.s32.totalorder %s18, 0
    %p165 = por %p163, %p164
    %p166 = scmp.le.s32.totalorder 1, %s12
    %p167 = scmp.lt.s32.totalorder %s12, 3
    %p168 = pnand %p166, %p167
    %p169 = pneg %p168
    // Predicated region
    $region9: #{gatnet_forward.3} parent=5 // pred_check
      _
    $region10: #{gatnet_forward.3} parent=5 // pred_check_branch
      %171 = sbr.rel (%p168) target = $region12
    $region11: #{gatnet_forward.3} parent=5 // pred_region
      %s172 = ssub.s32 %s12, 1
      // Predicated region
      $region13: #{gatnet_forward.3} parent=11 // pred_check
        %p173 = pneg %p59
      $region14: #{gatnet_forward.3} parent=11 // pred_check_branch
        %175 = sbr.rel (%p173) target = $region16
      $region15: #{gatnet_forward.3} parent=11 // pred_region
        _
      $region16: #{gatnet_forward.3} parent=11 // pred_fallthru
        _
      // Predicated region
      $region17: #{gatnet_forward.3} parent=11 // pred_check
        %p176 = pneg %p80
      $region18: #{gatnet_forward.3} parent=11 // pred_check_branch
        %178 = sbr.rel (%p176) target = $region20
      $region19: #{gatnet_forward.3} parent=11 // pred_region
        _
      $region20: #{gatnet_forward.3} parent=11 // pred_fallthru
        _
    $region12: #{gatnet_forward.3} parent=5 // pred_fallthru
      _
    %p179 = scmp.lt.s32.totalorder %s12, 2
    // Predicated region
    $region21: #{gatnet_forward.3} parent=5 // pred_check
      %p180 = pneg %p179
    $region22: #{gatnet_forward.3} parent=5 // pred_check_branch
      %182 = sbr.rel (%p180) target = $region24
    $region23: #{gatnet_forward.3} parent=5 // pred_region
      // Predicated region
      $region25: #{gatnet_forward.3} parent=23 // pred_check
        %p183 = pneg %p32
      $region26: #{gatnet_forward.3} parent=23 // pred_check_branch
        %185 = sbr.rel (%p183) target = $region28
      $region27: #{gatnet_forward.3} parent=23 // pred_region
        %s186 = smul.u32 16, %s12
        %p187 = scmp.lt.s32.totalorder %s186, 31
        %s188 = scalar_select %p187, %s186, 31
        %s189 = smul.addr %s188, 4
        %s190 = smul.addr %s189, 8
        %s191 = scalar_lea.vmem %s0, %s190
        %s192 = smul.u32 16, %s12
      $region28: #{gatnet_forward.3} parent=23 // pred_fallthru
        _
    $region24: #{gatnet_forward.3} parent=5 // pred_fallthru
      _
    %p193 = scmp.le.s32.totalorder 1, %s12
    %p194 = scmp.lt.s32.totalorder %s12, 3
    %p195 = pnand %p193, %p194
    %p196 = pneg %p195
    // Predicated region
    $region29: #{gatnet_forward.3} parent=5 // pred_check
      _
    $region30: #{gatnet_forward.3} parent=5 // pred_check_branch
      %198 = sbr.rel (%p195) target = $region32
    $region31: #{gatnet_forward.3} parent=5 // pred_region
      %s199 = ssub.s32 %s12, 1
      %s200 = smul.u32 16, %s17
      %p201 = scmp.lt.s32.totalorder %s200, 31
      %s202 = scalar_select %p201, %s200, 31
      %s203 = smul.addr %s202, 4
      %s204 = smul.addr %s203, 8
      %s205 = scalar_lea.vmem %s0, %s204
      %p206 = pneg %p38
      %p207 = pneg %p35
      %p208 = pneg %p59
      %p209 = pneg %p56
      %p210 = pneg %p80
      %p211 = pneg %p77
      %p212 = pneg %p106
      %p213 = pneg %p103
      %s214 = smul.u32 16, %s17
      %p215 = scmp.lt.s32.totalorder %s214, 31
      %s216 = scalar_select %p215, %s214, 31
      %s217 = smul.addr %s216, 4
      %s218 = smul.addr %s217, 4
      %s219 = scalar_lea.vmem %s3, %s218
      %p220 = pneg %p132
      %p221 = pneg %p129
      %s222 = smul.u32 16, %s17
      %p223 = scmp.lt.s32.totalorder %s222, 31
      %s224 = scalar_select %p223, %s222, 31
      %s225 = smul.addr %s224, 8
      %s226 = scalar_lea.vmem %s4, %s225
      %p227 = pneg %p158
      %p228 = pneg %p155
      %p229 = scmp.lt.s32.totalorder %s17, 1
      %s230 = scalar_select %p229, %s17, 1
      %s231 = smul.addr %s230, 8
      %s232 = scalar_lea.vmem %s5, %s231
      %s233 = smul.u32 16, %s17
      %p234 = scmp.lt.s32.totalorder %s233, 31
      %s235 = scalar_select %p234, %s233, 31
      %s236 = smul.addr %s235, 4
      %s237 = smul.addr %s236, 8
      %s238 = scalar_lea.vmem %s0, %s237
      %s239 = smul.u32 16, %s17
      %s240 = smul.u32 16, %s17
      %p241 = scmp.lt.s32.totalorder %s240, 31
      %s242 = scalar_select %p241, %s240, 31
      %s243 = smul.addr %s242, 4
      %s244 = smul.addr %s243, 4
      %s245 = scalar_lea.vmem %s3, %s244
      %s246 = smul.u32 16, %s17
      %s247 = smul.u32 16, %s17
      %p248 = scmp.lt.s32.totalorder %s247, 31
      %s249 = scalar_select %p248, %s247, 31
      %s250 = smul.addr %s249, 8
      %s251 = scalar_lea.vmem %s4, %s250
      %s252 = smul.u32 16, %s17
      %p253 = scmp.lt.s32.totalorder %s17, 1
      %s254 = scalar_select %p253, %s17, 1
      %s255 = smul.addr %s254, 8
      %s256 = scalar_lea.vmem %s5, %s255
      %v257 = vld [vmem:[%s238] sm:$0xff]
      %v258 = vld [vmem:[%s238 + $0x8] sm:$0xff]
      %v259 = vld [vmem:[%s238 + $0x10] sm:$0xff]
      %v260 = vld [vmem:[%s238 + $0x18] sm:$0xff]
      %v261 = vld [vmem:[%s238 + $0x20] sm:$0xff]
      %v262 = vld [vmem:[%s238 + $0x28] sm:$0xff]
      %v263 = vld [vmem:[%s238 + $0x30] sm:$0xff]
      %v264 = vld [vmem:[%s238 + $0x38] sm:$0xff]
      %v265 = vld [vmem:[%s238 + $0x40] sm:$0xff]
      %v266 = vld [vmem:[%s238 + $0x48] sm:$0xff]
      %v267 = vld [vmem:[%s238 + $0x50] sm:$0xff]
      %v268 = vld [vmem:[%s238 + $0x58] sm:$0xff]
      %v269 = vld [vmem:[%s238 + $0x60] sm:$0xff]
      %v270 = vld [vmem:[%s238 + $0x68] sm:$0xff]
      %v271 = vld [vmem:[%s238 + $0x70] sm:$0xff]
      %v272 = vld [vmem:[%s238 + $0x78] sm:$0xff]
      %v273 = vld [vmem:[%s238 + $0x80] sm:$0xff]
      %v274 = vld [vmem:[%s238 + $0x88] sm:$0xff]
      %v275 = vld [vmem:[%s238 + $0x90] sm:$0xff]
      %v276 = vld [vmem:[%s238 + $0x98] sm:$0xff]
      %v277 = vld [vmem:[%s238 + $0xa0] sm:$0xff]
      %v278 = vld [vmem:[%s238 + $0xa8] sm:$0xff]
      %v279 = vld [vmem:[%s238 + $0xb0] sm:$0xff]
      %v280 = vld [vmem:[%s238 + $0xb8] sm:$0xff]
      %v281 = vld [vmem:[%s238 + $0xc0] sm:$0xff]
      %v282 = vld [vmem:[%s238 + $0xc8] sm:$0xff]
      %v283 = vld [vmem:[%s238 + $0xd0] sm:$0xff]
      %v284 = vld [vmem:[%s238 + $0xd8] sm:$0xff]
      %v285 = vld [vmem:[%s238 + $0xe0] sm:$0xff]
      %v286 = vld [vmem:[%s238 + $0xe8] sm:$0xff]
      %v287 = vld [vmem:[%s238 + $0xf0] sm:$0xff]
      %v288 = vld [vmem:[%s238 + $0xf8] sm:$0xff]
      %v289 = vld [vmem:[%s238 + $0x100] sm:$0xff]
      %v290 = vld [vmem:[%s238 + $0x108] sm:$0xff]
      %v291 = vld [vmem:[%s238 + $0x110] sm:$0xff]
      %v292 = vld [vmem:[%s238 + $0x118] sm:$0xff]
      %v293 = vld [vmem:[%s238 + $0x120] sm:$0xff]
      %v294 = vld [vmem:[%s238 + $0x128] sm:$0xff]
      %v295 = vld [vmem:[%s238 + $0x130] sm:$0xff]
      %v296 = vld [vmem:[%s238 + $0x138] sm:$0xff]
      %v297 = vld [vmem:[%s238 + $0x140] sm:$0xff]
      %v298 = vld [vmem:[%s238 + $0x148] sm:$0xff]
      %v299 = vld [vmem:[%s238 + $0x150] sm:$0xff]
      %v300 = vld [vmem:[%s238 + $0x158] sm:$0xff]
      %v301 = vld [vmem:[%s238 + $0x160] sm:$0xff]
      %v302 = vld [vmem:[%s238 + $0x168] sm:$0xff]
      %v303 = vld [vmem:[%s238 + $0x170] sm:$0xff]
      %v304 = vld [vmem:[%s238 + $0x178] sm:$0xff]
      %v305 = vld [vmem:[%s238 + $0x180] sm:$0xff]
      %v306 = vld [vmem:[%s238 + $0x188] sm:$0xff]
      %v307 = vld [vmem:[%s238 + $0x190] sm:$0xff]
      %v308 = vld [vmem:[%s238 + $0x198] sm:$0xff]
      %v309 = vld [vmem:[%s238 + $0x1a0] sm:$0xff]
      %v310 = vld [vmem:[%s238 + $0x1a8] sm:$0xff]
      %v311 = vld [vmem:[%s238 + $0x1b0] sm:$0xff]
      %v312 = vld [vmem:[%s238 + $0x1b8] sm:$0xff]
      %v313 = vld [vmem:[%s238 + $0x1c0] sm:$0xff]
      %v314 = vld [vmem:[%s238 + $0x1c8] sm:$0xff]
      %v315 = vld [vmem:[%s238 + $0x1d0] sm:$0xff]
      %v316 = vld [vmem:[%s238 + $0x1d8] sm:$0xff]
      %v317 = vld [vmem:[%s238 + $0x1e0] sm:$0xff]
      %v318 = vld [vmem:[%s238 + $0x1e8] sm:$0xff]
      %v319 = vld [vmem:[%s238 + $0x1f0] sm:$0xff]
      %v320 = vld [vmem:[%s238 + $0x1f8] sm:$0xff]
      %v321 = vpack.c.bf16 %v261, %v257
      %v322 = vpack.c.bf16 %v262, %v258
      %v323 = vpack.c.bf16 %v263, %v259
      %v324 = vpack.c.bf16 %v264, %v260
      %v325 = vpack.c.bf16 %v269, %v265
      %v326 = vpack.c.bf16 %v270, %v266
      %v327 = vpack.c.bf16 %v271, %v267
      %v328 = vpack.c.bf16 %v272, %v268
      %v329 = vpack.c.bf16 %v277, %v273
      %v330 = vpack.c.bf16 %v278, %v274
      %v331 = vpack.c.bf16 %v279, %v275
      %v332 = vpack.c.bf16 %v280, %v276
      %v333 = vpack.c.bf16 %v285, %v281
      %v334 = vpack.c.bf16 %v286, %v282
      %v335 = vpack.c.bf16 %v287, %v283
      %v336 = vpack.c.bf16 %v288, %v284
      %v337 = vpack.c.bf16 %v293, %v289
      %v338 = vpack.c.bf16 %v294, %v290
      %v339 = vpack.c.bf16 %v295, %v291
      %v340 = vpack.c.bf16 %v296, %v292
      %v341 = vpack.c.bf16 %v301, %v297
      %v342 = vpack.c.bf16 %v302, %v298
      %v343 = vpack.c.bf16 %v303, %v299
      %v344 = vpack.c.bf16 %v304, %v300
      %v345 = vpack.c.bf16 %v309, %v305
      %v346 = vpack.c.bf16 %v310, %v306
      %v347 = vpack.c.bf16 %v311, %v307
      %v348 = vpack.c.bf16 %v312, %v308
      %v349 = vpack.c.bf16 %v317, %v313
      %v350 = vpack.c.bf16 %v318, %v314
      %v351 = vpack.c.bf16 %v319, %v315
      %v352 = vpack.c.bf16 %v320, %v316
      %v353 = vld [vmem:[%s1] sm:$0xff]
      %v354 = vld [vmem:[%s1 + $0x8] sm:$0xff]
      %v355 = vld [vmem:[%s1 + $0x10] sm:$0xff]
      %v356 = vld [vmem:[%s1 + $0x18] sm:$0xff]
      %v357 = vld [vmem:[%s1 + $0x20] sm:$0xff]
      %v358 = vld [vmem:[%s1 + $0x28] sm:$0xff]
      %v359 = vld [vmem:[%s1 + $0x30] sm:$0xff]
      %v360 = vld [vmem:[%s1 + $0x38] sm:$0xff]
      %v361 = vld [vmem:[%s1 + $0x40] sm:$0xff]
      %v362 = vld [vmem:[%s1 + $0x48] sm:$0xff]
      %v363 = vld [vmem:[%s1 + $0x50] sm:$0xff]
      %v364 = vld [vmem:[%s1 + $0x58] sm:$0xff]
      %v365 = vld [vmem:[%s1 + $0x60] sm:$0xff]
      %v366 = vld [vmem:[%s1 + $0x68] sm:$0xff]
      %v367 = vld [vmem:[%s1 + $0x70] sm:$0xff]
      %v368 = vld [vmem:[%s1 + $0x78] sm:$0xff]
      %v369 = vld [vmem:[%s1 + $0x80] sm:$0xff]
      %v370 = vld [vmem:[%s1 + $0x88] sm:$0xff]
      %v371 = vld [vmem:[%s1 + $0x90] sm:$0xff]
      %v372 = vld [vmem:[%s1 + $0x98] sm:$0xff]
      %v373 = vld [vmem:[%s1 + $0xa0] sm:$0xff]
      %v374 = vld [vmem:[%s1 + $0xa8] sm:$0xff]
      %v375 = vld [vmem:[%s1 + $0xb0] sm:$0xff]
      %v376 = vld [vmem:[%s1 + $0xb8] sm:$0xff]
      %v377 = vld [vmem:[%s1 + $0xc0] sm:$0xff]
      %v378 = vld [vmem:[%s1 + $0xc8] sm:$0xff]
      %v379 = vld [vmem:[%s1 + $0xd0] sm:$0xff]
      %v380 = vld [vmem:[%s1 + $0xd8] sm:$0xff]
      %v381 = vld [vmem:[%s1 + $0xe0] sm:$0xff]
      %v382 = vld [vmem:[%s1 + $0xe8] sm:$0xff]
      %v383 = vld [vmem:[%s1 + $0xf0] sm:$0xff]
      %v384 = vld [vmem:[%s1 + $0xf8] sm:$0xff]
      %v385 = vld [vmem:[%s1 + $0x100] sm:$0xff]
      %v386 = vld [vmem:[%s1 + $0x108] sm:$0xff]
      %v387 = vld [vmem:[%s1 + $0x110] sm:$0xff]
      %v388 = vld [vmem:[%s1 + $0x118] sm:$0xff]
      %v389 = vld [vmem:[%s1 + $0x120] sm:$0xff]
      %v390 = vld [vmem:[%s1 + $0x128] sm:$0xff]
      %v391 = vld [vmem:[%s1 + $0x130] sm:$0xff]
      %v392 = vld [vmem:[%s1 + $0x138] sm:$0xff]
      %v393 = vld [vmem:[%s1 + $0x140] sm:$0xff]
      %v394 = vld [vmem:[%s1 + $0x148] sm:$0xff]
      %v395 = vld [vmem:[%s1 + $0x150] sm:$0xff]
      %v396 = vld [vmem:[%s1 + $0x158] sm:$0xff]
      %v397 = vld [vmem:[%s1 + $0x160] sm:$0xff]
      %v398 = vld [vmem:[%s1 + $0x168] sm:$0xff]
      %v399 = vld [vmem:[%s1 + $0x170] sm:$0xff]
      %v400 = vld [vmem:[%s1 + $0x178] sm:$0xff]
      %v401 = vld [vmem:[%s1 + $0x180] sm:$0xff]
      %v402 = vld [vmem:[%s1 + $0x188] sm:$0xff]
      %v403 = vld [vmem:[%s1 + $0x190] sm:$0xff]
      %v404 = vld [vmem:[%s1 + $0x198] sm:$0xff]
      %v405 = vld [vmem:[%s1 + $0x1a0] sm:$0xff]
      %v406 = vld [vmem:[%s1 + $0x1a8] sm:$0xff]
      %v407 = vld [vmem:[%s1 + $0x1b0] sm:$0xff]
      %v408 = vld [vmem:[%s1 + $0x1b8] sm:$0xff]
      %v409 = vld [vmem:[%s1 + $0x1c0] sm:$0xff]
      %v410 = vld [vmem:[%s1 + $0x1c8] sm:$0xff]
      %v411 = vld [vmem:[%s1 + $0x1d0] sm:$0xff]
      %v412 = vld [vmem:[%s1 + $0x1d8] sm:$0xff]
      %v413 = vld [vmem:[%s1 + $0x1e0] sm:$0xff]
      %v414 = vld [vmem:[%s1 + $0x1e8] sm:$0xff]
      %v415 = vld [vmem:[%s1 + $0x1f0] sm:$0xff]
      %v416 = vld [vmem:[%s1 + $0x1f8] sm:$0xff]
      %v417 = vld [vmem:[%s1 + $0x200] sm:$0xff]
      %v418 = vld [vmem:[%s1 + $0x208] sm:$0xff]
      %v419 = vld [vmem:[%s1 + $0x210] sm:$0xff]
      %v420 = vld [vmem:[%s1 + $0x218] sm:$0xff]
      %v421 = vld [vmem:[%s1 + $0x220] sm:$0xff]
      %v422 = vld [vmem:[%s1 + $0x228] sm:$0xff]
      %v423 = vld [vmem:[%s1 + $0x230] sm:$0xff]
      %v424 = vld [vmem:[%s1 + $0x238] sm:$0xff]
      %v425 = vld [vmem:[%s1 + $0x240] sm:$0xff]
      %v426 = vld [vmem:[%s1 + $0x248] sm:$0xff]
      %v427 = vld [vmem:[%s1 + $0x250] sm:$0xff]
      %v428 = vld [vmem:[%s1 + $0x258] sm:$0xff]
      %v429 = vld [vmem:[%s1 + $0x260] sm:$0xff]
      %v430 = vld [vmem:[%s1 + $0x268] sm:$0xff]
      %v431 = vld [vmem:[%s1 + $0x270] sm:$0xff]
      %v432 = vld [vmem:[%s1 + $0x278] sm:$0xff]
      %v433 = vld [vmem:[%s1 + $0x280] sm:$0xff]
      %v434 = vld [vmem:[%s1 + $0x288] sm:$0xff]
      %v435 = vld [vmem:[%s1 + $0x290] sm:$0xff]
      %v436 = vld [vmem:[%s1 + $0x298] sm:$0xff]
      %v437 = vld [vmem:[%s1 + $0x2a0] sm:$0xff]
      %v438 = vld [vmem:[%s1 + $0x2a8] sm:$0xff]
      %v439 = vld [vmem:[%s1 + $0x2b0] sm:$0xff]
      %v440 = vld [vmem:[%s1 + $0x2b8] sm:$0xff]
      %v441 = vld [vmem:[%s1 + $0x2c0] sm:$0xff]
      %v442 = vld [vmem:[%s1 + $0x2c8] sm:$0xff]
      %v443 = vld [vmem:[%s1 + $0x2d0] sm:$0xff]
      %v444 = vld [vmem:[%s1 + $0x2d8] sm:$0xff]
      %v445 = vld [vmem:[%s1 + $0x2e0] sm:$0xff]
      %v446 = vld [vmem:[%s1 + $0x2e8] sm:$0xff]
      %v447 = vld [vmem:[%s1 + $0x2f0] sm:$0xff]
      %v448 = vld [vmem:[%s1 + $0x2f8] sm:$0xff]
      %v449 = vld [vmem:[%s1 + $0x300] sm:$0xff]
      %v450 = vld [vmem:[%s1 + $0x308] sm:$0xff]
      %v451 = vld [vmem:[%s1 + $0x310] sm:$0xff]
      %v452 = vld [vmem:[%s1 + $0x318] sm:$0xff]
      %v453 = vld [vmem:[%s1 + $0x320] sm:$0xff]
      %v454 = vld [vmem:[%s1 + $0x328] sm:$0xff]
      %v455 = vld [vmem:[%s1 + $0x330] sm:$0xff]
      %v456 = vld [vmem:[%s1 + $0x338] sm:$0xff]
      %v457 = vld [vmem:[%s1 + $0x340] sm:$0xff]
      %v458 = vld [vmem:[%s1 + $0x348] sm:$0xff]
      %v459 = vld [vmem:[%s1 + $0x350] sm:$0xff]
      %v460 = vld [vmem:[%s1 + $0x358] sm:$0xff]
      %v461 = vld [vmem:[%s1 + $0x360] sm:$0xff]
      %v462 = vld [vmem:[%s1 + $0x368] sm:$0xff]
      %v463 = vld [vmem:[%s1 + $0x370] sm:$0xff]
      %v464 = vld [vmem:[%s1 + $0x378] sm:$0xff]
      %v465 = vld [vmem:[%s1 + $0x380] sm:$0xff]
      %v466 = vld [vmem:[%s1 + $0x388] sm:$0xff]
      %v467 = vld [vmem:[%s1 + $0x390] sm:$0xff]
      %v468 = vld [vmem:[%s1 + $0x398] sm:$0xff]
      %v469 = vld [vmem:[%s1 + $0x3a0] sm:$0xff]
      %v470 = vld [vmem:[%s1 + $0x3a8] sm:$0xff]
      %v471 = vld [vmem:[%s1 + $0x3b0] sm:$0xff]
      %v472 = vld [vmem:[%s1 + $0x3b8] sm:$0xff]
      %v473 = vld [vmem:[%s1 + $0x3c0] sm:$0xff]
      %v474 = vld [vmem:[%s1 + $0x3c8] sm:$0xff]
      %v475 = vld [vmem:[%s1 + $0x3d0] sm:$0xff]
      %v476 = vld [vmem:[%s1 + $0x3d8] sm:$0xff]
      %v477 = vld [vmem:[%s1 + $0x3e0] sm:$0xff]
      %v478 = vld [vmem:[%s1 + $0x3e8] sm:$0xff]
      %v479 = vld [vmem:[%s1 + $0x3f0] sm:$0xff]
      %v480 = vld [vmem:[%s1 + $0x3f8] sm:$0xff]
      %v609 = vunpack.c.l.b16 %v353
      %v610 = vunpack.c.h.b16 %v353
      %v611 = vunpack.c.l.b16 %v354
      %v612 = vunpack.c.h.b16 %v354
      %v613 = vunpack.c.l.b16 %v355
      %v614 = vunpack.c.h.b16 %v355
      %v615 = vunpack.c.l.b16 %v356
      %v616 = vunpack.c.h.b16 %v356
      %v617 = vunpack.c.l.b16 %v357
      %v618 = vunpack.c.h.b16 %v357
      %v619 = vunpack.c.l.b16 %v358
      %v620 = vunpack.c.h.b16 %v358
      %v621 = vunpack.c.l.b16 %v359
      %v622 = vunpack.c.h.b16 %v359
      %v623 = vunpack.c.l.b16 %v360
      %v624 = vunpack.c.h.b16 %v360
      %v625 = vunpack.c.l.b16 %v361
      %v626 = vunpack.c.h.b16 %v361
      %v627 = vunpack.c.l.b16 %v362
      %v628 = vunpack.c.h.b16 %v362
      %v629 = vunpack.c.l.b16 %v363
      %v630 = vunpack.c.h.b16 %v363
      %v631 = vunpack.c.l.b16 %v364
      %v632 = vunpack.c.h.b16 %v364
      %v633 = vunpack.c.l.b16 %v365
      %v634 = vunpack.c.h.b16 %v365
      %v635 = vunpack.c.l.b16 %v366
      %v636 = vunpack.c.h.b16 %v366
      %v637 = vunpack.c.l.b16 %v367
      %v638 = vunpack.c.h.b16 %v367
      %v639 = vunpack.c.l.b16 %v368
      %v640 = vunpack.c.h.b16 %v368
      %v641 = vunpack.c.l.b16 %v369
      %v642 = vunpack.c.h.b16 %v369
      %v643 = vunpack.c.l.b16 %v370
      %v644 = vunpack.c.h.b16 %v370
      %v645 = vunpack.c.l.b16 %v371
      %v646 = vunpack.c.h.b16 %v371
      %v647 = vunpack.c.l.b16 %v372
      %v648 = vunpack.c.h.b16 %v372
      %v649 = vunpack.c.l.b16 %v373
      %v650 = vunpack.c.h.b16 %v373
      %v651 = vunpack.c.l.b16 %v374
      %v652 = vunpack.c.h.b16 %v374
      %v653 = vunpack.c.l.b16 %v375
      %v654 = vunpack.c.h.b16 %v375
      %v655 = vunpack.c.l.b16 %v376
      %v656 = vunpack.c.h.b16 %v376
      %v657 = vunpack.c.l.b16 %v377
      %v658 = vunpack.c.h.b16 %v377
      %v659 = vunpack.c.l.b16 %v378
      %v660 = vunpack.c.h.b16 %v378
      %v661 = vunpack.c.l.b16 %v379
      %v662 = vunpack.c.h.b16 %v379
      %v663 = vunpack.c.l.b16 %v380
      %v664 = vunpack.c.h.b16 %v380
      %v665 = vunpack.c.l.b16 %v381
      %v666 = vunpack.c.h.b16 %v381
      %v667 = vunpack.c.l.b16 %v382
      %v668 = vunpack.c.h.b16 %v382
      %v669 = vunpack.c.l.b16 %v383
      %v670 = vunpack.c.h.b16 %v383
      %v671 = vunpack.c.l.b16 %v384
      %v672 = vunpack.c.h.b16 %v384
      %v673 = vunpack.c.l.b16 %v385
      %v674 = vunpack.c.h.b16 %v385
      %v675 = vunpack.c.l.b16 %v386
      %v676 = vunpack.c.h.b16 %v386
      %v677 = vunpack.c.l.b16 %v387
      %v678 = vunpack.c.h.b16 %v387
      %v679 = vunpack.c.l.b16 %v388
      %v680 = vunpack.c.h.b16 %v388
      %v681 = vunpack.c.l.b16 %v389
      %v682 = vunpack.c.h.b16 %v389
      %v683 = vunpack.c.l.b16 %v390
      %v684 = vunpack.c.h.b16 %v390
      %v685 = vunpack.c.l.b16 %v391
      %v686 = vunpack.c.h.b16 %v391
      %v687 = vunpack.c.l.b16 %v392
      %v688 = vunpack.c.h.b16 %v392
      %v689 = vunpack.c.l.b16 %v393
      %v690 = vunpack.c.h.b16 %v393
      %v691 = vunpack.c.l.b16 %v394
      %v692 = vunpack.c.h.b16 %v394
      %v693 = vunpack.c.l.b16 %v395
      %v694 = vunpack.c.h.b16 %v395
      %v695 = vunpack.c.l.b16 %v396
      %v696 = vunpack.c.h.b16 %v396
      %v697 = vunpack.c.l.b16 %v397
      %v698 = vunpack.c.h.b16 %v397
      %v699 = vunpack.c.l.b16 %v398
      %v700 = vunpack.c.h.b16 %v398
      %v701 = vunpack.c.l.b16 %v399
      %v702 = vunpack.c.h.b16 %v399
      %v703 = vunpack.c.l.b16 %v400
      %v704 = vunpack.c.h.b16 %v400
      %v705 = vunpack.c.l.b16 %v401
      %v706 = vunpack.c.h.b16 %v401
      %v707 = vunpack.c.l.b16 %v402
      %v708 = vunpack.c.h.b16 %v402
      %v709 = vunpack.c.l.b16 %v403
      %v710 = vunpack.c.h.b16 %v403
      %v711 = vunpack.c.l.b16 %v404
      %v712 = vunpack.c.h.b16 %v404
      %v713 = vunpack.c.l.b16 %v405
      %v714 = vunpack.c.h.b16 %v405
      %v715 = vunpack.c.l.b16 %v406
      %v716 = vunpack.c.h.b16 %v406
      %v717 = vunpack.c.l.b16 %v407
      %v718 = vunpack.c.h.b16 %v407
      %v719 = vunpack.c.l.b16 %v408
      %v720 = vunpack.c.h.b16 %v408
      %v721 = vunpack.c.l.b16 %v409
      %v722 = vunpack.c.h.b16 %v409
      %v723 = vunpack.c.l.b16 %v410
      %v724 = vunpack.c.h.b16 %v410
      %v725 = vunpack.c.l.b16 %v411
      %v726 = vunpack.c.h.b16 %v411
      %v727 = vunpack.c.l.b16 %v412
      %v728 = vunpack.c.h.b16 %v412
      %v729 = vunpack.c.l.b16 %v413
      %v730 = vunpack.c.h.b16 %v413
      %v731 = vunpack.c.l.b16 %v414
      %v732 = vunpack.c.h.b16 %v414
      %v733 = vunpack.c.l.b16 %v415
      %v734 = vunpack.c.h.b16 %v415
      %v735 = vunpack.c.l.b16 %v416
      %v736 = vunpack.c.h.b16 %v416
      %v737 = vunpack.c.l.b16 %v417
      %v738 = vunpack.c.h.b16 %v417
      %v739 = vunpack.c.l.b16 %v418
      %v740 = vunpack.c.h.b16 %v418
      %v741 = vunpack.c.l.b16 %v419
      %v742 = vunpack.c.h.b16 %v419
      %v743 = vunpack.c.l.b16 %v420
      %v744 = vunpack.c.h.b16 %v420
      %v745 = vunpack.c.l.b16 %v421
      %v746 = vunpack.c.h.b16 %v421
      %v747 = vunpack.c.l.b16 %v422
      %v748 = vunpack.c.h.b16 %v422
      %v749 = vunpack.c.l.b16 %v423
      %v750 = vunpack.c.h.b16 %v423
      %v751 = vunpack.c.l.b16 %v424
      %v752 = vunpack.c.h.b16 %v424
      %v753 = vunpack.c.l.b16 %v425
      %v754 = vunpack.c.h.b16 %v425
      %v755 = vunpack.c.l.b16 %v426
      %v756 = vunpack.c.h.b16 %v426
      %v757 = vunpack.c.l.b16 %v427
      %v758 = vunpack.c.h.b16 %v427
      %v759 = vunpack.c.l.b16 %v428
      %v760 = vunpack.c.h.b16 %v428
      %v761 = vunpack.c.l.b16 %v429
      %v762 = vunpack.c.h.b16 %v429
      %v763 = vunpack.c.l.b16 %v430
      %v764 = vunpack.c.h.b16 %v430
      %v765 = vunpack.c.l.b16 %v431
      %v766 = vunpack.c.h.b16 %v431
      %v767 = vunpack.c.l.b16 %v432
      %v768 = vunpack.c.h.b16 %v432
      %v769 = vunpack.c.l.b16 %v433
      %v770 = vunpack.c.h.b16 %v433
      %v771 = vunpack.c.l.b16 %v434
      %v772 = vunpack.c.h.b16 %v434
      %v773 = vunpack.c.l.b16 %v435
      %v774 = vunpack.c.h.b16 %v435
      %v775 = vunpack.c.l.b16 %v436
      %v776 = vunpack.c.h.b16 %v436
      %v777 = vunpack.c.l.b16 %v437
      %v778 = vunpack.c.h.b16 %v437
      %v779 = vunpack.c.l.b16 %v438
      %v780 = vunpack.c.h.b16 %v438
      %v781 = vunpack.c.l.b16 %v439
      %v782 = vunpack.c.h.b16 %v439
      %v783 = vunpack.c.l.b16 %v440
      %v784 = vunpack.c.h.b16 %v440
      %v785 = vunpack.c.l.b16 %v441
      %v786 = vunpack.c.h.b16 %v441
      %v787 = vunpack.c.l.b16 %v442
      %v788 = vunpack.c.h.b16 %v442
      %v789 = vunpack.c.l.b16 %v443
      %v790 = vunpack.c.h.b16 %v443
      %v791 = vunpack.c.l.b16 %v444
      %v792 = vunpack.c.h.b16 %v444
      %v793 = vunpack.c.l.b16 %v445
      %v794 = vunpack.c.h.b16 %v445
      %v795 = vunpack.c.l.b16 %v446
      %v796 = vunpack.c.h.b16 %v446
      %v797 = vunpack.c.l.b16 %v447
      %v798 = vunpack.c.h.b16 %v447
      %v799 = vunpack.c.l.b16 %v448
      %v800 = vunpack.c.h.b16 %v448
      %v801 = vunpack.c.l.b16 %v449
      %v802 = vunpack.c.h.b16 %v449
      %v803 = vunpack.c.l.b16 %v450
      %v804 = vunpack.c.h.b16 %v450
      %v805 = vunpack.c.l.b16 %v451
      %v806 = vunpack.c.h.b16 %v451
      %v807 = vunpack.c.l.b16 %v452
      %v808 = vunpack.c.h.b16 %v452
      %v809 = vunpack.c.l.b16 %v453
      %v810 = vunpack.c.h.b16 %v453
      %v811 = vunpack.c.l.b16 %v454
      %v812 = vunpack.c.h.b16 %v454
      %v813 = vunpack.c.l.b16 %v455
      %v814 = vunpack.c.h.b16 %v455
      %v815 = vunpack.c.l.b16 %v456
      %v816 = vunpack.c.h.b16 %v456
      %v817 = vunpack.c.l.b16 %v457
      %v818 = vunpack.c.h.b16 %v457
      %v819 = vunpack.c.l.b16 %v458
      %v820 = vunpack.c.h.b16 %v458
      %v821 = vunpack.c.l.b16 %v459
      %v822 = vunpack.c.h.b16 %v459
      %v823 = vunpack.c.l.b16 %v460
      %v824 = vunpack.c.h.b16 %v460
      %v825 = vunpack.c.l.b16 %v461
      %v826 = vunpack.c.h.b16 %v461
      %v827 = vunpack.c.l.b16 %v462
      %v828 = vunpack.c.h.b16 %v462
      %v829 = vunpack.c.l.b16 %v463
      %v830 = vunpack.c.h.b16 %v463
      %v831 = vunpack.c.l.b16 %v464
      %v832 = vunpack.c.h.b16 %v464
      %v833 = vunpack.c.l.b16 %v465
      %v834 = vunpack.c.h.b16 %v465
      %v835 = vunpack.c.l.b16 %v466
      %v836 = vunpack.c.h.b16 %v466
      %v837 = vunpack.c.l.b16 %v467
      %v838 = vunpack.c.h.b16 %v467
      %v839 = vunpack.c.l.b16 %v468
      %v840 = vunpack.c.h.b16 %v468
      %v841 = vunpack.c.l.b16 %v469
      %v842 = vunpack.c.h.b16 %v469
      %v843 = vunpack.c.l.b16 %v470
      %v844 = vunpack.c.h.b16 %v470
      %v845 = vunpack.c.l.b16 %v471
      %v846 = vunpack.c.h.b16 %v471
      %v847 = vunpack.c.l.b16 %v472
      %v848 = vunpack.c.h.b16 %v472
      %v849 = vunpack.c.l.b16 %v473
      %v850 = vunpack.c.h.b16 %v473
      %v851 = vunpack.c.l.b16 %v474
      %v852 = vunpack.c.h.b16 %v474
      %v853 = vunpack.c.l.b16 %v475
      %v854 = vunpack.c.h.b16 %v475
      %v855 = vunpack.c.l.b16 %v476
      %v856 = vunpack.c.h.b16 %v476
      %v857 = vunpack.c.l.b16 %v477
      %v858 = vunpack.c.h.b16 %v477
      %v859 = vunpack.c.l.b16 %v478
      %v860 = vunpack.c.h.b16 %v478
      %v861 = vunpack.c.l.b16 %v479
      %v862 = vunpack.c.h.b16 %v479
      %v863 = vunpack.c.l.b16 %v480
      %v864 = vunpack.c.h.b16 %v480
      %v865 = vpack.c.b16 %v613, %v609
      %v866 = vpack.c.b16 %v614, %v610
      %v867 = vpack.c.b16 %v615, %v611
      %v868 = vpack.c.b16 %v616, %v612
      %v869 = vpack.c.b16 %v621, %v617
      %v870 = vpack.c.b16 %v622, %v618
      %v871 = vpack.c.b16 %v623, %v619
      %v872 = vpack.c.b16 %v624, %v620
      %v873 = vpack.c.b16 %v629, %v625
      %v874 = vpack.c.b16 %v630, %v626
      %v875 = vpack.c.b16 %v631, %v627
      %v876 = vpack.c.b16 %v632, %v628
      %v877 = vpack.c.b16 %v637, %v633
      %v878 = vpack.c.b16 %v638, %v634
      %v879 = vpack.c.b16 %v639, %v635
      %v880 = vpack.c.b16 %v640, %v636
      %v881 = vpack.c.b16 %v645, %v641
      %v882 = vpack.c.b16 %v646, %v642
      %v883 = vpack.c.b16 %v647, %v643
      %v884 = vpack.c.b16 %v648, %v644
      %v885 = vpack.c.b16 %v653, %v649
      %v886 = vpack.c.b16 %v654, %v650
      %v887 = vpack.c.b16 %v655, %v651
      %v888 = vpack.c.b16 %v656, %v652
      %v889 = vpack.c.b16 %v661, %v657
      %v890 = vpack.c.b16 %v662, %v658
      %v891 = vpack.c.b16 %v663, %v659
      %v892 = vpack.c.b16 %v664, %v660
      %v893 = vpack.c.b16 %v669, %v665
      %v894 = vpack.c.b16 %v670, %v666
      %v895 = vpack.c.b16 %v671, %v667
      %v896 = vpack.c.b16 %v672, %v668
      %v897 = vpack.c.b16 %v677, %v673
      %v898 = vpack.c.b16 %v678, %v674
      %v899 = vpack.c.b16 %v679, %v675
      %v900 = vpack.c.b16 %v680, %v676
      %v901 = vpack.c.b16 %v685, %v681
      %v902 = vpack.c.b16 %v686, %v682
      %v903 = vpack.c.b16 %v687, %v683
      %v904 = vpack.c.b16 %v688, %v684
      %v905 = vpack.c.b16 %v693, %v689
      %v906 = vpack.c.b16 %v694, %v690
      %v907 = vpack.c.b16 %v695, %v691
      %v908 = vpack.c.b16 %v696, %v692
      %v909 = vpack.c.b16 %v701, %v697
      %v910 = vpack.c.b16 %v702, %v698
      %v911 = vpack.c.b16 %v703, %v699
      %v912 = vpack.c.b16 %v704, %v700
      %v913 = vpack.c.b16 %v709, %v705
      %v914 = vpack.c.b16 %v710, %v706
      %v915 = vpack.c.b16 %v711, %v707
      %v916 = vpack.c.b16 %v712, %v708
      %v917 = vpack.c.b16 %v717, %v713
      %v918 = vpack.c.b16 %v718, %v714
      %v919 = vpack.c.b16 %v719, %v715
      %v920 = vpack.c.b16 %v720, %v716
      %v921 = vpack.c.b16 %v725, %v721
      %v922 = vpack.c.b16 %v726, %v722
      %v923 = vpack.c.b16 %v727, %v723
      %v924 = vpack.c.b16 %v728, %v724
      %v925 = vpack.c.b16 %v733, %v729
      %v926 = vpack.c.b16 %v734, %v730
      %v927 = vpack.c.b16 %v735, %v731
      %v928 = vpack.c.b16 %v736, %v732
      %v929 = vpack.c.b16 %v741, %v737
      %v930 = vpack.c.b16 %v742, %v738
      %v931 = vpack.c.b16 %v743, %v739
      %v932 = vpack.c.b16 %v744, %v740
      %v933 = vpack.c.b16 %v749, %v745
      %v934 = vpack.c.b16 %v750, %v746
      %v935 = vpack.c.b16 %v751, %v747
      %v936 = vpack.c.b16 %v752, %v748
      %v937 = vpack.c.b16 %v757, %v753
      %v938 = vpack.c.b16 %v758, %v754
      %v939 = vpack.c.b16 %v759, %v755
      %v940 = vpack.c.b16 %v760, %v756
      %v941 = vpack.c.b16 %v765, %v761
      %v942 = vpack.c.b16 %v766, %v762
      %v943 = vpack.c.b16 %v767, %v763
      %v944 = vpack.c.b16 %v768, %v764
      %v945 = vpack.c.b16 %v773, %v769
      %v946 = vpack.c.b16 %v774, %v770
      %v947 = vpack.c.b16 %v775, %v771
      %v948 = vpack.c.b16 %v776, %v772
      %v949 = vpack.c.b16 %v781, %v777
      %v950 = vpack.c.b16 %v782, %v778
      %v951 = vpack.c.b16 %v783, %v779
      %v952 = vpack.c.b16 %v784, %v780
      %v953 = vpack.c.b16 %v789, %v785
      %v954 = vpack.c.b16 %v790, %v786
      %v955 = vpack.c.b16 %v791, %v787
      %v956 = vpack.c.b16 %v792, %v788
      %v957 = vpack.c.b16 %v797, %v793
      %v958 = vpack.c.b16 %v798, %v794
      %v959 = vpack.c.b16 %v799, %v795
      %v960 = vpack.c.b16 %v800, %v796
      %v961 = vpack.c.b16 %v805, %v801
      %v962 = vpack.c.b16 %v806, %v802
      %v963 = vpack.c.b16 %v807, %v803
      %v964 = vpack.c.b16 %v808, %v804
      %v965 = vpack.c.b16 %v813, %v809
      %v966 = vpack.c.b16 %v814, %v810
      %v967 = vpack.c.b16 %v815, %v811
      %v968 = vpack.c.b16 %v816, %v812
      %v969 = vpack.c.b16 %v821, %v817
      %v970 = vpack.c.b16 %v822, %v818
      %v971 = vpack.c.b16 %v823, %v819
      %v972 = vpack.c.b16 %v824, %v820
      %v973 = vpack.c.b16 %v829, %v825
      %v974 = vpack.c.b16 %v830, %v826
      %v975 = vpack.c.b16 %v831, %v827
      %v976 = vpack.c.b16 %v832, %v828
      %v977 = vpack.c.b16 %v837, %v833
      %v978 = vpack.c.b16 %v838, %v834
      %v979 = vpack.c.b16 %v839, %v835
      %v980 = vpack.c.b16 %v840, %v836
      %v981 = vpack.c.b16 %v845, %v841
      %v982 = vpack.c.b16 %v846, %v842
      %v983 = vpack.c.b16 %v847, %v843
      %v984 = vpack.c.b16 %v848, %v844
      %v985 = vpack.c.b16 %v853, %v849
      %v986 = vpack.c.b16 %v854, %v850
      %v987 = vpack.c.b16 %v855, %v851
      %v988 = vpack.c.b16 %v856, %v852
      %v989 = vpack.c.b16 %v861, %v857
      %v990 = vpack.c.b16 %v862, %v858
      %v991 = vpack.c.b16 %v863, %v859
      %v992 = vpack.c.b16 %v864, %v860
      %1121 = vmatprep.subr.bf16.mxu0 %v866
      %1122 = vmatpush1.bf16.msra.mxu0 %v865
      %1123 = vmatprep.subr.bf16.mxu0 %v870
      %1124 = vmatpush1.bf16.msra.mxu0 %v869
      %1125 = vmatprep.subr.bf16.mxu0 %v874
      %1126 = vmatpush1.bf16.msra.mxu0 %v873
      %1127 = vmatprep.subr.bf16.mxu0 %v878
      %1128 = vmatpush1.bf16.msra.mxu0 %v877
      %1129 = vmatprep.subr.bf16.mxu0 %v882
      %1130 = vmatpush1.bf16.msra.mxu0 %v881
      %1131 = vmatprep.subr.bf16.mxu0 %v886
      %1132 = vmatpush1.bf16.msra.mxu0 %v885
      %1133 = vmatprep.subr.bf16.mxu0 %v890
      %1134 = vmatpush1.bf16.msra.mxu0 %v889
      %1135 = vmatprep.subr.bf16.mxu0 %v894
      %1136 = vmatpush1.bf16.msra.mxu0 %v893
      %1137 = vmatprep.subr.bf16.mxu0 %v898
      %1138 = vmatpush1.bf16.msra.mxu0 %v897
      %1139 = vmatprep.subr.bf16.mxu0 %v902
      %1140 = vmatpush1.bf16.msra.mxu0 %v901
      %1141 = vmatprep.subr.bf16.mxu0 %v906
      %1142 = vmatpush1.bf16.msra.mxu0 %v905
      %1143 = vmatprep.subr.bf16.mxu0 %v910
      %1144 = vmatpush1.bf16.msra.mxu0 %v909
      %1145 = vmatprep.subr.bf16.mxu0 %v914
      %1146 = vmatpush1.bf16.msra.mxu0 %v913
      %1147 = vmatprep.subr.bf16.mxu0 %v918
      %1148 = vmatpush1.bf16.msra.mxu0 %v917
      %1149 = vmatprep.subr.bf16.mxu0 %v922
      %1150 = vmatpush1.bf16.msra.mxu0 %v921
      %1151 = vmatprep.subr.bf16.mxu0 %v926
      %1152 = vmatpush1.bf16.msra.mxu0 %v925
      %1153 = vmatprep.mubr.bf16.mxu0 %v322
      %1154 = vmatmul.mubr.bf16.gmra.mrb[0].mxu0 %v321
      %v1155 = vpop.f32.mrb[0].mxu0
      %v1156 = vadd.f32 0.0, %v1155
      %v1157 = vpop.f32.mrb[0].mxu0
      %v1158 = vadd.f32 0.0, %v1157
      %v1159 = vpop.f32.mrb[0].mxu0
      %v1160 = vadd.f32 0.0, %v1159
      %v1161 = vpop.f32.mrb[0].mxu0
      %v1162 = vadd.f32 0.0, %v1161
      %1163 = vmatprep.mubr.bf16.mxu0 %v326
      %1164 = vmatmul.mubr.bf16.gmra.mrb[0].mxu0 %v325
      %v1165 = vpop.f32.mrb[0].mxu0
      %v1166 = vadd.f32 0.0, %v1165
      %v1167 = vpop.f32.mrb[0].mxu0
      %v1168 = vadd.f32 0.0, %v1167
      %v1169 = vpop.f32.mrb[0].mxu0
      %v1170 = vadd.f32 0.0, %v1169
      %v1171 = vpop.f32.mrb[0].mxu0
      %v1172 = vadd.f32 0.0, %v1171
      %1173 = vmatprep.mubr.bf16.mxu0 %v330
      %1174 = vmatmul.mubr.bf16.gmra.mrb[0].mxu0 %v329
      %v1175 = vpop.f32.mrb[0].mxu0
      %v1176 = vadd.f32 0.0, %v1175
      %v1177 = vpop.f32.mrb[0].mxu0
      %v1178 = vadd.f32 0.0, %v1177
      %v1179 = vpop.f32.mrb[0].mxu0
      %v1180 = vadd.f32 0.0, %v1179
      %v1181 = vpop.f32.mrb[0].mxu0
      %v1182 = vadd.f32 0.0, %v1181
      %1183 = vmatprep.mubr.bf16.mxu0 %v334
      %1184 = vmatmul.mubr.bf16.gmra.mrb[0].mxu0 %v333
      %v1185 = vpop.f32.mrb[0].mxu0
      %v1186 = vadd.f32 0.0, %v1185
      %v1187 = vpop.f32.mrb[0].mxu0
      %v1188 = vadd.f32 0.0, %v1187
      %v1189 = vpop.f32.mrb[0].mxu0
      %v1190 = vadd.f32 0.0, %v1189
      %v1191 = vpop.f32.mrb[0].mxu0
      %v1192 = vadd.f32 0.0, %v1191
      %1193 = vmatprep.mubr.bf16.mxu0 %v338
      %1194 = vmatmul.mubr.bf16.gmra.mrb[0].mxu0 %v337
      %v1195 = vpop.f32.mrb[0].mxu0
      %v1196 = vadd.f32 0.0, %v1195
      %v1197 = vpop.f32.mrb[0].mxu0
      %v1198 = vadd.f32 0.0, %v1197
      %v1199 = vpop.f32.mrb[0].mxu0
      %v1200 = vadd.f32 0.0, %v1199
      %v1201 = vpop.f32.mrb[0].mxu0
      %v1202 = vadd.f32 0.0, %v1201
      %1203 = vmatprep.mubr.bf16.mxu0 %v342
      %1204 = vmatmul.mubr.bf16.gmra.mrb[0].mxu0 %v341
      %v1205 = vpop.f32.mrb[0].mxu0
      %v1206 = vadd.f32 0.0, %v1205
      %v1207 = vpop.f32.mrb[0].mxu0
      %v1208 = vadd.f32 0.0, %v1207
      %v1209 = vpop.f32.mrb[0].mxu0
      %v1210 = vadd.f32 0.0, %v1209
      %v1211 = vpop.f32.mrb[0].mxu0
      %v1212 = vadd.f32 0.0, %v1211
      %1213 = vmatprep.mubr.bf16.mxu0 %v346
      %1214 = vmatmul.mubr.bf16.gmra.mrb[0].mxu0 %v345
      %v1215 = vpop.f32.mrb[0].mxu0
      %v1216 = vadd.f32 0.0, %v1215
      %v1217 = vpop.f32.mrb[0].mxu0
      %v1218 = vadd.f32 0.0, %v1217
      %v1219 = vpop.f32.mrb[0].mxu0
      %v1220 = vadd.f32 0.0, %v1219
      %v1221 = vpop.f32.mrb[0].mxu0
      %v1222 = vadd.f32 0.0, %v1221
      %1223 = vmatprep.mubr.bf16.mxu0 %v350
      %1224 = vmatmul.mubr.bf16.gmra.mrb[0].mxu0 %v349
      %v1225 = vpop.f32.mrb[0].mxu0
      %v1226 = vadd.f32 0.0, %v1225
      %v1227 = vpop.f32.mrb[0].mxu0
      %v1228 = vadd.f32 0.0, %v1227
      %v1229 = vpop.f32.mrb[0].mxu0
      %v1230 = vadd.f32 0.0, %v1229
      %v1231 = vpop.f32.mrb[0].mxu0
      %v1232 = vadd.f32 0.0, %v1231
      %1233 = vdwg.mxu0
      %1234 = vmatprep.subr.bf16.mxu0 %v930
      %1235 = vmatpush1.bf16.msra.mxu0 %v929
      %1236 = vmatprep.subr.bf16.mxu0 %v934
      %1237 = vmatpush1.bf16.msra.mxu0 %v933
      %1238 = vmatprep.subr.bf16.mxu0 %v938
      %1239 = vmatpush1.bf16.msra.mxu0 %v937
      %1240 = vmatprep.subr.bf16.mxu0 %v942
      %1241 = vmatpush1.bf16.msra.mxu0 %v941
      %1242 = vmatprep.subr.bf16.mxu0 %v946
      %1243 = vmatpush1.bf16.msra.mxu0 %v945
      %1244 = vmatprep.subr.bf16.mxu0 %v950
      %1245 = vmatpush1.bf16.msra.mxu0 %v949
      %1246 = vmatprep.subr.bf16.mxu0 %v954
      %1247 = vmatpush1.bf16.msra.mxu0 %v953
      %1248 = vmatprep.subr.bf16.mxu0 %v958
      %1249 = vmatpush1.bf16.msra.mxu0 %v957
      %1250 = vmatprep.subr.bf16.mxu0 %v962
      %1251 = vmatpush1.bf16.msra.mxu0 %v961
      %1252 = vmatprep.subr.bf16.mxu0 %v966
      %1253 = vmatpush1.bf16.msra.mxu0 %v965
      %1254 = vmatprep.subr.bf16.mxu0 %v970
      %1255 = vmatpush1.bf16.msra.mxu0 %v969
      %1256 = vmatprep.subr.bf16.mxu0 %v974
      %1257 = vmatpush1.bf16.msra.mxu0 %v973
      %1258 = vmatprep.subr.bf16.mxu0 %v978
      %1259 = vmatpush1.bf16.msra.mxu0 %v977
      %1260 = vmatprep.subr.bf16.mxu0 %v982
      %1261 = vmatpush1.bf16.msra.mxu0 %v981
      %1262 = vmatprep.subr.bf16.mxu0 %v986
      %1263 = vmatpush1.bf16.msra.mxu0 %v985
      %1264 = vmatprep.subr.bf16.mxu0 %v990
      %1265 = vmatpush1.bf16.msra.mxu0 %v989
      %1266 = vmatprep.mubr.bf16.mxu0 %v324
      %1267 = vmatmul.mubr.bf16.gmra.mrb[0].mxu0 %v323
      %v1268 = vpop.f32.mrb[0].mxu0
      %v1269 = vadd.f32 %v1156, %v1268
      %v1270 = vpop.f32.mrb[0].mxu0
      %v1271 = vadd.f32 %v1158, %v1270
      %v1272 = vpop.f32.mrb[0].mxu0
      %v1273 = vadd.f32 %v1160, %v1272
      %v1274 = vpop.f32.mrb[0].mxu0
      %v1275 = vadd.f32 %v1162, %v1274
      %1276 = vmatprep.mubr.bf16.mxu0 %v328
      %1277 = vmatmul.mubr.bf16.gmra.mrb[0].mxu0 %v327
      %v1278 = vpop.f32.mrb[0].mxu0
      %v1279 = vadd.f32 %v1166, %v1278
      %v1280 = vpop.f32.mrb[0].mxu0
      %v1281 = vadd.f32 %v1168, %v1280
      %v1282 = vpop.f32.mrb[0].mxu0
      %v1283 = vadd.f32 %v1170, %v1282
      %v1284 = vpop.f32.mrb[0].mxu0
      %v1285 = vadd.f32 %v1172, %v1284
      %1286 = vmatprep.mubr.bf16.mxu0 %v332
      %1287 = vmatmul.mubr.bf16.gmra.mrb[0].mxu0 %v331
      %v1288 = vpop.f32.mrb[0].mxu0
      %v1289 = vadd.f32 %v1176, %v1288
      %v1290 = vpop.f32.mrb[0].mxu0
      %v1291 = vadd.f32 %v1178, %v1290
      %v1292 = vpop.f32.mrb[0].mxu0
      %v1293 = vadd.f32 %v1180, %v1292
      %v1294 = vpop.f32.mrb[0].mxu0
      %v1295 = vadd.f32 %v1182, %v1294
      %1296 = vmatprep.mubr.bf16.mxu0 %v336
      %1297 = vmatmul.mubr.bf16.gmra.mrb[0].mxu0 %v335
      %v1298 = vpop.f32.mrb[0].mxu0
      %v1299 = vadd.f32 %v1186, %v1298
      %v1300 = vpop.f32.mrb[0].mxu0
      %v1301 = vadd.f32 %v1188, %v1300
      %v1302 = vpop.f32.mrb[0].mxu0
      %v1303 = vadd.f32 %v1190, %v1302
      %v1304 = vpop.f32.mrb[0].mxu0
      %v1305 = vadd.f32 %v1192, %v1304
      %1306 = vmatprep.mubr.bf16.mxu0 %v340
      %1307 = vmatmul.mubr.bf16.gmra.mrb[0].mxu0 %v339
      %v1308 = vpop.f32.mrb[0].mxu0
      %v1309 = vadd.f32 %v1196, %v1308
      %v1310 = vpop.f32.mrb[0].mxu0
      %v1311 = vadd.f32 %v1198, %v1310
      %v1312 = vpop.f32.mrb[0].mxu0
      %v1313 = vadd.f32 %v1200, %v1312
      %v1314 = vpop.f32.mrb[0].mxu0
      %v1315 = vadd.f32 %v1202, %v1314
      %1316 = vmatprep.mubr.bf16.mxu0 %v344
      %1317 = vmatmul.mubr.bf16.gmra.mrb[0].mxu0 %v343
      %v1318 = vpop.f32.mrb[0].mxu0
      %v1319 = vadd.f32 %v1206, %v1318
      %v1320 = vpop.f32.mrb[0].mxu0
      %v1321 = vadd.f32 %v1208, %v1320
      %v1322 = vpop.f32.mrb[0].mxu0
      %v1323 = vadd.f32 %v1210, %v1322
      %v1324 = vpop.f32.mrb[0].mxu0
      %v1325 = vadd.f32 %v1212, %v1324
      %1326 = vmatprep.mubr.bf16.mxu0 %v348
      %1327 = vmatmul.mubr.bf16.gmra.mrb[0].mxu0 %v347
      %v1328 = vpop.f32.mrb[0].mxu0
      %v1329 = vadd.f32 %v1216, %v1328
      %v1330 = vpop.f32.mrb[0].mxu0
      %v1331 = vadd.f32 %v1218, %v1330
      %v1332 = vpop.f32.mrb[0].mxu0
      %v1333 = vadd.f32 %v1220, %v1332
      %v1334 = vpop.f32.mrb[0].mxu0
      %v1335 = vadd.f32 %v1222, %v1334
      %1336 = vmatprep.mubr.bf16.mxu0 %v352
      %1337 = vmatmul.mubr.bf16.gmra.mrb[0].mxu0 %v351
      %v1338 = vpop.f32.mrb[0].mxu0
      %v1339 = vadd.f32 %v1226, %v1338
      %v1340 = vpop.f32.mrb[0].mxu0
      %v1341 = vadd.f32 %v1228, %v1340
      %v1342 = vpop.f32.mrb[0].mxu0
      %v1343 = vadd.f32 %v1230, %v1342
      %v1344 = vpop.f32.mrb[0].mxu0
      %v1345 = vadd.f32 %v1232, %v1344
      %1346 = vdwg.mxu0
      %1347 = vmatprep.subr.bf16.mxu0 %v868
      %1348 = vmatpush1.bf16.msra.mxu0 %v867
      %1349 = vmatprep.subr.bf16.mxu0 %v872
      %1350 = vmatpush1.bf16.msra.mxu0 %v871
      %1351 = vmatprep.subr.bf16.mxu0 %v876
      %1352 = vmatpush1.bf16.msra.mxu0 %v875
      %1353 = vmatprep.subr.bf16.mxu0 %v880
      %1354 = vmatpush1.bf16.msra.mxu0 %v879
      %1355 = vmatprep.subr.bf16.mxu0 %v884
      %1356 = vmatpush1.bf16.msra.mxu0 %v883
      %1357 = vmatprep.subr.bf16.mxu0 %v888
      %1358 = vmatpush1.bf16.msra.mxu0 %v887
      %1359 = vmatprep.subr.bf16.mxu0 %v892
      %1360 = vmatpush1.bf16.msra.mxu0 %v891
      %1361 = vmatprep.subr.bf16.mxu0 %v896
      %1362 = vmatpush1.bf16.msra.mxu0 %v895
      %1363 = vmatprep.subr.bf16.mxu0 %v900
      %1364 = vmatpush1.bf16.msra.mxu0 %v899
      %1365 = vmatprep.subr.bf16.mxu0 %v904
      %1366 = vmatpush1.bf16.msra.mxu0 %v903
      %1367 = vmatprep.subr.bf16.mxu0 %v908
      %1368 = vmatpush1.bf16.msra.mxu0 %v907
      %1369 = vmatprep.subr.bf16.mxu0 %v912
      %1370 = vmatpush1.bf16.msra.mxu0 %v911
      %1371 = vmatprep.subr.bf16.mxu0 %v916
      %1372 = vmatpush1.bf16.msra.mxu0 %v915
      %1373 = vmatprep.subr.bf16.mxu0 %v920
      %1374 = vmatpush1.bf16.msra.mxu0 %v919
      %1375 = vmatprep.subr.bf16.mxu0 %v924
      %1376 = vmatpush1.bf16.msra.mxu0 %v923
      %1377 = vmatprep.subr.bf16.mxu0 %v928
      %1378 = vmatpush1.bf16.msra.mxu0 %v927
      %1379 = vmatprep.mubr.bf16.mxu0 %v322
      %1380 = vmatmul.mubr.bf16.gmra.mrb[0].mxu0 %v321
      %v1381 = vpop.f32.mrb[0].mxu0
      %v1382 = vadd.f32 0.0, %v1381
      %v1383 = vpop.f32.mrb[0].mxu0
      %v1384 = vadd.f32 0.0, %v1383
      %v1385 = vpop.f32.mrb[0].mxu0
      %v1386 = vadd.f32 0.0, %v1385
      %v1387 = vpop.f32.mrb[0].mxu0
      %v1388 = vadd.f32 0.0, %v1387
      %1389 = vmatprep.mubr.bf16.mxu0 %v326
      %1390 = vmatmul.mubr.bf16.gmra.mrb[0].mxu0 %v325
      %v1391 = vpop.f32.mrb[0].mxu0
      %v1392 = vadd.f32 0.0, %v1391
      %v1393 = vpop.f32.mrb[0].mxu0
      %v1394 = vadd.f32 0.0, %v1393
      %v1395 = vpop.f32.mrb[0].mxu0
      %v1396 = vadd.f32 0.0, %v1395
      %v1397 = vpop.f32.mrb[0].mxu0
      %v1398 = vadd.f32 0.0, %v1397
      %1399 = vmatprep.mubr.bf16.mxu0 %v330
      %1400 = vmatmul.mubr.bf16.gmra.mrb[0].mxu0 %v329
      %v1401 = vpop.f32.mrb[0].mxu0
      %v1402 = vadd.f32 0.0, %v1401
      %v1403 = vpop.f32.mrb[0].mxu0
      %v1404 = vadd.f32 0.0, %v1403
      %v1405 = vpop.f32.mrb[0].mxu0
      %v1406 = vadd.f32 0.0, %v1405
      %v1407 = vpop.f32.mrb[0].mxu0
      %v1408 = vadd.f32 0.0, %v1407
      %1409 = vmatprep.mubr.bf16.mxu0 %v334
      %1410 = vmatmul.mubr.bf16.gmra.mrb[0].mxu0 %v333
      %v1411 = vpop.f32.mrb[0].mxu0
      %v1412 = vadd.f32 0.0, %v1411
      %v1413 = vpop.f32.mrb[0].mxu0
      %v1414 = vadd.f32 0.0, %v1413
      %v1415 = vpop.f32.mrb[0].mxu0
      %v1416 = vadd.f32 0.0, %v1415
      %v1417 = vpop.f32.mrb[0].mxu0
      %v1418 = vadd.f32 0.0, %v1417
      %1419 = vmatprep.mubr.bf16.mxu0 %v338
      %1420 = vmatmul.mubr.bf16.gmra.mrb[0].mxu0 %v337
      %v1421 = vpop.f32.mrb[0].mxu0
      %v1422 = vadd.f32 0.0, %v1421
      %v1423 = vpop.f32.mrb[0].mxu0
      %v1424 = vadd.f32 0.0, %v1423
      %v1425 = vpop.f32.mrb[0].mxu0
      %v1426 = vadd.f32 0.0, %v1425
      %v1427 = vpop.f32.mrb[0].mxu0
      %v1428 = vadd.f32 0.0, %v1427
      %1429 = vmatprep.mubr.bf16.mxu0 %v342
      %1430 = vmatmul.mubr.bf16.gmra.mrb[0].mxu0 %v341
      %v1431 = vpop.f32.mrb[0].mxu0
      %v1432 = vadd.f32 0.0, %v1431
      %v1433 = vpop.f32.mrb[0].mxu0
      %v1434 = vadd.f32 0.0, %v1433
      %v1435 = vpop.f32.mrb[0].mxu0
      %v1436 = vadd.f32 0.0, %v1435
      %v1437 = vpop.f32.mrb[0].mxu0
      %v1438 = vadd.f32 0.0, %v1437
      %1439 = vmatprep.mubr.bf16.mxu0 %v346
      %1440 = vmatmul.mubr.bf16.gmra.mrb[0].mxu0 %v345
      %v1441 = vpop.f32.mrb[0].mxu0
      %v1442 = vadd.f32 0.0, %v1441
      %v1443 = vpop.f32.mrb[0].mxu0
      %v1444 = vadd.f32 0.0, %v1443
      %v1445 = vpop.f32.mrb[0].mxu0
      %v1446 = vadd.f32 0.0, %v1445
      %v1447 = vpop.f32.mrb[0].mxu0
      %v1448 = vadd.f32 0.0, %v1447
      %1449 = vmatprep.mubr.bf16.mxu0 %v350
      %1450 = vmatmul.mubr.bf16.gmra.mrb[0].mxu0 %v349
      %v1451 = vpop.f32.mrb[0].mxu0
      %v1452 = vadd.f32 0.0, %v1451
      %v1453 = vpop.f32.mrb[0].mxu0
      %v1454 = vadd.f32 0.0, %v1453
      %v1455 = vpop.f32.mrb[0].mxu0
      %v1456 = vadd.f32 0.0, %v1455
      %v1457 = vpop.f32.mrb[0].mxu0
      %v1458 = vadd.f32 0.0, %v1457
      %1459 = vdwg.mxu0
      %1460 = vmatprep.subr.bf16.mxu0 %v932
      %1461 = vmatpush1.bf16.msra.mxu0 %v931
      %1462 = vmatprep.subr.bf16.mxu0 %v936
      %1463 = vmatpush1.bf16.msra.mxu0 %v935
      %1464 = vmatprep.subr.bf16.mxu0 %v940
      %1465 = vmatpush1.bf16.msra.mxu0 %v939
      %1466 = vmatprep.subr.bf16.mxu0 %v944
      %1467 = vmatpush1.bf16.msra.mxu0 %v943
      %1468 = vmatprep.subr.bf16.mxu0 %v948
      %1469 = vmatpush1.bf16.msra.mxu0 %v947
      %1470 = vmatprep.subr.bf16.mxu0 %v952
      %1471 = vmatpush1.bf16.msra.mxu0 %v951
      %1472 = vmatprep.subr.bf16.mxu0 %v956
      %1473 = vmatpush1.bf16.msra.mxu0 %v955
      %1474 = vmatprep.subr.bf16.mxu0 %v960
      %1475 = vmatpush1.bf16.msra.mxu0 %v959
      %1476 = vmatprep.subr.bf16.mxu0 %v964
      %1477 = vmatpush1.bf16.msra.mxu0 %v963
      %1478 = vmatprep.subr.bf16.mxu0 %v968
      %1479 = vmatpush1.bf16.msra.mxu0 %v967
      %1480 = vmatprep.subr.bf16.mxu0 %v972
      %1481 = vmatpush1.bf16.msra.mxu0 %v971
      %1482 = vmatprep.subr.bf16.mxu0 %v976
      %1483 = vmatpush1.bf16.msra.mxu0 %v975
      %1484 = vmatprep.subr.bf16.mxu0 %v980
      %1485 = vmatpush1.bf16.msra.mxu0 %v979
      %1486 = vmatprep.subr.bf16.mxu0 %v984
      %1487 = vmatpush1.bf16.msra.mxu0 %v983
      %1488 = vmatprep.subr.bf16.mxu0 %v988
      %1489 = vmatpush1.bf16.msra.mxu0 %v987
      %1490 = vmatprep.subr.bf16.mxu0 %v992
      %1491 = vmatpush1.bf16.msra.mxu0 %v991
      %1492 = vmatprep.mubr.bf16.mxu0 %v324
      %1493 = vmatmul.mubr.bf16.gmra.mrb[0].mxu0 %v323
      %v1494 = vpop.f32.mrb[0].mxu0
      %v1495 = vadd.f32 %v1382, %v1494
      %v1496 = vpop.f32.mrb[0].mxu0
      %v1497 = vadd.f32 %v1384, %v1496
      %v1498 = vpop.f32.mrb[0].mxu0
      %v1499 = vadd.f32 %v1386, %v1498
      %v1500 = vpop.f32.mrb[0].mxu0
      %v1501 = vadd.f32 %v1388, %v1500
      %1502 = vmatprep.mubr.bf16.mxu0 %v328
      %1503 = vmatmul.mubr.bf16.gmra.mrb[0].mxu0 %v327
      %v1504 = vpop.f32.mrb[0].mxu0
      %v1505 = vadd.f32 %v1392, %v1504
      %v1506 = vpop.f32.mrb[0].mxu0
      %v1507 = vadd.f32 %v1394, %v1506
      %v1508 = vpop.f32.mrb[0].mxu0
      %v1509 = vadd.f32 %v1396, %v1508
      %v1510 = vpop.f32.mrb[0].mxu0
      %v1511 = vadd.f32 %v1398, %v1510
      %1512 = vmatprep.mubr.bf16.mxu0 %v332
      %1513 = vmatmul.mubr.bf16.gmra.mrb[0].mxu0 %v331
      %v1514 = vpop.f32.mrb[0].mxu0
      %v1515 = vadd.f32 %v1402, %v1514
      %v1516 = vpop.f32.mrb[0].mxu0
      %v1517 = vadd.f32 %v1404, %v1516
      %v1518 = vpop.f32.mrb[0].mxu0
      %v1519 = vadd.f32 %v1406, %v1518
      %v1520 = vpop.f32.mrb[0].mxu0
      %v1521 = vadd.f32 %v1408, %v1520
      %1522 = vmatprep.mubr.bf16.mxu0 %v336
      %1523 = vmatmul.mubr.bf16.gmra.mrb[0].mxu0 %v335
      %v1524 = vpop.f32.mrb[0].mxu0
      %v1525 = vadd.f32 %v1412, %v1524
      %v1526 = vpop.f32.mrb[0].mxu0
      %v1527 = vadd.f32 %v1414, %v1526
      %v1528 = vpop.f32.mrb[0].mxu0
      %v1529 = vadd.f32 %v1416, %v1528
      %v1530 = vpop.f32.mrb[0].mxu0
      %v1531 = vadd.f32 %v1418, %v1530
      %1532 = vmatprep.mubr.bf16.mxu0 %v340
      %1533 = vmatmul.mubr.bf16.gmra.mrb[0].mxu0 %v339
      %v1534 = vpop.f32.mrb[0].mxu0
      %v1535 = vadd.f32 %v1422, %v1534
      %v1536 = vpop.f32.mrb[0].mxu0
      %v1537 = vadd.f32 %v1424, %v1536
      %v1538 = vpop.f32.mrb[0].mxu0
      %v1539 = vadd.f32 %v1426, %v1538
      %v1540 = vpop.f32.mrb[0].mxu0
      %v1541 = vadd.f32 %v1428, %v1540
      %1542 = vmatprep.mubr.bf16.mxu0 %v344
      %1543 = vmatmul.mubr.bf16.gmra.mrb[0].mxu0 %v343
      %v1544 = vpop.f32.mrb[0].mxu0
      %v1545 = vadd.f32 %v1432, %v1544
      %v1546 = vpop.f32.mrb[0].mxu0
      %v1547 = vadd.f32 %v1434, %v1546
      %v1548 = vpop.f32.mrb[0].mxu0
      %v1549 = vadd.f32 %v1436, %v1548
      %v1550 = vpop.f32.mrb[0].mxu0
      %v1551 = vadd.f32 %v1438, %v1550
      %1552 = vmatprep.mubr.bf16.mxu0 %v348
      %1553 = vmatmul.mubr.bf16.gmra.mrb[0].mxu0 %v347
      %v1554 = vpop.f32.mrb[0].mxu0
      %v1555 = vadd.f32 %v1442, %v1554
      %v1556 = vpop.f32.mrb[0].mxu0
      %v1557 = vadd.f32 %v1444, %v1556
      %v1558 = vpop.f32.mrb[0].mxu0
      %v1559 = vadd.f32 %v1446, %v1558
      %v1560 = vpop.f32.mrb[0].mxu0
      %v1561 = vadd.f32 %v1448, %v1560
      %1562 = vmatprep.mubr.bf16.mxu0 %v352
      %1563 = vmatmul.mubr.bf16.gmra.mrb[0].mxu0 %v351
      %v1564 = vpop.f32.mrb[0].mxu0
      %v1565 = vadd.f32 %v1452, %v1564
      %v1566 = vpop.f32.mrb[0].mxu0
      %v1567 = vadd.f32 %v1454, %v1566
      %v1568 = vpop.f32.mrb[0].mxu0
      %v1569 = vadd.f32 %v1456, %v1568
      %v1570 = vpop.f32.mrb[0].mxu0
      %v1571 = vadd.f32 %v1458, %v1570
      %1572 = vdwg.mxu0
      %v1573 = vpack.c.bf16 %v1273, %v1269
      %v1574 = vpack.c.bf16 %v1275, %v1271
      %v1575 = vpack.c.bf16 %v1499, %v1495
      %v1576 = vpack.c.bf16 %v1501, %v1497
      %v1577 = vpack.c.bf16 %v1283, %v1279
      %v1578 = vpack.c.bf16 %v1285, %v1281
      %v1579 = vpack.c.bf16 %v1509, %v1505
      %v1580 = vpack.c.bf16 %v1511, %v1507
      %v1581 = vpack.c.bf16 %v1293, %v1289
      %v1582 = vpack.c.bf16 %v1295, %v1291
      %v1583 = vpack.c.bf16 %v1519, %v1515
      %v1584 = vpack.c.bf16 %v1521, %v1517
      %v1585 = vpack.c.bf16 %v1303, %v1299
      %v1586 = vpack.c.bf16 %v1305, %v1301
      %v1587 = vpack.c.bf16 %v1529, %v1525
      %v1588 = vpack.c.bf16 %v1531, %v1527
      %v1589 = vpack.c.bf16 %v1313, %v1309
      %v1590 = vpack.c.bf16 %v1315, %v1311
      %v1591 = vpack.c.bf16 %v1539, %v1535
      %v1592 = vpack.c.bf16 %v1541, %v1537
      %v1593 = vpack.c.bf16 %v1323, %v1319
      %v1594 = vpack.c.bf16 %v1325, %v1321
      %v1595 = vpack.c.bf16 %v1549, %v1545
      %v1596 = vpack.c.bf16 %v1551, %v1547
      %v1597 = vpack.c.bf16 %v1333, %v1329
      %v1598 = vpack.c.bf16 %v1335, %v1331
      %v1599 = vpack.c.bf16 %v1559, %v1555
      %v1600 = vpack.c.bf16 %v1561, %v1557
      %v1601 = vpack.c.bf16 %v1343, %v1339
      %v1602 = vpack.c.bf16 %v1345, %v1341
      %v1603 = vpack.c.bf16 %v1569, %v1565
      %v1604 = vpack.c.bf16 %v1571, %v1567
      %v1637 = vunpack.c.l.b16 %v1573
      %v1638 = vunpack.c.l.b16 %v1574
      %v1639 = vunpack.c.l.b16 %v1575
      %v1640 = vunpack.c.l.b16 %v1576
      %v1641 = vunpack.c.h.b16 %v1573
      %v1642 = vunpack.c.h.b16 %v1574
      %v1643 = vunpack.c.h.b16 %v1575
      %v1644 = vunpack.c.h.b16 %v1576
      %v1645 = vunpack.c.l.b16 %v1577
      %v1646 = vunpack.c.l.b16 %v1578
      %v1647 = vunpack.c.l.b16 %v1579
      %v1648 = vunpack.c.l.b16 %v1580
      %v1649 = vunpack.c.h.b16 %v1577
      %v1650 = vunpack.c.h.b16 %v1578
      %v1651 = vunpack.c.h.b16 %v1579
      %v1652 = vunpack.c.h.b16 %v1580
      %v1653 = vunpack.c.l.b16 %v1581
      %v1654 = vunpack.c.l.b16 %v1582
      %v1655 = vunpack.c.l.b16 %v1583
      %v1656 = vunpack.c.l.b16 %v1584
      %v1657 = vunpack.c.h.b16 %v1581
      %v1658 = vunpack.c.h.b16 %v1582
      %v1659 = vunpack.c.h.b16 %v1583
      %v1660 = vunpack.c.h.b16 %v1584
      %v1661 = vunpack.c.l.b16 %v1585
      %v1662 = vunpack.c.l.b16 %v1586
      %v1663 = vunpack.c.l.b16 %v1587
      %v1664 = vunpack.c.l.b16 %v1588
      %v1665 = vunpack.c.h.b16 %v1585
      %v1666 = vunpack.c.h.b16 %v1586
      %v1667 = vunpack.c.h.b16 %v1587
      %v1668 = vunpack.c.h.b16 %v1588
      %v1669 = vunpack.c.l.b16 %v1589
      %v1670 = vunpack.c.l.b16 %v1590
      %v1671 = vunpack.c.l.b16 %v1591
      %v1672 = vunpack.c.l.b16 %v1592
      %v1673 = vunpack.c.h.b16 %v1589
      %v1674 = vunpack.c.h.b16 %v1590
      %v1675 = vunpack.c.h.b16 %v1591
      %v1676 = vunpack.c.h.b16 %v1592
      %v1677 = vunpack.c.l.b16 %v1593
      %v1678 = vunpack.c.l.b16 %v1594
      %v1679 = vunpack.c.l.b16 %v1595
      %v1680 = vunpack.c.l.b16 %v1596
      %v1681 = vunpack.c.h.b16 %v1593
      %v1682 = vunpack.c.h.b16 %v1594
      %v1683 = vunpack.c.h.b16 %v1595
      %v1684 = vunpack.c.h.b16 %v1596
      %v1685 = vunpack.c.l.b16 %v1597
      %v1686 = vunpack.c.l.b16 %v1598
      %v1687 = vunpack.c.l.b16 %v1599
      %v1688 = vunpack.c.l.b16 %v1600
      %v1689 = vunpack.c.h.b16 %v1597
      %v1690 = vunpack.c.h.b16 %v1598
      %v1691 = vunpack.c.h.b16 %v1599
      %v1692 = vunpack.c.h.b16 %v1600
      %v1693 = vunpack.c.l.b16 %v1601
      %v1694 = vunpack.c.l.b16 %v1602
      %v1695 = vunpack.c.l.b16 %v1603
      %v1696 = vunpack.c.l.b16 %v1604
      %v1697 = vunpack.c.h.b16 %v1601
      %v1698 = vunpack.c.h.b16 %v1602
      %v1699 = vunpack.c.h.b16 %v1603
      %v1700 = vunpack.c.h.b16 %v1604
      %v1701 = vpack.c.b16 %v1638, %v1637
      %v1702 = vpack.c.b16 %v1640, %v1639
      %v1703 = vpack.c.b16 %v1642, %v1641
      %v1704 = vpack.c.b16 %v1644, %v1643
      %v1705 = vpack.c.b16 %v1646, %v1645
      %v1706 = vpack.c.b16 %v1648, %v1647
      %v1707 = vpack.c.b16 %v1650, %v1649
      %v1708 = vpack.c.b16 %v1652, %v1651
      %v1709 = vpack.c.b16 %v1654, %v1653
      %v1710 = vpack.c.b16 %v1656, %v1655
      %v1711 = vpack.c.b16 %v1658, %v1657
      %v1712 = vpack.c.b16 %v1660, %v1659
      %v1713 = vpack.c.b16 %v1662, %v1661
      %v1714 = vpack.c.b16 %v1664, %v1663
      %v1715 = vpack.c.b16 %v1666, %v1665
      %v1716 = vpack.c.b16 %v1668, %v1667
      %v1717 = vpack.c.b16 %v1670, %v1669
      %v1718 = vpack.c.b16 %v1672, %v1671
      %v1719 = vpack.c.b16 %v1674, %v1673
      %v1720 = vpack.c.b16 %v1676, %v1675
      %v1721 = vpack.c.b16 %v1678, %v1677
      %v1722 = vpack.c.b16 %v1680, %v1679
      %v1723 = vpack.c.b16 %v1682, %v1681
      %v1724 = vpack.c.b16 %v1684, %v1683
      %v1725 = vpack.c.b16 %v1686, %v1685
      %v1726 = vpack.c.b16 %v1688, %v1687
      %v1727 = vpack.c.b16 %v1690, %v1689
      %v1728 = vpack.c.b16 %v1692, %v1691
      %v1729 = vpack.c.b16 %v1694, %v1693
      %v1730 = vpack.c.b16 %v1696, %v1695
      %v1731 = vpack.c.b16 %v1698, %v1697
      %v1732 = vpack.c.b16 %v1700, %v1699
      %1765 = vst [vmem:[%s245] sm:$0xff] %v1701
      %1766 = vst [vmem:[%s245 + $0x8] sm:$0xff] %v1702
      %1767 = vst [vmem:[%s245 + $0x10] sm:$0xff] %v1703
      %1768 = vst [vmem:[%s245 + $0x18] sm:$0xff] %v1704
      %1769 = vst [vmem:[%s245 + $0x20] sm:$0xff] %v1705
      %1770 = vst [vmem:[%s245 + $0x28] sm:$0xff] %v1706
      %1771 = vst [vmem:[%s245 + $0x30] sm:$0xff] %v1707
      %1772 = vst [vmem:[%s245 + $0x38] sm:$0xff] %v1708
      %1773 = vst [vmem:[%s245 + $0x40] sm:$0xff] %v1709
      %1774 = vst [vmem:[%s245 + $0x48] sm:$0xff] %v1710
      %1775 = vst [vmem:[%s245 + $0x50] sm:$0xff] %v1711
      %1776 = vst [vmem:[%s245 + $0x58] sm:$0xff] %v1712
      %1777 = vst [vmem:[%s245 + $0x60] sm:$0xff] %v1713
      %1778 = vst [vmem:[%s245 + $0x68] sm:$0xff] %v1714
      %1779 = vst [vmem:[%s245 + $0x70] sm:$0xff] %v1715
      %1780 = vst [vmem:[%s245 + $0x78] sm:$0xff] %v1716
      %1781 = vst [vmem:[%s245 + $0x80] sm:$0xff] %v1717
      %1782 = vst [vmem:[%s245 + $0x88] sm:$0xff] %v1718
      %1783 = vst [vmem:[%s245 + $0x90] sm:$0xff] %v1719
      %1784 = vst [vmem:[%s245 + $0x98] sm:$0xff] %v1720
      %1785 = vst [vmem:[%s245 + $0xa0] sm:$0xff] %v1721
      %1786 = vst [vmem:[%s245 + $0xa8] sm:$0xff] %v1722
      %1787 = vst [vmem:[%s245 + $0xb0] sm:$0xff] %v1723
      %1788 = vst [vmem:[%s245 + $0xb8] sm:$0xff] %v1724
      %1789 = vst [vmem:[%s245 + $0xc0] sm:$0xff] %v1725
      %1790 = vst [vmem:[%s245 + $0xc8] sm:$0xff] %v1726
      %1791 = vst [vmem:[%s245 + $0xd0] sm:$0xff] %v1727
      %1792 = vst [vmem:[%s245 + $0xd8] sm:$0xff] %v1728
      %1793 = vst [vmem:[%s245 + $0xe0] sm:$0xff] %v1729
      %1794 = vst [vmem:[%s245 + $0xe8] sm:$0xff] %v1730
      %1795 = vst [vmem:[%s245 + $0xf0] sm:$0xff] %v1731
      %1796 = vst [vmem:[%s245 + $0xf8] sm:$0xff] %v1732
      %v1797 = vld [vmem:[%s2] sm:$0xff]
      %v1798 = vld [vmem:[%s2 + $0x8] sm:$0xff]
      %v1799 = vld [vmem:[%s2 + $0x10] sm:$0xff]
      %v1800 = vld [vmem:[%s2 + $0x18] sm:$0xff]
      %v1801 = vld [vmem:[%s2 + $0x20] sm:$0xff]
      %v1802 = vld [vmem:[%s2 + $0x28] sm:$0xff]
      %v1803 = vld [vmem:[%s2 + $0x30] sm:$0xff]
      %v1804 = vld [vmem:[%s2 + $0x38] sm:$0xff]
      %v1805 = vld [vmem:[%s2 + $0x40] sm:$0xff]
      %v1806 = vld [vmem:[%s2 + $0x48] sm:$0xff]
      %v1807 = vld [vmem:[%s2 + $0x50] sm:$0xff]
      %v1808 = vld [vmem:[%s2 + $0x58] sm:$0xff]
      %v1809 = vld [vmem:[%s2 + $0x60] sm:$0xff]
      %v1810 = vld [vmem:[%s2 + $0x68] sm:$0xff]
      %v1811 = vld [vmem:[%s2 + $0x70] sm:$0xff]
      %v1812 = vld [vmem:[%s2 + $0x78] sm:$0xff]
      %v1813 = vld [vmem:[%s2 + $0x80] sm:$0xff]
      %v1814 = vld [vmem:[%s2 + $0x88] sm:$0xff]
      %v1815 = vld [vmem:[%s2 + $0x90] sm:$0xff]
      %v1816 = vld [vmem:[%s2 + $0x98] sm:$0xff]
      %v1817 = vld [vmem:[%s2 + $0xa0] sm:$0xff]
      %v1818 = vld [vmem:[%s2 + $0xa8] sm:$0xff]
      %v1819 = vld [vmem:[%s2 + $0xb0] sm:$0xff]
      %v1820 = vld [vmem:[%s2 + $0xb8] sm:$0xff]
      %v1821 = vld [vmem:[%s2 + $0xc0] sm:$0xff]
      %v1822 = vld [vmem:[%s2 + $0xc8] sm:$0xff]
      %v1823 = vld [vmem:[%s2 + $0xd0] sm:$0xff]
      %v1824 = vld [vmem:[%s2 + $0xd8] sm:$0xff]
      %v1825 = vld [vmem:[%s2 + $0xe0] sm:$0xff]
      %v1826 = vld [vmem:[%s2 + $0xe8] sm:$0xff]
      %v1827 = vld [vmem:[%s2 + $0xf0] sm:$0xff]
      %v1828 = vld [vmem:[%s2 + $0xf8] sm:$0xff]
      %v1829 = vld [vmem:[%s2 + $0x100] sm:$0xff]
      %v1830 = vld [vmem:[%s2 + $0x108] sm:$0xff]
      %v1831 = vld [vmem:[%s2 + $0x110] sm:$0xff]
      %v1832 = vld [vmem:[%s2 + $0x118] sm:$0xff]
      %v1833 = vld [vmem:[%s2 + $0x120] sm:$0xff]
      %v1834 = vld [vmem:[%s2 + $0x128] sm:$0xff]
      %v1835 = vld [vmem:[%s2 + $0x130] sm:$0xff]
      %v1836 = vld [vmem:[%s2 + $0x138] sm:$0xff]
      %v1837 = vld [vmem:[%s2 + $0x140] sm:$0xff]
      %v1838 = vld [vmem:[%s2 + $0x148] sm:$0xff]
      %v1839 = vld [vmem:[%s2 + $0x150] sm:$0xff]
      %v1840 = vld [vmem:[%s2 + $0x158] sm:$0xff]
      %v1841 = vld [vmem:[%s2 + $0x160] sm:$0xff]
      %v1842 = vld [vmem:[%s2 + $0x168] sm:$0xff]
      %v1843 = vld [vmem:[%s2 + $0x170] sm:$0xff]
      %v1844 = vld [vmem:[%s2 + $0x178] sm:$0xff]
      %v1845 = vld [vmem:[%s2 + $0x180] sm:$0xff]
      %v1846 = vld [vmem:[%s2 + $0x188] sm:$0xff]
      %v1847 = vld [vmem:[%s2 + $0x190] sm:$0xff]
      %v1848 = vld [vmem:[%s2 + $0x198] sm:$0xff]
      %v1849 = vld [vmem:[%s2 + $0x1a0] sm:$0xff]
      %v1850 = vld [vmem:[%s2 + $0x1a8] sm:$0xff]
      %v1851 = vld [vmem:[%s2 + $0x1b0] sm:$0xff]
      %v1852 = vld [vmem:[%s2 + $0x1b8] sm:$0xff]
      %v1853 = vld [vmem:[%s2 + $0x1c0] sm:$0xff]
      %v1854 = vld [vmem:[%s2 + $0x1c8] sm:$0xff]
      %v1855 = vld [vmem:[%s2 + $0x1d0] sm:$0xff]
      %v1856 = vld [vmem:[%s2 + $0x1d8] sm:$0xff]
      %v1857 = vld [vmem:[%s2 + $0x1e0] sm:$0xff]
      %v1858 = vld [vmem:[%s2 + $0x1e8] sm:$0xff]
      %v1859 = vld [vmem:[%s2 + $0x1f0] sm:$0xff]
      %v1860 = vld [vmem:[%s2 + $0x1f8] sm:$0xff]
      %1861 = vmatprep.subr.mxu0 0.0
      %1862 = vmatpush1.msra.mxu0 %v1797
      %1863 = vmatprep.subr.mxu0 0.0
      %1864 = vmatpush1.msra.mxu0 %v1798
      %1865 = vmatprep.subr.mxu0 0.0
      %1866 = vmatpush1.msra.mxu0 %v1799
      %1867 = vmatprep.subr.mxu0 0.0
      %1868 = vmatpush1.msra.mxu0 %v1800
      %1869 = vmatprep.subr.mxu0 0.0
      %1870 = vmatpush1.msra.mxu0 %v1801
      %1871 = vmatprep.subr.mxu0 0.0
      %1872 = vmatpush1.msra.mxu0 %v1802
      %1873 = vmatprep.subr.mxu0 0.0
      %1874 = vmatpush1.msra.mxu0 %v1803
      %1875 = vmatprep.subr.mxu0 0.0
      %1876 = vmatpush1.msra.mxu0 %v1804
      %1877 = vmatprep.subr.mxu0 0.0
      %1878 = vmatpush1.msra.mxu0 %v1805
      %1879 = vmatprep.subr.mxu0 0.0
      %1880 = vmatpush1.msra.mxu0 %v1806
      %1881 = vmatprep.subr.mxu0 0.0
      %1882 = vmatpush1.msra.mxu0 %v1807
      %1883 = vmatprep.subr.mxu0 0.0
      %1884 = vmatpush1.msra.mxu0 %v1808
      %1885 = vmatprep.subr.mxu0 0.0
      %1886 = vmatpush1.msra.mxu0 %v1809
      %1887 = vmatprep.subr.mxu0 0.0
      %1888 = vmatpush1.msra.mxu0 %v1810
      %1889 = vmatprep.subr.mxu0 0.0
      %1890 = vmatpush1.msra.mxu0 %v1811
      %1891 = vmatprep.subr.mxu0 0.0
      %1892 = vmatpush1.msra.mxu0 %v1812
      %1893 = vmatprep.subr.mxu0 0.0
      %1894 = vmatpush1.msra.mxu0 %v1813
      %1895 = vmatprep.subr.mxu0 0.0
      %1896 = vmatpush1.msra.mxu0 %v1814
      %1897 = vmatprep.subr.mxu0 0.0
      %1898 = vmatpush1.msra.mxu0 %v1815
      %1899 = vmatprep.subr.mxu0 0.0
      %1900 = vmatpush1.msra.mxu0 %v1816
      %1901 = vmatprep.subr.mxu0 0.0
      %1902 = vmatpush1.msra.mxu0 %v1817
      %1903 = vmatprep.subr.mxu0 0.0
      %1904 = vmatpush1.msra.mxu0 %v1818
      %1905 = vmatprep.subr.mxu0 0.0
      %1906 = vmatpush1.msra.mxu0 %v1819
      %1907 = vmatprep.subr.mxu0 0.0
      %1908 = vmatpush1.msra.mxu0 %v1820
      %1909 = vmatprep.subr.mxu0 0.0
      %1910 = vmatpush1.msra.mxu0 %v1821
      %1911 = vmatprep.subr.mxu0 0.0
      %1912 = vmatpush1.msra.mxu0 %v1822
      %1913 = vmatprep.subr.mxu0 0.0
      %1914 = vmatpush1.msra.mxu0 %v1823
      %1915 = vmatprep.subr.mxu0 0.0
      %1916 = vmatpush1.msra.mxu0 %v1824
      %1917 = vmatprep.subr.mxu0 0.0
      %1918 = vmatpush1.msra.mxu0 %v1825
      %1919 = vmatprep.subr.mxu0 0.0
      %1920 = vmatpush1.msra.mxu0 %v1826
      %1921 = vmatprep.subr.mxu0 0.0
      %1922 = vmatpush1.msra.mxu0 %v1827
      %1923 = vmatprep.subr.mxu0 0.0
      %1924 = vmatpush1.msra.mxu0 %v1828
      %1925 = vmatprep.mubr.f32.mxu0 %v1271
      %1926 = vmatmul.mubr.f32.gmra.mrb[0].mxu0 %v1269
      %v1927 = vpop.f32.mrb[0].mxu0
      %v1928 = vadd.f32 0.0, %v1927
      %v1929 = vpop.f32.mrb[0].mxu0
      %1930 = vmatprep.mubr.f32.mxu0 %v1275
      %1931 = vmatmul.mubr.f32.gmra.mrb[0].mxu0 %v1273
      %v1932 = vpop.f32.mrb[0].mxu0
      %v1933 = vadd.f32 0.0, %v1932
      %v1934 = vpop.f32.mrb[0].mxu0
      %1935 = vmatprep.mubr.f32.mxu0 %v1281
      %1936 = vmatmul.mubr.f32.gmra.mrb[0].mxu0 %v1279
      %v1937 = vpop.f32.mrb[0].mxu0
      %v1938 = vadd.f32 0.0, %v1937
      %v1939 = vpop.f32.mrb[0].mxu0
      %1940 = vmatprep.mubr.f32.mxu0 %v1285
      %1941 = vmatmul.mubr.f32.gmra.mrb[0].mxu0 %v1283
      %v1942 = vpop.f32.mrb[0].mxu0
      %v1943 = vadd.f32 0.0, %v1942
      %v1944 = vpop.f32.mrb[0].mxu0
      %1945 = vmatprep.mubr.f32.mxu0 %v1291
      %1946 = vmatmul.mubr.f32.gmra.mrb[0].mxu0 %v1289
      %v1947 = vpop.f32.mrb[0].mxu0
      %v1948 = vadd.f32 0.0, %v1947
      %v1949 = vpop.f32.mrb[0].mxu0
      %1950 = vmatprep.mubr.f32.mxu0 %v1295
      %1951 = vmatmul.mubr.f32.gmra.mrb[0].mxu0 %v1293
      %v1952 = vpop.f32.mrb[0].mxu0
      %v1953 = vadd.f32 0.0, %v1952
      %v1954 = vpop.f32.mrb[0].mxu0
      %1955 = vmatprep.mubr.f32.mxu0 %v1301
      %1956 = vmatmul.mubr.f32.gmra.mrb[0].mxu0 %v1299
      %v1957 = vpop.f32.mrb[0].mxu0
      %v1958 = vadd.f32 0.0, %v1957
      %v1959 = vpop.f32.mrb[0].mxu0
      %1960 = vmatprep.mubr.f32.mxu0 %v1305
      %1961 = vmatmul.mubr.f32.gmra.mrb[0].mxu0 %v1303
      %v1962 = vpop.f32.mrb[0].mxu0
      %v1963 = vadd.f32 0.0, %v1962
      %v1964 = vpop.f32.mrb[0].mxu0
      %1965 = vmatprep.mubr.f32.mxu0 %v1311
      %1966 = vmatmul.mubr.f32.gmra.mrb[0].mxu0 %v1309
      %v1967 = vpop.f32.mrb[0].mxu0
      %v1968 = vadd.f32 0.0, %v1967
      %v1969 = vpop.f32.mrb[0].mxu0
      %1970 = vmatprep.mubr.f32.mxu0 %v1315
      %1971 = vmatmul.mubr.f32.gmra.mrb[0].mxu0 %v1313
      %v1972 = vpop.f32.mrb[0].mxu0
      %v1973 = vadd.f32 0.0, %v1972
      %v1974 = vpop.f32.mrb[0].mxu0
      %1975 = vmatprep.mubr.f32.mxu0 %v1321
      %1976 = vmatmul.mubr.f32.gmra.mrb[0].mxu0 %v1319
      %v1977 = vpop.f32.mrb[0].mxu0
      %v1978 = vadd.f32 0.0, %v1977
      %v1979 = vpop.f32.mrb[0].mxu0
      %1980 = vmatprep.mubr.f32.mxu0 %v1325
      %1981 = vmatmul.mubr.f32.gmra.mrb[0].mxu0 %v1323
      %v1982 = vpop.f32.mrb[0].mxu0
      %v1983 = vadd.f32 0.0, %v1982
      %v1984 = vpop.f32.mrb[0].mxu0
      %1985 = vmatprep.mubr.f32.mxu0 %v1331
      %1986 = vmatmul.mubr.f32.gmra.mrb[0].mxu0 %v1329
      %v1987 = vpop.f32.mrb[0].mxu0
      %v1988 = vadd.f32 0.0, %v1987
      %v1989 = vpop.f32.mrb[0].mxu0
      %1990 = vmatprep.mubr.f32.mxu0 %v1335
      %1991 = vmatmul.mubr.f32.gmra.mrb[0].mxu0 %v1333
      %v1992 = vpop.f32.mrb[0].mxu0
      %v1993 = vadd.f32 0.0, %v1992
      %v1994 = vpop.f32.mrb[0].mxu0
      %1995 = vmatprep.mubr.f32.mxu0 %v1341
      %1996 = vmatmul.mubr.f32.gmra.mrb[0].mxu0 %v1339
      %v1997 = vpop.f32.mrb[0].mxu0
      %v1998 = vadd.f32 0.0, %v1997
      %v1999 = vpop.f32.mrb[0].mxu0
      %2000 = vmatprep.mubr.f32.mxu0 %v1345
      %2001 = vmatmul.mubr.f32.gmra.mrb[0].mxu0 %v1343
      %v2002 = vpop.f32.mrb[0].mxu0
      %v2003 = vadd.f32 0.0, %v2002
      %v2004 = vpop.f32.mrb[0].mxu0
      %2005 = vdwg.mxu0
      %2006 = vmatprep.subr.mxu0 0.0
      %2007 = vmatpush1.msra.mxu0 %v1829
      %2008 = vmatprep.subr.mxu0 0.0
      %2009 = vmatpush1.msra.mxu0 %v1830
      %2010 = vmatprep.subr.mxu0 0.0
      %2011 = vmatpush1.msra.mxu0 %v1831
      %2012 = vmatprep.subr.mxu0 0.0
      %2013 = vmatpush1.msra.mxu0 %v1832
      %2014 = vmatprep.subr.mxu0 0.0
      %2015 = vmatpush1.msra.mxu0 %v1833
      %2016 = vmatprep.subr.mxu0 0.0
      %2017 = vmatpush1.msra.mxu0 %v1834
      %2018 = vmatprep.subr.mxu0 0.0
      %2019 = vmatpush1.msra.mxu0 %v1835
      %2020 = vmatprep.subr.mxu0 0.0
      %2021 = vmatpush1.msra.mxu0 %v1836
      %2022 = vmatprep.subr.mxu0 0.0
      %2023 = vmatpush1.msra.mxu0 %v1837
      %2024 = vmatprep.subr.mxu0 0.0
      %2025 = vmatpush1.msra.mxu0 %v1838
      %2026 = vmatprep.subr.mxu0 0.0
      %2027 = vmatpush1.msra.mxu0 %v1839
      %2028 = vmatprep.subr.mxu0 0.0
      %2029 = vmatpush1.msra.mxu0 %v1840
      %2030 = vmatprep.subr.mxu0 0.0
      %2031 = vmatpush1.msra.mxu0 %v1841
      %2032 = vmatprep.subr.mxu0 0.0
      %2033 = vmatpush1.msra.mxu0 %v1842
      %2034 = vmatprep.subr.mxu0 0.0
      %2035 = vmatpush1.msra.mxu0 %v1843
      %2036 = vmatprep.subr.mxu0 0.0
      %2037 = vmatpush1.msra.mxu0 %v1844
      %2038 = vmatprep.subr.mxu0 0.0
      %2039 = vmatpush1.msra.mxu0 %v1845
      %2040 = vmatprep.subr.mxu0 0.0
      %2041 = vmatpush1.msra.mxu0 %v1846
      %2042 = vmatprep.subr.mxu0 0.0
      %2043 = vmatpush1.msra.mxu0 %v1847
      %2044 = vmatprep.subr.mxu0 0.0
      %2045 = vmatpush1.msra.mxu0 %v1848
      %2046 = vmatprep.subr.mxu0 0.0
      %2047 = vmatpush1.msra.mxu0 %v1849
      %2048 = vmatprep.subr.mxu0 0.0
      %2049 = vmatpush1.msra.mxu0 %v1850
      %2050 = vmatprep.subr.mxu0 0.0
      %2051 = vmatpush1.msra.mxu0 %v1851
      %2052 = vmatprep.subr.mxu0 0.0
      %2053 = vmatpush1.msra.mxu0 %v1852
      %2054 = vmatprep.subr.mxu0 0.0
      %2055 = vmatpush1.msra.mxu0 %v1853
      %2056 = vmatprep.subr.mxu0 0.0
      %2057 = vmatpush1.msra.mxu0 %v1854
      %2058 = vmatprep.subr.mxu0 0.0
      %2059 = vmatpush1.msra.mxu0 %v1855
      %2060 = vmatprep.subr.mxu0 0.0
      %2061 = vmatpush1.msra.mxu0 %v1856
      %2062 = vmatprep.subr.mxu0 0.0
      %2063 = vmatpush1.msra.mxu0 %v1857
      %2064 = vmatprep.subr.mxu0 0.0
      %2065 = vmatpush1.msra.mxu0 %v1858
      %2066 = vmatprep.subr.mxu0 0.0
      %2067 = vmatpush1.msra.mxu0 %v1859
      %2068 = vmatprep.subr.mxu0 0.0
      %2069 = vmatpush1.msra.mxu0 %v1860
      %2070 = vmatprep.mubr.f32.mxu0 %v1497
      %2071 = vmatmul.mubr.f32.gmra.mrb[0].mxu0 %v1495
      %v2072 = vpop.f32.mrb[0].mxu0
      %v2073 = vadd.f32 %v1928, %v2072
      %v2074 = vpop.f32.mrb[0].mxu0
      %2075 = vmatprep.mubr.f32.mxu0 %v1501
      %2076 = vmatmul.mubr.f32.gmra.mrb[0].mxu0 %v1499
      %v2077 = vpop.f32.mrb[0].mxu0
      %v2078 = vadd.f32 %v1933, %v2077
      %v2079 = vpop.f32.mrb[0].mxu0
      %2080 = vmatprep.mubr.f32.mxu0 %v1507
      %2081 = vmatmul.mubr.f32.gmra.mrb[0].mxu0 %v1505
      %v2082 = vpop.f32.mrb[0].mxu0
      %v2083 = vadd.f32 %v1938, %v2082
      %v2084 = vpop.f32.mrb[0].mxu0
      %2085 = vmatprep.mubr.f32.mxu0 %v1511
      %2086 = vmatmul.mubr.f32.gmra.mrb[0].mxu0 %v1509
      %v2087 = vpop.f32.mrb[0].mxu0
      %v2088 = vadd.f32 %v1943, %v2087
      %v2089 = vpop.f32.mrb[0].mxu0
      %2090 = vmatprep.mubr.f32.mxu0 %v1517
      %2091 = vmatmul.mubr.f32.gmra.mrb[0].mxu0 %v1515
      %v2092 = vpop.f32.mrb[0].mxu0
      %v2093 = vadd.f32 %v1948, %v2092
      %v2094 = vpop.f32.mrb[0].mxu0
      %2095 = vmatprep.mubr.f32.mxu0 %v1521
      %2096 = vmatmul.mubr.f32.gmra.mrb[0].mxu0 %v1519
      %v2097 = vpop.f32.mrb[0].mxu0
      %v2098 = vadd.f32 %v1953, %v2097
      %v2099 = vpop.f32.mrb[0].mxu0
      %2100 = vmatprep.mubr.f32.mxu0 %v1527
      %2101 = vmatmul.mubr.f32.gmra.mrb[0].mxu0 %v1525
      %v2102 = vpop.f32.mrb[0].mxu0
      %v2103 = vadd.f32 %v1958, %v2102
      %v2104 = vpop.f32.mrb[0].mxu0
      %2105 = vmatprep.mubr.f32.mxu0 %v1531
      %2106 = vmatmul.mubr.f32.gmra.mrb[0].mxu0 %v1529
      %v2107 = vpop.f32.mrb[0].mxu0
      %v2108 = vadd.f32 %v1963, %v2107
      %v2109 = vpop.f32.mrb[0].mxu0
      %2110 = vmatprep.mubr.f32.mxu0 %v1537
      %2111 = vmatmul.mubr.f32.gmra.mrb[0].mxu0 %v1535
      %v2112 = vpop.f32.mrb[0].mxu0
      %v2113 = vadd.f32 %v1968, %v2112
      %v2114 = vpop.f32.mrb[0].mxu0
      %2115 = vmatprep.mubr.f32.mxu0 %v1541
      %2116 = vmatmul.mubr.f32.gmra.mrb[0].mxu0 %v1539
      %v2117 = vpop.f32.mrb[0].mxu0
      %v2118 = vadd.f32 %v1973, %v2117
      %v2119 = vpop.f32.mrb[0].mxu0
      %2120 = vmatprep.mubr.f32.mxu0 %v1547
      %2121 = vmatmul.mubr.f32.gmra.mrb[0].mxu0 %v1545
      %v2122 = vpop.f32.mrb[0].mxu0
      %v2123 = vadd.f32 %v1978, %v2122
      %v2124 = vpop.f32.mrb[0].mxu0
      %2125 = vmatprep.mubr.f32.mxu0 %v1551
      %2126 = vmatmul.mubr.f32.gmra.mrb[0].mxu0 %v1549
      %v2127 = vpop.f32.mrb[0].mxu0
      %v2128 = vadd.f32 %v1983, %v2127
      %v2129 = vpop.f32.mrb[0].mxu0
      %2130 = vmatprep.mubr.f32.mxu0 %v1557
      %2131 = vmatmul.mubr.f32.gmra.mrb[0].mxu0 %v1555
      %v2132 = vpop.f32.mrb[0].mxu0
      %v2133 = vadd.f32 %v1988, %v2132
      %v2134 = vpop.f32.mrb[0].mxu0
      %2135 = vmatprep.mubr.f32.mxu0 %v1561
      %2136 = vmatmul.mubr.f32.gmra.mrb[0].mxu0 %v1559
      %v2137 = vpop.f32.mrb[0].mxu0
      %v2138 = vadd.f32 %v1993, %v2137
      %v2139 = vpop.f32.mrb[0].mxu0
      %2140 = vmatprep.mubr.f32.mxu0 %v1567
      %2141 = vmatmul.mubr.f32.gmra.mrb[0].mxu0 %v1565
      %v2142 = vpop.f32.mrb[0].mxu0
      %v2143 = vadd.f32 %v1998, %v2142
      %v2144 = vpop.f32.mrb[0].mxu0
      %2145 = vmatprep.mubr.f32.mxu0 %v1571
      %2146 = vmatmul.mubr.f32.gmra.mrb[0].mxu0 %v1569
      %v2147 = vpop.f32.mrb[0].mxu0
      %v2148 = vadd.f32 %v2003, %v2147
      %v2149 = vpop.f32.mrb[0].mxu0
      %2150 = vdwg.mxu0
      %2151 = vst [vmem:[%s251] sm:$0xff] %v2073
      %2152 = vst [vmem:[%s251 + $0x8] sm:$0xff] %v2078
      %2153 = vst [vmem:[%s251 + $0x10] sm:$0xff] %v2083
      %2154 = vst [vmem:[%s251 + $0x18] sm:$0xff] %v2088
      %2155 = vst [vmem:[%s251 + $0x20] sm:$0xff] %v2093
      %2156 = vst [vmem:[%s251 + $0x28] sm:$0xff] %v2098
      %2157 = vst [vmem:[%s251 + $0x30] sm:$0xff] %v2103
      %2158 = vst [vmem:[%s251 + $0x38] sm:$0xff] %v2108
      %2159 = vst [vmem:[%s251 + $0x40] sm:$0xff] %v2113
      %2160 = vst [vmem:[%s251 + $0x48] sm:$0xff] %v2118
      %2161 = vst [vmem:[%s251 + $0x50] sm:$0xff] %v2123
      %2162 = vst [vmem:[%s251 + $0x58] sm:$0xff] %v2128
      %2163 = vst [vmem:[%s251 + $0x60] sm:$0xff] %v2133
      %2164 = vst [vmem:[%s251 + $0x68] sm:$0xff] %v2138
      %2165 = vst [vmem:[%s251 + $0x70] sm:$0xff] %v2143
      %2166 = vst [vmem:[%s251 + $0x78] sm:$0xff] %v2148
      %2167 = vxpose.xlu0.b32.start [1/16] %v2073, 128
      %2168 = vxpose.xlu0.b32.cont [2/16] %v2078, 128
      %2169 = vxpose.xlu0.b32.cont [3/16] %v2083, 128
      %2170 = vxpose.xlu0.b32.cont [4/16] %v2088, 128
      %2171 = vxpose.xlu0.b32.cont [5/16] %v2093, 128
      %2172 = vxpose.xlu0.b32.cont [6/16] %v2098, 128
      %2173 = vxpose.xlu0.b32.cont [7/16] %v2103, 128
      %2174 = vxpose.xlu0.b32.cont [8/16] %v2108, 128
      %2175 = vxpose.xlu0.b32.cont [9/16] %v2113, 128
      %2176 = vxpose.xlu0.b32.cont [10/16] %v2118, 128
      %2177 = vxpose.xlu0.b32.cont [11/16] %v2123, 128
      %2178 = vxpose.xlu0.b32.cont [12/16] %v2128, 128
      %2179 = vxpose.xlu0.b32.cont [13/16] %v2133, 128
      %2180 = vxpose.xlu0.b32.cont [14/16] %v2138, 128
      %2181 = vxpose.xlu0.b32.cont [15/16] %v2143, 128
      %2182 = vxpose.xlu0.b32.end [16/16] %v2148, 128
      %v2183 = vpop.trf.xlu0
      %v2184 = vpop.trf.xlu0
      %v2185 = vpop.trf.xlu0
      %v2186 = vpop.trf.xlu0
      %v2187 = vpop.trf.xlu0
      %v2188 = vpop.trf.xlu0
      %v2189 = vpop.trf.xlu0
      %v2190 = vpop.trf.xlu0
      %v2191 = vpop.trf.xlu0
      %v2192 = vpop.trf.xlu0
      %v2193 = vpop.trf.xlu0
      %v2194 = vpop.trf.xlu0
      %v2195 = vpop.trf.xlu0
      %v2196 = vpop.trf.xlu0
      %v2197 = vpop.trf.xlu0
      %v2198 = vpop.trf.xlu0
      %2199 = vst [vmem:[%s256] sm:$0xff] %v2183
      %s2200 = smul.u32 16, %s17
      %p2201 = scmp.lt.s32.totalorder %s2200, 31
      %s2202 = scalar_select %p2201, %s2200, 31
      %s2203 = smul.addr %s2202, 4
      %s2204 = smul.addr %s2203, 4
      %s2205 = scalar_lea.vmem %s3, %s2204
      %s2206 = smul.u32 16, %s17
      %p2207 = scmp.lt.s32.totalorder %s2206, 31
      %s2208 = scalar_select %p2207, %s2206, 31
      %s2209 = smul.addr %s2208, 8
      %s2210 = scalar_lea.vmem %s4, %s2209
      %p2211 = scmp.lt.s32.totalorder %s17, 1
      %s2212 = scalar_select %p2211, %s17, 1
      %s2213 = smul.addr %s2212, 8
      %s2214 = scalar_lea.vmem %s5, %s2213
      // Predicated region
      $region33: #{gatnet_forward.3} parent=31 // pred_check
        %p2215 = pneg %p103
      $region34: #{gatnet_forward.3} parent=31 // pred_check_branch
        %2217 = sbr.rel (%p2215) target = $region36
      $region35: #{gatnet_forward.3} parent=31 // pred_region
        %s2218 = smul.u32 16, %s17
      $region36: #{gatnet_forward.3} parent=31 // pred_fallthru
        _
      // Predicated region
      $region37: #{gatnet_forward.3} parent=31 // pred_check
        %p2219 = pneg %p129
      $region38: #{gatnet_forward.3} parent=31 // pred_check_branch
        %2221 = sbr.rel (%p2219) target = $region40
      $region39: #{gatnet_forward.3} parent=31 // pred_region
        %s2222 = smul.u32 16, %s17
      $region40: #{gatnet_forward.3} parent=31 // pred_fallthru
        _
      // Predicated region
      $region41: #{gatnet_forward.3} parent=31 // pred_check
        %p2223 = pneg %p155
      $region42: #{gatnet_forward.3} parent=31 // pred_check_branch
        %2225 = sbr.rel (%p2223) target = $region44
      $region43: #{gatnet_forward.3} parent=31 // pred_region
        _
      $region44: #{gatnet_forward.3} parent=31 // pred_fallthru
        _
    $region32: #{gatnet_forward.3} parent=5 // pred_fallthru
      _
    %p2226 = scmp.le.s32.totalorder 2, %s12
    // Predicated region
    $region45: #{gatnet_forward.3} parent=5 // pred_check
      %p2227 = pneg %p2226
    $region46: #{gatnet_forward.3} parent=5 // pred_check_branch
      %2229 = sbr.rel (%p2227) target = $region48
    $region47: #{gatnet_forward.3} parent=5 // pred_region
      %s2230 = ssub.s32 %s12, 2
      // Predicated region
      $region49: #{gatnet_forward.3} parent=47 // pred_check
        %p2231 = pneg %p109
      $region50: #{gatnet_forward.3} parent=47 // pred_check_branch
        %2233 = sbr.rel (%p2231) target = $region52
      $region51: #{gatnet_forward.3} parent=47 // pred_region
        %s2234 = smul.u32 16, %s18
        %p2235 = scmp.lt.s32.totalorder %s2234, 31
        %s2236 = scalar_select %p2235, %s2234, 31
        %s2237 = smul.addr %s2236, 4
        %s2238 = smul.addr %s2237, 4
        %s2239 = scalar_lea.vmem %s3, %s2238
      $region52: #{gatnet_forward.3} parent=47 // pred_fallthru
        _
      // Predicated region
      $region53: #{gatnet_forward.3} parent=47 // pred_check
        %p2240 = pneg %p135
      $region54: #{gatnet_forward.3} parent=47 // pred_check_branch
        %2242 = sbr.rel (%p2240) target = $region56
      $region55: #{gatnet_forward.3} parent=47 // pred_region
        %s2243 = smul.u32 16, %s18
        %p2244 = scmp.lt.s32.totalorder %s2243, 31
        %s2245 = scalar_select %p2244, %s2243, 31
        %s2246 = smul.addr %s2245, 8
        %s2247 = scalar_lea.vmem %s4, %s2246
      $region56: #{gatnet_forward.3} parent=47 // pred_fallthru
        _
      // Predicated region
      $region57: #{gatnet_forward.3} parent=47 // pred_check
        %p2248 = pneg %p161
      $region58: #{gatnet_forward.3} parent=47 // pred_check_branch
        %2250 = sbr.rel (%p2248) target = $region60
      $region59: #{gatnet_forward.3} parent=47 // pred_region
        %p2251 = scmp.lt.s32.totalorder %s18, 1
        %s2252 = scalar_select %p2251, %s18, 1
        %s2253 = smul.addr %s2252, 8
        %s2254 = scalar_lea.vmem %s5, %s2253
      $region60: #{gatnet_forward.3} parent=47 // pred_fallthru
        _
    $region48: #{gatnet_forward.3} parent=5 // pred_fallthru
      _
  $region6: #{gatnet_forward.3} parent=0 // loop_footer
    %s16 = sadd.s32 1, %s12
  $region7: #{gatnet_forward.3} parent=0 // loop_footer_branch
    %11 = sbr.rel target = $region3
  $region8: #{gatnet_forward.3} parent=0 // loop_exit
    _

// kernel: gatnet_forward.5
$region0: #{gatnet_forward.5}
  #allocation0 [shape = 'u32[]', space=smem, size = 0x4, offset = 0x4, fixed_abs, tag = 'smem constant byte address 0x4 - core index']
  #allocation1 [shape = 'u32[144,128]{1,0:T(1,128)}', space=vmem, size = 0x12000, scoped, tag = 'internal scratch']
  %s0 = inlined_call_operand.vmem [shape: f32[256,128], index: 0, kind: input, shape index: {}]
  %s1 = inlined_call_operand.vmem [shape: f32[256,128], index: 1, kind: input, shape index: {}]
  %s2 = inlined_call_operand.hbm [shape: f32[256,256], index: 2, kind: output, shape index: {}]
  %s3 = sld [smem:[#allocation0]]
  $region41: #{gatnet_forward.5} parent=0
    _
  %s5 = ssub.s32 1, %s3
  %s6 = scalar_select 0, %s5, %s3
  $region1: #{gatnet_forward.5} parent=0
    #allocation2 [shape = 'u8[262144]{0}', space=vmem, size = 0x40000, scoped, tag = 'output window, operand 0']
    #allocation3 [shape = 's32[2]{0}', space=sflag, size = 0x8, scoped, tag = 'scoped memory for gatnet_forward.5']
    %7 = vsyncpa [#allocation3], 0
    %s8 = scalar_lea.sflag [#allocation3], 1
    %9 = vsyncpa %s8, 0
    loop: start=0, step=1, limit=4
    $region2: #{gatnet_forward.5} parent=1 // loop_pre_header
      _
    $region3: #{gatnet_forward.5} parent=1 // loop_header
      %s11 = sphi 0, %s15
      %p12 = scmp.ge.s32.totalorder %s11, 4
      %s18 = sphi 0, %s30
      %s19 = sphi 0, %s26
      %s20 = sphi 0, %s18
      %s21 = sphi 0, %s19
      %s22 = sphi 0, %s20
      %s23 = sphi 0, %s21
      %s33 = sphi 0, %s35
      %s36 = sphi 0, %s33
      %s37 = sphi 0, %s36
      %s53 = sphi 0, %s37
      %s59 = sphi 0, %s61
      %s62 = sphi 0, %s59
      %s63 = sphi 0, %s62
      %s79 = sphi 0, %s63
      %s87 = sphi 0, %s89
      %s90 = sphi 0, %s87
      %s91 = sphi 0, %s90
      %s107 = sphi 0, %s91
    $region4: #{gatnet_forward.5} parent=1 // loop_header_branch
      %14 = sbr.rel (%p12) target = $region8
    $region5: #{gatnet_forward.5} parent=1 // loop_body
      %s16 = ssub.s32 %s11, 1
      %s17 = ssub.s32 %s11, 2
      %s24 = sadd.s32 1, %s19
      %p25 = scmp.ge.s32.totalorder %s24, 1
      %s26 = scalar_select %p25, 0, %s24
      %s27 = sadd.s32 1, %s18
      %s28 = scalar_select %p25, %s27, %s18
      %p29 = scmp.ge.s32.totalorder %s28, 2
      %s30 = scalar_select %p29, 0, %s28
      %s31 = ssub.s32 %s18, %s30
      %p32 = scmp.eq.s32.totalorder %s31, 0
      %s34 = sadd.s32 %s33, 1
      %s35 = scalar_select %p32, %s33, %s34
      %p38 = pneg %p32
      %p39 = scmp.eq.s32.totalorder %s11, 1
      %p40 = por %p38, %p39
      %p41 = scmp.ne.s32.totalorder %s33, %s36
      %p42 = scmp.eq.s32.totalorder %s11, 0
      %p43 = por %p41, %p42
      %p44 = scmp.ne.s32.totalorder %s33, %s36
      %p45 = scmp.eq.s32.totalorder %s16, 1
      %p46 = por %p44, %p45
      %p47 = scmp.ne.s32.totalorder %s36, %s37
      %p48 = scmp.eq.s32.totalorder %s16, 0
      %p49 = por %p47, %p48
      %p50 = scmp.ne.s32.totalorder %s36, %s37
      %p51 = scmp.eq.s32.totalorder %s17, 1
      %p52 = por %p50, %p51
      %p54 = scmp.ne.s32.totalorder %s37, %s53
      %p55 = scmp.eq.s32.totalorder %s17, 0
      %p56 = por %p54, %p55
      %s57 = ssub.s32 %s19, %s26
      %p58 = scmp.eq.s32.totalorder %s57, 0
      %s60 = sadd.s32 %s59, 1
      %s61 = scalar_select %p58, %s59, %s60
      %p64 = pneg %p58
      %p65 = scmp.eq.s32.totalorder %s11, 1
      %p66 = por %p64, %p65
      %p67 = scmp.ne.s32.totalorder %s59, %s62
      %p68 = scmp.eq.s32.totalorder %s11, 0
      %p69 = por %p67, %p68
      %p70 = scmp.ne.s32.totalorder %s59, %s62
      %p71 = scmp.eq.s32.totalorder %s16, 1
      %p72 = por %p70, %p71
      %p73 = scmp.ne.s32.totalorder %s62, %s63
      %p74 = scmp.eq.s32.totalorder %s16, 0
      %p75 = por %p73, %p74
      %p76 = scmp.ne.s32.totalorder %s62, %s63
      %p77 = scmp.eq.s32.totalorder %s17, 1
      %p78 = por %p76, %p77
      %p80 = scmp.ne.s32.totalorder %s63, %s79
      %p81 = scmp.eq.s32.totalorder %s17, 0
      %p82 = por %p80, %p81
      %s83 = ssub.s32 %s18, %s30
      %s84 = ssub.s32 %s19, %s26
      %s85 = sor.u32 %s83, %s84
      %p86 = scmp.eq.s32.totalorder %s85, 0
      %s88 = sadd.s32 %s87, 1
      %s89 = scalar_select %p86, %s87, %s88
      %p92 = pneg %p86
      %p93 = scmp.eq.s32.totalorder %s11, 1
      %p94 = por %p92, %p93
      %p95 = scmp.ne.s32.totalorder %s87, %s90
      %p96 = scmp.eq.s32.totalorder %s11, 0
      %p97 = por %p95, %p96
      %p98 = scmp.ne.s32.totalorder %s87, %s90
      %p99 = scmp.eq.s32.totalorder %s16, 1
      %p100 = por %p98, %p99
      %p101 = scmp.ne.s32.totalorder %s90, %s91
      %p102 = scmp.eq.s32.totalorder %s16, 0
      %p103 = por %p101, %p102
      %p104 = scmp.ne.s32.totalorder %s90, %s91
      %p105 = scmp.eq.s32.totalorder %s17, 1
      %p106 = por %p104, %p105
      %p108 = scmp.ne.s32.totalorder %s91, %s107
      %p109 = scmp.eq.s32.totalorder %s17, 0
      %p110 = por %p108, %p109
      %p111 = scmp.le.s32.totalorder 1, %s11
      %p112 = scmp.lt.s32.totalorder %s11, 3
      %p113 = pnand %p111, %p112
      %p114 = pneg %p113
      // Predicated region
      $region9: #{gatnet_forward.5} parent=5 // pred_check
        _
      $region10: #{gatnet_forward.5} parent=5 // pred_check_branch
        %116 = sbr.rel (%p113) target = $region12
      $region11: #{gatnet_forward.5} parent=5 // pred_region
        %s117 = ssub.s32 %s11, 1
        // Predicated region
        $region13: #{gatnet_forward.5} parent=11 // pred_check
          %p118 = pneg %p75
        $region14: #{gatnet_forward.5} parent=11 // pred_check_branch
          %120 = sbr.rel (%p118) target = $region16
        $region15: #{gatnet_forward.5} parent=11 // pred_region
          %s121 = smul.u32 32, %s21
          %p122 = scmp.lt.s32.totalorder %s121, 31
          %s123 = scalar_select %p122, %s121, 31
          %s124 = smul.addr %s123, 8
          %s125 = scalar_lea.vmem %s1, %s124
          %s126 = smul.u32 32, %s21
        $region16: #{gatnet_forward.5} parent=11 // pred_fallthru
          _
      $region12: #{gatnet_forward.5} parent=5 // pred_fallthru
        _
      %p127 = scmp.lt.s32.totalorder %s11, 2
      // Predicated region
      $region17: #{gatnet_forward.5} parent=5 // pred_check
        %p128 = pneg %p127
      $region18: #{gatnet_forward.5} parent=5 // pred_check_branch
        %130 = sbr.rel (%p128) target = $region20
      $region19: #{gatnet_forward.5} parent=5 // pred_region
        // Predicated region
        $region21: #{gatnet_forward.5} parent=19 // pred_check
          %p131 = pneg %p43
        $region22: #{gatnet_forward.5} parent=19 // pred_check_branch
          %133 = sbr.rel (%p131) target = $region24
        $region23: #{gatnet_forward.5} parent=19 // pred_region
          %s134 = smul.u32 16, %s18
          %p135 = scmp.lt.s32.totalorder %s134, 31
          %s136 = scalar_select %p135, %s134, 31
          %s137 = smul.addr %s136, 8
          %s138 = scalar_lea.vmem %s0, %s137
          %s139 = smul.u32 16, %s18
        $region24: #{gatnet_forward.5} parent=19 // pred_fallthru
          _
      $region20: #{gatnet_forward.5} parent=5 // pred_fallthru
        _
      %p140 = scmp.le.s32.totalorder 1, %s11
      %p141 = scmp.lt.s32.totalorder %s11, 3
      %p142 = pnand %p140, %p141
      %p143 = pneg %p142
      // Predicated region
      $region25: #{gatnet_forward.5} parent=5 // pred_check
        _
      $region26: #{gatnet_forward.5} parent=5 // pred_check_branch
        %145 = sbr.rel (%p142) target = $region28
      $region27: #{gatnet_forward.5} parent=5 // pred_region
        %s146 = ssub.s32 %s11, 1
        %s147 = smul.u32 16, %s20
        %p148 = scmp.lt.s32.totalorder %s147, 31
        %s149 = scalar_select %p148, %s147, 31
        %s150 = smul.addr %s149, 8
        %s151 = scalar_lea.vmem %s0, %s150
        %p152 = pneg %p49
        %p153 = pneg %p46
        %s154 = smul.u32 32, %s21
        %p155 = scmp.lt.s32.totalorder %s154, 31
        %s156 = scalar_select %p155, %s154, 31
        %s157 = smul.addr %s156, 8
        %s158 = scalar_lea.vmem %s1, %s157
        %p159 = pneg %p75
        %p160 = pneg %p72
        %p161 = pneg %p103
        %p162 = pneg %p100
        %s163 = sand.u32 %s90, 1
        %s164 = scalar_lea.sflag [#allocation3], %s163
        %s165 = sand.u32 %s90, 1
        %s166 = smul.addr %s165, 256
        %s167 = scalar_lea.vmem [#allocation2], %s166
        %s168 = smul.u32 16, %s20
        %p169 = scmp.lt.s32.totalorder %s168, 31
        %s170 = scalar_select %p169, %s168, 31
        %s171 = smul.addr %s170, 8
        %s172 = scalar_lea.vmem %s0, %s171
        %s173 = smul.u32 16, %s20
        %s174 = smul.u32 32, %s21
        %p175 = scmp.lt.s32.totalorder %s174, 31
        %s176 = scalar_select %p175, %s174, 31
        %s177 = smul.addr %s176, 8
        %s178 = scalar_lea.vmem %s1, %s177
        %s179 = smul.u32 32, %s21
        %s180 = smul.u32 16, %s20
        %s181 = smul.u32 2, %s21
        %v182 = vld [vmem:[%s172] sm:$0xff]
        %v183 = vld [vmem:[%s172 + $0x8] sm:$0xff]
        %v184 = vld [vmem:[%s172 + $0x10] sm:$0xff]
        %v185 = vld [vmem:[%s172 + $0x18] sm:$0xff]
        %v186 = vld [vmem:[%s172 + $0x20] sm:$0xff]
        %v187 = vld [vmem:[%s172 + $0x28] sm:$0xff]
        %v188 = vld [vmem:[%s172 + $0x30] sm:$0xff]
        %v189 = vld [vmem:[%s172 + $0x38] sm:$0xff]
        %v190 = vld [vmem:[%s172 + $0x40] sm:$0xff]
        %v191 = vld [vmem:[%s172 + $0x48] sm:$0xff]
        %v192 = vld [vmem:[%s172 + $0x50] sm:$0xff]
        %v193 = vld [vmem:[%s172 + $0x58] sm:$0xff]
        %v194 = vld [vmem:[%s172 + $0x60] sm:$0xff]
        %v195 = vld [vmem:[%s172 + $0x68] sm:$0xff]
        %v196 = vld [vmem:[%s172 + $0x70] sm:$0xff]
        %v197 = vld [vmem:[%s172 + $0x78] sm:$0xff]
        %v198 = vld [vmem:[%s178] sm:$0xff]
        %v199 = vld [vmem:[%s178 + $0x8] sm:$0xff]
        %v200 = vld [vmem:[%s178 + $0x10] sm:$0xff]
        %v201 = vld [vmem:[%s178 + $0x18] sm:$0xff]
        %v202 = vld [vmem:[%s178 + $0x20] sm:$0xff]
        %v203 = vld [vmem:[%s178 + $0x28] sm:$0xff]
        %v204 = vld [vmem:[%s178 + $0x30] sm:$0xff]
        %v205 = vld [vmem:[%s178 + $0x38] sm:$0xff]
        %v206 = vld [vmem:[%s178 + $0x40] sm:$0xff]
        %v207 = vld [vmem:[%s178 + $0x48] sm:$0xff]
        %v208 = vld [vmem:[%s178 + $0x50] sm:$0xff]
        %v209 = vld [vmem:[%s178 + $0x58] sm:$0xff]
        %v210 = vld [vmem:[%s178 + $0x60] sm:$0xff]
        %v211 = vld [vmem:[%s178 + $0x68] sm:$0xff]
        %v212 = vld [vmem:[%s178 + $0x70] sm:$0xff]
        %v213 = vld [vmem:[%s178 + $0x78] sm:$0xff]
        %v214 = vld [vmem:[%s178 + $0x80] sm:$0xff]
        %v215 = vld [vmem:[%s178 + $0x88] sm:$0xff]
        %v216 = vld [vmem:[%s178 + $0x90] sm:$0xff]
        %v217 = vld [vmem:[%s178 + $0x98] sm:$0xff]
        %v218 = vld [vmem:[%s178 + $0xa0] sm:$0xff]
        %v219 = vld [vmem:[%s178 + $0xa8] sm:$0xff]
        %v220 = vld [vmem:[%s178 + $0xb0] sm:$0xff]
        %v221 = vld [vmem:[%s178 + $0xb8] sm:$0xff]
        %v222 = vld [vmem:[%s178 + $0xc0] sm:$0xff]
        %v223 = vld [vmem:[%s178 + $0xc8] sm:$0xff]
        %v224 = vld [vmem:[%s178 + $0xd0] sm:$0xff]
        %v225 = vld [vmem:[%s178 + $0xd8] sm:$0xff]
        %v226 = vld [vmem:[%s178 + $0xe0] sm:$0xff]
        %v227 = vld [vmem:[%s178 + $0xe8] sm:$0xff]
        %v228 = vld [vmem:[%s178 + $0xf0] sm:$0xff]
        %v229 = vld [vmem:[%s178 + $0xf8] sm:$0xff]
        %230 = vmatprep.subr.mxu0 0.0
        %231 = vmatpush1.xpose.msra.mxu0 %v198
        %232 = vmatprep.subr.mxu0 0.0
        %233 = vmatpush1.xpose.msra.mxu0 %v199
        %234 = vmatprep.subr.mxu0 0.0
        %235 = vmatpush1.xpose.msra.mxu0 %v200
        %236 = vmatprep.subr.mxu0 0.0
        %237 = vmatpush1.xpose.msra.mxu0 %v201
        %238 = vmatprep.subr.mxu0 0.0
        %239 = vmatpush1.xpose.msra.mxu0 %v202
        %240 = vmatprep.subr.mxu0 0.0
        %241 = vmatpush1.xpose.msra.mxu0 %v203
        %242 = vmatprep.subr.mxu0 0.0
        %243 = vmatpush1.xpose.msra.mxu0 %v204
        %244 = vmatprep.subr.mxu0 0.0
        %245 = vmatpush1.xpose.msra.mxu0 %v205
        %246 = vmatprep.subr.mxu0 0.0
        %247 = vmatpush1.xpose.msra.mxu0 %v206
        %248 = vmatprep.subr.mxu0 0.0
        %249 = vmatpush1.xpose.msra.mxu0 %v207
        %250 = vmatprep.subr.mxu0 0.0
        %251 = vmatpush1.xpose.msra.mxu0 %v208
        %252 = vmatprep.subr.mxu0 0.0
        %253 = vmatpush1.xpose.msra.mxu0 %v209
        %254 = vmatprep.subr.mxu0 0.0
        %255 = vmatpush1.xpose.msra.mxu0 %v210
        %256 = vmatprep.subr.mxu0 0.0
        %257 = vmatpush1.xpose.msra.mxu0 %v211
        %258 = vmatprep.subr.mxu0 0.0
        %259 = vmatpush1.xpose.msra.mxu0 %v212
        %260 = vmatprep.subr.mxu0 0.0
        %261 = vmatpush1.xpose.msra.mxu0 %v213
        %262 = vmatprep.subr.mxu0 0.0
        %263 = vmatpush1.xpose.msra.mxu0 %v214
        %264 = vmatprep.subr.mxu0 0.0
        %265 = vmatpush1.xpose.msra.mxu0 %v215
        %266 = vmatprep.subr.mxu0 0.0
        %267 = vmatpush1.xpose.msra.mxu0 %v216
        %268 = vmatprep.subr.mxu0 0.0
        %269 = vmatpush1.xpose.msra.mxu0 %v217
        %270 = vmatprep.subr.mxu0 0.0
        %271 = vmatpush1.xpose.msra.mxu0 %v218
        %272 = vmatprep.subr.mxu0 0.0
        %273 = vmatpush1.xpose.msra.mxu0 %v219
        %274 = vmatprep.subr.mxu0 0.0
        %275 = vmatpush1.xpose.msra.mxu0 %v220
        %276 = vmatprep.subr.mxu0 0.0
        %277 = vmatpush1.xpose.msra.mxu0 %v221
        %278 = vmatprep.subr.mxu0 0.0
        %279 = vmatpush1.xpose.msra.mxu0 %v222
        %280 = vmatprep.subr.mxu0 0.0
        %281 = vmatpush1.xpose.msra.mxu0 %v223
        %282 = vmatprep.subr.mxu0 0.0
        %283 = vmatpush1.xpose.msra.mxu0 %v224
        %284 = vmatprep.subr.mxu0 0.0
        %285 = vmatpush1.xpose.msra.mxu0 %v225
        %286 = vmatprep.subr.mxu0 0.0
        %287 = vmatpush1.xpose.msra.mxu0 %v226
        %288 = vmatprep.subr.mxu0 0.0
        %289 = vmatpush1.xpose.msra.mxu0 %v227
        %290 = vmatprep.subr.mxu0 0.0
        %291 = vmatpush1.xpose.msra.mxu0 %v228
        %292 = vmatprep.subr.mxu0 0.0
        %293 = vmatpush1.xpose.msra.mxu0 %v229
        %294 = vmatprep.mubr.f32.mxu0 0.0
        %295 = vmatmul.mubr.f32.gmra.mrb[0].mxu0 %v182
        %v296 = vpop.f32.mrb[0].mxu0
        %v297 = vadd.f32 0.0, %v296
        %v298 = vpop.f32.mrb[0].mxu0
        %v299 = vadd.f32 0.0, %v298
        %300 = vmatprep.mubr.f32.mxu0 0.0
        %301 = vmatmul.mubr.f32.gmra.mrb[0].mxu0 %v183
        %v302 = vpop.f32.mrb[0].mxu0
        %v303 = vadd.f32 0.0, %v302
        %v304 = vpop.f32.mrb[0].mxu0
        %v305 = vadd.f32 0.0, %v304
        %306 = vmatprep.mubr.f32.mxu0 0.0
        %307 = vmatmul.mubr.f32.gmra.mrb[0].mxu0 %v184
        %v308 = vpop.f32.mrb[0].mxu0
        %v309 = vadd.f32 0.0, %v308
        %v310 = vpop.f32.mrb[0].mxu0
        %v311 = vadd.f32 0.0, %v310
        %312 = vmatprep.mubr.f32.mxu0 0.0
        %313 = vmatmul.mubr.f32.gmra.mrb[0].mxu0 %v185
        %v314 = vpop.f32.mrb[0].mxu0
        %v315 = vadd.f32 0.0, %v314
        %v316 = vpop.f32.mrb[0].mxu0
        %v317 = vadd.f32 0.0, %v316
        %318 = vmatprep.mubr.f32.mxu0 0.0
        %319 = vmatmul.mubr.f32.gmra.mrb[0].mxu0 %v186
        %v320 = vpop.f32.mrb[0].mxu0
        %v321 = vadd.f32 0.0, %v320
        %v322 = vpop.f32.mrb[0].mxu0
        %v323 = vadd.f32 0.0, %v322
        %324 = vmatprep.mubr.f32.mxu0 0.0
        %325 = vmatmul.mubr.f32.gmra.mrb[0].mxu0 %v187
        %v326 = vpop.f32.mrb[0].mxu0
        %v327 = vadd.f32 0.0, %v326
        %v328 = vpop.f32.mrb[0].mxu0
        %v329 = vadd.f32 0.0, %v328
        %330 = vmatprep.mubr.f32.mxu0 0.0
        %331 = vmatmul.mubr.f32.gmra.mrb[0].mxu0 %v188
        %v332 = vpop.f32.mrb[0].mxu0
        %v333 = vadd.f32 0.0, %v332
        %v334 = vpop.f32.mrb[0].mxu0
        %v335 = vadd.f32 0.0, %v334
        %336 = vmatprep.mubr.f32.mxu0 0.0
        %337 = vmatmul.mubr.f32.gmra.mrb[0].mxu0 %v189
        %v338 = vpop.f32.mrb[0].mxu0
        %v339 = vadd.f32 0.0, %v338
        %v340 = vpop.f32.mrb[0].mxu0
        %v341 = vadd.f32 0.0, %v340
        %342 = vmatprep.mubr.f32.mxu0 0.0
        %343 = vmatmul.mubr.f32.gmra.mrb[0].mxu0 %v190
        %v344 = vpop.f32.mrb[0].mxu0
        %v345 = vadd.f32 0.0, %v344
        %v346 = vpop.f32.mrb[0].mxu0
        %v347 = vadd.f32 0.0, %v346
        %348 = vmatprep.mubr.f32.mxu0 0.0
        %349 = vmatmul.mubr.f32.gmra.mrb[0].mxu0 %v191
        %v350 = vpop.f32.mrb[0].mxu0
        %v351 = vadd.f32 0.0, %v350
        %v352 = vpop.f32.mrb[0].mxu0
        %v353 = vadd.f32 0.0, %v352
        %354 = vmatprep.mubr.f32.mxu0 0.0
        %355 = vmatmul.mubr.f32.gmra.mrb[0].mxu0 %v192
        %v356 = vpop.f32.mrb[0].mxu0
        %v357 = vadd.f32 0.0, %v356
        %v358 = vpop.f32.mrb[0].mxu0
        %v359 = vadd.f32 0.0, %v358
        %360 = vmatprep.mubr.f32.mxu0 0.0
        %361 = vmatmul.mubr.f32.gmra.mrb[0].mxu0 %v193
        %v362 = vpop.f32.mrb[0].mxu0
        %v363 = vadd.f32 0.0, %v362
        %v364 = vpop.f32.mrb[0].mxu0
        %v365 = vadd.f32 0.0, %v364
        %366 = vmatprep.mubr.f32.mxu0 0.0
        %367 = vmatmul.mubr.f32.gmra.mrb[0].mxu0 %v194
        %v368 = vpop.f32.mrb[0].mxu0
        %v369 = vadd.f32 0.0, %v368
        %v370 = vpop.f32.mrb[0].mxu0
        %v371 = vadd.f32 0.0, %v370
        %372 = vmatprep.mubr.f32.mxu0 0.0
        %373 = vmatmul.mubr.f32.gmra.mrb[0].mxu0 %v195
        %v374 = vpop.f32.mrb[0].mxu0
        %v375 = vadd.f32 0.0, %v374
        %v376 = vpop.f32.mrb[0].mxu0
        %v377 = vadd.f32 0.0, %v376
        %378 = vmatprep.mubr.f32.mxu0 0.0
        %379 = vmatmul.mubr.f32.gmra.mrb[0].mxu0 %v196
        %v380 = vpop.f32.mrb[0].mxu0
        %v381 = vadd.f32 0.0, %v380
        %v382 = vpop.f32.mrb[0].mxu0
        %v383 = vadd.f32 0.0, %v382
        %384 = vmatprep.mubr.f32.mxu0 0.0
        %385 = vmatmul.mubr.f32.gmra.mrb[0].mxu0 %v197
        %v386 = vpop.f32.mrb[0].mxu0
        %v387 = vadd.f32 0.0, %v386
        %v388 = vpop.f32.mrb[0].mxu0
        %v389 = vadd.f32 0.0, %v388
        %390 = vdwg.mxu0
        %v391 = vmax.f32 %v297, 0.0
        %v392 = vmax.f32 %v299, 0.0
        %v393 = vmax.f32 %v303, 0.0
        %v394 = vmax.f32 %v305, 0.0
        %v395 = vmax.f32 %v309, 0.0
        %v396 = vmax.f32 %v311, 0.0
        %v397 = vmax.f32 %v315, 0.0
        %v398 = vmax.f32 %v317, 0.0
        %v399 = vmax.f32 %v321, 0.0
        %v400 = vmax.f32 %v323, 0.0
        %v401 = vmax.f32 %v327, 0.0
        %v402 = vmax.f32 %v329, 0.0
        %v403 = vmax.f32 %v333, 0.0
        %v404 = vmax.f32 %v335, 0.0
        %v405 = vmax.f32 %v339, 0.0
        %v406 = vmax.f32 %v341, 0.0
        %v407 = vmax.f32 %v345, 0.0
        %v408 = vmax.f32 %v347, 0.0
        %v409 = vmax.f32 %v351, 0.0
        %v410 = vmax.f32 %v353, 0.0
        %v411 = vmax.f32 %v357, 0.0
        %v412 = vmax.f32 %v359, 0.0
        %v413 = vmax.f32 %v363, 0.0
        %v414 = vmax.f32 %v365, 0.0
        %v415 = vmax.f32 %v369, 0.0
        %v416 = vmax.f32 %v371, 0.0
        %v417 = vmax.f32 %v375, 0.0
        %v418 = vmax.f32 %v377, 0.0
        %v419 = vmax.f32 %v381, 0.0
        %v420 = vmax.f32 %v383, 0.0
        %v421 = vmax.f32 %v387, 0.0
        %v422 = vmax.f32 %v389, 0.0
        %v423 = vrsqrt.pop %v391
        %v424 = vmul.f32 %v391, %v423
        %vm425 = vcmp.eq.f32.partialorder %v391, inf
        %v426 = vsel %vm425, %v391, %v424
        %vm427 = vcmp.eq.f32.partialorder %v391, 0.0
        %v428 = vand.u32 %v391, 2147483648
        %v429 = vsel %vm427, %v428, %v426
        %v430 = vrsqrt.pop %v392
        %v431 = vmul.f32 %v392, %v430
        %vm432 = vcmp.eq.f32.partialorder %v392, inf
        %v433 = vsel %vm432, %v392, %v431
        %vm434 = vcmp.eq.f32.partialorder %v392, 0.0
        %v435 = vand.u32 %v392, 2147483648
        %v436 = vsel %vm434, %v435, %v433
        %v437 = vrsqrt.pop %v393
        %v438 = vmul.f32 %v393, %v437
        %vm439 = vcmp.eq.f32.partialorder %v393, inf
        %v440 = vsel %vm439, %v393, %v438
        %vm441 = vcmp.eq.f32.partialorder %v393, 0.0
        %v442 = vand.u32 %v393, 2147483648
        %v443 = vsel %vm441, %v442, %v440
        %v444 = vrsqrt.pop %v394
        %v445 = vmul.f32 %v394, %v444
        %vm446 = vcmp.eq.f32.partialorder %v394, inf
        %v447 = vsel %vm446, %v394, %v445
        %vm448 = vcmp.eq.f32.partialorder %v394, 0.0
        %v449 = vand.u32 %v394, 2147483648
        %v450 = vsel %vm448, %v449, %v447
        %v451 = vrsqrt.pop %v395
        %v452 = vmul.f32 %v395, %v451
        %vm453 = vcmp.eq.f32.partialorder %v395, inf
        %v454 = vsel %vm453, %v395, %v452
        %vm455 = vcmp.eq.f32.partialorder %v395, 0.0
        %v456 = vand.u32 %v395, 2147483648
        %v457 = vsel %vm455, %v456, %v454
        %v458 = vrsqrt.pop %v396
        %v459 = vmul.f32 %v396, %v458
        %vm460 = vcmp.eq.f32.partialorder %v396, inf
        %v461 = vsel %vm460, %v396, %v459
        %vm462 = vcmp.eq.f32.partialorder %v396, 0.0
        %v463 = vand.u32 %v396, 2147483648
        %v464 = vsel %vm462, %v463, %v461
        %v465 = vrsqrt.pop %v397
        %v466 = vmul.f32 %v397, %v465
        %vm467 = vcmp.eq.f32.partialorder %v397, inf
        %v468 = vsel %vm467, %v397, %v466
        %vm469 = vcmp.eq.f32.partialorder %v397, 0.0
        %v470 = vand.u32 %v397, 2147483648
        %v471 = vsel %vm469, %v470, %v468
        %v472 = vrsqrt.pop %v398
        %v473 = vmul.f32 %v398, %v472
        %vm474 = vcmp.eq.f32.partialorder %v398, inf
        %v475 = vsel %vm474, %v398, %v473
        %vm476 = vcmp.eq.f32.partialorder %v398, 0.0
        %v477 = vand.u32 %v398, 2147483648
        %v478 = vsel %vm476, %v477, %v475
        %v479 = vrsqrt.pop %v399
        %v480 = vmul.f32 %v399, %v479
        %vm481 = vcmp.eq.f32.partialorder %v399, inf
        %v482 = vsel %vm481, %v399, %v480
        %vm483 = vcmp.eq.f32.partialorder %v399, 0.0
        %v484 = vand.u32 %v399, 2147483648
        %v485 = vsel %vm483, %v484, %v482
        %v486 = vrsqrt.pop %v400
        %v487 = vmul.f32 %v400, %v486
        %vm488 = vcmp.eq.f32.partialorder %v400, inf
        %v489 = vsel %vm488, %v400, %v487
        %vm490 = vcmp.eq.f32.partialorder %v400, 0.0
        %v491 = vand.u32 %v400, 2147483648
        %v492 = vsel %vm490, %v491, %v489
        %v493 = vrsqrt.pop %v401
        %v494 = vmul.f32 %v401, %v493
        %vm495 = vcmp.eq.f32.partialorder %v401, inf
        %v496 = vsel %vm495, %v401, %v494
        %vm497 = vcmp.eq.f32.partialorder %v401, 0.0
        %v498 = vand.u32 %v401, 2147483648
        %v499 = vsel %vm497, %v498, %v496
        %v500 = vrsqrt.pop %v402
        %v501 = vmul.f32 %v402, %v500
        %vm502 = vcmp.eq.f32.partialorder %v402, inf
        %v503 = vsel %vm502, %v402, %v501
        %vm504 = vcmp.eq.f32.partialorder %v402, 0.0
        %v505 = vand.u32 %v402, 2147483648
        %v506 = vsel %vm504, %v505, %v503
        %v507 = vrsqrt.pop %v403
        %v508 = vmul.f32 %v403, %v507
        %vm509 = vcmp.eq.f32.partialorder %v403, inf
        %v510 = vsel %vm509, %v403, %v508
        %vm511 = vcmp.eq.f32.partialorder %v403, 0.0
        %v512 = vand.u32 %v403, 2147483648
        %v513 = vsel %vm511, %v512, %v510
        %v514 = vrsqrt.pop %v404
        %v515 = vmul.f32 %v404, %v514
        %vm516 = vcmp.eq.f32.partialorder %v404, inf
        %v517 = vsel %vm516, %v404, %v515
        %vm518 = vcmp.eq.f32.partialorder %v404, 0.0
        %v519 = vand.u32 %v404, 2147483648
        %v520 = vsel %vm518, %v519, %v517
        %v521 = vrsqrt.pop %v405
        %v522 = vmul.f32 %v405, %v521
        %vm523 = vcmp.eq.f32.partialorder %v405, inf
        %v524 = vsel %vm523, %v405, %v522
        %vm525 = vcmp.eq.f32.partialorder %v405, 0.0
        %v526 = vand.u32 %v405, 2147483648
        %v527 = vsel %vm525, %v526, %v524
        %v528 = vrsqrt.pop %v406
        %v529 = vmul.f32 %v406, %v528
        %vm530 = vcmp.eq.f32.partialorder %v406, inf
        %v531 = vsel %vm530, %v406, %v529
        %vm532 = vcmp.eq.f32.partialorder %v406, 0.0
        %v533 = vand.u32 %v406, 2147483648
        %v534 = vsel %vm532, %v533, %v531
        %v535 = vrsqrt.pop %v407
        %v536 = vmul.f32 %v407, %v535
        %vm537 = vcmp.eq.f32.partialorder %v407, inf
        %v538 = vsel %vm537, %v407, %v536
        %vm539 = vcmp.eq.f32.partialorder %v407, 0.0
        %v540 = vand.u32 %v407, 2147483648
        %v541 = vsel %vm539, %v540, %v538
        %v542 = vrsqrt.pop %v408
        %v543 = vmul.f32 %v408, %v542
        %vm544 = vcmp.eq.f32.partialorder %v408, inf
        %v545 = vsel %vm544, %v408, %v543
        %vm546 = vcmp.eq.f32.partialorder %v408, 0.0
        %v547 = vand.u32 %v408, 2147483648
        %v548 = vsel %vm546, %v547, %v545
        %v549 = vrsqrt.pop %v409
        %v550 = vmul.f32 %v409, %v549
        %vm551 = vcmp.eq.f32.partialorder %v409, inf
        %v552 = vsel %vm551, %v409, %v550
        %vm553 = vcmp.eq.f32.partialorder %v409, 0.0
        %v554 = vand.u32 %v409, 2147483648
        %v555 = vsel %vm553, %v554, %v552
        %v556 = vrsqrt.pop %v410
        %v557 = vmul.f32 %v410, %v556
        %vm558 = vcmp.eq.f32.partialorder %v410, inf
        %v559 = vsel %vm558, %v410, %v557
        %vm560 = vcmp.eq.f32.partialorder %v410, 0.0
        %v561 = vand.u32 %v410, 2147483648
        %v562 = vsel %vm560, %v561, %v559
        %v563 = vrsqrt.pop %v411
        %v564 = vmul.f32 %v411, %v563
        %vm565 = vcmp.eq.f32.partialorder %v411, inf
        %v566 = vsel %vm565, %v411, %v564
        %vm567 = vcmp.eq.f32.partialorder %v411, 0.0
        %v568 = vand.u32 %v411, 2147483648
        %v569 = vsel %vm567, %v568, %v566
        %v570 = vrsqrt.pop %v412
        %v571 = vmul.f32 %v412, %v570
        %vm572 = vcmp.eq.f32.partialorder %v412, inf
        %v573 = vsel %vm572, %v412, %v571
        %vm574 = vcmp.eq.f32.partialorder %v412, 0.0
        %v575 = vand.u32 %v412, 2147483648
        %v576 = vsel %vm574, %v575, %v573
        %v577 = vrsqrt.pop %v413
        %v578 = vmul.f32 %v413, %v577
        %vm579 = vcmp.eq.f32.partialorder %v413, inf
        %v580 = vsel %vm579, %v413, %v578
        %vm581 = vcmp.eq.f32.partialorder %v413, 0.0
        %v582 = vand.u32 %v413, 2147483648
        %v583 = vsel %vm581, %v582, %v580
        %v584 = vrsqrt.pop %v414
        %v585 = vmul.f32 %v414, %v584
        %vm586 = vcmp.eq.f32.partialorder %v414, inf
        %v587 = vsel %vm586, %v414, %v585
        %vm588 = vcmp.eq.f32.partialorder %v414, 0.0
        %v589 = vand.u32 %v414, 2147483648
        %v590 = vsel %vm588, %v589, %v587
        %v591 = vrsqrt.pop %v415
        %v592 = vmul.f32 %v415, %v591
        %vm593 = vcmp.eq.f32.partialorder %v415, inf
        %v594 = vsel %vm593, %v415, %v592
        %vm595 = vcmp.eq.f32.partialorder %v415, 0.0
        %v596 = vand.u32 %v415, 2147483648
        %v597 = vsel %vm595, %v596, %v594
        %v598 = vrsqrt.pop %v416
        %v599 = vmul.f32 %v416, %v598
        %vm600 = vcmp.eq.f32.partialorder %v416, inf
        %v601 = vsel %vm600, %v416, %v599
        %vm602 = vcmp.eq.f32.partialorder %v416, 0.0
        %v603 = vand.u32 %v416, 2147483648
        %v604 = vsel %vm602, %v603, %v601
        %v605 = vrsqrt.pop %v417
        %v606 = vmul.f32 %v417, %v605
        %vm607 = vcmp.eq.f32.partialorder %v417, inf
        %v608 = vsel %vm607, %v417, %v606
        %vm609 = vcmp.eq.f32.partialorder %v417, 0.0
        %v610 = vand.u32 %v417, 2147483648
        %v611 = vsel %vm609, %v610, %v608
        %v612 = vrsqrt.pop %v418
        %v613 = vmul.f32 %v418, %v612
        %vm614 = vcmp.eq.f32.partialorder %v418, inf
        %v615 = vsel %vm614, %v418, %v613
        %vm616 = vcmp.eq.f32.partialorder %v418, 0.0
        %v617 = vand.u32 %v418, 2147483648
        %v618 = vsel %vm616, %v617, %v615
        %v619 = vrsqrt.pop %v419
        %v620 = vmul.f32 %v419, %v619
        %vm621 = vcmp.eq.f32.partialorder %v419, inf
        %v622 = vsel %vm621, %v419, %v620
        %vm623 = vcmp.eq.f32.partialorder %v419, 0.0
        %v624 = vand.u32 %v419, 2147483648
        %v625 = vsel %vm623, %v624, %v622
        %v626 = vrsqrt.pop %v420
        %v627 = vmul.f32 %v420, %v626
        %vm628 = vcmp.eq.f32.partialorder %v420, inf
        %v629 = vsel %vm628, %v420, %v627
        %vm630 = vcmp.eq.f32.partialorder %v420, 0.0
        %v631 = vand.u32 %v420, 2147483648
        %v632 = vsel %vm630, %v631, %v629
        %v633 = vrsqrt.pop %v421
        %v634 = vmul.f32 %v421, %v633
        %vm635 = vcmp.eq.f32.partialorder %v421, inf
        %v636 = vsel %vm635, %v421, %v634
        %vm637 = vcmp.eq.f32.partialorder %v421, 0.0
        %v638 = vand.u32 %v421, 2147483648
        %v639 = vsel %vm637, %v638, %v636
        %v640 = vrsqrt.pop %v422
        %v641 = vmul.f32 %v422, %v640
        %vm642 = vcmp.eq.f32.partialorder %v422, inf
        %v643 = vsel %vm642, %v422, %v641
        %vm644 = vcmp.eq.f32.partialorder %v422, 0.0
        %v645 = vand.u32 %v422, 2147483648
        %v646 = vsel %vm644, %v645, %v643
        %647 = vst [vmem:[%s167] sm:$0xff] %v429
        %648 = vst [vmem:[%s167 + $0x8] sm:$0xff] %v436
        %649 = vst [vmem:[%s167 + $0x10] sm:$0xff] %v443
        %650 = vst [vmem:[%s167 + $0x18] sm:$0xff] %v450
        %651 = vst [vmem:[%s167 + $0x20] sm:$0xff] %v457
        %652 = vst [vmem:[%s167 + $0x28] sm:$0xff] %v464
        %653 = vst [vmem:[%s167 + $0x30] sm:$0xff] %v471
        %654 = vst [vmem:[%s167 + $0x38] sm:$0xff] %v478
        %655 = vst [vmem:[%s167 + $0x40] sm:$0xff] %v485
        %656 = vst [vmem:[%s167 + $0x48] sm:$0xff] %v492
        %657 = vst [vmem:[%s167 + $0x50] sm:$0xff] %v499
        %658 = vst [vmem:[%s167 + $0x58] sm:$0xff] %v506
        %659 = vst [vmem:[%s167 + $0x60] sm:$0xff] %v513
        %660 = vst [vmem:[%s167 + $0x68] sm:$0xff] %v520
        %661 = vst [vmem:[%s167 + $0x70] sm:$0xff] %v527
        %662 = vst [vmem:[%s167 + $0x78] sm:$0xff] %v534
        %663 = vst [vmem:[%s167 + $0x80] sm:$0xff] %v541
        %664 = vst [vmem:[%s167 + $0x88] sm:$0xff] %v548
        %665 = vst [vmem:[%s167 + $0x90] sm:$0xff] %v555
        %666 = vst [vmem:[%s167 + $0x98] sm:$0xff] %v562
        %667 = vst [vmem:[%s167 + $0xa0] sm:$0xff] %v569
        %668 = vst [vmem:[%s167 + $0xa8] sm:$0xff] %v576
        %669 = vst [vmem:[%s167 + $0xb0] sm:$0xff] %v583
        %670 = vst [vmem:[%s167 + $0xb8] sm:$0xff] %v590
        %671 = vst [vmem:[%s167 + $0xc0] sm:$0xff] %v597
        %672 = vst [vmem:[%s167 + $0xc8] sm:$0xff] %v604
        %673 = vst [vmem:[%s167 + $0xd0] sm:$0xff] %v611
        %674 = vst [vmem:[%s167 + $0xd8] sm:$0xff] %v618
        %675 = vst [vmem:[%s167 + $0xe0] sm:$0xff] %v625
        %676 = vst [vmem:[%s167 + $0xe8] sm:$0xff] %v632
        %677 = vst [vmem:[%s167 + $0xf0] sm:$0xff] %v639
        %678 = vst [vmem:[%s167 + $0xf8] sm:$0xff] %v646
        %s679 = sand.u32 %s90, 1
        %s680 = scalar_lea.sflag [#allocation3], %s679
        %s681 = sand.u32 %s90, 1
        %s682 = smul.addr %s681, 256
        %s683 = scalar_lea.vmem [#allocation2], %s682
        // Predicated region
        $region29: #{gatnet_forward.5} parent=27 // pred_check
          %p684 = pneg %p100
        $region30: #{gatnet_forward.5} parent=27 // pred_check_branch
          %686 = sbr.rel (%p684) target = $region32
        $region31: #{gatnet_forward.5} parent=27 // pred_region
          %s687 = smul.u32 16, %s20
          %s688 = smul.u32 2, %s21
          %s690 = ssub.s32 4096, 4096
          %691 = vsyncadd %s680, %s690
          %s692 = smul.addr %s687, 2
          %s693 = sadd.s32 %s688, %s692
          %s694 = smul.addr %s693, 128
          %s695 = scalar_lea.hbm %s2, %s694
          %s696 = sshll.u32 %s683, 4
          %s697 = int_to_ptr.vmem [resolvable:$true] %s696
          %702 = dma.vmem_to_hbm [thread:$0]  %s697, 4096, %s695, %s680, 256, 256, 16
        $region32: #{gatnet_forward.5} parent=27 // pred_fallthru
          _
      $region28: #{gatnet_forward.5} parent=5 // pred_fallthru
        _
      %p703 = scmp.le.s32.totalorder 2, %s11
      // Predicated region
      $region33: #{gatnet_forward.5} parent=5 // pred_check
        %p704 = pneg %p703
      $region34: #{gatnet_forward.5} parent=5 // pred_check_branch
        %706 = sbr.rel (%p704) target = $region36
      $region35: #{gatnet_forward.5} parent=5 // pred_region
        %s707 = ssub.s32 %s11, 2
        // Predicated region
        $region37: #{gatnet_forward.5} parent=35 // pred_check
          %p708 = pneg %p106
        $region38: #{gatnet_forward.5} parent=35 // pred_check_branch
          %710 = sbr.rel (%p708) target = $region40
        $region39: #{gatnet_forward.5} parent=35 // pred_region
          %s711 = sand.u32 %s91, 1
          %s712 = scalar_lea.sflag [#allocation3], %s711
          %s713 = sand.u32 %s91, 1
          %s714 = smul.addr %s713, 256
          %s715 = scalar_lea.vmem [#allocation2], %s714
          %716 = dma.done %s712, 4096
        $region40: #{gatnet_forward.5} parent=35 // pred_fallthru
          _
      $region36: #{gatnet_forward.5} parent=5 // pred_fallthru
        _
    $region6: #{gatnet_forward.5} parent=1 // loop_footer
      %s15 = sadd.s32 1, %s11
    $region7: #{gatnet_forward.5} parent=1 // loop_footer_branch
      %10 = sbr.rel target = $region3
    $region8: #{gatnet_forward.5} parent=1 // loop_exit
      _
    %717 = vsyncpa [#allocation3], 1
    %s718 = scalar_lea.sflag [#allocation3], 1
    %719 = vsyncpa %s718, 1

// kernel: gatnet_forward.4
$region0: #{gatnet_forward.4}
  #allocation0 [shape = 'u32[]', space=smem, size = 0x4, offset = 0x4, fixed_abs, tag = 'smem constant byte address 0x4 - core index']
  #allocation1 [shape = 'u32[144,128]{1,0:T(1,128)}', space=vmem, size = 0x12000, scoped, tag = 'internal scratch']
  #allocation2 [shape = 'f32[2,128,1]{2,1,0:T(8,128)}', space=vmem, size = 0x20000, scoped, tag = 'scratch operand']
  #allocation3 [shape = 'f32[2,128,1]{2,1,0:T(8,128)}', space=vmem, size = 0x20000, scoped, tag = 'scratch operand']
  #allocation4 [shape = 'f32[2,128,256]{2,1,0:T(8,128)}', space=vmem, size = 0x40000, scoped, tag = 'scratch operand']
  %s0 = inlined_call_operand.vmem [shape: s8[256,256], index: 0, kind: input, shape index: {}]
  %s1 = inlined_call_operand.vmem [shape: bf16[256,512], index: 1, kind: input, shape index: {}]
  %s2 = inlined_call_operand.vmem [shape: f32[256,128], index: 2, kind: input, shape index: {}]
  %s3 = inlined_call_operand.vmem [shape: f32[8,256], index: 3, kind: input, shape index: {}]
  %s4 = inlined_call_operand.vmem [shape: f32[1,512], index: 4, kind: input, shape index: {}]
  %s5 = inlined_call_operand.vmem [shape: bf16[512,256], index: 5, kind: input, shape index: {}]
  %s6 = inlined_call_operand.vmem [shape: f32[1,256], index: 6, kind: input, shape index: {}]
  %s7 = inlined_call_operand.vmem [shape: bf16[256,128], index: 7, kind: input, shape index: {}]
  %s8 = inlined_call_operand.vmem [shape: f32[1,128], index: 8, kind: input, shape index: {}]
  %s9 = inlined_call_operand.vmem [shape: bf16[128,128], index: 9, kind: input, shape index: {}]
  %s10 = inlined_call_operand.vmem [shape: f32[1,128], index: 10, kind: input, shape index: {}]
  %s11 = inlined_call_operand.vmem [shape: f32[256,128], index: 11, kind: output, shape index: {0}]
  %s12 = inlined_call_operand.vmem [shape: f32[256,128], index: 12, kind: output, shape index: {1}]
  %13 = xla_tuple %s11, %s12
  %s14 = sld [smem:[#allocation0]]
  $region93: #{gatnet_forward.4} parent=0
    _
  %s16 = ssub.s32 1, %s14
  %s17 = scalar_select 0, %s16, %s14
  loop: start=0, step=1, limit=4
  $region2: #{gatnet_forward.4} parent=0 // loop_pre_header
    _
  $region3: #{gatnet_forward.4} parent=0 // loop_header
    %s19 = sphi 0, %s23
    %p20 = scmp.ge.s32.totalorder %s19, 4
    %s26 = sphi 0, %s38
    %s27 = sphi 0, %s34
    %s28 = sphi 0, %s26
    %s29 = sphi 0, %s27
    %s30 = sphi 0, %s28
    %s31 = sphi 0, %s29
    %s43 = sphi 0, %s45
    %s46 = sphi 0, %s43
    %s47 = sphi 0, %s46
    %s63 = sphi 0, %s47
    %s69 = sphi 0, %s71
    %s72 = sphi 0, %s69
    %s73 = sphi 0, %s72
    %s89 = sphi 0, %s73
    %s95 = sphi 0, %s97
    %s98 = sphi 0, %s95
    %s99 = sphi 0, %s98
    %s115 = sphi 0, %s99
    %s121 = sphi 0, %s123
    %s124 = sphi 0, %s121
    %s125 = sphi 0, %s124
    %s141 = sphi 0, %s125
    %s145 = sphi 0, %s145
    %s147 = sphi 0, %s145
    %s148 = sphi 0, %s147
    %s162 = sphi 0, %s148
    %s166 = sphi 0, %s166
    %s168 = sphi 0, %s166
    %s169 = sphi 0, %s168
    %s183 = sphi 0, %s169
    %s187 = sphi 0, %s187
    %s189 = sphi 0, %s187
    %s190 = sphi 0, %s189
    %s204 = sphi 0, %s190
    %s208 = sphi 0, %s208
    %s210 = sphi 0, %s208
    %s211 = sphi 0, %s210
    %s225 = sphi 0, %s211
    %s229 = sphi 0, %s229
    %s231 = sphi 0, %s229
    %s232 = sphi 0, %s231
    %s246 = sphi 0, %s232
    %s250 = sphi 0, %s250
    %s252 = sphi 0, %s250
    %s253 = sphi 0, %s252
    %s267 = sphi 0, %s253
    %s271 = sphi 0, %s271
    %s273 = sphi 0, %s271
    %s274 = sphi 0, %s273
    %s288 = sphi 0, %s274
    %s294 = sphi 0, %s296
    %s297 = sphi 0, %s294
    %s298 = sphi 0, %s297
    %s314 = sphi 0, %s298
    %s320 = sphi 0, %s322
    %s323 = sphi 0, %s320
    %s324 = sphi 0, %s323
    %s340 = sphi 0, %s324
  $region4: #{gatnet_forward.4} parent=0 // loop_header_branch
    %22 = sbr.rel (%p20) target = $region8
  $region5: #{gatnet_forward.4} parent=0 // loop_body
    %s24 = ssub.s32 %s19, 1
    %s25 = ssub.s32 %s19, 2
    %s32 = sadd.s32 1, %s27
    %p33 = scmp.ge.s32.totalorder %s32, 1
    %s34 = scalar_select %p33, 0, %s32
    %s35 = sadd.s32 1, %s26
    %s36 = scalar_select %p33, %s35, %s26
    %p37 = scmp.ge.s32.totalorder %s36, 2
    %s38 = scalar_select %p37, 0, %s36
    %s39 = ssub.s32 %s26, %s38
    %s40 = ssub.s32 %s27, %s34
    %s41 = sor.u32 %s39, %s40
    %p42 = scmp.eq.s32.totalorder %s41, 0
    %s44 = sadd.s32 %s43, 1
    %s45 = scalar_select %p42, %s43, %s44
    %p48 = pneg %p42
    %p49 = scmp.eq.s32.totalorder %s19, 1
    %p50 = por %p48, %p49
    %p51 = scmp.ne.s32.totalorder %s43, %s46
    %p52 = scmp.eq.s32.totalorder %s19, 0
    %p53 = por %p51, %p52
    %p54 = scmp.ne.s32.totalorder %s43, %s46
    %p55 = scmp.eq.s32.totalorder %s24, 1
    %p56 = por %p54, %p55
    %p57 = scmp.ne.s32.totalorder %s46, %s47
    %p58 = scmp.eq.s32.totalorder %s24, 0
    %p59 = por %p57, %p58
    %p60 = scmp.ne.s32.totalorder %s46, %s47
    %p61 = scmp.eq.s32.totalorder %s25, 1
    %p62 = por %p60, %p61
    %p64 = scmp.ne.s32.totalorder %s47, %s63
    %p65 = scmp.eq.s32.totalorder %s25, 0
    %p66 = por %p64, %p65
    %s67 = ssub.s32 %s27, %s34
    %p68 = scmp.eq.s32.totalorder %s67, 0
    %s70 = sadd.s32 %s69, 1
    %s71 = scalar_select %p68, %s69, %s70
    %p74 = pneg %p68
    %p75 = scmp.eq.s32.totalorder %s19, 1
    %p76 = por %p74, %p75
    %p77 = scmp.ne.s32.totalorder %s69, %s72
    %p78 = scmp.eq.s32.totalorder %s19, 0
    %p79 = por %p77, %p78
    %p80 = scmp.ne.s32.totalorder %s69, %s72
    %p81 = scmp.eq.s32.totalorder %s24, 1
    %p82 = por %p80, %p81
    %p83 = scmp.ne.s32.totalorder %s72, %s73
    %p84 = scmp.eq.s32.totalorder %s24, 0
    %p85 = por %p83, %p84
    %p86 = scmp.ne.s32.totalorder %s72, %s73
    %p87 = scmp.eq.s32.totalorder %s25, 1
    %p88 = por %p86, %p87
    %p90 = scmp.ne.s32.totalorder %s73, %s89
    %p91 = scmp.eq.s32.totalorder %s25, 0
    %p92 = por %p90, %p91
    %s93 = ssub.s32 %s26, %s38
    %p94 = scmp.eq.s32.totalorder %s93, 0
    %s96 = sadd.s32 %s95, 1
    %s97 = scalar_select %p94, %s95, %s96
    %p100 = pneg %p94
    %p101 = scmp.eq.s32.totalorder %s19, 1
    %p102 = por %p100, %p101
    %p103 = scmp.ne.s32.totalorder %s95, %s98
    %p104 = scmp.eq.s32.totalorder %s19, 0
    %p105 = por %p103, %p104
    %p106 = scmp.ne.s32.totalorder %s95, %s98
    %p107 = scmp.eq.s32.totalorder %s24, 1
    %p108 = por %p106, %p107
    %p109 = scmp.ne.s32.totalorder %s98, %s99
    %p110 = scmp.eq.s32.totalorder %s24, 0
    %p111 = por %p109, %p110
    %p112 = scmp.ne.s32.totalorder %s98, %s99
    %p113 = scmp.eq.s32.totalorder %s25, 1
    %p114 = por %p112, %p113
    %p116 = scmp.ne.s32.totalorder %s99, %s115
    %p117 = scmp.eq.s32.totalorder %s25, 0
    %p118 = por %p116, %p117
    %s119 = ssub.s32 %s27, %s34
    %p120 = scmp.eq.s32.totalorder %s119, 0
    %s122 = sadd.s32 %s121, 1
    %s123 = scalar_select %p120, %s121, %s122
    %p126 = pneg %p120
    %p127 = scmp.eq.s32.totalorder %s19, 1
    %p128 = por %p126, %p127
    %p129 = scmp.ne.s32.totalorder %s121, %s124
    %p130 = scmp.eq.s32.totalorder %s19, 0
    %p131 = por %p129, %p130
    %p132 = scmp.ne.s32.totalorder %s121, %s124
    %p133 = scmp.eq.s32.totalorder %s24, 1
    %p134 = por %p132, %p133
    %p135 = scmp.ne.s32.totalorder %s124, %s125
    %p136 = scmp.eq.s32.totalorder %s24, 0
    %p137 = por %p135, %p136
    %p138 = scmp.ne.s32.totalorder %s124, %s125
    %p139 = scmp.eq.s32.totalorder %s25, 1
    %p140 = por %p138, %p139
    %p142 = scmp.ne.s32.totalorder %s125, %s141
    %p143 = scmp.eq.s32.totalorder %s25, 0
    %p144 = por %p142, %p143
    %s146 = sadd.s32 %s145, 1
    %p149 = scmp.eq.s32.totalorder %s19, 1
    %p150 = scmp.ne.s32.totalorder %s145, %s147
    %p151 = scmp.eq.s32.totalorder %s19, 0
    %p152 = por %p150, %p151
    %p153 = scmp.ne.s32.totalorder %s145, %s147
    %p154 = scmp.eq.s32.totalorder %s24, 1
    %p155 = por %p153, %p154
    %p156 = scmp.ne.s32.totalorder %s147, %s148
    %p157 = scmp.eq.s32.totalorder %s24, 0
    %p158 = por %p156, %p157
    %p159 = scmp.ne.s32.totalorder %s147, %s148
    %p160 = scmp.eq.s32.totalorder %s25, 1
    %p161 = por %p159, %p160
    %p163 = scmp.ne.s32.totalorder %s148, %s162
    %p164 = scmp.eq.s32.totalorder %s25, 0
    %p165 = por %p163, %p164
    %s167 = sadd.s32 %s166, 1
    %p170 = scmp.eq.s32.totalorder %s19, 1
    %p171 = scmp.ne.s32.totalorder %s166, %s168
    %p172 = scmp.eq.s32.totalorder %s19, 0
    %p173 = por %p171, %p172
    %p174 = scmp.ne.s32.totalorder %s166, %s168
    %p175 = scmp.eq.s32.totalorder %s24, 1
    %p176 = por %p174, %p175
    %p177 = scmp.ne.s32.totalorder %s168, %s169
    %p178 = scmp.eq.s32.totalorder %s24, 0
    %p179 = por %p177, %p178
    %p180 = scmp.ne.s32.totalorder %s168, %s169
    %p181 = scmp.eq.s32.totalorder %s25, 1
    %p182 = por %p180, %p181
    %p184 = scmp.ne.s32.totalorder %s169, %s183
    %p185 = scmp.eq.s32.totalorder %s25, 0
    %p186 = por %p184, %p185
    %s188 = sadd.s32 %s187, 1
    %p191 = scmp.eq.s32.totalorder %s19, 1
    %p192 = scmp.ne.s32.totalorder %s187, %s189
    %p193 = scmp.eq.s32.totalorder %s19, 0
    %p194 = por %p192, %p193
    %p195 = scmp.ne.s32.totalorder %s187, %s189
    %p196 = scmp.eq.s32.totalorder %s24, 1
    %p197 = por %p195, %p196
    %p198 = scmp.ne.s32.totalorder %s189, %s190
    %p199 = scmp.eq.s32.totalorder %s24, 0
    %p200 = por %p198, %p199
    %p201 = scmp.ne.s32.totalorder %s189, %s190
    %p202 = scmp.eq.s32.totalorder %s25, 1
    %p203 = por %p201, %p202
    %p205 = scmp.ne.s32.totalorder %s190, %s204
    %p206 = scmp.eq.s32.totalorder %s25, 0
    %p207 = por %p205, %p206
    %s209 = sadd.s32 %s208, 1
    %p212 = scmp.eq.s32.totalorder %s19, 1
    %p213 = scmp.ne.s32.totalorder %s208, %s210
    %p214 = scmp.eq.s32.totalorder %s19, 0
    %p215 = por %p213, %p214
    %p216 = scmp.ne.s32.totalorder %s208, %s210
    %p217 = scmp.eq.s32.totalorder %s24, 1
    %p218 = por %p216, %p217
    %p219 = scmp.ne.s32.totalorder %s210, %s211
    %p220 = scmp.eq.s32.totalorder %s24, 0
    %p221 = por %p219, %p220
    %p222 = scmp.ne.s32.totalorder %s210, %s211
    %p223 = scmp.eq.s32.totalorder %s25, 1
    %p224 = por %p222, %p223
    %p226 = scmp.ne.s32.totalorder %s211, %s225
    %p227 = scmp.eq.s32.totalorder %s25, 0
    %p228 = por %p226, %p227
    %s230 = sadd.s32 %s229, 1
    %p233 = scmp.eq.s32.totalorder %s19, 1
    %p234 = scmp.ne.s32.totalorder %s229, %s231
    %p235 = scmp.eq.s32.totalorder %s19, 0
    %p236 = por %p234, %p235
    %p237 = scmp.ne.s32.totalorder %s229, %s231
    %p238 = scmp.eq.s32.totalorder %s24, 1
    %p239 = por %p237, %p238
    %p240 = scmp.ne.s32.totalorder %s231, %s232
    %p241 = scmp.eq.s32.totalorder %s24, 0
    %p242 = por %p240, %p241
    %p243 = scmp.ne.s32.totalorder %s231, %s232
    %p244 = scmp.eq.s32.totalorder %s25, 1
    %p245 = por %p243, %p244
    %p247 = scmp.ne.s32.totalorder %s232, %s246
    %p248 = scmp.eq.s32.totalorder %s25, 0
    %p249 = por %p247, %p248
    %s251 = sadd.s32 %s250, 1
    %p254 = scmp.eq.s32.totalorder %s19, 1
    %p255 = scmp.ne.s32.totalorder %s250, %s252
    %p256 = scmp.eq.s32.totalorder %s19, 0
    %p257 = por %p255, %p256
    %p258 = scmp.ne.s32.totalorder %s250, %s252
    %p259 = scmp.eq.s32.totalorder %s24, 1
    %p260 = por %p258, %p259
    %p261 = scmp.ne.s32.totalorder %s252, %s253
    %p262 = scmp.eq.s32.totalorder %s24, 0
    %p263 = por %p261, %p262
    %p264 = scmp.ne.s32.totalorder %s252, %s253
    %p265 = scmp.eq.s32.totalorder %s25, 1
    %p266 = por %p264, %p265
    %p268 = scmp.ne.s32.totalorder %s253, %s267
    %p269 = scmp.eq.s32.totalorder %s25, 0
    %p270 = por %p268, %p269
    %s272 = sadd.s32 %s271, 1
    %p275 = scmp.eq.s32.totalorder %s19, 1
    %p276 = scmp.ne.s32.totalorder %s271, %s273
    %p277 = scmp.eq.s32.totalorder %s19, 0
    %p278 = por %p276, %p277
    %p279 = scmp.ne.s32.totalorder %s271, %s273
    %p280 = scmp.eq.s32.totalorder %s24, 1
    %p281 = por %p279, %p280
    %p282 = scmp.ne.s32.totalorder %s273, %s274
    %p283 = scmp.eq.s32.totalorder %s24, 0
    %p284 = por %p282, %p283
    %p285 = scmp.ne.s32.totalorder %s273, %s274
    %p286 = scmp.eq.s32.totalorder %s25, 1
    %p287 = por %p285, %p286
    %p289 = scmp.ne.s32.totalorder %s274, %s288
    %p290 = scmp.eq.s32.totalorder %s25, 0
    %p291 = por %p289, %p290
    %s292 = ssub.s32 %s26, %s38
    %p293 = scmp.eq.s32.totalorder %s292, 0
    %s295 = sadd.s32 %s294, 1
    %s296 = scalar_select %p293, %s294, %s295
    %p299 = pneg %p293
    %p300 = scmp.eq.s32.totalorder %s19, 1
    %p301 = por %p299, %p300
    %p302 = scmp.ne.s32.totalorder %s294, %s297
    %p303 = scmp.eq.s32.totalorder %s19, 0
    %p304 = por %p302, %p303
    %p305 = scmp.ne.s32.totalorder %s294, %s297
    %p306 = scmp.eq.s32.totalorder %s24, 1
    %p307 = por %p305, %p306
    %p308 = scmp.ne.s32.totalorder %s297, %s298
    %p309 = scmp.eq.s32.totalorder %s24, 0
    %p310 = por %p308, %p309
    %p311 = scmp.ne.s32.totalorder %s297, %s298
    %p312 = scmp.eq.s32.totalorder %s25, 1
    %p313 = por %p311, %p312
    %p315 = scmp.ne.s32.totalorder %s298, %s314
    %p316 = scmp.eq.s32.totalorder %s25, 0
    %p317 = por %p315, %p316
    %s318 = ssub.s32 %s26, %s38
    %p319 = scmp.eq.s32.totalorder %s318, 0
    %s321 = sadd.s32 %s320, 1
    %s322 = scalar_select %p319, %s320, %s321
    %p325 = pneg %p319
    %p326 = scmp.eq.s32.totalorder %s19, 1
    %p327 = por %p325, %p326
    %p328 = scmp.ne.s32.totalorder %s320, %s323
    %p329 = scmp.eq.s32.totalorder %s19, 0
    %p330 = por %p328, %p329
    %p331 = scmp.ne.s32.totalorder %s320, %s323
    %p332 = scmp.eq.s32.totalorder %s24, 1
    %p333 = por %p331, %p332
    %p334 = scmp.ne.s32.totalorder %s323, %s324
    %p335 = scmp.eq.s32.totalorder %s24, 0
    %p336 = por %p334, %p335
    %p337 = scmp.ne.s32.totalorder %s323, %s324
    %p338 = scmp.eq.s32.totalorder %s25, 1
    %p339 = por %p337, %p338
    %p341 = scmp.ne.s32.totalorder %s324, %s340
    %p342 = scmp.eq.s32.totalorder %s25, 0
    %p343 = por %p341, %p342
    %p344 = scmp.le.s32.totalorder 1, %s19
    %p345 = scmp.lt.s32.totalorder %s19, 3
    %p346 = pnand %p344, %p345
    %p347 = pneg %p346
    // Predicated region
    $region9: #{gatnet_forward.4} parent=5 // pred_check
      _
    $region10: #{gatnet_forward.4} parent=5 // pred_check_branch
      %349 = sbr.rel (%p346) target = $region12
    $region11: #{gatnet_forward.4} parent=5 // pred_region
      %s350 = ssub.s32 %s19, 1
      // Predicated region
      $region13: #{gatnet_forward.4} parent=11 // pred_check
        %p351 = pneg %p85
      $region14: #{gatnet_forward.4} parent=11 // pred_check_branch
        %353 = sbr.rel (%p351) target = $region16
      $region15: #{gatnet_forward.4} parent=11 // pred_region
        %s354 = smul.u32 32, %s29
        %p355 = scmp.lt.s32.totalorder %s354, 31
        %s356 = scalar_select %p355, %s354, 31
        %s357 = smul.addr %s356, 4
        %s358 = smul.addr %s357, 4
        %s359 = scalar_lea.vmem %s1, %s358
        %s360 = smul.u32 32, %s29
      $region16: #{gatnet_forward.4} parent=11 // pred_fallthru
        _
      // Predicated region
      $region17: #{gatnet_forward.4} parent=11 // pred_check
        %p361 = pneg %p137
      $region18: #{gatnet_forward.4} parent=11 // pred_check_branch
        %363 = sbr.rel (%p361) target = $region20
      $region19: #{gatnet_forward.4} parent=11 // pred_region
        %s364 = smul.u32 2, %s29
        %p365 = scmp.lt.s32.totalorder %s364, 1
        %s366 = scalar_select %p365, %s364, 1
        %s367 = smul.addr %s366, 8
        %s368 = scalar_lea.vmem %s3, %s367
        %s369 = smul.u32 2, %s29
      $region20: #{gatnet_forward.4} parent=11 // pred_fallthru
        _
      // Predicated region
      $region21: #{gatnet_forward.4} parent=11 // pred_check
        %p370 = pneg %p158
      $region22: #{gatnet_forward.4} parent=11 // pred_check_branch
        %372 = sbr.rel (%p370) target = $region24
      $region23: #{gatnet_forward.4} parent=11 // pred_region
        _
      $region24: #{gatnet_forward.4} parent=11 // pred_fallthru
        _
      // Predicated region
      $region25: #{gatnet_forward.4} parent=11 // pred_check
        %p373 = pneg %p179
      $region26: #{gatnet_forward.4} parent=11 // pred_check_branch
        %375 = sbr.rel (%p373) target = $region28
      $region27: #{gatnet_forward.4} parent=11 // pred_region
        _
      $region28: #{gatnet_forward.4} parent=11 // pred_fallthru
        _
      // Predicated region
      $region29: #{gatnet_forward.4} parent=11 // pred_check
        %p376 = pneg %p200
      $region30: #{gatnet_forward.4} parent=11 // pred_check_branch
        %378 = sbr.rel (%p376) target = $region32
      $region31: #{gatnet_forward.4} parent=11 // pred_region
        _
      $region32: #{gatnet_forward.4} parent=11 // pred_fallthru
        _
      // Predicated region
      $region33: #{gatnet_forward.4} parent=11 // pred_check
        %p379 = pneg %p221
      $region34: #{gatnet_forward.4} parent=11 // pred_check_branch
        %381 = sbr.rel (%p379) target = $region36
      $region35: #{gatnet_forward.4} parent=11 // pred_region
        _
      $region36: #{gatnet_forward.4} parent=11 // pred_fallthru
        _
      // Predicated region
      $region37: #{gatnet_forward.4} parent=11 // pred_check
        %p382 = pneg %p242
      $region38: #{gatnet_forward.4} parent=11 // pred_check_branch
        %384 = sbr.rel (%p382) target = $region40
      $region39: #{gatnet_forward.4} parent=11 // pred_region
        _
      $region40: #{gatnet_forward.4} parent=11 // pred_fallthru
        _
      // Predicated region
      $region41: #{gatnet_forward.4} parent=11 // pred_check
        %p385 = pneg %p263
      $region42: #{gatnet_forward.4} parent=11 // pred_check_branch
        %387 = sbr.rel (%p385) target = $region44
      $region43: #{gatnet_forward.4} parent=11 // pred_region
        _
      $region44: #{gatnet_forward.4} parent=11 // pred_fallthru
        _
      // Predicated region
      $region45: #{gatnet_forward.4} parent=11 // pred_check
        %p388 = pneg %p284
      $region46: #{gatnet_forward.4} parent=11 // pred_check_branch
        %390 = sbr.rel (%p388) target = $region48
      $region47: #{gatnet_forward.4} parent=11 // pred_region
        _
      $region48: #{gatnet_forward.4} parent=11 // pred_fallthru
        _
    $region12: #{gatnet_forward.4} parent=5 // pred_fallthru
      _
    %p391 = scmp.lt.s32.totalorder %s19, 2
    // Predicated region
    $region49: #{gatnet_forward.4} parent=5 // pred_check
      %p392 = pneg %p391
    $region50: #{gatnet_forward.4} parent=5 // pred_check_branch
      %394 = sbr.rel (%p392) target = $region52
    $region51: #{gatnet_forward.4} parent=5 // pred_region
      // Predicated region
      $region53: #{gatnet_forward.4} parent=51 // pred_check
        %p395 = pneg %p53
      $region54: #{gatnet_forward.4} parent=51 // pred_check_branch
        %397 = sbr.rel (%p395) target = $region56
      $region55: #{gatnet_forward.4} parent=51 // pred_region
        %s398 = smul.u32 16, %s26
        %s399 = smul.u32 2, %s27
        %p400 = scmp.lt.s32.totalorder %s398, 31
        %s401 = scalar_select %p400, %s398, 31
        %p402 = scmp.lt.s32.totalorder %s399, 1
        %s403 = scalar_select %p402, %s399, 1
        %s404 = smul.addr %s401, 2
        %s405 = sadd.s32 %s403, %s404
        %s406 = smul.addr %s405, 2
        %s407 = scalar_lea.vmem %s0, %s406
        %s408 = smul.u32 16, %s26
        %s409 = smul.u32 2, %s27
      $region56: #{gatnet_forward.4} parent=51 // pred_fallthru
        _
      // Predicated region
      $region57: #{gatnet_forward.4} parent=51 // pred_check
        %p410 = pneg %p105
      $region58: #{gatnet_forward.4} parent=51 // pred_check_branch
        %412 = sbr.rel (%p410) target = $region60
      $region59: #{gatnet_forward.4} parent=51 // pred_region
        %s413 = smul.u32 16, %s26
        %p414 = scmp.lt.s32.totalorder %s413, 31
        %s415 = scalar_select %p414, %s413, 31
        %s416 = smul.addr %s415, 8
        %s417 = scalar_lea.vmem %s2, %s416
        %s418 = smul.u32 16, %s26
      $region60: #{gatnet_forward.4} parent=51 // pred_fallthru
        _
    $region52: #{gatnet_forward.4} parent=5 // pred_fallthru
      _
    %p419 = scmp.le.s32.totalorder 1, %s19
    %p420 = scmp.lt.s32.totalorder %s19, 3
    %p421 = pnand %p419, %p420
    %p422 = pneg %p421
    // Predicated region
    $region61: #{gatnet_forward.4} parent=5 // pred_check
      _
    $region62: #{gatnet_forward.4} parent=5 // pred_check_branch
      %424 = sbr.rel (%p421) target = $region64
    $region63: #{gatnet_forward.4} parent=5 // pred_region
      %s425 = ssub.s32 %s19, 1
      %s426 = smul.u32 16, %s28
      %s427 = smul.u32 2, %s29
      %p428 = scmp.lt.s32.totalorder %s426, 31
      %s429 = scalar_select %p428, %s426, 31
      %p430 = scmp.lt.s32.totalorder %s427, 1
      %s431 = scalar_select %p430, %s427, 1
      %s432 = smul.addr %s429, 2
      %s433 = sadd.s32 %s431, %s432
      %s434 = smul.addr %s433, 2
      %s435 = scalar_lea.vmem %s0, %s434
      %p436 = pneg %p59
      %p437 = pneg %p56
      %s438 = smul.u32 32, %s29
      %p439 = scmp.lt.s32.totalorder %s438, 31
      %s440 = scalar_select %p439, %s438, 31
      %s441 = smul.addr %s440, 4
      %s442 = smul.addr %s441, 4
      %s443 = scalar_lea.vmem %s1, %s442
      %p444 = pneg %p85
      %p445 = pneg %p82
      %s446 = smul.u32 16, %s28
      %p447 = scmp.lt.s32.totalorder %s446, 31
      %s448 = scalar_select %p447, %s446, 31
      %s449 = smul.addr %s448, 8
      %s450 = scalar_lea.vmem %s2, %s449
      %p451 = pneg %p111
      %p452 = pneg %p108
      %s453 = smul.u32 2, %s29
      %p454 = scmp.lt.s32.totalorder %s453, 1
      %s455 = scalar_select %p454, %s453, 1
      %s456 = smul.addr %s455, 8
      %s457 = scalar_lea.vmem %s3, %s456
      %p458 = pneg %p137
      %p459 = pneg %p134
      %p460 = pneg %p158
      %p461 = pneg %p155
      %p462 = pneg %p179
      %p463 = pneg %p176
      %p464 = pneg %p200
      %p465 = pneg %p197
      %p466 = pneg %p221
      %p467 = pneg %p218
      %p468 = pneg %p242
      %p469 = pneg %p239
      %p470 = pneg %p263
      %p471 = pneg %p260
      %p472 = pneg %p284
      %p473 = pneg %p281
      %p474 = pneg %p310
      %p475 = pneg %p307
      %s476 = smul.u32 16, %s28
      %p477 = scmp.lt.s32.totalorder %s476, 31
      %s478 = scalar_select %p477, %s476, 31
      %s479 = smul.addr %s478, 8
      %s480 = scalar_lea.vmem %s11, %s479
      %p481 = pneg %p336
      %p482 = pneg %p333
      %s483 = smul.u32 16, %s28
      %p484 = scmp.lt.s32.totalorder %s483, 31
      %s485 = scalar_select %p484, %s483, 31
      %s486 = smul.addr %s485, 8
      %s487 = scalar_lea.vmem %s12, %s486
      %s488 = smul.u32 16, %s28
      %s489 = smul.u32 2, %s29
      %p490 = scmp.lt.s32.totalorder %s488, 31
      %s491 = scalar_select %p490, %s488, 31
      %p492 = scmp.lt.s32.totalorder %s489, 1
      %s493 = scalar_select %p492, %s489, 1
      %s494 = smul.addr %s491, 2
      %s495 = sadd.s32 %s493, %s494
      %s496 = smul.addr %s495, 2
      %s497 = scalar_lea.vmem %s0, %s496
      %s498 = smul.u32 16, %s28
      %s499 = smul.u32 2, %s29
      %s500 = smul.u32 32, %s29
      %p501 = scmp.lt.s32.totalorder %s500, 31
      %s502 = scalar_select %p501, %s500, 31
      %s503 = smul.addr %s502, 4
      %s504 = smul.addr %s503, 4
      %s505 = scalar_lea.vmem %s1, %s504
      %s506 = smul.u32 32, %s29
      %s507 = smul.u32 16, %s28
      %p508 = scmp.lt.s32.totalorder %s507, 31
      %s509 = scalar_select %p508, %s507, 31
      %s510 = smul.addr %s509, 8
      %s511 = scalar_lea.vmem %s2, %s510
      %s512 = smul.u32 16, %s28
      %s513 = smul.u32 2, %s29
      %p514 = scmp.lt.s32.totalorder %s513, 1
      %s515 = scalar_select %p514, %s513, 1
      %s516 = smul.addr %s515, 8
      %s517 = scalar_lea.vmem %s3, %s516
      %s518 = smul.u32 2, %s29
      %s519 = smul.u32 16, %s28
      %p520 = scmp.lt.s32.totalorder %s519, 31
      %s521 = scalar_select %p520, %s519, 31
      %s522 = smul.addr %s521, 8
      %s523 = scalar_lea.vmem %s11, %s522
      %s524 = smul.u32 16, %s28
      %s525 = smul.u32 16, %s28
      %p526 = scmp.lt.s32.totalorder %s525, 31
      %s527 = scalar_select %p526, %s525, 31
      %s528 = smul.addr %s527, 8
      %s529 = scalar_lea.vmem %s12, %s528
      %s530 = smul.u32 16, %s28
      %p538 = scmp.eq.s32.totalorder %s29, 0
      // Predicated region
      $region65: #{gatnet_forward.4} parent=63 // pred_check
        %p539 = pneg %p538
      $region66: #{gatnet_forward.4} parent=63 // pred_check_branch
        %541 = sbr.rel (%p539) target = $region68
      $region67: #{gatnet_forward.4} parent=63 // pred_region
        %vm542 = vcmask 7168
        %543 = vst.msk [vmem:[#allocation2] sm:$0xff] %vm542, -inf
        %544 = vst.msk [vmem:[#allocation2 + $0x8] sm:$0xff] %vm542, -inf
        %545 = vst.msk [vmem:[#allocation2 + $0x10] sm:$0xff] %vm542, -inf
        %546 = vst.msk [vmem:[#allocation2 + $0x18] sm:$0xff] %vm542, -inf
        %547 = vst.msk [vmem:[#allocation2 + $0x20] sm:$0xff] %vm542, -inf
        %548 = vst.msk [vmem:[#allocation2 + $0x28] sm:$0xff] %vm542, -inf
        %549 = vst.msk [vmem:[#allocation2 + $0x30] sm:$0xff] %vm542, -inf
        %550 = vst.msk [vmem:[#allocation2 + $0x38] sm:$0xff] %vm542, -inf
        %551 = vst.msk [vmem:[#allocation2 + $0x40] sm:$0xff] %vm542, -inf
        %552 = vst.msk [vmem:[#allocation2 + $0x48] sm:$0xff] %vm542, -inf
        %553 = vst.msk [vmem:[#allocation2 + $0x50] sm:$0xff] %vm542, -inf
        %554 = vst.msk [vmem:[#allocation2 + $0x58] sm:$0xff] %vm542, -inf
        %555 = vst.msk [vmem:[#allocation2 + $0x60] sm:$0xff] %vm542, -inf
        %556 = vst.msk [vmem:[#allocation2 + $0x68] sm:$0xff] %vm542, -inf
        %557 = vst.msk [vmem:[#allocation2 + $0x70] sm:$0xff] %vm542, -inf
        %558 = vst.msk [vmem:[#allocation2 + $0x78] sm:$0xff] %vm542, -inf
        %559 = vst.msk [vmem:[#allocation2 + $0x80] sm:$0xff] %vm542, -inf
        %560 = vst.msk [vmem:[#allocation2 + $0x88] sm:$0xff] %vm542, -inf
        %561 = vst.msk [vmem:[#allocation2 + $0x90] sm:$0xff] %vm542, -inf
        %562 = vst.msk [vmem:[#allocation2 + $0x98] sm:$0xff] %vm542, -inf
        %563 = vst.msk [vmem:[#allocation2 + $0xa0] sm:$0xff] %vm542, -inf
        %564 = vst.msk [vmem:[#allocation2 + $0xa8] sm:$0xff] %vm542, -inf
        %565 = vst.msk [vmem:[#allocation2 + $0xb0] sm:$0xff] %vm542, -inf
        %566 = vst.msk [vmem:[#allocation2 + $0xb8] sm:$0xff] %vm542, -inf
        %567 = vst.msk [vmem:[#allocation2 + $0xc0] sm:$0xff] %vm542, -inf
        %568 = vst.msk [vmem:[#allocation2 + $0xc8] sm:$0xff] %vm542, -inf
        %569 = vst.msk [vmem:[#allocation2 + $0xd0] sm:$0xff] %vm542, -inf
        %570 = vst.msk [vmem:[#allocation2 + $0xd8] sm:$0xff] %vm542, -inf
        %571 = vst.msk [vmem:[#allocation2 + $0xe0] sm:$0xff] %vm542, -inf
        %572 = vst.msk [vmem:[#allocation2 + $0xe8] sm:$0xff] %vm542, -inf
        %573 = vst.msk [vmem:[#allocation2 + $0xf0] sm:$0xff] %vm542, -inf
        %574 = vst.msk [vmem:[#allocation2 + $0xf8] sm:$0xff] %vm542, -inf
        %575 = vst.msk [vmem:[#allocation3] sm:$0xff] %vm542, 0.0
        %576 = vst.msk [vmem:[#allocation3 + $0x8] sm:$0xff] %vm542, 0.0
        %577 = vst.msk [vmem:[#allocation3 + $0x10] sm:$0xff] %vm542, 0.0
        %578 = vst.msk [vmem:[#allocation3 + $0x18] sm:$0xff] %vm542, 0.0
        %579 = vst.msk [vmem:[#allocation3 + $0x20] sm:$0xff] %vm542, 0.0
        %580 = vst.msk [vmem:[#allocation3 + $0x28] sm:$0xff] %vm542, 0.0
        %581 = vst.msk [vmem:[#allocation3 + $0x30] sm:$0xff] %vm542, 0.0
        %582 = vst.msk [vmem:[#allocation3 + $0x38] sm:$0xff] %vm542, 0.0
        %583 = vst.msk [vmem:[#allocation3 + $0x40] sm:$0xff] %vm542, 0.0
        %584 = vst.msk [vmem:[#allocation3 + $0x48] sm:$0xff] %vm542, 0.0
        %585 = vst.msk [vmem:[#allocation3 + $0x50] sm:$0xff] %vm542, 0.0
        %586 = vst.msk [vmem:[#allocation3 + $0x58] sm:$0xff] %vm542, 0.0
        %587 = vst.msk [vmem:[#allocation3 + $0x60] sm:$0xff] %vm542, 0.0
        %588 = vst.msk [vmem:[#allocation3 + $0x68] sm:$0xff] %vm542, 0.0
        %589 = vst.msk [vmem:[#allocation3 + $0x70] sm:$0xff] %vm542, 0.0
        %590 = vst.msk [vmem:[#allocation3 + $0x78] sm:$0xff] %vm542, 0.0
        %591 = vst.msk [vmem:[#allocation3 + $0x80] sm:$0xff] %vm542, 0.0
        %592 = vst.msk [vmem:[#allocation3 + $0x88] sm:$0xff] %vm542, 0.0
        %593 = vst.msk [vmem:[#allocation3 + $0x90] sm:$0xff] %vm542, 0.0
        %594 = vst.msk [vmem:[#allocation3 + $0x98] sm:$0xff] %vm542, 0.0
        %595 = vst.msk [vmem:[#allocation3 + $0xa0] sm:$0xff] %vm542, 0.0
        %596 = vst.msk [vmem:[#allocation3 + $0xa8] sm:$0xff] %vm542, 0.0
        %597 = vst.msk [vmem:[#allocation3 + $0xb0] sm:$0xff] %vm542, 0.0
        %598 = vst.msk [vmem:[#allocation3 + $0xb8] sm:$0xff] %vm542, 0.0
        %599 = vst.msk [vmem:[#allocation3 + $0xc0] sm:$0xff] %vm542, 0.0
        %600 = vst.msk [vmem:[#allocation3 + $0xc8] sm:$0xff] %vm542, 0.0
        %601 = vst.msk [vmem:[#allocation3 + $0xd0] sm:$0xff] %vm542, 0.0
        %602 = vst.msk [vmem:[#allocation3 + $0xd8] sm:$0xff] %vm542, 0.0
        %603 = vst.msk [vmem:[#allocation3 + $0xe0] sm:$0xff] %vm542, 0.0
        %604 = vst.msk [vmem:[#allocation3 + $0xe8] sm:$0xff] %vm542, 0.0
        %605 = vst.msk [vmem:[#allocation3 + $0xf0] sm:$0xff] %vm542, 0.0
        %606 = vst.msk [vmem:[#allocation3 + $0xf8] sm:$0xff] %vm542, 0.0
        %607 = vst [vmem:[#allocation4] sm:$0xff] 0.0
        %608 = vst [vmem:[#allocation4 + $0x8] sm:$0xff] 0.0
        %609 = vst [vmem:[#allocation4 + $0x10] sm:$0xff] 0.0
        %610 = vst [vmem:[#allocation4 + $0x18] sm:$0xff] 0.0
        %611 = vst [vmem:[#allocation4 + $0x20] sm:$0xff] 0.0
        %612 = vst [vmem:[#allocation4 + $0x28] sm:$0xff] 0.0
        %613 = vst [vmem:[#allocation4 + $0x30] sm:$0xff] 0.0
        %614 = vst [vmem:[#allocation4 + $0x38] sm:$0xff] 0.0
        %615 = vst [vmem:[#allocation4 + $0x40] sm:$0xff] 0.0
        %616 = vst [vmem:[#allocation4 + $0x48] sm:$0xff] 0.0
        %617 = vst [vmem:[#allocation4 + $0x50] sm:$0xff] 0.0
        %618 = vst [vmem:[#allocation4 + $0x58] sm:$0xff] 0.0
        %619 = vst [vmem:[#allocation4 + $0x60] sm:$0xff] 0.0
        %620 = vst [vmem:[#allocation4 + $0x68] sm:$0xff] 0.0
        %621 = vst [vmem:[#allocation4 + $0x70] sm:$0xff] 0.0
        %622 = vst [vmem:[#allocation4 + $0x78] sm:$0xff] 0.0
        %623 = vst [vmem:[#allocation4 + $0x80] sm:$0xff] 0.0
        %624 = vst [vmem:[#allocation4 + $0x88] sm:$0xff] 0.0
        %625 = vst [vmem:[#allocation4 + $0x90] sm:$0xff] 0.0
        %626 = vst [vmem:[#allocation4 + $0x98] sm:$0xff] 0.0
        %627 = vst [vmem:[#allocation4 + $0xa0] sm:$0xff] 0.0
        %628 = vst [vmem:[#allocation4 + $0xa8] sm:$0xff] 0.0
        %629 = vst [vmem:[#allocation4 + $0xb0] sm:$0xff] 0.0
        %630 = vst [vmem:[#allocation4 + $0xb8] sm:$0xff] 0.0
        %631 = vst [vmem:[#allocation4 + $0xc0] sm:$0xff] 0.0
        %632 = vst [vmem:[#allocation4 + $0xc8] sm:$0xff] 0.0
        %633 = vst [vmem:[#allocation4 + $0xd0] sm:$0xff] 0.0
        %634 = vst [vmem:[#allocation4 + $0xd8] sm:$0xff] 0.0
        %635 = vst [vmem:[#allocation4 + $0xe0] sm:$0xff] 0.0
        %636 = vst [vmem:[#allocation4 + $0xe8] sm:$0xff] 0.0
        %637 = vst [vmem:[#allocation4 + $0xf0] sm:$0xff] 0.0
        %638 = vst [vmem:[#allocation4 + $0xf8] sm:$0xff] 0.0
        %639 = vst [vmem:[#allocation4 + $0x100] sm:$0xff] 0.0
        %640 = vst [vmem:[#allocation4 + $0x108] sm:$0xff] 0.0
        %641 = vst [vmem:[#allocation4 + $0x110] sm:$0xff] 0.0
        %642 = vst [vmem:[#allocation4 + $0x118] sm:$0xff] 0.0
        %643 = vst [vmem:[#allocation4 + $0x120] sm:$0xff] 0.0
        %644 = vst [vmem:[#allocation4 + $0x128] sm:$0xff] 0.0
        %645 = vst [vmem:[#allocation4 + $0x130] sm:$0xff] 0.0
        %646 = vst [vmem:[#allocation4 + $0x138] sm:$0xff] 0.0
        %647 = vst [vmem:[#allocation4 + $0x140] sm:$0xff] 0.0
        %648 = vst [vmem:[#allocation4 + $0x148] sm:$0xff] 0.0
        %649 = vst [vmem:[#allocation4 + $0x150] sm:$0xff] 0.0
        %650 = vst [vmem:[#allocation4 + $0x158] sm:$0xff] 0.0
        %651 = vst [vmem:[#allocation4 + $0x160] sm:$0xff] 0.0
        %652 = vst [vmem:[#allocation4 + $0x168] sm:$0xff] 0.0
        %653 = vst [vmem:[#allocation4 + $0x170] sm:$0xff] 0.0
        %654 = vst [vmem:[#allocation4 + $0x178] sm:$0xff] 0.0
        %655 = vst [vmem:[#allocation4 + $0x180] sm:$0xff] 0.0
        %656 = vst [vmem:[#allocation4 + $0x188] sm:$0xff] 0.0
        %657 = vst [vmem:[#allocation4 + $0x190] sm:$0xff] 0.0
        %658 = vst [vmem:[#allocation4 + $0x198] sm:$0xff] 0.0
        %659 = vst [vmem:[#allocation4 + $0x1a0] sm:$0xff] 0.0
        %660 = vst [vmem:[#allocation4 + $0x1a8] sm:$0xff] 0.0
        %661 = vst [vmem:[#allocation4 + $0x1b0] sm:$0xff] 0.0
        %662 = vst [vmem:[#allocation4 + $0x1b8] sm:$0xff] 0.0
        %663 = vst [vmem:[#allocation4 + $0x1c0] sm:$0xff] 0.0
        %664 = vst [vmem:[#allocation4 + $0x1c8] sm:$0xff] 0.0
        %665 = vst [vmem:[#allocation4 + $0x1d0] sm:$0xff] 0.0
        %666 = vst [vmem:[#allocation4 + $0x1d8] sm:$0xff] 0.0
        %667 = vst [vmem:[#allocation4 + $0x1e0] sm:$0xff] 0.0
        %668 = vst [vmem:[#allocation4 + $0x1e8] sm:$0xff] 0.0
        %669 = vst [vmem:[#allocation4 + $0x1f0] sm:$0xff] 0.0
        %670 = vst [vmem:[#allocation4 + $0x1f8] sm:$0xff] 0.0
      $region68: #{gatnet_forward.4} parent=63 // pred_fallthru
        _
      %v671 = vld [vmem:[%s497] sm:$0xf]
      %v672 = vld [vmem:[%s497 + $0x4] sm:$0xf]
      %v673 = vld [vmem:[%s497 + $0x8] sm:$0xf]
      %v674 = vld [vmem:[%s497 + $0xc] sm:$0xf]
      %v675 = vld [vmem:[%s497 + $0x10] sm:$0xf]
      %v676 = vld [vmem:[%s497 + $0x14] sm:$0xf]
      %v677 = vld [vmem:[%s497 + $0x18] sm:$0xf]
      %v678 = vld [vmem:[%s497 + $0x1c] sm:$0xf]
      %v679 = vld [vmem:[%s497 + $0x20] sm:$0xf]
      %v680 = vld [vmem:[%s497 + $0x24] sm:$0xf]
      %v681 = vld [vmem:[%s497 + $0x28] sm:$0xf]
      %v682 = vld [vmem:[%s497 + $0x2c] sm:$0xf]
      %v683 = vld [vmem:[%s497 + $0x30] sm:$0xf]
      %v684 = vld [vmem:[%s497 + $0x34] sm:$0xf]
      %v685 = vld [vmem:[%s497 + $0x38] sm:$0xf]
      %v686 = vld [vmem:[%s497 + $0x3c] sm:$0xf]
      %vm687 = vnez %v671
      %vm688 = vnez %v672
      %vm689 = vnez %v673
      %vm690 = vnez %v674
      %vm691 = vnez %v675
      %vm692 = vnez %v676
      %vm693 = vnez %v677
      %vm694 = vnez %v678
      %vm695 = vnez %v679
      %vm696 = vnez %v680
      %vm697 = vnez %v681
      %vm698 = vnez %v682
      %vm699 = vnez %v683
      %vm700 = vnez %v684
      %vm701 = vnez %v685
      %vm702 = vnez %v686
      %v703 = vld [vmem:[%s505] sm:$0xff]
      %v704 = vld [vmem:[%s505 + $0x8] sm:$0xff]
      %v705 = vld [vmem:[%s505 + $0x10] sm:$0xff]
      %v706 = vld [vmem:[%s505 + $0x18] sm:$0xff]
      %v707 = vld [vmem:[%s505 + $0x20] sm:$0xff]
      %v708 = vld [vmem:[%s505 + $0x28] sm:$0xff]
      %v709 = vld [vmem:[%s505 + $0x30] sm:$0xff]
      %v710 = vld [vmem:[%s505 + $0x38] sm:$0xff]
      %v711 = vld [vmem:[%s505 + $0x40] sm:$0xff]
      %v712 = vld [vmem:[%s505 + $0x48] sm:$0xff]
      %v713 = vld [vmem:[%s505 + $0x50] sm:$0xff]
      %v714 = vld [vmem:[%s505 + $0x58] sm:$0xff]
      %v715 = vld [vmem:[%s505 + $0x60] sm:$0xff]
      %v716 = vld [vmem:[%s505 + $0x68] sm:$0xff]
      %v717 = vld [vmem:[%s505 + $0x70] sm:$0xff]
      %v718 = vld [vmem:[%s505 + $0x78] sm:$0xff]
      %v719 = vld [vmem:[%s505 + $0x80] sm:$0xff]
      %v720 = vld [vmem:[%s505 + $0x88] sm:$0xff]
      %v721 = vld [vmem:[%s505 + $0x90] sm:$0xff]
      %v722 = vld [vmem:[%s505 + $0x98] sm:$0xff]
      %v723 = vld [vmem:[%s505 + $0xa0] sm:$0xff]
      %v724 = vld [vmem:[%s505 + $0xa8] sm:$0xff]
      %v725 = vld [vmem:[%s505 + $0xb0] sm:$0xff]
      %v726 = vld [vmem:[%s505 + $0xb8] sm:$0xff]
      %v727 = vld [vmem:[%s505 + $0xc0] sm:$0xff]
      %v728 = vld [vmem:[%s505 + $0xc8] sm:$0xff]
      %v729 = vld [vmem:[%s505 + $0xd0] sm:$0xff]
      %v730 = vld [vmem:[%s505 + $0xd8] sm:$0xff]
      %v731 = vld [vmem:[%s505 + $0xe0] sm:$0xff]
      %v732 = vld [vmem:[%s505 + $0xe8] sm:$0xff]
      %v733 = vld [vmem:[%s505 + $0xf0] sm:$0xff]
      %v734 = vld [vmem:[%s505 + $0xf8] sm:$0xff]
      %v735 = vld [vmem:[%s505 + $0x100] sm:$0xff]
      %v736 = vld [vmem:[%s505 + $0x108] sm:$0xff]
      %v737 = vld [vmem:[%s505 + $0x110] sm:$0xff]
      %v738 = vld [vmem:[%s505 + $0x118] sm:$0xff]
      %v739 = vld [vmem:[%s505 + $0x120] sm:$0xff]
      %v740 = vld [vmem:[%s505 + $0x128] sm:$0xff]
      %v741 = vld [vmem:[%s505 + $0x130] sm:$0xff]
      %v742 = vld [vmem:[%s505 + $0x138] sm:$0xff]
      %v743 = vld [vmem:[%s505 + $0x140] sm:$0xff]
      %v744 = vld [vmem:[%s505 + $0x148] sm:$0xff]
      %v745 = vld [vmem:[%s505 + $0x150] sm:$0xff]
      %v746 = vld [vmem:[%s505 + $0x158] sm:$0xff]
      %v747 = vld [vmem:[%s505 + $0x160] sm:$0xff]
      %v748 = vld [vmem:[%s505 + $0x168] sm:$0xff]
      %v749 = vld [vmem:[%s505 + $0x170] sm:$0xff]
      %v750 = vld [vmem:[%s505 + $0x178] sm:$0xff]
      %v751 = vld [vmem:[%s505 + $0x180] sm:$0xff]
      %v752 = vld [vmem:[%s505 + $0x188] sm:$0xff]
      %v753 = vld [vmem:[%s505 + $0x190] sm:$0xff]
      %v754 = vld [vmem:[%s505 + $0x198] sm:$0xff]
      %v755 = vld [vmem:[%s505 + $0x1a0] sm:$0xff]
      %v756 = vld [vmem:[%s505 + $0x1a8] sm:$0xff]
      %v757 = vld [vmem:[%s505 + $0x1b0] sm:$0xff]
      %v758 = vld [vmem:[%s505 + $0x1b8] sm:$0xff]
      %v759 = vld [vmem:[%s505 + $0x1c0] sm:$0xff]
      %v760 = vld [vmem:[%s505 + $0x1c8] sm:$0xff]
      %v761 = vld [vmem:[%s505 + $0x1d0] sm:$0xff]
      %v762 = vld [vmem:[%s505 + $0x1d8] sm:$0xff]
      %v763 = vld [vmem:[%s505 + $0x1e0] sm:$0xff]
      %v764 = vld [vmem:[%s505 + $0x1e8] sm:$0xff]
      %v765 = vld [vmem:[%s505 + $0x1f0] sm:$0xff]
      %v766 = vld [vmem:[%s505 + $0x1f8] sm:$0xff]
      %v767 = vld [vmem:[%s511] sm:$0xff]
      %v768 = vld [vmem:[%s511 + $0x8] sm:$0xff]
      %v769 = vld [vmem:[%s511 + $0x10] sm:$0xff]
      %v770 = vld [vmem:[%s511 + $0x18] sm:$0xff]
      %v771 = vld [vmem:[%s511 + $0x20] sm:$0xff]
      %v772 = vld [vmem:[%s511 + $0x28] sm:$0xff]
      %v773 = vld [vmem:[%s511 + $0x30] sm:$0xff]
      %v774 = vld [vmem:[%s511 + $0x38] sm:$0xff]
      %v775 = vld [vmem:[%s511 + $0x40] sm:$0xff]
      %v776 = vld [vmem:[%s511 + $0x48] sm:$0xff]
      %v777 = vld [vmem:[%s511 + $0x50] sm:$0xff]
      %v778 = vld [vmem:[%s511 + $0x58] sm:$0xff]
      %v779 = vld [vmem:[%s511 + $0x60] sm:$0xff]
      %v780 = vld [vmem:[%s511 + $0x68] sm:$0xff]
      %v781 = vld [vmem:[%s511 + $0x70] sm:$0xff]
      %v782 = vld [vmem:[%s511 + $0x78] sm:$0xff]
      %v783 = vpack.c.bf16 %v768, %v767
      %v784 = vpack.c.bf16 %v770, %v769
      %v785 = vpack.c.bf16 %v772, %v771
      %v786 = vpack.c.bf16 %v774, %v773
      %v787 = vpack.c.bf16 %v776, %v775
      %v788 = vpack.c.bf16 %v778, %v777
      %v789 = vpack.c.bf16 %v780, %v779
      %v790 = vpack.c.bf16 %v782, %v781
      %v791 = vld [vmem:[%s517] sm:$0xff]
      %v792 = vld [vmem:[%s517 + $0x8] sm:$0xff]
      %v793 = vpack.c.bf16 %v791, %v791
      %v794 = vpack.c.bf16 %v792, %v792
      %796 = vset.pattern.permute.xlu0 2
      %797 = vperm.xlu0 %796, %v783
      %v798 = vpop.permute.xlu0 %797
      %801 = vset.pattern.permute.xlu0 2
      %802 = vperm.xlu0 %801, %v784
      %v803 = vpop.permute.xlu0 %802
      %806 = vset.pattern.permute.xlu0 2
      %807 = vperm.xlu0 %806, %v785
      %v808 = vpop.permute.xlu0 %807
      %811 = vset.pattern.permute.xlu0 2
      %812 = vperm.xlu0 %811, %v786
      %v813 = vpop.permute.xlu0 %812
      %816 = vset.pattern.permute.xlu0 2
      %817 = vperm.xlu0 %816, %v787
      %v818 = vpop.permute.xlu0 %817
      %821 = vset.pattern.permute.xlu0 2
      %822 = vperm.xlu0 %821, %v788
      %v823 = vpop.permute.xlu0 %822
      %826 = vset.pattern.permute.xlu0 2
      %827 = vperm.xlu0 %826, %v789
      %v828 = vpop.permute.xlu0 %827
      %831 = vset.pattern.permute.xlu0 2
      %832 = vperm.xlu0 %831, %v790
      %v833 = vpop.permute.xlu0 %832
      %v836 = vpack.i.b16 %v793, %v793
      %v838 = vlaneseq
      %v839 = vshrl.u32 %v838, 7
      %v840 = vsub.s32 0, %v839
      %v841 = vrot.slane %v836, %v840
      %v843 = vpack.i.b16 %v794, %v794
      %v845 = vlaneseq
      %v846 = vshrl.u32 %v845, 7
      %v847 = vsub.s32 0, %v846
      %v848 = vrot.slane %v843, %v847
      %v849 = vadd.bf16 %v798, %v841
      %v850 = vadd.bf16 %v798, %v848
      %v851 = vadd.bf16 %v803, %v841
      %v852 = vadd.bf16 %v803, %v848
      %v853 = vadd.bf16 %v808, %v841
      %v854 = vadd.bf16 %v808, %v848
      %v855 = vadd.bf16 %v813, %v841
      %v856 = vadd.bf16 %v813, %v848
      %v857 = vadd.bf16 %v818, %v841
      %v858 = vadd.bf16 %v818, %v848
      %v859 = vadd.bf16 %v823, %v841
      %v860 = vadd.bf16 %v823, %v848
      %v861 = vadd.bf16 %v828, %v841
      %v862 = vadd.bf16 %v828, %v848
      %v863 = vadd.bf16 %v833, %v841
      %v864 = vadd.bf16 %v833, %v848
      %vm865 = vcmp.gt.bf16.partialorder %v849, 0
      %vm866 = vcmp.gt.bf16.partialorder %v850, 0
      %vm867 = vcmp.gt.bf16.partialorder %v851, 0
      %vm868 = vcmp.gt.bf16.partialorder %v852, 0
      %vm869 = vcmp.gt.bf16.partialorder %v853, 0
      %vm870 = vcmp.gt.bf16.partialorder %v854, 0
      %vm871 = vcmp.gt.bf16.partialorder %v855, 0
      %vm872 = vcmp.gt.bf16.partialorder %v856, 0
      %vm873 = vcmp.gt.bf16.partialorder %v857, 0
      %vm874 = vcmp.gt.bf16.partialorder %v858, 0
      %vm875 = vcmp.gt.bf16.partialorder %v859, 0
      %vm876 = vcmp.gt.bf16.partialorder %v860, 0
      %vm877 = vcmp.gt.bf16.partialorder %v861, 0
      %vm878 = vcmp.gt.bf16.partialorder %v862, 0
      %vm879 = vcmp.gt.bf16.partialorder %v863, 0
      %vm880 = vcmp.gt.bf16.partialorder %v864, 0
      %v881 = vmul.bf16 %v849, 1045249613
      %v882 = vmul.bf16 %v850, 1045249613
      %v883 = vmul.bf16 %v851, 1045249613
      %v884 = vmul.bf16 %v852, 1045249613
      %v885 = vmul.bf16 %v853, 1045249613
      %v886 = vmul.bf16 %v854, 1045249613
      %v887 = vmul.bf16 %v855, 1045249613
      %v888 = vmul.bf16 %v856, 1045249613
      %v889 = vmul.bf16 %v857, 1045249613
      %v890 = vmul.bf16 %v858, 1045249613
      %v891 = vmul.bf16 %v859, 1045249613
      %v892 = vmul.bf16 %v860, 1045249613
      %v893 = vmul.bf16 %v861, 1045249613
      %v894 = vmul.bf16 %v862, 1045249613
      %v895 = vmul.bf16 %v863, 1045249613
      %v896 = vmul.bf16 %v864, 1045249613
      %v897 = vsel %vm865, %v849, %v881
      %v898 = vsel %vm866, %v850, %v882
      %v899 = vsel %vm867, %v851, %v883
      %v900 = vsel %vm868, %v852, %v884
      %v901 = vsel %vm869, %v853, %v885
      %v902 = vsel %vm870, %v854, %v886
      %v903 = vsel %vm871, %v855, %v887
      %v904 = vsel %vm872, %v856, %v888
      %v905 = vsel %vm873, %v857, %v889
      %v906 = vsel %vm874, %v858, %v890
      %v907 = vsel %vm875, %v859, %v891
      %v908 = vsel %vm876, %v860, %v892
      %v909 = vsel %vm877, %v861, %v893
      %v910 = vsel %vm878, %v862, %v894
      %v911 = vsel %vm879, %v863, %v895
      %v912 = vsel %vm880, %v864, %v896
      %v913 = vsel %vm687, 16843009, 0
      %v914 = vsel %vm688, 16843009, 0
      %v915 = vsel %vm689, 16843009, 0
      %v916 = vsel %vm690, 16843009, 0
      %v917 = vsel %vm691, 16843009, 0
      %v918 = vsel %vm692, 16843009, 0
      %v919 = vsel %vm693, 16843009, 0
      %v920 = vsel %vm694, 16843009, 0
      %v921 = vsel %vm695, 16843009, 0
      %v922 = vsel %vm696, 16843009, 0
      %v923 = vsel %vm697, 16843009, 0
      %v924 = vsel %vm698, 16843009, 0
      %v925 = vsel %vm699, 16843009, 0
      %v926 = vsel %vm700, 16843009, 0
      %v927 = vsel %vm701, 16843009, 0
      %v928 = vsel %vm702, 16843009, 0
      %v929 = vunpack.c.1.s8 %v913
      %v930 = vunpack.c.0.s8 %v913
      %v931 = vpack.c.b16 %v929, %v930
      %v932 = vunpack.c.1.s8 %v914
      %v933 = vunpack.c.0.s8 %v914
      %v934 = vpack.c.b16 %v932, %v933
      %v935 = vunpack.c.1.s8 %v915
      %v936 = vunpack.c.0.s8 %v915
      %v937 = vpack.c.b16 %v935, %v936
      %v938 = vunpack.c.1.s8 %v916
      %v939 = vunpack.c.0.s8 %v916
      %v940 = vpack.c.b16 %v938, %v939
      %v941 = vunpack.c.1.s8 %v917
      %v942 = vunpack.c.0.s8 %v917
      %v943 = vpack.c.b16 %v941, %v942
      %v944 = vunpack.c.1.s8 %v918
      %v945 = vunpack.c.0.s8 %v918
      %v946 = vpack.c.b16 %v944, %v945
      %v947 = vunpack.c.1.s8 %v919
      %v948 = vunpack.c.0.s8 %v919
      %v949 = vpack.c.b16 %v947, %v948
      %v950 = vunpack.c.1.s8 %v920
      %v951 = vunpack.c.0.s8 %v920
      %v952 = vpack.c.b16 %v950, %v951
      %v953 = vunpack.c.1.s8 %v921
      %v954 = vunpack.c.0.s8 %v921
      %v955 = vpack.c.b16 %v953, %v954
      %v956 = vunpack.c.1.s8 %v922
      %v957 = vunpack.c.0.s8 %v922
      %v958 = vpack.c.b16 %v956, %v957
      %v959 = vunpack.c.1.s8 %v923
      %v960 = vunpack.c.0.s8 %v923
      %v961 = vpack.c.b16 %v959, %v960
      %v962 = vunpack.c.1.s8 %v924
      %v963 = vunpack.c.0.s8 %v924
      %v964 = vpack.c.b16 %v962, %v963
      %v965 = vunpack.c.1.s8 %v925
      %v966 = vunpack.c.0.s8 %v925
      %v967 = vpack.c.b16 %v965, %v966
      %v968 = vunpack.c.1.s8 %v926
      %v969 = vunpack.c.0.s8 %v926
      %v970 = vpack.c.b16 %v968, %v969
      %v971 = vunpack.c.1.s8 %v927
      %v972 = vunpack.c.0.s8 %v927
      %v973 = vpack.c.b16 %v971, %v972
      %v974 = vunpack.c.1.s8 %v928
      %v975 = vunpack.c.0.s8 %v928
      %v976 = vpack.c.b16 %v974, %v975
      %vm977 = vcmp.ne.s16.totalorder %v931, 0
      %vm978 = vcmp.ne.s16.totalorder %v934, 0
      %vm979 = vcmp.ne.s16.totalorder %v937, 0
      %vm980 = vcmp.ne.s16.totalorder %v940, 0
      %vm981 = vcmp.ne.s16.totalorder %v943, 0
      %vm982 = vcmp.ne.s16.totalorder %v946, 0
      %vm983 = vcmp.ne.s16.totalorder %v949, 0
      %vm984 = vcmp.ne.s16.totalorder %v952, 0
      %vm985 = vcmp.ne.s16.totalorder %v955, 0
      %vm986 = vcmp.ne.s16.totalorder %v958, 0
      %vm987 = vcmp.ne.s16.totalorder %v961, 0
      %vm988 = vcmp.ne.s16.totalorder %v964, 0
      %vm989 = vcmp.ne.s16.totalorder %v967, 0
      %vm990 = vcmp.ne.s16.totalorder %v970, 0
      %vm991 = vcmp.ne.s16.totalorder %v973, 0
      %vm992 = vcmp.ne.s16.totalorder %v976, 0
      %v993 = vsel %vm977, 65537, 0
      %v994 = vsel %vm978, 65537, 0
      %v995 = vsel %vm979, 65537, 0
      %v996 = vsel %vm980, 65537, 0
      %v997 = vsel %vm981, 65537, 0
      %v998 = vsel %vm982, 65537, 0
      %v999 = vsel %vm983, 65537, 0
      %v1000 = vsel %vm984, 65537, 0
      %v1001 = vsel %vm985, 65537, 0
      %v1002 = vsel %vm986, 65537, 0
      %v1003 = vsel %vm987, 65537, 0
      %v1004 = vsel %vm988, 65537, 0
      %v1005 = vsel %vm989, 65537, 0
      %v1006 = vsel %vm990, 65537, 0
      %v1007 = vsel %vm991, 65537, 0
      %v1008 = vsel %vm992, 65537, 0
      %v1009 = vunpack.c.l.b16 %v993
      %v1010 = vunpack.c.h.b16 %v993
      %v1011 = vunpack.c.l.b16 %v994
      %v1012 = vunpack.c.h.b16 %v994
      %v1013 = vunpack.c.l.b16 %v995
      %v1014 = vunpack.c.h.b16 %v995
      %v1015 = vunpack.c.l.b16 %v996
      %v1016 = vunpack.c.h.b16 %v996
      %v1017 = vunpack.c.l.b16 %v997
      %v1018 = vunpack.c.h.b16 %v997
      %v1019 = vunpack.c.l.b16 %v998
      %v1020 = vunpack.c.h.b16 %v998
      %v1021 = vunpack.c.l.b16 %v999
      %v1022 = vunpack.c.h.b16 %v999
      %v1023 = vunpack.c.l.b16 %v1000
      %v1024 = vunpack.c.h.b16 %v1000
      %v1025 = vunpack.c.l.b16 %v1001
      %v1026 = vunpack.c.h.b16 %v1001
      %v1027 = vunpack.c.l.b16 %v1002
      %v1028 = vunpack.c.h.b16 %v1002
      %v1029 = vunpack.c.l.b16 %v1003
      %v1030 = vunpack.c.h.b16 %v1003
      %v1031 = vunpack.c.l.b16 %v1004
      %v1032 = vunpack.c.h.b16 %v1004
      %v1033 = vunpack.c.l.b16 %v1005
      %v1034 = vunpack.c.h.b16 %v1005
      %v1035 = vunpack.c.l.b16 %v1006
      %v1036 = vunpack.c.h.b16 %v1006
      %v1037 = vunpack.c.l.b16 %v1007
      %v1038 = vunpack.c.h.b16 %v1007
      %v1039 = vunpack.c.l.b16 %v1008
      %v1040 = vunpack.c.h.b16 %v1008
      %v1041 = vpack.c.b16 %v1011, %v1009
      %v1042 = vpack.c.b16 %v1012, %v1010
      %v1043 = vpack.c.b16 %v1015, %v1013
      %v1044 = vpack.c.b16 %v1016, %v1014
      %v1045 = vpack.c.b16 %v1019, %v1017
      %v1046 = vpack.c.b16 %v1020, %v1018
      %v1047 = vpack.c.b16 %v1023, %v1021
      %v1048 = vpack.c.b16 %v1024, %v1022
      %v1049 = vpack.c.b16 %v1027, %v1025
      %v1050 = vpack.c.b16 %v1028, %v1026
      %v1051 = vpack.c.b16 %v1031, %v1029
      %v1052 = vpack.c.b16 %v1032, %v1030
      %v1053 = vpack.c.b16 %v1035, %v1033
      %v1054 = vpack.c.b16 %v1036, %v1034
      %v1055 = vpack.c.b16 %v1039, %v1037
      %v1056 = vpack.c.b16 %v1040, %v1038
      %vm1057 = vcmp.ne.s16.totalorder %v1041, 0
      %vm1058 = vcmp.ne.s16.totalorder %v1042, 0
      %vm1059 = vcmp.ne.s16.totalorder %v1043, 0
      %vm1060 = vcmp.ne.s16.totalorder %v1044, 0
      %vm1061 = vcmp.ne.s16.totalorder %v1045, 0
      %vm1062 = vcmp.ne.s16.totalorder %v1046, 0
      %vm1063 = vcmp.ne.s16.totalorder %v1047, 0
      %vm1064 = vcmp.ne.s16.totalorder %v1048, 0
      %vm1065 = vcmp.ne.s16.totalorder %v1049, 0
      %vm1066 = vcmp.ne.s16.totalorder %v1050, 0
      %vm1067 = vcmp.ne.s16.totalorder %v1051, 0
      %vm1068 = vcmp.ne.s16.totalorder %v1052, 0
      %vm1069 = vcmp.ne.s16.totalorder %v1053, 0
      %vm1070 = vcmp.ne.s16.totalorder %v1054, 0
      %vm1071 = vcmp.ne.s16.totalorder %v1055, 0
      %vm1072 = vcmp.ne.s16.totalorder %v1056, 0
      %v1073 = vsel %vm1057, %v897, 4048220490
      %v1074 = vsel %vm1058, %v898, 4048220490
      %v1075 = vsel %vm1059, %v899, 4048220490
      %v1076 = vsel %vm1060, %v900, 4048220490
      %v1077 = vsel %vm1061, %v901, 4048220490
      %v1078 = vsel %vm1062, %v902, 4048220490
      %v1079 = vsel %vm1063, %v903, 4048220490
      %v1080 = vsel %vm1064, %v904, 4048220490
      %v1081 = vsel %vm1065, %v905, 4048220490
      %v1082 = vsel %vm1066, %v906, 4048220490
      %v1083 = vsel %vm1067, %v907, 4048220490
      %v1084 = vsel %vm1068, %v908, 4048220490
      %v1085 = vsel %vm1069, %v909, 4048220490
      %v1086 = vsel %vm1070, %v910, 4048220490
      %v1087 = vsel %vm1071, %v911, 4048220490
      %v1088 = vsel %vm1072, %v912, 4048220490
      %v1089 = vld [vmem:[#allocation2] sm:$0xff]
      %v1090 = vld [vmem:[#allocation2 + $0x8] sm:$0xff]
      %v1091 = vld [vmem:[#allocation2 + $0x10] sm:$0xff]
      %v1092 = vld [vmem:[#allocation2 + $0x18] sm:$0xff]
      %v1093 = vld [vmem:[#allocation2 + $0x20] sm:$0xff]
      %v1094 = vld [vmem:[#allocation2 + $0x28] sm:$0xff]
      %v1095 = vld [vmem:[#allocation2 + $0x30] sm:$0xff]
      %v1096 = vld [vmem:[#allocation2 + $0x38] sm:$0xff]
      %v1097 = vld [vmem:[#allocation2 + $0x40] sm:$0xff]
      %v1098 = vld [vmem:[#allocation2 + $0x48] sm:$0xff]
      %v1099 = vld [vmem:[#allocation2 + $0x50] sm:$0xff]
      %v1100 = vld [vmem:[#allocation2 + $0x58] sm:$0xff]
      %v1101 = vld [vmem:[#allocation2 + $0x60] sm:$0xff]
      %v1102 = vld [vmem:[#allocation2 + $0x68] sm:$0xff]
      %v1103 = vld [vmem:[#allocation2 + $0x70] sm:$0xff]
      %v1104 = vld [vmem:[#allocation2 + $0x78] sm:$0xff]
      %v1105 = vmax.bf16 %v1073, %v1074
      %1106 = vmax.xlane.bf16.xlu0 %v1105
      %v1107 = vpop.xlane.xlu0 %1106
      %v1108 = vmax.bf16 %v1075, %v1076
      %1109 = vmax.xlane.bf16.xlu0 %v1108
      %v1110 = vpop.xlane.xlu0 %1109
      %v1111 = vmax.bf16 %v1077, %v1078
      %1112 = vmax.xlane.bf16.xlu0 %v1111
      %v1113 = vpop.xlane.xlu0 %1112
      %v1114 = vmax.bf16 %v1079, %v1080
      %1115 = vmax.xlane.bf16.xlu0 %v1114
      %v1116 = vpop.xlane.xlu0 %1115
      %v1117 = vmax.bf16 %v1081, %v1082
      %1118 = vmax.xlane.bf16.xlu0 %v1117
      %v1119 = vpop.xlane.xlu0 %1118
      %v1120 = vmax.bf16 %v1083, %v1084
      %1121 = vmax.xlane.bf16.xlu0 %v1120
      %v1122 = vpop.xlane.xlu0 %1121
      %v1123 = vmax.bf16 %v1085, %v1086
      %1124 = vmax.xlane.bf16.xlu0 %v1123
      %v1125 = vpop.xlane.xlu0 %1124
      %v1126 = vmax.bf16 %v1087, %v1088
      %1127 = vmax.xlane.bf16.xlu0 %v1126
      %v1128 = vpop.xlane.xlu0 %1127
      %v1129 = vunpack.c.l.bf16 %v1107
      %v1130 = vunpack.c.h.bf16 %v1107
      %v1131 = vunpack.c.l.bf16 %v1110
      %v1132 = vunpack.c.h.bf16 %v1110
      %v1133 = vunpack.c.l.bf16 %v1113
      %v1134 = vunpack.c.h.bf16 %v1113
      %v1135 = vunpack.c.l.bf16 %v1116
      %v1136 = vunpack.c.h.bf16 %v1116
      %v1137 = vunpack.c.l.bf16 %v1119
      %v1138 = vunpack.c.h.bf16 %v1119
      %v1139 = vunpack.c.l.bf16 %v1122
      %v1140 = vunpack.c.h.bf16 %v1122
      %v1141 = vunpack.c.l.bf16 %v1125
      %v1142 = vunpack.c.h.bf16 %v1125
      %v1143 = vunpack.c.l.bf16 %v1128
      %v1144 = vunpack.c.h.bf16 %v1128
      %v1145 = vmax.f32 %v1089, %v1129
      %v1146 = vmax.f32 %v1090, %v1130
      %v1147 = vmax.f32 %v1091, %v1131
      %v1148 = vmax.f32 %v1092, %v1132
      %v1149 = vmax.f32 %v1093, %v1133
      %v1150 = vmax.f32 %v1094, %v1134
      %v1151 = vmax.f32 %v1095, %v1135
      %v1152 = vmax.f32 %v1096, %v1136
      %v1153 = vmax.f32 %v1097, %v1137
      %v1154 = vmax.f32 %v1098, %v1138
      %v1155 = vmax.f32 %v1099, %v1139
      %v1156 = vmax.f32 %v1100, %v1140
      %v1157 = vmax.f32 %v1101, %v1141
      %v1158 = vmax.f32 %v1102, %v1142
      %v1159 = vmax.f32 %v1103, %v1143
      %v1160 = vmax.f32 %v1104, %v1144
      %v1161 = vsub.f32 %v1089, %v1145
      %v1162 = vsub.f32 %v1090, %v1146
      %v1163 = vsub.f32 %v1091, %v1147
      %v1164 = vsub.f32 %v1092, %v1148
      %v1165 = vsub.f32 %v1093, %v1149
      %v1166 = vsub.f32 %v1094, %v1150
      %v1167 = vsub.f32 %v1095, %v1151
      %v1168 = vsub.f32 %v1096, %v1152
      %v1169 = vsub.f32 %v1097, %v1153
      %v1170 = vsub.f32 %v1098, %v1154
      %v1171 = vsub.f32 %v1099, %v1155
      %v1172 = vsub.f32 %v1100, %v1156
      %v1173 = vsub.f32 %v1101, %v1157
      %v1174 = vsub.f32 %v1102, %v1158
      %v1175 = vsub.f32 %v1103, %v1159
      %v1176 = vsub.f32 %v1104, %v1160
      %v1177 = vmul.f32 %v1161, 1.442695
      %v1178 = vpow.pop %v1177
      %v1179 = vmul.f32 %v1162, 1.442695
      %v1180 = vpow.pop %v1179
      %v1181 = vmul.f32 %v1163, 1.442695
      %v1182 = vpow.pop %v1181
      %v1183 = vmul.f32 %v1164, 1.442695
      %v1184 = vpow.pop %v1183
      %v1185 = vmul.f32 %v1165, 1.442695
      %v1186 = vpow.pop %v1185
      %v1187 = vmul.f32 %v1166, 1.442695
      %v1188 = vpow.pop %v1187
      %v1189 = vmul.f32 %v1167, 1.442695
      %v1190 = vpow.pop %v1189
      %v1191 = vmul.f32 %v1168, 1.442695
      %v1192 = vpow.pop %v1191
      %v1193 = vmul.f32 %v1169, 1.442695
      %v1194 = vpow.pop %v1193
      %v1195 = vmul.f32 %v1170, 1.442695
      %v1196 = vpow.pop %v1195
      %v1197 = vmul.f32 %v1171, 1.442695
      %v1198 = vpow.pop %v1197
      %v1199 = vmul.f32 %v1172, 1.442695
      %v1200 = vpow.pop %v1199
      %v1201 = vmul.f32 %v1173, 1.442695
      %v1202 = vpow.pop %v1201
      %v1203 = vmul.f32 %v1174, 1.442695
      %v1204 = vpow.pop %v1203
      %v1205 = vmul.f32 %v1175, 1.442695
      %v1206 = vpow.pop %v1205
      %v1207 = vmul.f32 %v1176, 1.442695
      %v1208 = vpow.pop %v1207
      %v1209 = vpack.c.bf16 %v1146, %v1145
      %v1210 = vpack.c.bf16 %v1148, %v1147
      %v1211 = vpack.c.bf16 %v1150, %v1149
      %v1212 = vpack.c.bf16 %v1152, %v1151
      %v1213 = vpack.c.bf16 %v1154, %v1153
      %v1214 = vpack.c.bf16 %v1156, %v1155
      %v1215 = vpack.c.bf16 %v1158, %v1157
      %v1216 = vpack.c.bf16 %v1160, %v1159
      %1218 = vset.pattern.permute.xlu0 0
      %1219 = vperm.xlu0 %1218, %v1209
      %v1220 = vpop.permute.xlu0 %1219
      %1223 = vset.pattern.permute.xlu0 0
      %1224 = vperm.xlu0 %1223, %v1210
      %v1225 = vpop.permute.xlu0 %1224
      %1228 = vset.pattern.permute.xlu0 0
      %1229 = vperm.xlu0 %1228, %v1211
      %v1230 = vpop.permute.xlu0 %1229
      %1233 = vset.pattern.permute.xlu0 0
      %1234 = vperm.xlu0 %1233, %v1212
      %v1235 = vpop.permute.xlu0 %1234
      %1238 = vset.pattern.permute.xlu0 0
      %1239 = vperm.xlu0 %1238, %v1213
      %v1240 = vpop.permute.xlu0 %1239
      %1243 = vset.pattern.permute.xlu0 0
      %1244 = vperm.xlu0 %1243, %v1214
      %v1245 = vpop.permute.xlu0 %1244
      %1248 = vset.pattern.permute.xlu0 0
      %1249 = vperm.xlu0 %1248, %v1215
      %v1250 = vpop.permute.xlu0 %1249
      %1253 = vset.pattern.permute.xlu0 0
      %1254 = vperm.xlu0 %1253, %v1216
      %v1255 = vpop.permute.xlu0 %1254
      %v1257 = vsub.bf16 %v1073, %v1220
      %v1258 = vsub.bf16 %v1074, %v1220
      %v1259 = vsub.bf16 %v1075, %v1225
      %v1260 = vsub.bf16 %v1076, %v1225
      %v1261 = vsub.bf16 %v1077, %v1230
      %v1262 = vsub.bf16 %v1078, %v1230
      %v1263 = vsub.bf16 %v1079, %v1235
      %v1264 = vsub.bf16 %v1080, %v1235
      %v1265 = vsub.bf16 %v1081, %v1240
      %v1266 = vsub.bf16 %v1082, %v1240
      %v1267 = vsub.bf16 %v1083, %v1245
      %v1268 = vsub.bf16 %v1084, %v1245
      %v1269 = vsub.bf16 %v1085, %v1250
      %v1270 = vsub.bf16 %v1086, %v1250
      %v1271 = vsub.bf16 %v1087, %v1255
      %v1272 = vsub.bf16 %v1088, %v1255
      %v1274 = vmul.bf16 %v1257, 1069105081
      %v1275 = vpow.bf16.pop %v1274
      %v1277 = vmul.bf16 %v1258, 1069105081
      %v1278 = vpow.bf16.pop %v1277
      %v1280 = vmul.bf16 %v1259, 1069105081
      %v1281 = vpow.bf16.pop %v1280
      %v1283 = vmul.bf16 %v1260, 1069105081
      %v1284 = vpow.bf16.pop %v1283
      %v1286 = vmul.bf16 %v1261, 1069105081
      %v1287 = vpow.bf16.pop %v1286
      %v1289 = vmul.bf16 %v1262, 1069105081
      %v1290 = vpow.bf16.pop %v1289
      %v1292 = vmul.bf16 %v1263, 1069105081
      %v1293 = vpow.bf16.pop %v1292
      %v1295 = vmul.bf16 %v1264, 1069105081
      %v1296 = vpow.bf16.pop %v1295
      %v1298 = vmul.bf16 %v1265, 1069105081
      %v1299 = vpow.bf16.pop %v1298
      %v1301 = vmul.bf16 %v1266, 1069105081
      %v1302 = vpow.bf16.pop %v1301
      %v1304 = vmul.bf16 %v1267, 1069105081
      %v1305 = vpow.bf16.pop %v1304
      %v1307 = vmul.bf16 %v1268, 1069105081
      %v1308 = vpow.bf16.pop %v1307
      %v1310 = vmul.bf16 %v1269, 1069105081
      %v1311 = vpow.bf16.pop %v1310
      %v1313 = vmul.bf16 %v1270, 1069105081
      %v1314 = vpow.bf16.pop %v1313
      %v1316 = vmul.bf16 %v1271, 1069105081
      %v1317 = vpow.bf16.pop %v1316
      %v1319 = vmul.bf16 %v1272, 1069105081
      %v1320 = vpow.bf16.pop %v1319
      %v1321 = vld [vmem:[#allocation3] sm:$0xff]
      %v1322 = vld [vmem:[#allocation3 + $0x8] sm:$0xff]
      %v1323 = vld [vmem:[#allocation3 + $0x10] sm:$0xff]
      %v1324 = vld [vmem:[#allocation3 + $0x18] sm:$0xff]
      %v1325 = vld [vmem:[#allocation3 + $0x20] sm:$0xff]
      %v1326 = vld [vmem:[#allocation3 + $0x28] sm:$0xff]
      %v1327 = vld [vmem:[#allocation3 + $0x30] sm:$0xff]
      %v1328 = vld [vmem:[#allocation3 + $0x38] sm:$0xff]
      %v1329 = vld [vmem:[#allocation3 + $0x40] sm:$0xff]
      %v1330 = vld [vmem:[#allocation3 + $0x48] sm:$0xff]
      %v1331 = vld [vmem:[#allocation3 + $0x50] sm:$0xff]
      %v1332 = vld [vmem:[#allocation3 + $0x58] sm:$0xff]
      %v1333 = vld [vmem:[#allocation3 + $0x60] sm:$0xff]
      %v1334 = vld [vmem:[#allocation3 + $0x68] sm:$0xff]
      %v1335 = vld [vmem:[#allocation3 + $0x70] sm:$0xff]
      %v1336 = vld [vmem:[#allocation3 + $0x78] sm:$0xff]
      %v1337 = vmul.f32 %v1178, %v1321
      %v1338 = vmul.f32 %v1180, %v1322
      %v1339 = vmul.f32 %v1182, %v1323
      %v1340 = vmul.f32 %v1184, %v1324
      %v1341 = vmul.f32 %v1186, %v1325
      %v1342 = vmul.f32 %v1188, %v1326
      %v1343 = vmul.f32 %v1190, %v1327
      %v1344 = vmul.f32 %v1192, %v1328
      %v1345 = vmul.f32 %v1194, %v1329
      %v1346 = vmul.f32 %v1196, %v1330
      %v1347 = vmul.f32 %v1198, %v1331
      %v1348 = vmul.f32 %v1200, %v1332
      %v1349 = vmul.f32 %v1202, %v1333
      %v1350 = vmul.f32 %v1204, %v1334
      %v1351 = vmul.f32 %v1206, %v1335
      %v1352 = vmul.f32 %v1208, %v1336
      %v1353 = vunpack.c.l.bf16 %v1275
      %v1354 = vunpack.c.l.bf16 %v1278
      %v1355 = vunpack.c.h.bf16 %v1275
      %v1356 = vunpack.c.h.bf16 %v1278
      %v1357 = vunpack.c.l.bf16 %v1281
      %v1358 = vunpack.c.l.bf16 %v1284
      %v1359 = vunpack.c.h.bf16 %v1281
      %v1360 = vunpack.c.h.bf16 %v1284
      %v1361 = vunpack.c.l.bf16 %v1287
      %v1362 = vunpack.c.l.bf16 %v1290
      %v1363 = vunpack.c.h.bf16 %v1287
      %v1364 = vunpack.c.h.bf16 %v1290
      %v1365 = vunpack.c.l.bf16 %v1293
      %v1366 = vunpack.c.l.bf16 %v1296
      %v1367 = vunpack.c.h.bf16 %v1293
      %v1368 = vunpack.c.h.bf16 %v1296
      %v1369 = vunpack.c.l.bf16 %v1299
      %v1370 = vunpack.c.l.bf16 %v1302
      %v1371 = vunpack.c.h.bf16 %v1299
      %v1372 = vunpack.c.h.bf16 %v1302
      %v1373 = vunpack.c.l.bf16 %v1305
      %v1374 = vunpack.c.l.bf16 %v1308
      %v1375 = vunpack.c.h.bf16 %v1305
      %v1376 = vunpack.c.h.bf16 %v1308
      %v1377 = vunpack.c.l.bf16 %v1311
      %v1378 = vunpack.c.l.bf16 %v1314
      %v1379 = vunpack.c.h.bf16 %v1311
      %v1380 = vunpack.c.h.bf16 %v1314
      %v1381 = vunpack.c.l.bf16 %v1317
      %v1382 = vunpack.c.l.bf16 %v1320
      %v1383 = vunpack.c.h.bf16 %v1317
      %v1384 = vunpack.c.h.bf16 %v1320
      %v1385 = vadd.f32 %v1353, %v1354
      %1386 = vadd.xlane.f32.xlu0 %v1385
      %v1387 = vpop.xlane.xlu0 %1386
      %v1388 = vadd.f32 %v1355, %v1356
      %1389 = vadd.xlane.f32.xlu0 %v1388
      %v1390 = vpop.xlane.xlu0 %1389
      %v1391 = vadd.f32 %v1357, %v1358
      %1392 = vadd.xlane.f32.xlu0 %v1391
      %v1393 = vpop.xlane.xlu0 %1392
      %v1394 = vadd.f32 %v1359, %v1360
      %1395 = vadd.xlane.f32.xlu0 %v1394
      %v1396 = vpop.xlane.xlu0 %1395
      %v1397 = vadd.f32 %v1361, %v1362
      %1398 = vadd.xlane.f32.xlu0 %v1397
      %v1399 = vpop.xlane.xlu0 %1398
      %v1400 = vadd.f32 %v1363, %v1364
      %1401 = vadd.xlane.f32.xlu0 %v1400
      %v1402 = vpop.xlane.xlu0 %1401
      %v1403 = vadd.f32 %v1365, %v1366
      %1404 = vadd.xlane.f32.xlu0 %v1403
      %v1405 = vpop.xlane.xlu0 %1404
      %v1406 = vadd.f32 %v1367, %v1368
      %1407 = vadd.xlane.f32.xlu0 %v1406
      %v1408 = vpop.xlane.xlu0 %1407
      %v1409 = vadd.f32 %v1369, %v1370
      %1410 = vadd.xlane.f32.xlu0 %v1409
      %v1411 = vpop.xlane.xlu0 %1410
      %v1412 = vadd.f32 %v1371, %v1372
      %1413 = vadd.xlane.f32.xlu0 %v1412
      %v1414 = vpop.xlane.xlu0 %1413
      %v1415 = vadd.f32 %v1373, %v1374
      %1416 = vadd.xlane.f32.xlu0 %v1415
      %v1417 = vpop.xlane.xlu0 %1416
      %v1418 = vadd.f32 %v1375, %v1376
      %1419 = vadd.xlane.f32.xlu0 %v1418
      %v1420 = vpop.xlane.xlu0 %1419
      %v1421 = vadd.f32 %v1377, %v1378
      %1422 = vadd.xlane.f32.xlu0 %v1421
      %v1423 = vpop.xlane.xlu0 %1422
      %v1424 = vadd.f32 %v1379, %v1380
      %1425 = vadd.xlane.f32.xlu0 %v1424
      %v1426 = vpop.xlane.xlu0 %1425
      %v1427 = vadd.f32 %v1381, %v1382
      %1428 = vadd.xlane.f32.xlu0 %v1427
      %v1429 = vpop.xlane.xlu0 %1428
      %v1430 = vadd.f32 %v1383, %v1384
      %1431 = vadd.xlane.f32.xlu0 %v1430
      %v1432 = vpop.xlane.xlu0 %1431
      %v1433 = vadd.f32 %v1337, %v1387
      %v1434 = vadd.f32 %v1338, %v1390
      %v1435 = vadd.f32 %v1339, %v1393
      %v1436 = vadd.f32 %v1340, %v1396
      %v1437 = vadd.f32 %v1341, %v1399
      %v1438 = vadd.f32 %v1342, %v1402
      %v1439 = vadd.f32 %v1343, %v1405
      %v1440 = vadd.f32 %v1344, %v1408
      %v1441 = vadd.f32 %v1345, %v1411
      %v1442 = vadd.f32 %v1346, %v1414
      %v1443 = vadd.f32 %v1347, %v1417
      %v1444 = vadd.f32 %v1348, %v1420
      %v1445 = vadd.f32 %v1349, %v1423
      %v1446 = vadd.f32 %v1350, %v1426
      %v1447 = vadd.f32 %v1351, %v1429
      %v1448 = vadd.f32 %v1352, %v1432
      %vm1449 = vcmask 7168
      %1450 = vst.msk [vmem:[#allocation3] sm:$0xff] %vm1449, %v1433
      %1451 = vst.msk [vmem:[#allocation3 + $0x8] sm:$0xff] %vm1449, %v1434
      %1452 = vst.msk [vmem:[#allocation3 + $0x10] sm:$0xff] %vm1449, %v1435
      %1453 = vst.msk [vmem:[#allocation3 + $0x18] sm:$0xff] %vm1449, %v1436
      %1454 = vst.msk [vmem:[#allocation3 + $0x20] sm:$0xff] %vm1449, %v1437
      %1455 = vst.msk [vmem:[#allocation3 + $0x28] sm:$0xff] %vm1449, %v1438
      %1456 = vst.msk [vmem:[#allocation3 + $0x30] sm:$0xff] %vm1449, %v1439
      %1457 = vst.msk [vmem:[#allocation3 + $0x38] sm:$0xff] %vm1449, %v1440
      %1458 = vst.msk [vmem:[#allocation3 + $0x40] sm:$0xff] %vm1449, %v1441
      %1459 = vst.msk [vmem:[#allocation3 + $0x48] sm:$0xff] %vm1449, %v1442
      %1460 = vst.msk [vmem:[#allocation3 + $0x50] sm:$0xff] %vm1449, %v1443
      %1461 = vst.msk [vmem:[#allocation3 + $0x58] sm:$0xff] %vm1449, %v1444
      %1462 = vst.msk [vmem:[#allocation3 + $0x60] sm:$0xff] %vm1449, %v1445
      %1463 = vst.msk [vmem:[#allocation3 + $0x68] sm:$0xff] %vm1449, %v1446
      %1464 = vst.msk [vmem:[#allocation3 + $0x70] sm:$0xff] %vm1449, %v1447
      %1465 = vst.msk [vmem:[#allocation3 + $0x78] sm:$0xff] %vm1449, %v1448
      %v1466 = vld [vmem:[#allocation4] sm:$0xff]
      %v1467 = vld [vmem:[#allocation4 + $0x8] sm:$0xff]
      %v1468 = vld [vmem:[#allocation4 + $0x10] sm:$0xff]
      %v1469 = vld [vmem:[#allocation4 + $0x18] sm:$0xff]
      %v1470 = vld [vmem:[#allocation4 + $0x20] sm:$0xff]
      %v1471 = vld [vmem:[#allocation4 + $0x28] sm:$0xff]
      %v1472 = vld [vmem:[#allocation4 + $0x30] sm:$0xff]
      %v1473 = vld [vmem:[#allocation4 + $0x38] sm:$0xff]
      %v1474 = vld [vmem:[#allocation4 + $0x40] sm:$0xff]
      %v1475 = vld [vmem:[#allocation4 + $0x48] sm:$0xff]
      %v1476 = vld [vmem:[#allocation4 + $0x50] sm:$0xff]
      %v1477 = vld [vmem:[#allocation4 + $0x58] sm:$0xff]
      %v1478 = vld [vmem:[#allocation4 + $0x60] sm:$0xff]
      %v1479 = vld [vmem:[#allocation4 + $0x68] sm:$0xff]
      %v1480 = vld [vmem:[#allocation4 + $0x70] sm:$0xff]
      %v1481 = vld [vmem:[#allocation4 + $0x78] sm:$0xff]
      %v1482 = vld [vmem:[#allocation4 + $0x80] sm:$0xff]
      %v1483 = vld [vmem:[#allocation4 + $0x88] sm:$0xff]
      %v1484 = vld [vmem:[#allocation4 + $0x90] sm:$0xff]
      %v1485 = vld [vmem:[#allocation4 + $0x98] sm:$0xff]
      %v1486 = vld [vmem:[#allocation4 + $0xa0] sm:$0xff]
      %v1487 = vld [vmem:[#allocation4 + $0xa8] sm:$0xff]
      %v1488 = vld [vmem:[#allocation4 + $0xb0] sm:$0xff]
      %v1489 = vld [vmem:[#allocation4 + $0xb8] sm:$0xff]
      %v1490 = vld [vmem:[#allocation4 + $0xc0] sm:$0xff]
      %v1491 = vld [vmem:[#allocation4 + $0xc8] sm:$0xff]
      %v1492 = vld [vmem:[#allocation4 + $0xd0] sm:$0xff]
      %v1493 = vld [vmem:[#allocation4 + $0xd8] sm:$0xff]
      %v1494 = vld [vmem:[#allocation4 + $0xe0] sm:$0xff]
      %v1495 = vld [vmem:[#allocation4 + $0xe8] sm:$0xff]
      %v1496 = vld [vmem:[#allocation4 + $0xf0] sm:$0xff]
      %v1497 = vld [vmem:[#allocation4 + $0xf8] sm:$0xff]
      %1499 = vset.pattern.permute.xlu0 0
      %1500 = vperm.xlu0 %1499, %v1178
      %v1501 = vpop.permute.xlu0 %1500
      %1504 = vset.pattern.permute.xlu0 0
      %1505 = vperm.xlu0 %1504, %v1180
      %v1506 = vpop.permute.xlu0 %1505
      %1509 = vset.pattern.permute.xlu0 0
      %1510 = vperm.xlu0 %1509, %v1182
      %v1511 = vpop.permute.xlu0 %1510
      %1514 = vset.pattern.permute.xlu0 0
      %1515 = vperm.xlu0 %1514, %v1184
      %v1516 = vpop.permute.xlu0 %1515
      %1519 = vset.pattern.permute.xlu0 0
      %1520 = vperm.xlu0 %1519, %v1186
      %v1521 = vpop.permute.xlu0 %1520
      %1524 = vset.pattern.permute.xlu0 0
      %1525 = vperm.xlu0 %1524, %v1188
      %v1526 = vpop.permute.xlu0 %1525
      %1529 = vset.pattern.permute.xlu0 0
      %1530 = vperm.xlu0 %1529, %v1190
      %v1531 = vpop.permute.xlu0 %1530
      %1534 = vset.pattern.permute.xlu0 0
      %1535 = vperm.xlu0 %1534, %v1192
      %v1536 = vpop.permute.xlu0 %1535
      %1539 = vset.pattern.permute.xlu0 0
      %1540 = vperm.xlu0 %1539, %v1194
      %v1541 = vpop.permute.xlu0 %1540
      %1544 = vset.pattern.permute.xlu0 0
      %1545 = vperm.xlu0 %1544, %v1196
      %v1546 = vpop.permute.xlu0 %1545
      %1549 = vset.pattern.permute.xlu0 0
      %1550 = vperm.xlu0 %1549, %v1198
      %v1551 = vpop.permute.xlu0 %1550
      %1554 = vset.pattern.permute.xlu0 0
      %1555 = vperm.xlu0 %1554, %v1200
      %v1556 = vpop.permute.xlu0 %1555
      %1559 = vset.pattern.permute.xlu0 0
      %1560 = vperm.xlu0 %1559, %v1202
      %v1561 = vpop.permute.xlu0 %1560
      %1564 = vset.pattern.permute.xlu0 0
      %1565 = vperm.xlu0 %1564, %v1204
      %v1566 = vpop.permute.xlu0 %1565
      %1569 = vset.pattern.permute.xlu0 0
      %1570 = vperm.xlu0 %1569, %v1206
      %v1571 = vpop.permute.xlu0 %1570
      %1574 = vset.pattern.permute.xlu0 0
      %1575 = vperm.xlu0 %1574, %v1208
      %v1576 = vpop.permute.xlu0 %1575
      %v1578 = vmul.f32 %v1501, %v1466
      %v1579 = vmul.f32 %v1501, %v1467
      %v1580 = vmul.f32 %v1506, %v1468
      %v1581 = vmul.f32 %v1506, %v1469
      %v1582 = vmul.f32 %v1511, %v1470
      %v1583 = vmul.f32 %v1511, %v1471
      %v1584 = vmul.f32 %v1516, %v1472
      %v1585 = vmul.f32 %v1516, %v1473
      %v1586 = vmul.f32 %v1521, %v1474
      %v1587 = vmul.f32 %v1521, %v1475
      %v1588 = vmul.f32 %v1526, %v1476
      %v1589 = vmul.f32 %v1526, %v1477
      %v1590 = vmul.f32 %v1531, %v1478
      %v1591 = vmul.f32 %v1531, %v1479
      %v1592 = vmul.f32 %v1536, %v1480
      %v1593 = vmul.f32 %v1536, %v1481
      %v1594 = vmul.f32 %v1541, %v1482
      %v1595 = vmul.f32 %v1541, %v1483
      %v1596 = vmul.f32 %v1546, %v1484
      %v1597 = vmul.f32 %v1546, %v1485
      %v1598 = vmul.f32 %v1551, %v1486
      %v1599 = vmul.f32 %v1551, %v1487
      %v1600 = vmul.f32 %v1556, %v1488
      %v1601 = vmul.f32 %v1556, %v1489
      %v1602 = vmul.f32 %v1561, %v1490
      %v1603 = vmul.f32 %v1561, %v1491
      %v1604 = vmul.f32 %v1566, %v1492
      %v1605 = vmul.f32 %v1566, %v1493
      %v1606 = vmul.f32 %v1571, %v1494
      %v1607 = vmul.f32 %v1571, %v1495
      %v1608 = vmul.f32 %v1576, %v1496
      %v1609 = vmul.f32 %v1576, %v1497
      %v1642 = vunpack.c.l.b16 %v703
      %v1643 = vunpack.c.h.b16 %v703
      %v1644 = vunpack.c.l.b16 %v705
      %v1645 = vunpack.c.h.b16 %v705
      %v1646 = vunpack.c.l.b16 %v707
      %v1647 = vunpack.c.h.b16 %v707
      %v1648 = vunpack.c.l.b16 %v709
      %v1649 = vunpack.c.h.b16 %v709
      %v1650 = vunpack.c.l.b16 %v711
      %v1651 = vunpack.c.h.b16 %v711
      %v1652 = vunpack.c.l.b16 %v713
      %v1653 = vunpack.c.h.b16 %v713
      %v1654 = vunpack.c.l.b16 %v715
      %v1655 = vunpack.c.h.b16 %v715
      %v1656 = vunpack.c.l.b16 %v717
      %v1657 = vunpack.c.h.b16 %v717
      %v1658 = vunpack.c.l.b16 %v719
      %v1659 = vunpack.c.h.b16 %v719
      %v1660 = vunpack.c.l.b16 %v721
      %v1661 = vunpack.c.h.b16 %v721
      %v1662 = vunpack.c.l.b16 %v723
      %v1663 = vunpack.c.h.b16 %v723
      %v1664 = vunpack.c.l.b16 %v725
      %v1665 = vunpack.c.h.b16 %v725
      %v1666 = vunpack.c.l.b16 %v727
      %v1667 = vunpack.c.h.b16 %v727
      %v1668 = vunpack.c.l.b16 %v729
      %v1669 = vunpack.c.h.b16 %v729
      %v1670 = vunpack.c.l.b16 %v731
      %v1671 = vunpack.c.h.b16 %v731
      %v1672 = vunpack.c.l.b16 %v733
      %v1673 = vunpack.c.h.b16 %v733
      %v1674 = vunpack.c.l.b16 %v735
      %v1675 = vunpack.c.h.b16 %v735
      %v1676 = vunpack.c.l.b16 %v737
      %v1677 = vunpack.c.h.b16 %v737
      %v1678 = vunpack.c.l.b16 %v739
      %v1679 = vunpack.c.h.b16 %v739
      %v1680 = vunpack.c.l.b16 %v741
      %v1681 = vunpack.c.h.b16 %v741
      %v1682 = vunpack.c.l.b16 %v743
      %v1683 = vunpack.c.h.b16 %v743
      %v1684 = vunpack.c.l.b16 %v745
      %v1685 = vunpack.c.h.b16 %v745
      %v1686 = vunpack.c.l.b16 %v747
      %v1687 = vunpack.c.h.b16 %v747
      %v1688 = vunpack.c.l.b16 %v749
      %v1689 = vunpack.c.h.b16 %v749
      %v1690 = vunpack.c.l.b16 %v751
      %v1691 = vunpack.c.h.b16 %v751
      %v1692 = vunpack.c.l.b16 %v753
      %v1693 = vunpack.c.h.b16 %v753
      %v1694 = vunpack.c.l.b16 %v755
      %v1695 = vunpack.c.h.b16 %v755
      %v1696 = vunpack.c.l.b16 %v757
      %v1697 = vunpack.c.h.b16 %v757
      %v1698 = vunpack.c.l.b16 %v759
      %v1699 = vunpack.c.h.b16 %v759
      %v1700 = vunpack.c.l.b16 %v761
      %v1701 = vunpack.c.h.b16 %v761
      %v1702 = vunpack.c.l.b16 %v763
      %v1703 = vunpack.c.h.b16 %v763
      %v1704 = vunpack.c.l.b16 %v765
      %v1705 = vunpack.c.h.b16 %v765
      %v1706 = vpack.c.b16 %v1644, %v1642
      %v1707 = vpack.c.b16 %v1645, %v1643
      %v1708 = vpack.c.b16 %v1648, %v1646
      %v1709 = vpack.c.b16 %v1649, %v1647
      %v1710 = vpack.c.b16 %v1652, %v1650
      %v1711 = vpack.c.b16 %v1653, %v1651
      %v1712 = vpack.c.b16 %v1656, %v1654
      %v1713 = vpack.c.b16 %v1657, %v1655
      %v1714 = vpack.c.b16 %v1660, %v1658
      %v1715 = vpack.c.b16 %v1661, %v1659
      %v1716 = vpack.c.b16 %v1664, %v1662
      %v1717 = vpack.c.b16 %v1665, %v1663
      %v1718 = vpack.c.b16 %v1668, %v1666
      %v1719 = vpack.c.b16 %v1669, %v1667
      %v1720 = vpack.c.b16 %v1672, %v1670
      %v1721 = vpack.c.b16 %v1673, %v1671
      %v1722 = vpack.c.b16 %v1676, %v1674
      %v1723 = vpack.c.b16 %v1677, %v1675
      %v1724 = vpack.c.b16 %v1680, %v1678
      %v1725 = vpack.c.b16 %v1681, %v1679
      %v1726 = vpack.c.b16 %v1684, %v1682
      %v1727 = vpack.c.b16 %v1685, %v1683
      %v1728 = vpack.c.b16 %v1688, %v1686
      %v1729 = vpack.c.b16 %v1689, %v1687
      %v1730 = vpack.c.b16 %v1692, %v1690
      %v1731 = vpack.c.b16 %v1693, %v1691
      %v1732 = vpack.c.b16 %v1696, %v1694
      %v1733 = vpack.c.b16 %v1697, %v1695
      %v1734 = vpack.c.b16 %v1700, %v1698
      %v1735 = vpack.c.b16 %v1701, %v1699
      %v1736 = vpack.c.b16 %v1704, %v1702
      %v1737 = vpack.c.b16 %v1705, %v1703
      %1770 = vmatprep.subr.bf16.mxu0 %v1707
      %1771 = vmatpush1.bf16.msra.mxu0 %v1706
      %1772 = vmatprep.subr.bf16.mxu0 %v1709
      %1773 = vmatpush1.bf16.msra.mxu0 %v1708
      %1774 = vmatprep.subr.bf16.mxu0 %v1711
      %1775 = vmatpush1.bf16.msra.mxu0 %v1710
      %1776 = vmatprep.subr.bf16.mxu0 %v1713
      %1777 = vmatpush1.bf16.msra.mxu0 %v1712
      %1778 = vmatprep.subr.bf16.mxu0 %v1715
      %1779 = vmatpush1.bf16.msra.mxu0 %v1714
      %1780 = vmatprep.subr.bf16.mxu0 %v1717
      %1781 = vmatpush1.bf16.msra.mxu0 %v1716
      %1782 = vmatprep.subr.bf16.mxu0 %v1719
      %1783 = vmatpush1.bf16.msra.mxu0 %v1718
      %1784 = vmatprep.subr.bf16.mxu0 %v1721
      %1785 = vmatpush1.bf16.msra.mxu0 %v1720
      %1786 = vmatprep.subr.bf16.mxu0 %v1723
      %1787 = vmatpush1.bf16.msra.mxu0 %v1722
      %1788 = vmatprep.subr.bf16.mxu0 %v1725
      %1789 = vmatpush1.bf16.msra.mxu0 %v1724
      %1790 = vmatprep.subr.bf16.mxu0 %v1727
      %1791 = vmatpush1.bf16.msra.mxu0 %v1726
      %1792 = vmatprep.subr.bf16.mxu0 %v1729
      %1793 = vmatpush1.bf16.msra.mxu0 %v1728
      %1794 = vmatprep.subr.bf16.mxu0 %v1731
      %1795 = vmatpush1.bf16.msra.mxu0 %v1730
      %1796 = vmatprep.subr.bf16.mxu0 %v1733
      %1797 = vmatpush1.bf16.msra.mxu0 %v1732
      %1798 = vmatprep.subr.bf16.mxu0 %v1735
      %1799 = vmatpush1.bf16.msra.mxu0 %v1734
      %1800 = vmatprep.subr.bf16.mxu0 %v1737
      %1801 = vmatpush1.bf16.msra.mxu0 %v1736
      %1802 = vmatprep.mubr.bf16.mxu0 %v1278
      %1803 = vmatmul.mubr.bf16.gmra.mrb[0].mxu0 %v1275
      %v1804 = vpop.f32.mrb[0].mxu0
      %v1805 = vadd.f32 0.0, %v1804
      %v1806 = vpop.f32.mrb[0].mxu0
      %v1807 = vadd.f32 0.0, %v1806
      %v1808 = vpop.f32.mrb[0].mxu0
      %v1809 = vadd.f32 0.0, %v1808
      %v1810 = vpop.f32.mrb[0].mxu0
      %v1811 = vadd.f32 0.0, %v1810
      %1812 = vmatprep.mubr.bf16.mxu0 %v1284
      %1813 = vmatmul.mubr.bf16.gmra.mrb[0].mxu0 %v1281
      %v1814 = vpop.f32.mrb[0].mxu0
      %v1815 = vadd.f32 0.0, %v1814
      %v1816 = vpop.f32.mrb[0].mxu0
      %v1817 = vadd.f32 0.0, %v1816
      %v1818 = vpop.f32.mrb[0].mxu0
      %v1819 = vadd.f32 0.0, %v1818
      %v1820 = vpop.f32.mrb[0].mxu0
      %v1821 = vadd.f32 0.0, %v1820
      %1822 = vmatprep.mubr.bf16.mxu0 %v1290
      %1823 = vmatmul.mubr.bf16.gmra.mrb[0].mxu0 %v1287
      %v1824 = vpop.f32.mrb[0].mxu0
      %v1825 = vadd.f32 0.0, %v1824
      %v1826 = vpop.f32.mrb[0].mxu0
      %v1827 = vadd.f32 0.0, %v1826
      %v1828 = vpop.f32.mrb[0].mxu0
      %v1829 = vadd.f32 0.0, %v1828
      %v1830 = vpop.f32.mrb[0].mxu0
      %v1831 = vadd.f32 0.0, %v1830
      %1832 = vmatprep.mubr.bf16.mxu0 %v1296
      %1833 = vmatmul.mubr.bf16.gmra.mrb[0].mxu0 %v1293
      %v1834 = vpop.f32.mrb[0].mxu0
      %v1835 = vadd.f32 0.0, %v1834
      %v1836 = vpop.f32.mrb[0].mxu0
      %v1837 = vadd.f32 0.0, %v1836
      %v1838 = vpop.f32.mrb[0].mxu0
      %v1839 = vadd.f32 0.0, %v1838
      %v1840 = vpop.f32.mrb[0].mxu0
      %v1841 = vadd.f32 0.0, %v1840
      %1842 = vmatprep.mubr.bf16.mxu0 %v1302
      %1843 = vmatmul.mubr.bf16.gmra.mrb[0].mxu0 %v1299
      %v1844 = vpop.f32.mrb[0].mxu0
      %v1845 = vadd.f32 0.0, %v1844
      %v1846 = vpop.f32.mrb[0].mxu0
      %v1847 = vadd.f32 0.0, %v1846
      %v1848 = vpop.f32.mrb[0].mxu0
      %v1849 = vadd.f32 0.0, %v1848
      %v1850 = vpop.f32.mrb[0].mxu0
      %v1851 = vadd.f32 0.0, %v1850
      %1852 = vmatprep.mubr.bf16.mxu0 %v1308
      %1853 = vmatmul.mubr.bf16.gmra.mrb[0].mxu0 %v1305
      %v1854 = vpop.f32.mrb[0].mxu0
      %v1855 = vadd.f32 0.0, %v1854
      %v1856 = vpop.f32.mrb[0].mxu0
      %v1857 = vadd.f32 0.0, %v1856
      %v1858 = vpop.f32.mrb[0].mxu0
      %v1859 = vadd.f32 0.0, %v1858
      %v1860 = vpop.f32.mrb[0].mxu0
      %v1861 = vadd.f32 0.0, %v1860
      %1862 = vmatprep.mubr.bf16.mxu0 %v1314
      %1863 = vmatmul.mubr.bf16.gmra.mrb[0].mxu0 %v1311
      %v1864 = vpop.f32.mrb[0].mxu0
      %v1865 = vadd.f32 0.0, %v1864
      %v1866 = vpop.f32.mrb[0].mxu0
      %v1867 = vadd.f32 0.0, %v1866
      %v1868 = vpop.f32.mrb[0].mxu0
      %v1869 = vadd.f32 0.0, %v1868
      %v1870 = vpop.f32.mrb[0].mxu0
      %v1871 = vadd.f32 0.0, %v1870
      %1872 = vmatprep.mubr.bf16.mxu0 %v1320
      %1873 = vmatmul.mubr.bf16.gmra.mrb[0].mxu0 %v1317
      %v1874 = vpop.f32.mrb[0].mxu0
      %v1875 = vadd.f32 0.0, %v1874
      %v1876 = vpop.f32.mrb[0].mxu0
      %v1877 = vadd.f32 0.0, %v1876
      %v1878 = vpop.f32.mrb[0].mxu0
      %v1879 = vadd.f32 0.0, %v1878
      %v1880 = vpop.f32.mrb[0].mxu0
      %v1881 = vadd.f32 0.0, %v1880
      %1882 = vdwg.mxu0
      %v1883 = vadd.f32 %v1578, %v1805
      %v1884 = vadd.f32 %v1579, %v1807
      %v1885 = vadd.f32 %v1580, %v1809
      %v1886 = vadd.f32 %v1581, %v1811
      %v1887 = vadd.f32 %v1582, %v1815
      %v1888 = vadd.f32 %v1583, %v1817
      %v1889 = vadd.f32 %v1584, %v1819
      %v1890 = vadd.f32 %v1585, %v1821
      %v1891 = vadd.f32 %v1586, %v1825
      %v1892 = vadd.f32 %v1587, %v1827
      %v1893 = vadd.f32 %v1588, %v1829
      %v1894 = vadd.f32 %v1589, %v1831
      %v1895 = vadd.f32 %v1590, %v1835
      %v1896 = vadd.f32 %v1591, %v1837
      %v1897 = vadd.f32 %v1592, %v1839
      %v1898 = vadd.f32 %v1593, %v1841
      %v1899 = vadd.f32 %v1594, %v1845
      %v1900 = vadd.f32 %v1595, %v1847
      %v1901 = vadd.f32 %v1596, %v1849
      %v1902 = vadd.f32 %v1597, %v1851
      %v1903 = vadd.f32 %v1598, %v1855
      %v1904 = vadd.f32 %v1599, %v1857
      %v1905 = vadd.f32 %v1600, %v1859
      %v1906 = vadd.f32 %v1601, %v1861
      %v1907 = vadd.f32 %v1602, %v1865
      %v1908 = vadd.f32 %v1603, %v1867
      %v1909 = vadd.f32 %v1604, %v1869
      %v1910 = vadd.f32 %v1605, %v1871
      %v1911 = vadd.f32 %v1606, %v1875
      %v1912 = vadd.f32 %v1607, %v1877
      %v1913 = vadd.f32 %v1608, %v1879
      %v1914 = vadd.f32 %v1609, %v1881
      %1915 = vst [vmem:[#allocation4] sm:$0xff] %v1883
      %1916 = vst [vmem:[#allocation4 + $0x8] sm:$0xff] %v1884
      %1917 = vst [vmem:[#allocation4 + $0x10] sm:$0xff] %v1885
      %1918 = vst [vmem:[#allocation4 + $0x18] sm:$0xff] %v1886
      %1919 = vst [vmem:[#allocation4 + $0x20] sm:$0xff] %v1887
      %1920 = vst [vmem:[#allocation4 + $0x28] sm:$0xff] %v1888
      %1921 = vst [vmem:[#allocation4 + $0x30] sm:$0xff] %v1889
      %1922 = vst [vmem:[#allocation4 + $0x38] sm:$0xff] %v1890
      %1923 = vst [vmem:[#allocation4 + $0x40] sm:$0xff] %v1891
      %1924 = vst [vmem:[#allocation4 + $0x48] sm:$0xff] %v1892
      %1925 = vst [vmem:[#allocation4 + $0x50] sm:$0xff] %v1893
      %1926 = vst [vmem:[#allocation4 + $0x58] sm:$0xff] %v1894
      %1927 = vst [vmem:[#allocation4 + $0x60] sm:$0xff] %v1895
      %1928 = vst [vmem:[#allocation4 + $0x68] sm:$0xff] %v1896
      %1929 = vst [vmem:[#allocation4 + $0x70] sm:$0xff] %v1897
      %1930 = vst [vmem:[#allocation4 + $0x78] sm:$0xff] %v1898
      %1931 = vst [vmem:[#allocation4 + $0x80] sm:$0xff] %v1899
      %1932 = vst [vmem:[#allocation4 + $0x88] sm:$0xff] %v1900
      %1933 = vst [vmem:[#allocation4 + $0x90] sm:$0xff] %v1901
      %1934 = vst [vmem:[#allocation4 + $0x98] sm:$0xff] %v1902
      %1935 = vst [vmem:[#allocation4 + $0xa0] sm:$0xff] %v1903
      %1936 = vst [vmem:[#allocation4 + $0xa8] sm:$0xff] %v1904
      %1937 = vst [vmem:[#allocation4 + $0xb0] sm:$0xff] %v1905
      %1938 = vst [vmem:[#allocation4 + $0xb8] sm:$0xff] %v1906
      %1939 = vst [vmem:[#allocation4 + $0xc0] sm:$0xff] %v1907
      %1940 = vst [vmem:[#allocation4 + $0xc8] sm:$0xff] %v1908
      %1941 = vst [vmem:[#allocation4 + $0xd0] sm:$0xff] %v1909
      %1942 = vst [vmem:[#allocation4 + $0xd8] sm:$0xff] %v1910
      %1943 = vst [vmem:[#allocation4 + $0xe0] sm:$0xff] %v1911
      %1944 = vst [vmem:[#allocation4 + $0xe8] sm:$0xff] %v1912
      %1945 = vst [vmem:[#allocation4 + $0xf0] sm:$0xff] %v1913
      %1946 = vst [vmem:[#allocation4 + $0xf8] sm:$0xff] %v1914
      %1947 = vst.msk [vmem:[#allocation2] sm:$0xff] %vm1449, %v1145
      %1948 = vst.msk [vmem:[#allocation2 + $0x8] sm:$0xff] %vm1449, %v1146
      %1949 = vst.msk [vmem:[#allocation2 + $0x10] sm:$0xff] %vm1449, %v1147
      %1950 = vst.msk [vmem:[#allocation2 + $0x18] sm:$0xff] %vm1449, %v1148
      %1951 = vst.msk [vmem:[#allocation2 + $0x20] sm:$0xff] %vm1449, %v1149
      %1952 = vst.msk [vmem:[#allocation2 + $0x28] sm:$0xff] %vm1449, %v1150
      %1953 = vst.msk [vmem:[#allocation2 + $0x30] sm:$0xff] %vm1449, %v1151
      %1954 = vst.msk [vmem:[#allocation2 + $0x38] sm:$0xff] %vm1449, %v1152
      %1955 = vst.msk [vmem:[#allocation2 + $0x40] sm:$0xff] %vm1449, %v1153
      %1956 = vst.msk [vmem:[#allocation2 + $0x48] sm:$0xff] %vm1449, %v1154
      %1957 = vst.msk [vmem:[#allocation2 + $0x50] sm:$0xff] %vm1449, %v1155
      %1958 = vst.msk [vmem:[#allocation2 + $0x58] sm:$0xff] %vm1449, %v1156
      %1959 = vst.msk [vmem:[#allocation2 + $0x60] sm:$0xff] %vm1449, %v1157
      %1960 = vst.msk [vmem:[#allocation2 + $0x68] sm:$0xff] %vm1449, %v1158
      %1961 = vst.msk [vmem:[#allocation2 + $0x70] sm:$0xff] %vm1449, %v1159
      %1962 = vst.msk [vmem:[#allocation2 + $0x78] sm:$0xff] %vm1449, %v1160
      %1963 = vset.pattern.permute.xlu0 3
      %1964 = vperm.xlu0 %1963, %v783
      %v1965 = vpop.permute.xlu0 %1964
      %1967 = vset.pattern.permute.xlu0 3
      %1968 = vperm.xlu0 %1967, %v784
      %v1969 = vpop.permute.xlu0 %1968
      %1971 = vset.pattern.permute.xlu0 3
      %1972 = vperm.xlu0 %1971, %v785
      %v1973 = vpop.permute.xlu0 %1972
      %1975 = vset.pattern.permute.xlu0 3
      %1976 = vperm.xlu0 %1975, %v786
      %v1977 = vpop.permute.xlu0 %1976
      %1979 = vset.pattern.permute.xlu0 3
      %1980 = vperm.xlu0 %1979, %v787
      %v1981 = vpop.permute.xlu0 %1980
      %1983 = vset.pattern.permute.xlu0 3
      %1984 = vperm.xlu0 %1983, %v788
      %v1985 = vpop.permute.xlu0 %1984
      %1987 = vset.pattern.permute.xlu0 3
      %1988 = vperm.xlu0 %1987, %v789
      %v1989 = vpop.permute.xlu0 %1988
      %1991 = vset.pattern.permute.xlu0 3
      %1992 = vperm.xlu0 %1991, %v790
      %v1993 = vpop.permute.xlu0 %1992
      %v1995 = vshrl.u32 %v793, 16
      %v1996 = vpack.i.b16 %v1995, %v1995
      %v1998 = vlaneseq
      %v1999 = vshrl.u32 %v1998, 7
      %v2000 = vsub.s32 0, %v1999
      %v2001 = vrot.slane %v1996, %v2000
      %v2002 = vshrl.u32 %v794, 16
      %v2003 = vpack.i.b16 %v2002, %v2002
      %v2005 = vlaneseq
      %v2006 = vshrl.u32 %v2005, 7
      %v2007 = vsub.s32 0, %v2006
      %v2008 = vrot.slane %v2003, %v2007
      %v2009 = vadd.bf16 %v1965, %v2001
      %v2010 = vadd.bf16 %v1965, %v2008
      %v2011 = vadd.bf16 %v1969, %v2001
      %v2012 = vadd.bf16 %v1969, %v2008
      %v2013 = vadd.bf16 %v1973, %v2001
      %v2014 = vadd.bf16 %v1973, %v2008
      %v2015 = vadd.bf16 %v1977, %v2001
      %v2016 = vadd.bf16 %v1977, %v2008
      %v2017 = vadd.bf16 %v1981, %v2001
      %v2018 = vadd.bf16 %v1981, %v2008
      %v2019 = vadd.bf16 %v1985, %v2001
      %v2020 = vadd.bf16 %v1985, %v2008
      %v2021 = vadd.bf16 %v1989, %v2001
      %v2022 = vadd.bf16 %v1989, %v2008
      %v2023 = vadd.bf16 %v1993, %v2001
      %v2024 = vadd.bf16 %v1993, %v2008
      %vm2025 = vcmp.gt.bf16.partialorder %v2009, 0
      %vm2026 = vcmp.gt.bf16.partialorder %v2010, 0
      %vm2027 = vcmp.gt.bf16.partialorder %v2011, 0
      %vm2028 = vcmp.gt.bf16.partialorder %v2012, 0
      %vm2029 = vcmp.gt.bf16.partialorder %v2013, 0
      %vm2030 = vcmp.gt.bf16.partialorder %v2014, 0
      %vm2031 = vcmp.gt.bf16.partialorder %v2015, 0
      %vm2032 = vcmp.gt.bf16.partialorder %v2016, 0
      %vm2033 = vcmp.gt.bf16.partialorder %v2017, 0
      %vm2034 = vcmp.gt.bf16.partialorder %v2018, 0
      %vm2035 = vcmp.gt.bf16.partialorder %v2019, 0
      %vm2036 = vcmp.gt.bf16.partialorder %v2020, 0
      %vm2037 = vcmp.gt.bf16.partialorder %v2021, 0
      %vm2038 = vcmp.gt.bf16.partialorder %v2022, 0
      %vm2039 = vcmp.gt.bf16.partialorder %v2023, 0
      %vm2040 = vcmp.gt.bf16.partialorder %v2024, 0
      %v2041 = vmul.bf16 %v2009, 1045249613
      %v2042 = vmul.bf16 %v2010, 1045249613
      %v2043 = vmul.bf16 %v2011, 1045249613
      %v2044 = vmul.bf16 %v2012, 1045249613
      %v2045 = vmul.bf16 %v2013, 1045249613
      %v2046 = vmul.bf16 %v2014, 1045249613
      %v2047 = vmul.bf16 %v2015, 1045249613
      %v2048 = vmul.bf16 %v2016, 1045249613
      %v2049 = vmul.bf16 %v2017, 1045249613
      %v2050 = vmul.bf16 %v2018, 1045249613
      %v2051 = vmul.bf16 %v2019, 1045249613
      %v2052 = vmul.bf16 %v2020, 1045249613
      %v2053 = vmul.bf16 %v2021, 1045249613
      %v2054 = vmul.bf16 %v2022, 1045249613
      %v2055 = vmul.bf16 %v2023, 1045249613
      %v2056 = vmul.bf16 %v2024, 1045249613
      %v2057 = vsel %vm2025, %v2009, %v2041
      %v2058 = vsel %vm2026, %v2010, %v2042
      %v2059 = vsel %vm2027, %v2011, %v2043
      %v2060 = vsel %vm2028, %v2012, %v2044
      %v2061 = vsel %vm2029, %v2013, %v2045
      %v2062 = vsel %vm2030, %v2014, %v2046
      %v2063 = vsel %vm2031, %v2015, %v2047
      %v2064 = vsel %vm2032, %v2016, %v2048
      %v2065 = vsel %vm2033, %v2017, %v2049
      %v2066 = vsel %vm2034, %v2018, %v2050
      %v2067 = vsel %vm2035, %v2019, %v2051
      %v2068 = vsel %vm2036, %v2020, %v2052
      %v2069 = vsel %vm2037, %v2021, %v2053
      %v2070 = vsel %vm2038, %v2022, %v2054
      %v2071 = vsel %vm2039, %v2023, %v2055
      %v2072 = vsel %vm2040, %v2024, %v2056
      %v2073 = vsel %vm1057, %v2057, 4048220490
      %v2074 = vsel %vm1058, %v2058, 4048220490
      %v2075 = vsel %vm1059, %v2059, 4048220490
      %v2076 = vsel %vm1060, %v2060, 4048220490
      %v2077 = vsel %vm1061, %v2061, 4048220490
      %v2078 = vsel %vm1062, %v2062, 4048220490
      %v2079 = vsel %vm1063, %v2063, 4048220490
      %v2080 = vsel %vm1064, %v2064, 4048220490
      %v2081 = vsel %vm1065, %v2065, 4048220490
      %v2082 = vsel %vm1066, %v2066, 4048220490
      %v2083 = vsel %vm1067, %v2067, 4048220490
      %v2084 = vsel %vm1068, %v2068, 4048220490
      %v2085 = vsel %vm1069, %v2069, 4048220490
      %v2086 = vsel %vm1070, %v2070, 4048220490
      %v2087 = vsel %vm1071, %v2071, 4048220490
      %v2088 = vsel %vm1072, %v2072, 4048220490
      %s2089 = scalar_lea.vmem [#allocation2], 128
      %v2090 = vld [vmem:[%s2089] sm:$0xff]
      %v2091 = vld [vmem:[%s2089 + $0x8] sm:$0xff]
      %v2092 = vld [vmem:[%s2089 + $0x10] sm:$0xff]
      %v2093 = vld [vmem:[%s2089 + $0x18] sm:$0xff]
      %v2094 = vld [vmem:[%s2089 + $0x20] sm:$0xff]
      %v2095 = vld [vmem:[%s2089 + $0x28] sm:$0xff]
      %v2096 = vld [vmem:[%s2089 + $0x30] sm:$0xff]
      %v2097 = vld [vmem:[%s2089 + $0x38] sm:$0xff]
      %v2098 = vld [vmem:[%s2089 + $0x40] sm:$0xff]
      %v2099 = vld [vmem:[%s2089 + $0x48] sm:$0xff]
      %v2100 = vld [vmem:[%s2089 + $0x50] sm:$0xff]
      %v2101 = vld [vmem:[%s2089 + $0x58] sm:$0xff]
      %v2102 = vld [vmem:[%s2089 + $0x60] sm:$0xff]
      %v2103 = vld [vmem:[%s2089 + $0x68] sm:$0xff]
      %v2104 = vld [vmem:[%s2089 + $0x70] sm:$0xff]
      %v2105 = vld [vmem:[%s2089 + $0x78] sm:$0xff]
      %v2106 = vmax.bf16 %v2073, %v2074
      %2107 = vmax.xlane.bf16.xlu0 %v2106
      %v2108 = vpop.xlane.xlu0 %2107
      %v2109 = vmax.bf16 %v2075, %v2076
      %2110 = vmax.xlane.bf16.xlu0 %v2109
      %v2111 = vpop.xlane.xlu0 %2110
      %v2112 = vmax.bf16 %v2077, %v2078
      %2113 = vmax.xlane.bf16.xlu0 %v2112
      %v2114 = vpop.xlane.xlu0 %2113
      %v2115 = vmax.bf16 %v2079, %v2080
      %2116 = vmax.xlane.bf16.xlu0 %v2115
      %v2117 = vpop.xlane.xlu0 %2116
      %v2118 = vmax.bf16 %v2081, %v2082
      %2119 = vmax.xlane.bf16.xlu0 %v2118
      %v2120 = vpop.xlane.xlu0 %2119
      %v2121 = vmax.bf16 %v2083, %v2084
      %2122 = vmax.xlane.bf16.xlu0 %v2121
      %v2123 = vpop.xlane.xlu0 %2122
      %v2124 = vmax.bf16 %v2085, %v2086
      %2125 = vmax.xlane.bf16.xlu0 %v2124
      %v2126 = vpop.xlane.xlu0 %2125
      %v2127 = vmax.bf16 %v2087, %v2088
      %2128 = vmax.xlane.bf16.xlu0 %v2127
      %v2129 = vpop.xlane.xlu0 %2128
      %v2130 = vunpack.c.l.bf16 %v2108
      %v2131 = vunpack.c.h.bf16 %v2108
      %v2132 = vunpack.c.l.bf16 %v2111
      %v2133 = vunpack.c.h.bf16 %v2111
      %v2134 = vunpack.c.l.bf16 %v2114
      %v2135 = vunpack.c.h.bf16 %v2114
      %v2136 = vunpack.c.l.bf16 %v2117
      %v2137 = vunpack.c.h.bf16 %v2117
      %v2138 = vunpack.c.l.bf16 %v2120
      %v2139 = vunpack.c.h.bf16 %v2120
      %v2140 = vunpack.c.l.bf16 %v2123
      %v2141 = vunpack.c.h.bf16 %v2123
      %v2142 = vunpack.c.l.bf16 %v2126
      %v2143 = vunpack.c.h.bf16 %v2126
      %v2144 = vunpack.c.l.bf16 %v2129
      %v2145 = vunpack.c.h.bf16 %v2129
      %v2146 = vmax.f32 %v2090, %v2130
      %v2147 = vmax.f32 %v2091, %v2131
      %v2148 = vmax.f32 %v2092, %v2132
      %v2149 = vmax.f32 %v2093, %v2133
      %v2150 = vmax.f32 %v2094, %v2134
      %v2151 = vmax.f32 %v2095, %v2135
      %v2152 = vmax.f32 %v2096, %v2136
      %v2153 = vmax.f32 %v2097, %v2137
      %v2154 = vmax.f32 %v2098, %v2138
      %v2155 = vmax.f32 %v2099, %v2139
      %v2156 = vmax.f32 %v2100, %v2140
      %v2157 = vmax.f32 %v2101, %v2141
      %v2158 = vmax.f32 %v2102, %v2142
      %v2159 = vmax.f32 %v2103, %v2143
      %v2160 = vmax.f32 %v2104, %v2144
      %v2161 = vmax.f32 %v2105, %v2145
      %v2162 = vsub.f32 %v2090, %v2146
      %v2163 = vsub.f32 %v2091, %v2147
      %v2164 = vsub.f32 %v2092, %v2148
      %v2165 = vsub.f32 %v2093, %v2149
      %v2166 = vsub.f32 %v2094, %v2150
      %v2167 = vsub.f32 %v2095, %v2151
      %v2168 = vsub.f32 %v2096, %v2152
      %v2169 = vsub.f32 %v2097, %v2153
      %v2170 = vsub.f32 %v2098, %v2154
      %v2171 = vsub.f32 %v2099, %v2155
      %v2172 = vsub.f32 %v2100, %v2156
      %v2173 = vsub.f32 %v2101, %v2157
      %v2174 = vsub.f32 %v2102, %v2158
      %v2175 = vsub.f32 %v2103, %v2159
      %v2176 = vsub.f32 %v2104, %v2160
      %v2177 = vsub.f32 %v2105, %v2161
      %v2178 = vmul.f32 %v2162, 1.442695
      %v2179 = vpow.pop %v2178
      %v2180 = vmul.f32 %v2163, 1.442695
      %v2181 = vpow.pop %v2180
      %v2182 = vmul.f32 %v2164, 1.442695
      %v2183 = vpow.pop %v2182
      %v2184 = vmul.f32 %v2165, 1.442695
      %v2185 = vpow.pop %v2184
      %v2186 = vmul.f32 %v2166, 1.442695
      %v2187 = vpow.pop %v2186
      %v2188 = vmul.f32 %v2167, 1.442695
      %v2189 = vpow.pop %v2188
      %v2190 = vmul.f32 %v2168, 1.442695
      %v2191 = vpow.pop %v2190
      %v2192 = vmul.f32 %v2169, 1.442695
      %v2193 = vpow.pop %v2192
      %v2194 = vmul.f32 %v2170, 1.442695
      %v2195 = vpow.pop %v2194
      %v2196 = vmul.f32 %v2171, 1.442695
      %v2197 = vpow.pop %v2196
      %v2198 = vmul.f32 %v2172, 1.442695
      %v2199 = vpow.pop %v2198
      %v2200 = vmul.f32 %v2173, 1.442695
      %v2201 = vpow.pop %v2200
      %v2202 = vmul.f32 %v2174, 1.442695
      %v2203 = vpow.pop %v2202
      %v2204 = vmul.f32 %v2175, 1.442695
      %v2205 = vpow.pop %v2204
      %v2206 = vmul.f32 %v2176, 1.442695
      %v2207 = vpow.pop %v2206
      %v2208 = vmul.f32 %v2177, 1.442695
      %v2209 = vpow.pop %v2208
      %v2210 = vpack.c.bf16 %v2147, %v2146
      %v2211 = vpack.c.bf16 %v2149, %v2148
      %v2212 = vpack.c.bf16 %v2151, %v2150
      %v2213 = vpack.c.bf16 %v2153, %v2152
      %v2214 = vpack.c.bf16 %v2155, %v2154
      %v2215 = vpack.c.bf16 %v2157, %v2156
      %v2216 = vpack.c.bf16 %v2159, %v2158
      %v2217 = vpack.c.bf16 %v2161, %v2160
      %2219 = vset.pattern.permute.xlu0 0
      %2220 = vperm.xlu0 %2219, %v2210
      %v2221 = vpop.permute.xlu0 %2220
      %2224 = vset.pattern.permute.xlu0 0
      %2225 = vperm.xlu0 %2224, %v2211
      %v2226 = vpop.permute.xlu0 %2225
      %2229 = vset.pattern.permute.xlu0 0
      %2230 = vperm.xlu0 %2229, %v2212
      %v2231 = vpop.permute.xlu0 %2230
      %2234 = vset.pattern.permute.xlu0 0
      %2235 = vperm.xlu0 %2234, %v2213
      %v2236 = vpop.permute.xlu0 %2235
      %2239 = vset.pattern.permute.xlu0 0
      %2240 = vperm.xlu0 %2239, %v2214
      %v2241 = vpop.permute.xlu0 %2240
      %2244 = vset.pattern.permute.xlu0 0
      %2245 = vperm.xlu0 %2244, %v2215
      %v2246 = vpop.permute.xlu0 %2245
      %2249 = vset.pattern.permute.xlu0 0
      %2250 = vperm.xlu0 %2249, %v2216
      %v2251 = vpop.permute.xlu0 %2250
      %2254 = vset.pattern.permute.xlu0 0
      %2255 = vperm.xlu0 %2254, %v2217
      %v2256 = vpop.permute.xlu0 %2255
      %v2258 = vsub.bf16 %v2073, %v2221
      %v2259 = vsub.bf16 %v2074, %v2221
      %v2260 = vsub.bf16 %v2075, %v2226
      %v2261 = vsub.bf16 %v2076, %v2226
      %v2262 = vsub.bf16 %v2077, %v2231
      %v2263 = vsub.bf16 %v2078, %v2231
      %v2264 = vsub.bf16 %v2079, %v2236
      %v2265 = vsub.bf16 %v2080, %v2236
      %v2266 = vsub.bf16 %v2081, %v2241
      %v2267 = vsub.bf16 %v2082, %v2241
      %v2268 = vsub.bf16 %v2083, %v2246
      %v2269 = vsub.bf16 %v2084, %v2246
      %v2270 = vsub.bf16 %v2085, %v2251
      %v2271 = vsub.bf16 %v2086, %v2251
      %v2272 = vsub.bf16 %v2087, %v2256
      %v2273 = vsub.bf16 %v2088, %v2256
      %v2275 = vmul.bf16 %v2258, 1069105081
      %v2276 = vpow.bf16.pop %v2275
      %v2278 = vmul.bf16 %v2259, 1069105081
      %v2279 = vpow.bf16.pop %v2278
      %v2281 = vmul.bf16 %v2260, 1069105081
      %v2282 = vpow.bf16.pop %v2281
      %v2284 = vmul.bf16 %v2261, 1069105081
      %v2285 = vpow.bf16.pop %v2284
      %v2287 = vmul.bf16 %v2262, 1069105081
      %v2288 = vpow.bf16.pop %v2287
      %v2290 = vmul.bf16 %v2263, 1069105081
      %v2291 = vpow.bf16.pop %v2290
      %v2293 = vmul.bf16 %v2264, 1069105081
      %v2294 = vpow.bf16.pop %v2293
      %v2296 = vmul.bf16 %v2265, 1069105081
      %v2297 = vpow.bf16.pop %v2296
      %v2299 = vmul.bf16 %v2266, 1069105081
      %v2300 = vpow.bf16.pop %v2299
      %v2302 = vmul.bf16 %v2267, 1069105081
      %v2303 = vpow.bf16.pop %v2302
      %v2305 = vmul.bf16 %v2268, 1069105081
      %v2306 = vpow.bf16.pop %v2305
      %v2308 = vmul.bf16 %v2269, 1069105081
      %v2309 = vpow.bf16.pop %v2308
      %v2311 = vmul.bf16 %v2270, 1069105081
      %v2312 = vpow.bf16.pop %v2311
      %v2314 = vmul.bf16 %v2271, 1069105081
      %v2315 = vpow.bf16.pop %v2314
      %v2317 = vmul.bf16 %v2272, 1069105081
      %v2318 = vpow.bf16.pop %v2317
      %v2320 = vmul.bf16 %v2273, 1069105081
      %v2321 = vpow.bf16.pop %v2320
      %s2322 = scalar_lea.vmem [#allocation3], 128
      %v2323 = vld [vmem:[%s2322] sm:$0xff]
      %v2324 = vld [vmem:[%s2322 + $0x8] sm:$0xff]
      %v2325 = vld [vmem:[%s2322 + $0x10] sm:$0xff]
      %v2326 = vld [vmem:[%s2322 + $0x18] sm:$0xff]
      %v2327 = vld [vmem:[%s2322 + $0x20] sm:$0xff]
      %v2328 = vld [vmem:[%s2322 + $0x28] sm:$0xff]
      %v2329 = vld [vmem:[%s2322 + $0x30] sm:$0xff]
      %v2330 = vld [vmem:[%s2322 + $0x38] sm:$0xff]
      %v2331 = vld [vmem:[%s2322 + $0x40] sm:$0xff]
      %v2332 = vld [vmem:[%s2322 + $0x48] sm:$0xff]
      %v2333 = vld [vmem:[%s2322 + $0x50] sm:$0xff]
      %v2334 = vld [vmem:[%s2322 + $0x58] sm:$0xff]
      %v2335 = vld [vmem:[%s2322 + $0x60] sm:$0xff]
      %v2336 = vld [vmem:[%s2322 + $0x68] sm:$0xff]
      %v2337 = vld [vmem:[%s2322 + $0x70] sm:$0xff]
      %v2338 = vld [vmem:[%s2322 + $0x78] sm:$0xff]
      %v2339 = vmul.f32 %v2179, %v2323
      %v2340 = vmul.f32 %v2181, %v2324
      %v2341 = vmul.f32 %v2183, %v2325
      %v2342 = vmul.f32 %v2185, %v2326
      %v2343 = vmul.f32 %v2187, %v2327
      %v2344 = vmul.f32 %v2189, %v2328
      %v2345 = vmul.f32 %v2191, %v2329
      %v2346 = vmul.f32 %v2193, %v2330
      %v2347 = vmul.f32 %v2195, %v2331
      %v2348 = vmul.f32 %v2197, %v2332
      %v2349 = vmul.f32 %v2199, %v2333
      %v2350 = vmul.f32 %v2201, %v2334
      %v2351 = vmul.f32 %v2203, %v2335
      %v2352 = vmul.f32 %v2205, %v2336
      %v2353 = vmul.f32 %v2207, %v2337
      %v2354 = vmul.f32 %v2209, %v2338
      %v2355 = vunpack.c.l.bf16 %v2276
      %v2356 = vunpack.c.l.bf16 %v2279
      %v2357 = vunpack.c.h.bf16 %v2276
      %v2358 = vunpack.c.h.bf16 %v2279
      %v2359 = vunpack.c.l.bf16 %v2282
      %v2360 = vunpack.c.l.bf16 %v2285
      %v2361 = vunpack.c.h.bf16 %v2282
      %v2362 = vunpack.c.h.bf16 %v2285
      %v2363 = vunpack.c.l.bf16 %v2288
      %v2364 = vunpack.c.l.bf16 %v2291
      %v2365 = vunpack.c.h.bf16 %v2288
      %v2366 = vunpack.c.h.bf16 %v2291
      %v2367 = vunpack.c.l.bf16 %v2294
      %v2368 = vunpack.c.l.bf16 %v2297
      %v2369 = vunpack.c.h.bf16 %v2294
      %v2370 = vunpack.c.h.bf16 %v2297
      %v2371 = vunpack.c.l.bf16 %v2300
      %v2372 = vunpack.c.l.bf16 %v2303
      %v2373 = vunpack.c.h.bf16 %v2300
      %v2374 = vunpack.c.h.bf16 %v2303
      %v2375 = vunpack.c.l.bf16 %v2306
      %v2376 = vunpack.c.l.bf16 %v2309
      %v2377 = vunpack.c.h.bf16 %v2306
      %v2378 = vunpack.c.h.bf16 %v2309
      %v2379 = vunpack.c.l.bf16 %v2312
      %v2380 = vunpack.c.l.bf16 %v2315
      %v2381 = vunpack.c.h.bf16 %v2312
      %v2382 = vunpack.c.h.bf16 %v2315
      %v2383 = vunpack.c.l.bf16 %v2318
      %v2384 = vunpack.c.l.bf16 %v2321
      %v2385 = vunpack.c.h.bf16 %v2318
      %v2386 = vunpack.c.h.bf16 %v2321
      %v2387 = vadd.f32 %v2355, %v2356
      %2388 = vadd.xlane.f32.xlu0 %v2387
      %v2389 = vpop.xlane.xlu0 %2388
      %v2390 = vadd.f32 %v2357, %v2358
      %2391 = vadd.xlane.f32.xlu0 %v2390
      %v2392 = vpop.xlane.xlu0 %2391
      %v2393 = vadd.f32 %v2359, %v2360
      %2394 = vadd.xlane.f32.xlu0 %v2393
      %v2395 = vpop.xlane.xlu0 %2394
      %v2396 = vadd.f32 %v2361, %v2362
      %2397 = vadd.xlane.f32.xlu0 %v2396
      %v2398 = vpop.xlane.xlu0 %2397
      %v2399 = vadd.f32 %v2363, %v2364
      %2400 = vadd.xlane.f32.xlu0 %v2399
      %v2401 = vpop.xlane.xlu0 %2400
      %v2402 = vadd.f32 %v2365, %v2366
      %2403 = vadd.xlane.f32.xlu0 %v2402
      %v2404 = vpop.xlane.xlu0 %2403
      %v2405 = vadd.f32 %v2367, %v2368
      %2406 = vadd.xlane.f32.xlu0 %v2405
      %v2407 = vpop.xlane.xlu0 %2406
      %v2408 = vadd.f32 %v2369, %v2370
      %2409 = vadd.xlane.f32.xlu0 %v2408
      %v2410 = vpop.xlane.xlu0 %2409
      %v2411 = vadd.f32 %v2371, %v2372
      %2412 = vadd.xlane.f32.xlu0 %v2411
      %v2413 = vpop.xlane.xlu0 %2412
      %v2414 = vadd.f32 %v2373, %v2374
      %2415 = vadd.xlane.f32.xlu0 %v2414
      %v2416 = vpop.xlane.xlu0 %2415
      %v2417 = vadd.f32 %v2375, %v2376
      %2418 = vadd.xlane.f32.xlu0 %v2417
      %v2419 = vpop.xlane.xlu0 %2418
      %v2420 = vadd.f32 %v2377, %v2378
      %2421 = vadd.xlane.f32.xlu0 %v2420
      %v2422 = vpop.xlane.xlu0 %2421
      %v2423 = vadd.f32 %v2379, %v2380
      %2424 = vadd.xlane.f32.xlu0 %v2423
      %v2425 = vpop.xlane.xlu0 %2424
      %v2426 = vadd.f32 %v2381, %v2382
      %2427 = vadd.xlane.f32.xlu0 %v2426
      %v2428 = vpop.xlane.xlu0 %2427
      %v2429 = vadd.f32 %v2383, %v2384
      %2430 = vadd.xlane.f32.xlu0 %v2429
      %v2431 = vpop.xlane.xlu0 %2430
      %v2432 = vadd.f32 %v2385, %v2386
      %2433 = vadd.xlane.f32.xlu0 %v2432
      %v2434 = vpop.xlane.xlu0 %2433
      %v2435 = vadd.f32 %v2339, %v2389
      %v2436 = vadd.f32 %v2340, %v2392
      %v2437 = vadd.f32 %v2341, %v2395
      %v2438 = vadd.f32 %v2342, %v2398
      %v2439 = vadd.f32 %v2343, %v2401
      %v2440 = vadd.f32 %v2344, %v2404
      %v2441 = vadd.f32 %v2345, %v2407
      %v2442 = vadd.f32 %v2346, %v2410
      %v2443 = vadd.f32 %v2347, %v2413
      %v2444 = vadd.f32 %v2348, %v2416
      %v2445 = vadd.f32 %v2349, %v2419
      %v2446 = vadd.f32 %v2350, %v2422
      %v2447 = vadd.f32 %v2351, %v2425
      %v2448 = vadd.f32 %v2352, %v2428
      %v2449 = vadd.f32 %v2353, %v2431
      %v2450 = vadd.f32 %v2354, %v2434
      %2451 = vst.msk [vmem:[%s2322] sm:$0xff] %vm1449, %v2435
      %2452 = vst.msk [vmem:[%s2322 + $0x8] sm:$0xff] %vm1449, %v2436
      %2453 = vst.msk [vmem:[%s2322 + $0x10] sm:$0xff] %vm1449, %v2437
      %2454 = vst.msk [vmem:[%s2322 + $0x18] sm:$0xff] %vm1449, %v2438
      %2455 = vst.msk [vmem:[%s2322 + $0x20] sm:$0xff] %vm1449, %v2439
      %2456 = vst.msk [vmem:[%s2322 + $0x28] sm:$0xff] %vm1449, %v2440
      %2457 = vst.msk [vmem:[%s2322 + $0x30] sm:$0xff] %vm1449, %v2441
      %2458 = vst.msk [vmem:[%s2322 + $0x38] sm:$0xff] %vm1449, %v2442
      %2459 = vst.msk [vmem:[%s2322 + $0x40] sm:$0xff] %vm1449, %v2443
      %2460 = vst.msk [vmem:[%s2322 + $0x48] sm:$0xff] %vm1449, %v2444
      %2461 = vst.msk [vmem:[%s2322 + $0x50] sm:$0xff] %vm1449, %v2445
      %2462 = vst.msk [vmem:[%s2322 + $0x58] sm:$0xff] %vm1449, %v2446
      %2463 = vst.msk [vmem:[%s2322 + $0x60] sm:$0xff] %vm1449, %v2447
      %2464 = vst.msk [vmem:[%s2322 + $0x68] sm:$0xff] %vm1449, %v2448
      %2465 = vst.msk [vmem:[%s2322 + $0x70] sm:$0xff] %vm1449, %v2449
      %2466 = vst.msk [vmem:[%s2322 + $0x78] sm:$0xff] %vm1449, %v2450
      %s2467 = scalar_lea.vmem [#allocation4], 256
      %v2468 = vld [vmem:[%s2467] sm:$0xff]
      %v2469 = vld [vmem:[%s2467 + $0x8] sm:$0xff]
      %v2470 = vld [vmem:[%s2467 + $0x10] sm:$0xff]
      %v2471 = vld [vmem:[%s2467 + $0x18] sm:$0xff]
      %v2472 = vld [vmem:[%s2467 + $0x20] sm:$0xff]
      %v2473 = vld [vmem:[%s2467 + $0x28] sm:$0xff]
      %v2474 = vld [vmem:[%s2467 + $0x30] sm:$0xff]
      %v2475 = vld [vmem:[%s2467 + $0x38] sm:$0xff]
      %v2476 = vld [vmem:[%s2467 + $0x40] sm:$0xff]
      %v2477 = vld [vmem:[%s2467 + $0x48] sm:$0xff]
      %v2478 = vld [vmem:[%s2467 + $0x50] sm:$0xff]
      %v2479 = vld [vmem:[%s2467 + $0x58] sm:$0xff]
      %v2480 = vld [vmem:[%s2467 + $0x60] sm:$0xff]
      %v2481 = vld [vmem:[%s2467 + $0x68] sm:$0xff]
      %v2482 = vld [vmem:[%s2467 + $0x70] sm:$0xff]
      %v2483 = vld [vmem:[%s2467 + $0x78] sm:$0xff]
      %v2484 = vld [vmem:[%s2467 + $0x80] sm:$0xff]
      %v2485 = vld [vmem:[%s2467 + $0x88] sm:$0xff]
      %v2486 = vld [vmem:[%s2467 + $0x90] sm:$0xff]
      %v2487 = vld [vmem:[%s2467 + $0x98] sm:$0xff]
      %v2488 = vld [vmem:[%s2467 + $0xa0] sm:$0xff]
      %v2489 = vld [vmem:[%s2467 + $0xa8] sm:$0xff]
      %v2490 = vld [vmem:[%s2467 + $0xb0] sm:$0xff]
      %v2491 = vld [vmem:[%s2467 + $0xb8] sm:$0xff]
      %v2492 = vld [vmem:[%s2467 + $0xc0] sm:$0xff]
      %v2493 = vld [vmem:[%s2467 + $0xc8] sm:$0xff]
      %v2494 = vld [vmem:[%s2467 + $0xd0] sm:$0xff]
      %v2495 = vld [vmem:[%s2467 + $0xd8] sm:$0xff]
      %v2496 = vld [vmem:[%s2467 + $0xe0] sm:$0xff]
      %v2497 = vld [vmem:[%s2467 + $0xe8] sm:$0xff]
      %v2498 = vld [vmem:[%s2467 + $0xf0] sm:$0xff]
      %v2499 = vld [vmem:[%s2467 + $0xf8] sm:$0xff]
      %2501 = vset.pattern.permute.xlu0 0
      %2502 = vperm.xlu0 %2501, %v2179
      %v2503 = vpop.permute.xlu0 %2502
      %2506 = vset.pattern.permute.xlu0 0
      %2507 = vperm.xlu0 %2506, %v2181
      %v2508 = vpop.permute.xlu0 %2507
      %2511 = vset.pattern.permute.xlu0 0
      %2512 = vperm.xlu0 %2511, %v2183
      %v2513 = vpop.permute.xlu0 %2512
      %2516 = vset.pattern.permute.xlu0 0
      %2517 = vperm.xlu0 %2516, %v2185
      %v2518 = vpop.permute.xlu0 %2517
      %2521 = vset.pattern.permute.xlu0 0
      %2522 = vperm.xlu0 %2521, %v2187
      %v2523 = vpop.permute.xlu0 %2522
      %2526 = vset.pattern.permute.xlu0 0
      %2527 = vperm.xlu0 %2526, %v2189
      %v2528 = vpop.permute.xlu0 %2527
      %2531 = vset.pattern.permute.xlu0 0
      %2532 = vperm.xlu0 %2531, %v2191
      %v2533 = vpop.permute.xlu0 %2532
      %2536 = vset.pattern.permute.xlu0 0
      %2537 = vperm.xlu0 %2536, %v2193
      %v2538 = vpop.permute.xlu0 %2537
      %2541 = vset.pattern.permute.xlu0 0
      %2542 = vperm.xlu0 %2541, %v2195
      %v2543 = vpop.permute.xlu0 %2542
      %2546 = vset.pattern.permute.xlu0 0
      %2547 = vperm.xlu0 %2546, %v2197
      %v2548 = vpop.permute.xlu0 %2547
      %2551 = vset.pattern.permute.xlu0 0
      %2552 = vperm.xlu0 %2551, %v2199
      %v2553 = vpop.permute.xlu0 %2552
      %2556 = vset.pattern.permute.xlu0 0
      %2557 = vperm.xlu0 %2556, %v2201
      %v2558 = vpop.permute.xlu0 %2557
      %2561 = vset.pattern.permute.xlu0 0
      %2562 = vperm.xlu0 %2561, %v2203
      %v2563 = vpop.permute.xlu0 %2562
      %2566 = vset.pattern.permute.xlu0 0
      %2567 = vperm.xlu0 %2566, %v2205
      %v2568 = vpop.permute.xlu0 %2567
      %2571 = vset.pattern.permute.xlu0 0
      %2572 = vperm.xlu0 %2571, %v2207
      %v2573 = vpop.permute.xlu0 %2572
      %2576 = vset.pattern.permute.xlu0 0
      %2577 = vperm.xlu0 %2576, %v2209
      %v2578 = vpop.permute.xlu0 %2577
      %v2580 = vmul.f32 %v2503, %v2468
      %v2581 = vmul.f32 %v2503, %v2469
      %v2582 = vmul.f32 %v2508, %v2470
      %v2583 = vmul.f32 %v2508, %v2471
      %v2584 = vmul.f32 %v2513, %v2472
      %v2585 = vmul.f32 %v2513, %v2473
      %v2586 = vmul.f32 %v2518, %v2474
      %v2587 = vmul.f32 %v2518, %v2475
      %v2588 = vmul.f32 %v2523, %v2476
      %v2589 = vmul.f32 %v2523, %v2477
      %v2590 = vmul.f32 %v2528, %v2478
      %v2591 = vmul.f32 %v2528, %v2479
      %v2592 = vmul.f32 %v2533, %v2480
      %v2593 = vmul.f32 %v2533, %v2481
      %v2594 = vmul.f32 %v2538, %v2482
      %v2595 = vmul.f32 %v2538, %v2483
      %v2596 = vmul.f32 %v2543, %v2484
      %v2597 = vmul.f32 %v2543, %v2485
      %v2598 = vmul.f32 %v2548, %v2486
      %v2599 = vmul.f32 %v2548, %v2487
      %v2600 = vmul.f32 %v2553, %v2488
      %v2601 = vmul.f32 %v2553, %v2489
      %v2602 = vmul.f32 %v2558, %v2490
      %v2603 = vmul.f32 %v2558, %v2491
      %v2604 = vmul.f32 %v2563, %v2492
      %v2605 = vmul.f32 %v2563, %v2493
      %v2606 = vmul.f32 %v2568, %v2494
      %v2607 = vmul.f32 %v2568, %v2495
      %v2608 = vmul.f32 %v2573, %v2496
      %v2609 = vmul.f32 %v2573, %v2497
      %v2610 = vmul.f32 %v2578, %v2498
      %v2611 = vmul.f32 %v2578, %v2499
      %v2644 = vunpack.c.l.b16 %v704
      %v2645 = vunpack.c.h.b16 %v704
      %v2646 = vunpack.c.l.b16 %v706
      %v2647 = vunpack.c.h.b16 %v706
      %v2648 = vunpack.c.l.b16 %v708
      %v2649 = vunpack.c.h.b16 %v708
      %v2650 = vunpack.c.l.b16 %v710
      %v2651 = vunpack.c.h.b16 %v710
      %v2652 = vunpack.c.l.b16 %v712
      %v2653 = vunpack.c.h.b16 %v712
      %v2654 = vunpack.c.l.b16 %v714
      %v2655 = vunpack.c.h.b16 %v714
      %v2656 = vunpack.c.l.b16 %v716
      %v2657 = vunpack.c.h.b16 %v716
      %v2658 = vunpack.c.l.b16 %v718
      %v2659 = vunpack.c.h.b16 %v718
      %v2660 = vunpack.c.l.b16 %v720
      %v2661 = vunpack.c.h.b16 %v720
      %v2662 = vunpack.c.l.b16 %v722
      %v2663 = vunpack.c.h.b16 %v722
      %v2664 = vunpack.c.l.b16 %v724
      %v2665 = vunpack.c.h.b16 %v724
      %v2666 = vunpack.c.l.b16 %v726
      %v2667 = vunpack.c.h.b16 %v726
      %v2668 = vunpack.c.l.b16 %v728
      %v2669 = vunpack.c.h.b16 %v728
      %v2670 = vunpack.c.l.b16 %v730
      %v2671 = vunpack.c.h.b16 %v730
      %v2672 = vunpack.c.l.b16 %v732
      %v2673 = vunpack.c.h.b16 %v732
      %v2674 = vunpack.c.l.b16 %v734
      %v2675 = vunpack.c.h.b16 %v734
      %v2676 = vunpack.c.l.b16 %v736
      %v2677 = vunpack.c.h.b16 %v736
      %v2678 = vunpack.c.l.b16 %v738
      %v2679 = vunpack.c.h.b16 %v738
      %v2680 = vunpack.c.l.b16 %v740
      %v2681 = vunpack.c.h.b16 %v740
      %v2682 = vunpack.c.l.b16 %v742
      %v2683 = vunpack.c.h.b16 %v742
      %v2684 = vunpack.c.l.b16 %v744
      %v2685 = vunpack.c.h.b16 %v744
      %v2686 = vunpack.c.l.b16 %v746
      %v2687 = vunpack.c.h.b16 %v746
      %v2688 = vunpack.c.l.b16 %v748
      %v2689 = vunpack.c.h.b16 %v748
      %v2690 = vunpack.c.l.b16 %v750
      %v2691 = vunpack.c.h.b16 %v750
      %v2692 = vunpack.c.l.b16 %v752
      %v2693 = vunpack.c.h.b16 %v752
      %v2694 = vunpack.c.l.b16 %v754
      %v2695 = vunpack.c.h.b16 %v754
      %v2696 = vunpack.c.l.b16 %v756
      %v2697 = vunpack.c.h.b16 %v756
      %v2698 = vunpack.c.l.b16 %v758
      %v2699 = vunpack.c.h.b16 %v758
      %v2700 = vunpack.c.l.b16 %v760
      %v2701 = vunpack.c.h.b16 %v760
      %v2702 = vunpack.c.l.b16 %v762
      %v2703 = vunpack.c.h.b16 %v762
      %v2704 = vunpack.c.l.b16 %v764
      %v2705 = vunpack.c.h.b16 %v764
      %v2706 = vunpack.c.l.b16 %v766
      %v2707 = vunpack.c.h.b16 %v766
      %v2708 = vpack.c.b16 %v2646, %v2644
      %v2709 = vpack.c.b16 %v2647, %v2645
      %v2710 = vpack.c.b16 %v2650, %v2648
      %v2711 = vpack.c.b16 %v2651, %v2649
      %v2712 = vpack.c.b16 %v2654, %v2652
      %v2713 = vpack.c.b16 %v2655, %v2653
      %v2714 = vpack.c.b16 %v2658, %v2656
      %v2715 = vpack.c.b16 %v2659, %v2657
      %v2716 = vpack.c.b16 %v2662, %v2660
      %v2717 = vpack.c.b16 %v2663, %v2661
      %v2718 = vpack.c.b16 %v2666, %v2664
      %v2719 = vpack.c.b16 %v2667, %v2665
      %v2720 = vpack.c.b16 %v2670, %v2668
      %v2721 = vpack.c.b16 %v2671, %v2669
      %v2722 = vpack.c.b16 %v2674, %v2672
      %v2723 = vpack.c.b16 %v2675, %v2673
      %v2724 = vpack.c.b16 %v2678, %v2676
      %v2725 = vpack.c.b16 %v2679, %v2677
      %v2726 = vpack.c.b16 %v2682, %v2680
      %v2727 = vpack.c.b16 %v2683, %v2681
      %v2728 = vpack.c.b16 %v2686, %v2684
      %v2729 = vpack.c.b16 %v2687, %v2685
      %v2730 = vpack.c.b16 %v2690, %v2688
      %v2731 = vpack.c.b16 %v2691, %v2689
      %v2732 = vpack.c.b16 %v2694, %v2692
      %v2733 = vpack.c.b16 %v2695, %v2693
      %v2734 = vpack.c.b16 %v2698, %v2696
      %v2735 = vpack.c.b16 %v2699, %v2697
      %v2736 = vpack.c.b16 %v2702, %v2700
      %v2737 = vpack.c.b16 %v2703, %v2701
      %v2738 = vpack.c.b16 %v2706, %v2704
      %v2739 = vpack.c.b16 %v2707, %v2705
      %2772 = vmatprep.subr.bf16.mxu0 %v2709
      %2773 = vmatpush1.bf16.msra.mxu0 %v2708
      %2774 = vmatprep.subr.bf16.mxu0 %v2711
      %2775 = vmatpush1.bf16.msra.mxu0 %v2710
      %2776 = vmatprep.subr.bf16.mxu0 %v2713
      %2777 = vmatpush1.bf16.msra.mxu0 %v2712
      %2778 = vmatprep.subr.bf16.mxu0 %v2715
      %2779 = vmatpush1.bf16.msra.mxu0 %v2714
      %2780 = vmatprep.subr.bf16.mxu0 %v2717
      %2781 = vmatpush1.bf16.msra.mxu0 %v2716
      %2782 = vmatprep.subr.bf16.mxu0 %v2719
      %2783 = vmatpush1.bf16.msra.mxu0 %v2718
      %2784 = vmatprep.subr.bf16.mxu0 %v2721
      %2785 = vmatpush1.bf16.msra.mxu0 %v2720
      %2786 = vmatprep.subr.bf16.mxu0 %v2723
      %2787 = vmatpush1.bf16.msra.mxu0 %v2722
      %2788 = vmatprep.subr.bf16.mxu0 %v2725
      %2789 = vmatpush1.bf16.msra.mxu0 %v2724
      %2790 = vmatprep.subr.bf16.mxu0 %v2727
      %2791 = vmatpush1.bf16.msra.mxu0 %v2726
      %2792 = vmatprep.subr.bf16.mxu0 %v2729
      %2793 = vmatpush1.bf16.msra.mxu0 %v2728
      %2794 = vmatprep.subr.bf16.mxu0 %v2731
      %2795 = vmatpush1.bf16.msra.mxu0 %v2730
      %2796 = vmatprep.subr.bf16.mxu0 %v2733
      %2797 = vmatpush1.bf16.msra.mxu0 %v2732
      %2798 = vmatprep.subr.bf16.mxu0 %v2735
      %2799 = vmatpush1.bf16.msra.mxu0 %v2734
      %2800 = vmatprep.subr.bf16.mxu0 %v2737
      %2801 = vmatpush1.bf16.msra.mxu0 %v2736
      %2802 = vmatprep.subr.bf16.mxu0 %v2739
      %2803 = vmatpush1.bf16.msra.mxu0 %v2738
      %2804 = vmatprep.mubr.bf16.mxu0 %v2279
      %2805 = vmatmul.mubr.bf16.gmra.mrb[0].mxu0 %v2276
      %v2806 = vpop.f32.mrb[0].mxu0
      %v2807 = vadd.f32 0.0, %v2806
      %v2808 = vpop.f32.mrb[0].mxu0
      %v2809 = vadd.f32 0.0, %v2808
      %v2810 = vpop.f32.mrb[0].mxu0
      %v2811 = vadd.f32 0.0, %v2810
      %v2812 = vpop.f32.mrb[0].mxu0
      %v2813 = vadd.f32 0.0, %v2812
      %2814 = vmatprep.mubr.bf16.mxu0 %v2285
      %2815 = vmatmul.mubr.bf16.gmra.mrb[0].mxu0 %v2282
      %v2816 = vpop.f32.mrb[0].mxu0
      %v2817 = vadd.f32 0.0, %v2816
      %v2818 = vpop.f32.mrb[0].mxu0
      %v2819 = vadd.f32 0.0, %v2818
      %v2820 = vpop.f32.mrb[0].mxu0
      %v2821 = vadd.f32 0.0, %v2820
      %v2822 = vpop.f32.mrb[0].mxu0
      %v2823 = vadd.f32 0.0, %v2822
      %2824 = vmatprep.mubr.bf16.mxu0 %v2291
      %2825 = vmatmul.mubr.bf16.gmra.mrb[0].mxu0 %v2288
      %v2826 = vpop.f32.mrb[0].mxu0
      %v2827 = vadd.f32 0.0, %v2826
      %v2828 = vpop.f32.mrb[0].mxu0
      %v2829 = vadd.f32 0.0, %v2828
      %v2830 = vpop.f32.mrb[0].mxu0
      %v2831 = vadd.f32 0.0, %v2830
      %v2832 = vpop.f32.mrb[0].mxu0
      %v2833 = vadd.f32 0.0, %v2832
      %2834 = vmatprep.mubr.bf16.mxu0 %v2297
      %2835 = vmatmul.mubr.bf16.gmra.mrb[0].mxu0 %v2294
      %v2836 = vpop.f32.mrb[0].mxu0
      %v2837 = vadd.f32 0.0, %v2836
      %v2838 = vpop.f32.mrb[0].mxu0
      %v2839 = vadd.f32 0.0, %v2838
      %v2840 = vpop.f32.mrb[0].mxu0
      %v2841 = vadd.f32 0.0, %v2840
      %v2842 = vpop.f32.mrb[0].mxu0
      %v2843 = vadd.f32 0.0, %v2842
      %2844 = vmatprep.mubr.bf16.mxu0 %v2303
      %2845 = vmatmul.mubr.bf16.gmra.mrb[0].mxu0 %v2300
      %v2846 = vpop.f32.mrb[0].mxu0
      %v2847 = vadd.f32 0.0, %v2846
      %v2848 = vpop.f32.mrb[0].mxu0
      %v2849 = vadd.f32 0.0, %v2848
      %v2850 = vpop.f32.mrb[0].mxu0
      %v2851 = vadd.f32 0.0, %v2850
      %v2852 = vpop.f32.mrb[0].mxu0
      %v2853 = vadd.f32 0.0, %v2852
      %2854 = vmatprep.mubr.bf16.mxu0 %v2309
      %2855 = vmatmul.mubr.bf16.gmra.mrb[0].mxu0 %v2306
      %v2856 = vpop.f32.mrb[0].mxu0
      %v2857 = vadd.f32 0.0, %v2856
      %v2858 = vpop.f32.mrb[0].mxu0
      %v2859 = vadd.f32 0.0, %v2858
      %v2860 = vpop.f32.mrb[0].mxu0
      %v2861 = vadd.f32 0.0, %v2860
      %v2862 = vpop.f32.mrb[0].mxu0
      %v2863 = vadd.f32 0.0, %v2862
      %2864 = vmatprep.mubr.bf16.mxu0 %v2315
      %2865 = vmatmul.mubr.bf16.gmra.mrb[0].mxu0 %v2312
      %v2866 = vpop.f32.mrb[0].mxu0
      %v2867 = vadd.f32 0.0, %v2866
      %v2868 = vpop.f32.mrb[0].mxu0
      %v2869 = vadd.f32 0.0, %v2868
      %v2870 = vpop.f32.mrb[0].mxu0
      %v2871 = vadd.f32 0.0, %v2870
      %v2872 = vpop.f32.mrb[0].mxu0
      %v2873 = vadd.f32 0.0, %v2872
      %2874 = vmatprep.mubr.bf16.mxu0 %v2321
      %2875 = vmatmul.mubr.bf16.gmra.mrb[0].mxu0 %v2318
      %v2876 = vpop.f32.mrb[0].mxu0
      %v2877 = vadd.f32 0.0, %v2876
      %v2878 = vpop.f32.mrb[0].mxu0
      %v2879 = vadd.f32 0.0, %v2878
      %v2880 = vpop.f32.mrb[0].mxu0
      %v2881 = vadd.f32 0.0, %v2880
      %v2882 = vpop.f32.mrb[0].mxu0
      %v2883 = vadd.f32 0.0, %v2882
      %2884 = vdwg.mxu0
      %v2885 = vadd.f32 %v2580, %v2807
      %v2886 = vadd.f32 %v2581, %v2809
      %v2887 = vadd.f32 %v2582, %v2811
      %v2888 = vadd.f32 %v2583, %v2813
      %v2889 = vadd.f32 %v2584, %v2817
      %v2890 = vadd.f32 %v2585, %v2819
      %v2891 = vadd.f32 %v2586, %v2821
      %v2892 = vadd.f32 %v2587, %v2823
      %v2893 = vadd.f32 %v2588, %v2827
      %v2894 = vadd.f32 %v2589, %v2829
      %v2895 = vadd.f32 %v2590, %v2831
      %v2896 = vadd.f32 %v2591, %v2833
      %v2897 = vadd.f32 %v2592, %v2837
      %v2898 = vadd.f32 %v2593, %v2839
      %v2899 = vadd.f32 %v2594, %v2841
      %v2900 = vadd.f32 %v2595, %v2843
      %v2901 = vadd.f32 %v2596, %v2847
      %v2902 = vadd.f32 %v2597, %v2849
      %v2903 = vadd.f32 %v2598, %v2851
      %v2904 = vadd.f32 %v2599, %v2853
      %v2905 = vadd.f32 %v2600, %v2857
      %v2906 = vadd.f32 %v2601, %v2859
      %v2907 = vadd.f32 %v2602, %v2861
      %v2908 = vadd.f32 %v2603, %v2863
      %v2909 = vadd.f32 %v2604, %v2867
      %v2910 = vadd.f32 %v2605, %v2869
      %v2911 = vadd.f32 %v2606, %v2871
      %v2912 = vadd.f32 %v2607, %v2873
      %v2913 = vadd.f32 %v2608, %v2877
      %v2914 = vadd.f32 %v2609, %v2879
      %v2915 = vadd.f32 %v2610, %v2881
      %v2916 = vadd.f32 %v2611, %v2883
      %2917 = vst [vmem:[%s2467] sm:$0xff] %v2885
      %2918 = vst [vmem:[%s2467 + $0x8] sm:$0xff] %v2886
      %2919 = vst [vmem:[%s2467 + $0x10] sm:$0xff] %v2887
      %2920 = vst [vmem:[%s2467 + $0x18] sm:$0xff] %v2888
      %2921 = vst [vmem:[%s2467 + $0x20] sm:$0xff] %v2889
      %2922 = vst [vmem:[%s2467 + $0x28] sm:$0xff] %v2890
      %2923 = vst [vmem:[%s2467 + $0x30] sm:$0xff] %v2891
      %2924 = vst [vmem:[%s2467 + $0x38] sm:$0xff] %v2892
      %2925 = vst [vmem:[%s2467 + $0x40] sm:$0xff] %v2893
      %2926 = vst [vmem:[%s2467 + $0x48] sm:$0xff] %v2894
      %2927 = vst [vmem:[%s2467 + $0x50] sm:$0xff] %v2895
      %2928 = vst [vmem:[%s2467 + $0x58] sm:$0xff] %v2896
      %2929 = vst [vmem:[%s2467 + $0x60] sm:$0xff] %v2897
      %2930 = vst [vmem:[%s2467 + $0x68] sm:$0xff] %v2898
      %2931 = vst [vmem:[%s2467 + $0x70] sm:$0xff] %v2899
      %2932 = vst [vmem:[%s2467 + $0x78] sm:$0xff] %v2900
      %2933 = vst [vmem:[%s2467 + $0x80] sm:$0xff] %v2901
      %2934 = vst [vmem:[%s2467 + $0x88] sm:$0xff] %v2902
      %2935 = vst [vmem:[%s2467 + $0x90] sm:$0xff] %v2903
      %2936 = vst [vmem:[%s2467 + $0x98] sm:$0xff] %v2904
      %2937 = vst [vmem:[%s2467 + $0xa0] sm:$0xff] %v2905
      %2938 = vst [vmem:[%s2467 + $0xa8] sm:$0xff] %v2906
      %2939 = vst [vmem:[%s2467 + $0xb0] sm:$0xff] %v2907
      %2940 = vst [vmem:[%s2467 + $0xb8] sm:$0xff] %v2908
      %2941 = vst [vmem:[%s2467 + $0xc0] sm:$0xff] %v2909
      %2942 = vst [vmem:[%s2467 + $0xc8] sm:$0xff] %v2910
      %2943 = vst [vmem:[%s2467 + $0xd0] sm:$0xff] %v2911
      %2944 = vst [vmem:[%s2467 + $0xd8] sm:$0xff] %v2912
      %2945 = vst [vmem:[%s2467 + $0xe0] sm:$0xff] %v2913
      %2946 = vst [vmem:[%s2467 + $0xe8] sm:$0xff] %v2914
      %2947 = vst [vmem:[%s2467 + $0xf0] sm:$0xff] %v2915
      %2948 = vst [vmem:[%s2467 + $0xf8] sm:$0xff] %v2916
      %2949 = vst.msk [vmem:[%s2089] sm:$0xff] %vm1449, %v2146
      %2950 = vst.msk [vmem:[%s2089 + $0x8] sm:$0xff] %vm1449, %v2147
      %2951 = vst.msk [vmem:[%s2089 + $0x10] sm:$0xff] %vm1449, %v2148
      %2952 = vst.msk [vmem:[%s2089 + $0x18] sm:$0xff] %vm1449, %v2149
      %2953 = vst.msk [vmem:[%s2089 + $0x20] sm:$0xff] %vm1449, %v2150
      %2954 = vst.msk [vmem:[%s2089 + $0x28] sm:$0xff] %vm1449, %v2151
      %2955 = vst.msk [vmem:[%s2089 + $0x30] sm:$0xff] %vm1449, %v2152
      %2956 = vst.msk [vmem:[%s2089 + $0x38] sm:$0xff] %vm1449, %v2153
      %2957 = vst.msk [vmem:[%s2089 + $0x40] sm:$0xff] %vm1449, %v2154
      %2958 = vst.msk [vmem:[%s2089 + $0x48] sm:$0xff] %vm1449, %v2155
      %2959 = vst.msk [vmem:[%s2089 + $0x50] sm:$0xff] %vm1449, %v2156
      %2960 = vst.msk [vmem:[%s2089 + $0x58] sm:$0xff] %vm1449, %v2157
      %2961 = vst.msk [vmem:[%s2089 + $0x60] sm:$0xff] %vm1449, %v2158
      %2962 = vst.msk [vmem:[%s2089 + $0x68] sm:$0xff] %vm1449, %v2159
      %2963 = vst.msk [vmem:[%s2089 + $0x70] sm:$0xff] %vm1449, %v2160
      %2964 = vst.msk [vmem:[%s2089 + $0x78] sm:$0xff] %vm1449, %v2161
      // Predicated region
      $region69: #{gatnet_forward.4} parent=63 // pred_check
        %p2965 = pneg %p538
      $region70: #{gatnet_forward.4} parent=63 // pred_check_branch
        %2967 = sbr.rel (%p2965) target = $region72
      $region71: #{gatnet_forward.4} parent=63 // pred_region
        %v2968 = vld [vmem:[#allocation4] sm:$0xff]
        %v2969 = vld [vmem:[#allocation4 + $0x8] sm:$0xff]
        %v2970 = vld [vmem:[#allocation4 + $0x10] sm:$0xff]
        %v2971 = vld [vmem:[#allocation4 + $0x18] sm:$0xff]
        %v2972 = vld [vmem:[#allocation4 + $0x20] sm:$0xff]
        %v2973 = vld [vmem:[#allocation4 + $0x28] sm:$0xff]
        %v2974 = vld [vmem:[#allocation4 + $0x30] sm:$0xff]
        %v2975 = vld [vmem:[#allocation4 + $0x38] sm:$0xff]
        %v2976 = vld [vmem:[#allocation4 + $0x40] sm:$0xff]
        %v2977 = vld [vmem:[#allocation4 + $0x48] sm:$0xff]
        %v2978 = vld [vmem:[#allocation4 + $0x50] sm:$0xff]
        %v2979 = vld [vmem:[#allocation4 + $0x58] sm:$0xff]
        %v2980 = vld [vmem:[#allocation4 + $0x60] sm:$0xff]
        %v2981 = vld [vmem:[#allocation4 + $0x68] sm:$0xff]
        %v2982 = vld [vmem:[#allocation4 + $0x70] sm:$0xff]
        %v2983 = vld [vmem:[#allocation4 + $0x78] sm:$0xff]
        %v2984 = vld [vmem:[#allocation4 + $0x80] sm:$0xff]
        %v2985 = vld [vmem:[#allocation4 + $0x88] sm:$0xff]
        %v2986 = vld [vmem:[#allocation4 + $0x90] sm:$0xff]
        %v2987 = vld [vmem:[#allocation4 + $0x98] sm:$0xff]
        %v2988 = vld [vmem:[#allocation4 + $0xa0] sm:$0xff]
        %v2989 = vld [vmem:[#allocation4 + $0xa8] sm:$0xff]
        %v2990 = vld [vmem:[#allocation4 + $0xb0] sm:$0xff]
        %v2991 = vld [vmem:[#allocation4 + $0xb8] sm:$0xff]
        %v2992 = vld [vmem:[#allocation4 + $0xc0] sm:$0xff]
        %v2993 = vld [vmem:[#allocation4 + $0xc8] sm:$0xff]
        %v2994 = vld [vmem:[#allocation4 + $0xd0] sm:$0xff]
        %v2995 = vld [vmem:[#allocation4 + $0xd8] sm:$0xff]
        %v2996 = vld [vmem:[#allocation4 + $0xe0] sm:$0xff]
        %v2997 = vld [vmem:[#allocation4 + $0xe8] sm:$0xff]
        %v2998 = vld [vmem:[#allocation4 + $0xf0] sm:$0xff]
        %v2999 = vld [vmem:[#allocation4 + $0xf8] sm:$0xff]
        %v3000 = vld [vmem:[#allocation3] sm:$0xff]
        %v3001 = vld [vmem:[#allocation3 + $0x8] sm:$0xff]
        %v3002 = vld [vmem:[#allocation3 + $0x10] sm:$0xff]
        %v3003 = vld [vmem:[#allocation3 + $0x18] sm:$0xff]
        %v3004 = vld [vmem:[#allocation3 + $0x20] sm:$0xff]
        %v3005 = vld [vmem:[#allocation3 + $0x28] sm:$0xff]
        %v3006 = vld [vmem:[#allocation3 + $0x30] sm:$0xff]
        %v3007 = vld [vmem:[#allocation3 + $0x38] sm:$0xff]
        %v3008 = vld [vmem:[#allocation3 + $0x40] sm:$0xff]
        %v3009 = vld [vmem:[#allocation3 + $0x48] sm:$0xff]
        %v3010 = vld [vmem:[#allocation3 + $0x50] sm:$0xff]
        %v3011 = vld [vmem:[#allocation3 + $0x58] sm:$0xff]
        %v3012 = vld [vmem:[#allocation3 + $0x60] sm:$0xff]
        %v3013 = vld [vmem:[#allocation3 + $0x68] sm:$0xff]
        %v3014 = vld [vmem:[#allocation3 + $0x70] sm:$0xff]
        %v3015 = vld [vmem:[#allocation3 + $0x78] sm:$0xff]
        %v3016 = vrcp.pop %v3000
        %v3017 = vrcp.pop %v3001
        %v3018 = vrcp.pop %v3002
        %v3019 = vrcp.pop %v3003
        %v3020 = vrcp.pop %v3004
        %v3021 = vrcp.pop %v3005
        %v3022 = vrcp.pop %v3006
        %v3023 = vrcp.pop %v3007
        %v3024 = vrcp.pop %v3008
        %v3025 = vrcp.pop %v3009
        %v3026 = vrcp.pop %v3010
        %v3027 = vrcp.pop %v3011
        %v3028 = vrcp.pop %v3012
        %v3029 = vrcp.pop %v3013
        %v3030 = vrcp.pop %v3014
        %v3031 = vrcp.pop %v3015
        %3033 = vset.pattern.permute.xlu0 0
        %3034 = vperm.xlu0 %3033, %v3016
        %v3035 = vpop.permute.xlu0 %3034
        %3038 = vset.pattern.permute.xlu0 0
        %3039 = vperm.xlu0 %3038, %v3017
        %v3040 = vpop.permute.xlu0 %3039
        %3043 = vset.pattern.permute.xlu0 0
        %3044 = vperm.xlu0 %3043, %v3018
        %v3045 = vpop.permute.xlu0 %3044
        %3048 = vset.pattern.permute.xlu0 0
        %3049 = vperm.xlu0 %3048, %v3019
        %v3050 = vpop.permute.xlu0 %3049
        %3053 = vset.pattern.permute.xlu0 0
        %3054 = vperm.xlu0 %3053, %v3020
        %v3055 = vpop.permute.xlu0 %3054
        %3058 = vset.pattern.permute.xlu0 0
        %3059 = vperm.xlu0 %3058, %v3021
        %v3060 = vpop.permute.xlu0 %3059
        %3063 = vset.pattern.permute.xlu0 0
        %3064 = vperm.xlu0 %3063, %v3022
        %v3065 = vpop.permute.xlu0 %3064
        %3068 = vset.pattern.permute.xlu0 0
        %3069 = vperm.xlu0 %3068, %v3023
        %v3070 = vpop.permute.xlu0 %3069
        %3073 = vset.pattern.permute.xlu0 0
        %3074 = vperm.xlu0 %3073, %v3024
        %v3075 = vpop.permute.xlu0 %3074
        %3078 = vset.pattern.permute.xlu0 0
        %3079 = vperm.xlu0 %3078, %v3025
        %v3080 = vpop.permute.xlu0 %3079
        %3083 = vset.pattern.permute.xlu0 0
        %3084 = vperm.xlu0 %3083, %v3026
        %v3085 = vpop.permute.xlu0 %3084
        %3088 = vset.pattern.permute.xlu0 0
        %3089 = vperm.xlu0 %3088, %v3027
        %v3090 = vpop.permute.xlu0 %3089
        %3093 = vset.pattern.permute.xlu0 0
        %3094 = vperm.xlu0 %3093, %v3028
        %v3095 = vpop.permute.xlu0 %3094
        %3098 = vset.pattern.permute.xlu0 0
        %3099 = vperm.xlu0 %3098, %v3029
        %v3100 = vpop.permute.xlu0 %3099
        %3103 = vset.pattern.permute.xlu0 0
        %3104 = vperm.xlu0 %3103, %v3030
        %v3105 = vpop.permute.xlu0 %3104
        %3108 = vset.pattern.permute.xlu0 0
        %3109 = vperm.xlu0 %3108, %v3031
        %v3110 = vpop.permute.xlu0 %3109
        %v3112 = vmul.f32 %v2968, %v3035
        %v3113 = vmul.f32 %v2969, %v3035
        %v3114 = vmul.f32 %v2970, %v3040
        %v3115 = vmul.f32 %v2971, %v3040
        %v3116 = vmul.f32 %v2972, %v3045
        %v3117 = vmul.f32 %v2973, %v3045
        %v3118 = vmul.f32 %v2974, %v3050
        %v3119 = vmul.f32 %v2975, %v3050
        %v3120 = vmul.f32 %v2976, %v3055
        %v3121 = vmul.f32 %v2977, %v3055
        %v3122 = vmul.f32 %v2978, %v3060
        %v3123 = vmul.f32 %v2979, %v3060
        %v3124 = vmul.f32 %v2980, %v3065
        %v3125 = vmul.f32 %v2981, %v3065
        %v3126 = vmul.f32 %v2982, %v3070
        %v3127 = vmul.f32 %v2983, %v3070
        %v3128 = vmul.f32 %v2984, %v3075
        %v3129 = vmul.f32 %v2985, %v3075
        %v3130 = vmul.f32 %v2986, %v3080
        %v3131 = vmul.f32 %v2987, %v3080
        %v3132 = vmul.f32 %v2988, %v3085
        %v3133 = vmul.f32 %v2989, %v3085
        %v3134 = vmul.f32 %v2990, %v3090
        %v3135 = vmul.f32 %v2991, %v3090
        %v3136 = vmul.f32 %v2992, %v3095
        %v3137 = vmul.f32 %v2993, %v3095
        %v3138 = vmul.f32 %v2994, %v3100
        %v3139 = vmul.f32 %v2995, %v3100
        %v3140 = vmul.f32 %v2996, %v3105
        %v3141 = vmul.f32 %v2997, %v3105
        %v3142 = vmul.f32 %v2998, %v3110
        %v3143 = vmul.f32 %v2999, %v3110
        %v3144 = vld [vmem:[%s2467] sm:$0xff]
        %v3145 = vld [vmem:[%s2467 + $0x8] sm:$0xff]
        %v3146 = vld [vmem:[%s2467 + $0x10] sm:$0xff]
        %v3147 = vld [vmem:[%s2467 + $0x18] sm:$0xff]
        %v3148 = vld [vmem:[%s2467 + $0x20] sm:$0xff]
        %v3149 = vld [vmem:[%s2467 + $0x28] sm:$0xff]
        %v3150 = vld [vmem:[%s2467 + $0x30] sm:$0xff]
        %v3151 = vld [vmem:[%s2467 + $0x38] sm:$0xff]
        %v3152 = vld [vmem:[%s2467 + $0x40] sm:$0xff]
        %v3153 = vld [vmem:[%s2467 + $0x48] sm:$0xff]
        %v3154 = vld [vmem:[%s2467 + $0x50] sm:$0xff]
        %v3155 = vld [vmem:[%s2467 + $0x58] sm:$0xff]
        %v3156 = vld [vmem:[%s2467 + $0x60] sm:$0xff]
        %v3157 = vld [vmem:[%s2467 + $0x68] sm:$0xff]
        %v3158 = vld [vmem:[%s2467 + $0x70] sm:$0xff]
        %v3159 = vld [vmem:[%s2467 + $0x78] sm:$0xff]
        %v3160 = vld [vmem:[%s2467 + $0x80] sm:$0xff]
        %v3161 = vld [vmem:[%s2467 + $0x88] sm:$0xff]
        %v3162 = vld [vmem:[%s2467 + $0x90] sm:$0xff]
        %v3163 = vld [vmem:[%s2467 + $0x98] sm:$0xff]
        %v3164 = vld [vmem:[%s2467 + $0xa0] sm:$0xff]
        %v3165 = vld [vmem:[%s2467 + $0xa8] sm:$0xff]
        %v3166 = vld [vmem:[%s2467 + $0xb0] sm:$0xff]
        %v3167 = vld [vmem:[%s2467 + $0xb8] sm:$0xff]
        %v3168 = vld [vmem:[%s2467 + $0xc0] sm:$0xff]
        %v3169 = vld [vmem:[%s2467 + $0xc8] sm:$0xff]
        %v3170 = vld [vmem:[%s2467 + $0xd0] sm:$0xff]
        %v3171 = vld [vmem:[%s2467 + $0xd8] sm:$0xff]
        %v3172 = vld [vmem:[%s2467 + $0xe0] sm:$0xff]
        %v3173 = vld [vmem:[%s2467 + $0xe8] sm:$0xff]
        %v3174 = vld [vmem:[%s2467 + $0xf0] sm:$0xff]
        %v3175 = vld [vmem:[%s2467 + $0xf8] sm:$0xff]
        %v3176 = vld [vmem:[%s2322] sm:$0xff]
        %v3177 = vld [vmem:[%s2322 + $0x8] sm:$0xff]
        %v3178 = vld [vmem:[%s2322 + $0x10] sm:$0xff]
        %v3179 = vld [vmem:[%s2322 + $0x18] sm:$0xff]
        %v3180 = vld [vmem:[%s2322 + $0x20] sm:$0xff]
        %v3181 = vld [vmem:[%s2322 + $0x28] sm:$0xff]
        %v3182 = vld [vmem:[%s2322 + $0x30] sm:$0xff]
        %v3183 = vld [vmem:[%s2322 + $0x38] sm:$0xff]
        %v3184 = vld [vmem:[%s2322 + $0x40] sm:$0xff]
        %v3185 = vld [vmem:[%s2322 + $0x48] sm:$0xff]
        %v3186 = vld [vmem:[%s2322 + $0x50] sm:$0xff]
        %v3187 = vld [vmem:[%s2322 + $0x58] sm:$0xff]
        %v3188 = vld [vmem:[%s2322 + $0x60] sm:$0xff]
        %v3189 = vld [vmem:[%s2322 + $0x68] sm:$0xff]
        %v3190 = vld [vmem:[%s2322 + $0x70] sm:$0xff]
        %v3191 = vld [vmem:[%s2322 + $0x78] sm:$0xff]
        %v3192 = vrcp.pop %v3176
        %v3193 = vrcp.pop %v3177
        %v3194 = vrcp.pop %v3178
        %v3195 = vrcp.pop %v3179
        %v3196 = vrcp.pop %v3180
        %v3197 = vrcp.pop %v3181
        %v3198 = vrcp.pop %v3182
        %v3199 = vrcp.pop %v3183
        %v3200 = vrcp.pop %v3184
        %v3201 = vrcp.pop %v3185
        %v3202 = vrcp.pop %v3186
        %v3203 = vrcp.pop %v3187
        %v3204 = vrcp.pop %v3188
        %v3205 = vrcp.pop %v3189
        %v3206 = vrcp.pop %v3190
        %v3207 = vrcp.pop %v3191
        %3209 = vset.pattern.permute.xlu0 0
        %3210 = vperm.xlu0 %3209, %v3192
        %v3211 = vpop.permute.xlu0 %3210
        %3214 = vset.pattern.permute.xlu0 0
        %3215 = vperm.xlu0 %3214, %v3193
        %v3216 = vpop.permute.xlu0 %3215
        %3219 = vset.pattern.permute.xlu0 0
        %3220 = vperm.xlu0 %3219, %v3194
        %v3221 = vpop.permute.xlu0 %3220
        %3224 = vset.pattern.permute.xlu0 0
        %3225 = vperm.xlu0 %3224, %v3195
        %v3226 = vpop.permute.xlu0 %3225
        %3229 = vset.pattern.permute.xlu0 0
        %3230 = vperm.xlu0 %3229, %v3196
        %v3231 = vpop.permute.xlu0 %3230
        %3234 = vset.pattern.permute.xlu0 0
        %3235 = vperm.xlu0 %3234, %v3197
        %v3236 = vpop.permute.xlu0 %3235
        %3239 = vset.pattern.permute.xlu0 0
        %3240 = vperm.xlu0 %3239, %v3198
        %v3241 = vpop.permute.xlu0 %3240
        %3244 = vset.pattern.permute.xlu0 0
        %3245 = vperm.xlu0 %3244, %v3199
        %v3246 = vpop.permute.xlu0 %3245
        %3249 = vset.pattern.permute.xlu0 0
        %3250 = vperm.xlu0 %3249, %v3200
        %v3251 = vpop.permute.xlu0 %3250
        %3254 = vset.pattern.permute.xlu0 0
        %3255 = vperm.xlu0 %3254, %v3201
        %v3256 = vpop.permute.xlu0 %3255
        %3259 = vset.pattern.permute.xlu0 0
        %3260 = vperm.xlu0 %3259, %v3202
        %v3261 = vpop.permute.xlu0 %3260
        %3264 = vset.pattern.permute.xlu0 0
        %3265 = vperm.xlu0 %3264, %v3203
        %v3266 = vpop.permute.xlu0 %3265
        %3269 = vset.pattern.permute.xlu0 0
        %3270 = vperm.xlu0 %3269, %v3204
        %v3271 = vpop.permute.xlu0 %3270
        %3274 = vset.pattern.permute.xlu0 0
        %3275 = vperm.xlu0 %3274, %v3205
        %v3276 = vpop.permute.xlu0 %3275
        %3279 = vset.pattern.permute.xlu0 0
        %3280 = vperm.xlu0 %3279, %v3206
        %v3281 = vpop.permute.xlu0 %3280
        %3284 = vset.pattern.permute.xlu0 0
        %3285 = vperm.xlu0 %3284, %v3207
        %v3286 = vpop.permute.xlu0 %3285
        %v3288 = vmul.f32 %v3144, %v3211
        %v3289 = vmul.f32 %v3145, %v3211
        %v3290 = vmul.f32 %v3146, %v3216
        %v3291 = vmul.f32 %v3147, %v3216
        %v3292 = vmul.f32 %v3148, %v3221
        %v3293 = vmul.f32 %v3149, %v3221
        %v3294 = vmul.f32 %v3150, %v3226
        %v3295 = vmul.f32 %v3151, %v3226
        %v3296 = vmul.f32 %v3152, %v3231
        %v3297 = vmul.f32 %v3153, %v3231
        %v3298 = vmul.f32 %v3154, %v3236
        %v3299 = vmul.f32 %v3155, %v3236
        %v3300 = vmul.f32 %v3156, %v3241
        %v3301 = vmul.f32 %v3157, %v3241
        %v3302 = vmul.f32 %v3158, %v3246
        %v3303 = vmul.f32 %v3159, %v3246
        %v3304 = vmul.f32 %v3160, %v3251
        %v3305 = vmul.f32 %v3161, %v3251
        %v3306 = vmul.f32 %v3162, %v3256
        %v3307 = vmul.f32 %v3163, %v3256
        %v3308 = vmul.f32 %v3164, %v3261
        %v3309 = vmul.f32 %v3165, %v3261
        %v3310 = vmul.f32 %v3166, %v3266
        %v3311 = vmul.f32 %v3167, %v3266
        %v3312 = vmul.f32 %v3168, %v3271
        %v3313 = vmul.f32 %v3169, %v3271
        %v3314 = vmul.f32 %v3170, %v3276
        %v3315 = vmul.f32 %v3171, %v3276
        %v3316 = vmul.f32 %v3172, %v3281
        %v3317 = vmul.f32 %v3173, %v3281
        %v3318 = vmul.f32 %v3174, %v3286
        %v3319 = vmul.f32 %v3175, %v3286
        %v3320 = vld [vmem:[%s4] sm:$0xf]
        %v3322 = vlaneseq
        %v3323 = vshrl.u32 %v3322, 7
        %v3324 = vsub.s32 0, %v3323
        %v3325 = vrot.slane %v3320, %v3324
        %v3326 = vlaneseq
        %v3327 = vshrl.u32 %v3326, 7
        %v3328 = vsub.s32 1, %v3327
        %v3329 = vrot.slane %v3320, %v3328
        %v3330 = vlaneseq
        %v3331 = vshrl.u32 %v3330, 7
        %v3332 = vsub.s32 2, %v3331
        %v3333 = vrot.slane %v3320, %v3332
        %v3334 = vlaneseq
        %v3335 = vshrl.u32 %v3334, 7
        %v3336 = vsub.s32 3, %v3335
        %v3337 = vrot.slane %v3320, %v3336
        %v3342 = vadd.f32 %v3112, %v3325
        %v3343 = vadd.f32 %v3113, %v3329
        %v3344 = vadd.f32 %v3288, %v3333
        %v3345 = vadd.f32 %v3289, %v3337
        %v3346 = vadd.f32 %v3114, %v3325
        %v3347 = vadd.f32 %v3115, %v3329
        %v3348 = vadd.f32 %v3290, %v3333
        %v3349 = vadd.f32 %v3291, %v3337
        %v3350 = vadd.f32 %v3116, %v3325
        %v3351 = vadd.f32 %v3117, %v3329
        %v3352 = vadd.f32 %v3292, %v3333
        %v3353 = vadd.f32 %v3293, %v3337
        %v3354 = vadd.f32 %v3118, %v3325
        %v3355 = vadd.f32 %v3119, %v3329
        %v3356 = vadd.f32 %v3294, %v3333
        %v3357 = vadd.f32 %v3295, %v3337
        %v3358 = vadd.f32 %v3120, %v3325
        %v3359 = vadd.f32 %v3121, %v3329
        %v3360 = vadd.f32 %v3296, %v3333
        %v3361 = vadd.f32 %v3297, %v3337
        %v3362 = vadd.f32 %v3122, %v3325
        %v3363 = vadd.f32 %v3123, %v3329
        %v3364 = vadd.f32 %v3298, %v3333
        %v3365 = vadd.f32 %v3299, %v3337
        %v3366 = vadd.f32 %v3124, %v3325
        %v3367 = vadd.f32 %v3125, %v3329
        %v3368 = vadd.f32 %v3300, %v3333
        %v3369 = vadd.f32 %v3301, %v3337
        %v3370 = vadd.f32 %v3126, %v3325
        %v3371 = vadd.f32 %v3127, %v3329
        %v3372 = vadd.f32 %v3302, %v3333
        %v3373 = vadd.f32 %v3303, %v3337
        %v3374 = vadd.f32 %v3128, %v3325
        %v3375 = vadd.f32 %v3129, %v3329
        %v3376 = vadd.f32 %v3304, %v3333
        %v3377 = vadd.f32 %v3305, %v3337
        %v3378 = vadd.f32 %v3130, %v3325
        %v3379 = vadd.f32 %v3131, %v3329
        %v3380 = vadd.f32 %v3306, %v3333
        %v3381 = vadd.f32 %v3307, %v3337
        %v3382 = vadd.f32 %v3132, %v3325
        %v3383 = vadd.f32 %v3133, %v3329
        %v3384 = vadd.f32 %v3308, %v3333
        %v3385 = vadd.f32 %v3309, %v3337
        %v3386 = vadd.f32 %v3134, %v3325
        %v3387 = vadd.f32 %v3135, %v3329
        %v3388 = vadd.f32 %v3310, %v3333
        %v3389 = vadd.f32 %v3311, %v3337
        %v3390 = vadd.f32 %v3136, %v3325
        %v3391 = vadd.f32 %v3137, %v3329
        %v3392 = vadd.f32 %v3312, %v3333
        %v3393 = vadd.f32 %v3313, %v3337
        %v3394 = vadd.f32 %v3138, %v3325
        %v3395 = vadd.f32 %v3139, %v3329
        %v3396 = vadd.f32 %v3314, %v3333
        %v3397 = vadd.f32 %v3315, %v3337
        %v3398 = vadd.f32 %v3140, %v3325
        %v3399 = vadd.f32 %v3141, %v3329
        %v3400 = vadd.f32 %v3316, %v3333
        %v3401 = vadd.f32 %v3317, %v3337
        %v3402 = vadd.f32 %v3142, %v3325
        %v3403 = vadd.f32 %v3143, %v3329
        %v3404 = vadd.f32 %v3318, %v3333
        %v3405 = vadd.f32 %v3319, %v3337
        %vm3406 = vcmp.gt.f32.partialorder %v3342, 0.0
        %vm3407 = vcmp.gt.f32.partialorder %v3343, 0.0
        %vm3408 = vcmp.gt.f32.partialorder %v3344, 0.0
        %vm3409 = vcmp.gt.f32.partialorder %v3345, 0.0
        %vm3410 = vcmp.gt.f32.partialorder %v3346, 0.0
        %vm3411 = vcmp.gt.f32.partialorder %v3347, 0.0
        %vm3412 = vcmp.gt.f32.partialorder %v3348, 0.0
        %vm3413 = vcmp.gt.f32.partialorder %v3349, 0.0
        %vm3414 = vcmp.gt.f32.partialorder %v3350, 0.0
        %vm3415 = vcmp.gt.f32.partialorder %v3351, 0.0
        %vm3416 = vcmp.gt.f32.partialorder %v3352, 0.0
        %vm3417 = vcmp.gt.f32.partialorder %v3353, 0.0
        %vm3418 = vcmp.gt.f32.partialorder %v3354, 0.0
        %vm3419 = vcmp.gt.f32.partialorder %v3355, 0.0
        %vm3420 = vcmp.gt.f32.partialorder %v3356, 0.0
        %vm3421 = vcmp.gt.f32.partialorder %v3357, 0.0
        %vm3422 = vcmp.gt.f32.partialorder %v3358, 0.0
        %vm3423 = vcmp.gt.f32.partialorder %v3359, 0.0
        %vm3424 = vcmp.gt.f32.partialorder %v3360, 0.0
        %vm3425 = vcmp.gt.f32.partialorder %v3361, 0.0
        %vm3426 = vcmp.gt.f32.partialorder %v3362, 0.0
        %vm3427 = vcmp.gt.f32.partialorder %v3363, 0.0
        %vm3428 = vcmp.gt.f32.partialorder %v3364, 0.0
        %vm3429 = vcmp.gt.f32.partialorder %v3365, 0.0
        %vm3430 = vcmp.gt.f32.partialorder %v3366, 0.0
        %vm3431 = vcmp.gt.f32.partialorder %v3367, 0.0
        %vm3432 = vcmp.gt.f32.partialorder %v3368, 0.0
        %vm3433 = vcmp.gt.f32.partialorder %v3369, 0.0
        %vm3434 = vcmp.gt.f32.partialorder %v3370, 0.0
        %vm3435 = vcmp.gt.f32.partialorder %v3371, 0.0
        %vm3436 = vcmp.gt.f32.partialorder %v3372, 0.0
        %vm3437 = vcmp.gt.f32.partialorder %v3373, 0.0
        %vm3438 = vcmp.gt.f32.partialorder %v3374, 0.0
        %vm3439 = vcmp.gt.f32.partialorder %v3375, 0.0
        %vm3440 = vcmp.gt.f32.partialorder %v3376, 0.0
        %vm3441 = vcmp.gt.f32.partialorder %v3377, 0.0
        %vm3442 = vcmp.gt.f32.partialorder %v3378, 0.0
        %vm3443 = vcmp.gt.f32.partialorder %v3379, 0.0
        %vm3444 = vcmp.gt.f32.partialorder %v3380, 0.0
        %vm3445 = vcmp.gt.f32.partialorder %v3381, 0.0
        %vm3446 = vcmp.gt.f32.partialorder %v3382, 0.0
        %vm3447 = vcmp.gt.f32.partialorder %v3383, 0.0
        %vm3448 = vcmp.gt.f32.partialorder %v3384, 0.0
        %vm3449 = vcmp.gt.f32.partialorder %v3385, 0.0
        %vm3450 = vcmp.gt.f32.partialorder %v3386, 0.0
        %vm3451 = vcmp.gt.f32.partialorder %v3387, 0.0
        %vm3452 = vcmp.gt.f32.partialorder %v3388, 0.0
        %vm3453 = vcmp.gt.f32.partialorder %v3389, 0.0
        %vm3454 = vcmp.gt.f32.partialorder %v3390, 0.0
        %vm3455 = vcmp.gt.f32.partialorder %v3391, 0.0
        %vm3456 = vcmp.gt.f32.partialorder %v3392, 0.0
        %vm3457 = vcmp.gt.f32.partialorder %v3393, 0.0
        %vm3458 = vcmp.gt.f32.partialorder %v3394, 0.0
        %vm3459 = vcmp.gt.f32.partialorder %v3395, 0.0
        %vm3460 = vcmp.gt.f32.partialorder %v3396, 0.0
        %vm3461 = vcmp.gt.f32.partialorder %v3397, 0.0
        %vm3462 = vcmp.gt.f32.partialorder %v3398, 0.0
        %vm3463 = vcmp.gt.f32.partialorder %v3399, 0.0
        %vm3464 = vcmp.gt.f32.partialorder %v3400, 0.0
        %vm3465 = vcmp.gt.f32.partialorder %v3401, 0.0
        %vm3466 = vcmp.gt.f32.partialorder %v3402, 0.0
        %vm3467 = vcmp.gt.f32.partialorder %v3403, 0.0
        %vm3468 = vcmp.gt.f32.partialorder %v3404, 0.0
        %vm3469 = vcmp.gt.f32.partialorder %v3405, 0.0
        %v3470 = vmul.f32 %v3342, 0.01
        %v3471 = vmul.f32 %v3343, 0.01
        %v3472 = vmul.f32 %v3344, 0.01
        %v3473 = vmul.f32 %v3345, 0.01
        %v3474 = vmul.f32 %v3346, 0.01
        %v3475 = vmul.f32 %v3347, 0.01
        %v3476 = vmul.f32 %v3348, 0.01
        %v3477 = vmul.f32 %v3349, 0.01
        %v3478 = vmul.f32 %v3350, 0.01
        %v3479 = vmul.f32 %v3351, 0.01
        %v3480 = vmul.f32 %v3352, 0.01
        %v3481 = vmul.f32 %v3353, 0.01
        %v3482 = vmul.f32 %v3354, 0.01
        %v3483 = vmul.f32 %v3355, 0.01
        %v3484 = vmul.f32 %v3356, 0.01
        %v3485 = vmul.f32 %v3357, 0.01
        %v3486 = vmul.f32 %v3358, 0.01
        %v3487 = vmul.f32 %v3359, 0.01
        %v3488 = vmul.f32 %v3360, 0.01
        %v3489 = vmul.f32 %v3361, 0.01
        %v3490 = vmul.f32 %v3362, 0.01
        %v3491 = vmul.f32 %v3363, 0.01
        %v3492 = vmul.f32 %v3364, 0.01
        %v3493 = vmul.f32 %v3365, 0.01
        %v3494 = vmul.f32 %v3366, 0.01
        %v3495 = vmul.f32 %v3367, 0.01
        %v3496 = vmul.f32 %v3368, 0.01
        %v3497 = vmul.f32 %v3369, 0.01
        %v3498 = vmul.f32 %v3370, 0.01
        %v3499 = vmul.f32 %v3371, 0.01
        %v3500 = vmul.f32 %v3372, 0.01
        %v3501 = vmul.f32 %v3373, 0.01
        %v3502 = vmul.f32 %v3374, 0.01
        %v3503 = vmul.f32 %v3375, 0.01
        %v3504 = vmul.f32 %v3376, 0.01
        %v3505 = vmul.f32 %v3377, 0.01
        %v3506 = vmul.f32 %v3378, 0.01
        %v3507 = vmul.f32 %v3379, 0.01
        %v3508 = vmul.f32 %v3380, 0.01
        %v3509 = vmul.f32 %v3381, 0.01
        %v3510 = vmul.f32 %v3382, 0.01
        %v3511 = vmul.f32 %v3383, 0.01
        %v3512 = vmul.f32 %v3384, 0.01
        %v3513 = vmul.f32 %v3385, 0.01
        %v3514 = vmul.f32 %v3386, 0.01
        %v3515 = vmul.f32 %v3387, 0.01
        %v3516 = vmul.f32 %v3388, 0.01
        %v3517 = vmul.f32 %v3389, 0.01
        %v3518 = vmul.f32 %v3390, 0.01
        %v3519 = vmul.f32 %v3391, 0.01
        %v3520 = vmul.f32 %v3392, 0.01
        %v3521 = vmul.f32 %v3393, 0.01
        %v3522 = vmul.f32 %v3394, 0.01
        %v3523 = vmul.f32 %v3395, 0.01
        %v3524 = vmul.f32 %v3396, 0.01
        %v3525 = vmul.f32 %v3397, 0.01
        %v3526 = vmul.f32 %v3398, 0.01
        %v3527 = vmul.f32 %v3399, 0.01
        %v3528 = vmul.f32 %v3400, 0.01
        %v3529 = vmul.f32 %v3401, 0.01
        %v3530 = vmul.f32 %v3402, 0.01
        %v3531 = vmul.f32 %v3403, 0.01
        %v3532 = vmul.f32 %v3404, 0.01
        %v3533 = vmul.f32 %v3405, 0.01
        %v3534 = vsel %vm3406, %v3342, %v3470
        %v3535 = vsel %vm3407, %v3343, %v3471
        %v3536 = vsel %vm3408, %v3344, %v3472
        %v3537 = vsel %vm3409, %v3345, %v3473
        %v3538 = vsel %vm3410, %v3346, %v3474
        %v3539 = vsel %vm3411, %v3347, %v3475
        %v3540 = vsel %vm3412, %v3348, %v3476
        %v3541 = vsel %vm3413, %v3349, %v3477
        %v3542 = vsel %vm3414, %v3350, %v3478
        %v3543 = vsel %vm3415, %v3351, %v3479
        %v3544 = vsel %vm3416, %v3352, %v3480
        %v3545 = vsel %vm3417, %v3353, %v3481
        %v3546 = vsel %vm3418, %v3354, %v3482
        %v3547 = vsel %vm3419, %v3355, %v3483
        %v3548 = vsel %vm3420, %v3356, %v3484
        %v3549 = vsel %vm3421, %v3357, %v3485
        %v3550 = vsel %vm3422, %v3358, %v3486
        %v3551 = vsel %vm3423, %v3359, %v3487
        %v3552 = vsel %vm3424, %v3360, %v3488
        %v3553 = vsel %vm3425, %v3361, %v3489
        %v3554 = vsel %vm3426, %v3362, %v3490
        %v3555 = vsel %vm3427, %v3363, %v3491
        %v3556 = vsel %vm3428, %v3364, %v3492
        %v3557 = vsel %vm3429, %v3365, %v3493
        %v3558 = vsel %vm3430, %v3366, %v3494
        %v3559 = vsel %vm3431, %v3367, %v3495
        %v3560 = vsel %vm3432, %v3368, %v3496
        %v3561 = vsel %vm3433, %v3369, %v3497
        %v3562 = vsel %vm3434, %v3370, %v3498
        %v3563 = vsel %vm3435, %v3371, %v3499
        %v3564 = vsel %vm3436, %v3372, %v3500
        %v3565 = vsel %vm3437, %v3373, %v3501
        %v3566 = vsel %vm3438, %v3374, %v3502
        %v3567 = vsel %vm3439, %v3375, %v3503
        %v3568 = vsel %vm3440, %v3376, %v3504
        %v3569 = vsel %vm3441, %v3377, %v3505
        %v3570 = vsel %vm3442, %v3378, %v3506
        %v3571 = vsel %vm3443, %v3379, %v3507
        %v3572 = vsel %vm3444, %v3380, %v3508
        %v3573 = vsel %vm3445, %v3381, %v3509
        %v3574 = vsel %vm3446, %v3382, %v3510
        %v3575 = vsel %vm3447, %v3383, %v3511
        %v3576 = vsel %vm3448, %v3384, %v3512
        %v3577 = vsel %vm3449, %v3385, %v3513
        %v3578 = vsel %vm3450, %v3386, %v3514
        %v3579 = vsel %vm3451, %v3387, %v3515
        %v3580 = vsel %vm3452, %v3388, %v3516
        %v3581 = vsel %vm3453, %v3389, %v3517
        %v3582 = vsel %vm3454, %v3390, %v3518
        %v3583 = vsel %vm3455, %v3391, %v3519
        %v3584 = vsel %vm3456, %v3392, %v3520
        %v3585 = vsel %vm3457, %v3393, %v3521
        %v3586 = vsel %vm3458, %v3394, %v3522
        %v3587 = vsel %vm3459, %v3395, %v3523
        %v3588 = vsel %vm3460, %v3396, %v3524
        %v3589 = vsel %vm3461, %v3397, %v3525
        %v3590 = vsel %vm3462, %v3398, %v3526
        %v3591 = vsel %vm3463, %v3399, %v3527
        %v3592 = vsel %vm3464, %v3400, %v3528
        %v3593 = vsel %vm3465, %v3401, %v3529
        %v3594 = vsel %vm3466, %v3402, %v3530
        %v3595 = vsel %vm3467, %v3403, %v3531
        %v3596 = vsel %vm3468, %v3404, %v3532
        %v3597 = vsel %vm3469, %v3405, %v3533
        %v3598 = vpack.c.bf16 %v3538, %v3534
        %v3599 = vpack.c.bf16 %v3539, %v3535
        %v3600 = vpack.c.bf16 %v3540, %v3536
        %v3601 = vpack.c.bf16 %v3541, %v3537
        %v3602 = vpack.c.bf16 %v3546, %v3542
        %v3603 = vpack.c.bf16 %v3547, %v3543
        %v3604 = vpack.c.bf16 %v3548, %v3544
        %v3605 = vpack.c.bf16 %v3549, %v3545
        %v3606 = vpack.c.bf16 %v3554, %v3550
        %v3607 = vpack.c.bf16 %v3555, %v3551
        %v3608 = vpack.c.bf16 %v3556, %v3552
        %v3609 = vpack.c.bf16 %v3557, %v3553
        %v3610 = vpack.c.bf16 %v3562, %v3558
        %v3611 = vpack.c.bf16 %v3563, %v3559
        %v3612 = vpack.c.bf16 %v3564, %v3560
        %v3613 = vpack.c.bf16 %v3565, %v3561
        %v3614 = vpack.c.bf16 %v3570, %v3566
        %v3615 = vpack.c.bf16 %v3571, %v3567
        %v3616 = vpack.c.bf16 %v3572, %v3568
        %v3617 = vpack.c.bf16 %v3573, %v3569
        %v3618 = vpack.c.bf16 %v3578, %v3574
        %v3619 = vpack.c.bf16 %v3579, %v3575
        %v3620 = vpack.c.bf16 %v3580, %v3576
        %v3621 = vpack.c.bf16 %v3581, %v3577
        %v3622 = vpack.c.bf16 %v3586, %v3582
        %v3623 = vpack.c.bf16 %v3587, %v3583
        %v3624 = vpack.c.bf16 %v3588, %v3584
        %v3625 = vpack.c.bf16 %v3589, %v3585
        %v3626 = vpack.c.bf16 %v3594, %v3590
        %v3627 = vpack.c.bf16 %v3595, %v3591
        %v3628 = vpack.c.bf16 %v3596, %v3592
        %v3629 = vpack.c.bf16 %v3597, %v3593
        %v3630 = vld [vmem:[%s5] sm:$0xff]
        %v3631 = vld [vmem:[%s5 + $0x8] sm:$0xff]
        %v3632 = vld [vmem:[%s5 + $0x10] sm:$0xff]
        %v3633 = vld [vmem:[%s5 + $0x18] sm:$0xff]
        %v3634 = vld [vmem:[%s5 + $0x20] sm:$0xff]
        %v3635 = vld [vmem:[%s5 + $0x28] sm:$0xff]
        %v3636 = vld [vmem:[%s5 + $0x30] sm:$0xff]
        %v3637 = vld [vmem:[%s5 + $0x38] sm:$0xff]
        %v3638 = vld [vmem:[%s5 + $0x40] sm:$0xff]
        %v3639 = vld [vmem:[%s5 + $0x48] sm:$0xff]
        %v3640 = vld [vmem:[%s5 + $0x50] sm:$0xff]
        %v3641 = vld [vmem:[%s5 + $0x58] sm:$0xff]
        %v3642 = vld [vmem:[%s5 + $0x60] sm:$0xff]
        %v3643 = vld [vmem:[%s5 + $0x68] sm:$0xff]
        %v3644 = vld [vmem:[%s5 + $0x70] sm:$0xff]
        %v3645 = vld [vmem:[%s5 + $0x78] sm:$0xff]
        %v3646 = vld [vmem:[%s5 + $0x80] sm:$0xff]
        %v3647 = vld [vmem:[%s5 + $0x88] sm:$0xff]
        %v3648 = vld [vmem:[%s5 + $0x90] sm:$0xff]
        %v3649 = vld [vmem:[%s5 + $0x98] sm:$0xff]
        %v3650 = vld [vmem:[%s5 + $0xa0] sm:$0xff]
        %v3651 = vld [vmem:[%s5 + $0xa8] sm:$0xff]
        %v3652 = vld [vmem:[%s5 + $0xb0] sm:$0xff]
        %v3653 = vld [vmem:[%s5 + $0xb8] sm:$0xff]
        %v3654 = vld [vmem:[%s5 + $0xc0] sm:$0xff]
        %v3655 = vld [vmem:[%s5 + $0xc8] sm:$0xff]
        %v3656 = vld [vmem:[%s5 + $0xd0] sm:$0xff]
        %v3657 = vld [vmem:[%s5 + $0xd8] sm:$0xff]
        %v3658 = vld [vmem:[%s5 + $0xe0] sm:$0xff]
        %v3659 = vld [vmem:[%s5 + $0xe8] sm:$0xff]
        %v3660 = vld [vmem:[%s5 + $0xf0] sm:$0xff]
        %v3661 = vld [vmem:[%s5 + $0xf8] sm:$0xff]
        %v3662 = vld [vmem:[%s5 + $0x100] sm:$0xff]
        %v3663 = vld [vmem:[%s5 + $0x108] sm:$0xff]
        %v3664 = vld [vmem:[%s5 + $0x110] sm:$0xff]
        %v3665 = vld [vmem:[%s5 + $0x118] sm:$0xff]
        %v3666 = vld [vmem:[%s5 + $0x120] sm:$0xff]
        %v3667 = vld [vmem:[%s5 + $0x128] sm:$0xff]
        %v3668 = vld [vmem:[%s5 + $0x130] sm:$0xff]
        %v3669 = vld [vmem:[%s5 + $0x138] sm:$0xff]
        %v3670 = vld [vmem:[%s5 + $0x140] sm:$0xff]
        %v3671 = vld [vmem:[%s5 + $0x148] sm:$0xff]
        %v3672 = vld [vmem:[%s5 + $0x150] sm:$0xff]
        %v3673 = vld [vmem:[%s5 + $0x158] sm:$0xff]
        %v3674 = vld [vmem:[%s5 + $0x160] sm:$0xff]
        %v3675 = vld [vmem:[%s5 + $0x168] sm:$0xff]
        %v3676 = vld [vmem:[%s5 + $0x170] sm:$0xff]
        %v3677 = vld [vmem:[%s5 + $0x178] sm:$0xff]
        %v3678 = vld [vmem:[%s5 + $0x180] sm:$0xff]
        %v3679 = vld [vmem:[%s5 + $0x188] sm:$0xff]
        %v3680 = vld [vmem:[%s5 + $0x190] sm:$0xff]
        %v3681 = vld [vmem:[%s5 + $0x198] sm:$0xff]
        %v3682 = vld [vmem:[%s5 + $0x1a0] sm:$0xff]
        %v3683 = vld [vmem:[%s5 + $0x1a8] sm:$0xff]
        %v3684 = vld [vmem:[%s5 + $0x1b0] sm:$0xff]
        %v3685 = vld [vmem:[%s5 + $0x1b8] sm:$0xff]
        %v3686 = vld [vmem:[%s5 + $0x1c0] sm:$0xff]
        %v3687 = vld [vmem:[%s5 + $0x1c8] sm:$0xff]
        %v3688 = vld [vmem:[%s5 + $0x1d0] sm:$0xff]
        %v3689 = vld [vmem:[%s5 + $0x1d8] sm:$0xff]
        %v3690 = vld [vmem:[%s5 + $0x1e0] sm:$0xff]
        %v3691 = vld [vmem:[%s5 + $0x1e8] sm:$0xff]
        %v3692 = vld [vmem:[%s5 + $0x1f0] sm:$0xff]
        %v3693 = vld [vmem:[%s5 + $0x1f8] sm:$0xff]
        %v3694 = vld [vmem:[%s6] sm:$0x3]
        %v3696 = vlaneseq
        %v3697 = vshrl.u32 %v3696, 7
        %v3698 = vsub.s32 0, %v3697
        %v3699 = vrot.slane %v3694, %v3698
        %v3700 = vlaneseq
        %v3701 = vshrl.u32 %v3700, 7
        %v3702 = vsub.s32 1, %v3701
        %v3703 = vrot.slane %v3694, %v3702
        %v3770 = vunpack.c.l.b16 %v3630
        %v3771 = vunpack.c.h.b16 %v3630
        %v3772 = vunpack.c.l.b16 %v3631
        %v3773 = vunpack.c.h.b16 %v3631
        %v3774 = vunpack.c.l.b16 %v3632
        %v3775 = vunpack.c.h.b16 %v3632
        %v3776 = vunpack.c.l.b16 %v3633
        %v3777 = vunpack.c.h.b16 %v3633
        %v3778 = vunpack.c.l.b16 %v3634
        %v3779 = vunpack.c.h.b16 %v3634
        %v3780 = vunpack.c.l.b16 %v3635
        %v3781 = vunpack.c.h.b16 %v3635
        %v3782 = vunpack.c.l.b16 %v3636
        %v3783 = vunpack.c.h.b16 %v3636
        %v3784 = vunpack.c.l.b16 %v3637
        %v3785 = vunpack.c.h.b16 %v3637
        %v3786 = vunpack.c.l.b16 %v3638
        %v3787 = vunpack.c.h.b16 %v3638
        %v3788 = vunpack.c.l.b16 %v3639
        %v3789 = vunpack.c.h.b16 %v3639
        %v3790 = vunpack.c.l.b16 %v3640
        %v3791 = vunpack.c.h.b16 %v3640
        %v3792 = vunpack.c.l.b16 %v3641
        %v3793 = vunpack.c.h.b16 %v3641
        %v3794 = vunpack.c.l.b16 %v3642
        %v3795 = vunpack.c.h.b16 %v3642
        %v3796 = vunpack.c.l.b16 %v3643
        %v3797 = vunpack.c.h.b16 %v3643
        %v3798 = vunpack.c.l.b16 %v3644
        %v3799 = vunpack.c.h.b16 %v3644
        %v3800 = vunpack.c.l.b16 %v3645
        %v3801 = vunpack.c.h.b16 %v3645
        %v3802 = vunpack.c.l.b16 %v3646
        %v3803 = vunpack.c.h.b16 %v3646
        %v3804 = vunpack.c.l.b16 %v3647
        %v3805 = vunpack.c.h.b16 %v3647
        %v3806 = vunpack.c.l.b16 %v3648
        %v3807 = vunpack.c.h.b16 %v3648
        %v3808 = vunpack.c.l.b16 %v3649
        %v3809 = vunpack.c.h.b16 %v3649
        %v3810 = vunpack.c.l.b16 %v3650
        %v3811 = vunpack.c.h.b16 %v3650
        %v3812 = vunpack.c.l.b16 %v3651
        %v3813 = vunpack.c.h.b16 %v3651
        %v3814 = vunpack.c.l.b16 %v3652
        %v3815 = vunpack.c.h.b16 %v3652
        %v3816 = vunpack.c.l.b16 %v3653
        %v3817 = vunpack.c.h.b16 %v3653
        %v3818 = vunpack.c.l.b16 %v3654
        %v3819 = vunpack.c.h.b16 %v3654
        %v3820 = vunpack.c.l.b16 %v3655
        %v3821 = vunpack.c.h.b16 %v3655
        %v3822 = vunpack.c.l.b16 %v3656
        %v3823 = vunpack.c.h.b16 %v3656
        %v3824 = vunpack.c.l.b16 %v3657
        %v3825 = vunpack.c.h.b16 %v3657
        %v3826 = vunpack.c.l.b16 %v3658
        %v3827 = vunpack.c.h.b16 %v3658
        %v3828 = vunpack.c.l.b16 %v3659
        %v3829 = vunpack.c.h.b16 %v3659
        %v3830 = vunpack.c.l.b16 %v3660
        %v3831 = vunpack.c.h.b16 %v3660
        %v3832 = vunpack.c.l.b16 %v3661
        %v3833 = vunpack.c.h.b16 %v3661
        %v3834 = vunpack.c.l.b16 %v3662
        %v3835 = vunpack.c.h.b16 %v3662
        %v3836 = vunpack.c.l.b16 %v3663
        %v3837 = vunpack.c.h.b16 %v3663
        %v3838 = vunpack.c.l.b16 %v3664
        %v3839 = vunpack.c.h.b16 %v3664
        %v3840 = vunpack.c.l.b16 %v3665
        %v3841 = vunpack.c.h.b16 %v3665
        %v3842 = vunpack.c.l.b16 %v3666
        %v3843 = vunpack.c.h.b16 %v3666
        %v3844 = vunpack.c.l.b16 %v3667
        %v3845 = vunpack.c.h.b16 %v3667
        %v3846 = vunpack.c.l.b16 %v3668
        %v3847 = vunpack.c.h.b16 %v3668
        %v3848 = vunpack.c.l.b16 %v3669
        %v3849 = vunpack.c.h.b16 %v3669
        %v3850 = vunpack.c.l.b16 %v3670
        %v3851 = vunpack.c.h.b16 %v3670
        %v3852 = vunpack.c.l.b16 %v3671
        %v3853 = vunpack.c.h.b16 %v3671
        %v3854 = vunpack.c.l.b16 %v3672
        %v3855 = vunpack.c.h.b16 %v3672
        %v3856 = vunpack.c.l.b16 %v3673
        %v3857 = vunpack.c.h.b16 %v3673
        %v3858 = vunpack.c.l.b16 %v3674
        %v3859 = vunpack.c.h.b16 %v3674
        %v3860 = vunpack.c.l.b16 %v3675
        %v3861 = vunpack.c.h.b16 %v3675
        %v3862 = vunpack.c.l.b16 %v3676
        %v3863 = vunpack.c.h.b16 %v3676
        %v3864 = vunpack.c.l.b16 %v3677
        %v3865 = vunpack.c.h.b16 %v3677
        %v3866 = vunpack.c.l.b16 %v3678
        %v3867 = vunpack.c.h.b16 %v3678
        %v3868 = vunpack.c.l.b16 %v3679
        %v3869 = vunpack.c.h.b16 %v3679
        %v3870 = vunpack.c.l.b16 %v3680
        %v3871 = vunpack.c.h.b16 %v3680
        %v3872 = vunpack.c.l.b16 %v3681
        %v3873 = vunpack.c.h.b16 %v3681
        %v3874 = vunpack.c.l.b16 %v3682
        %v3875 = vunpack.c.h.b16 %v3682
        %v3876 = vunpack.c.l.b16 %v3683
        %v3877 = vunpack.c.h.b16 %v3683
        %v3878 = vunpack.c.l.b16 %v3684
        %v3879 = vunpack.c.h.b16 %v3684
        %v3880 = vunpack.c.l.b16 %v3685
        %v3881 = vunpack.c.h.b16 %v3685
        %v3882 = vunpack.c.l.b16 %v3686
        %v3883 = vunpack.c.h.b16 %v3686
        %v3884 = vunpack.c.l.b16 %v3687
        %v3885 = vunpack.c.h.b16 %v3687
        %v3886 = vunpack.c.l.b16 %v3688
        %v3887 = vunpack.c.h.b16 %v3688
        %v3888 = vunpack.c.l.b16 %v3689
        %v3889 = vunpack.c.h.b16 %v3689
        %v3890 = vunpack.c.l.b16 %v3690
        %v3891 = vunpack.c.h.b16 %v3690
        %v3892 = vunpack.c.l.b16 %v3691
        %v3893 = vunpack.c.h.b16 %v3691
        %v3894 = vunpack.c.l.b16 %v3692
        %v3895 = vunpack.c.h.b16 %v3692
        %v3896 = vunpack.c.l.b16 %v3693
        %v3897 = vunpack.c.h.b16 %v3693
        %v3898 = vpack.c.b16 %v3772, %v3770
        %v3899 = vpack.c.b16 %v3773, %v3771
        %v3900 = vpack.c.b16 %v3776, %v3774
        %v3901 = vpack.c.b16 %v3777, %v3775
        %v3902 = vpack.c.b16 %v3780, %v3778
        %v3903 = vpack.c.b16 %v3781, %v3779
        %v3904 = vpack.c.b16 %v3784, %v3782
        %v3905 = vpack.c.b16 %v3785, %v3783
        %v3906 = vpack.c.b16 %v3788, %v3786
        %v3907 = vpack.c.b16 %v3789, %v3787
        %v3908 = vpack.c.b16 %v3792, %v3790
        %v3909 = vpack.c.b16 %v3793, %v3791
        %v3910 = vpack.c.b16 %v3796, %v3794
        %v3911 = vpack.c.b16 %v3797, %v3795
        %v3912 = vpack.c.b16 %v3800, %v3798
        %v3913 = vpack.c.b16 %v3801, %v3799
        %v3914 = vpack.c.b16 %v3804, %v3802
        %v3915 = vpack.c.b16 %v3805, %v3803
        %v3916 = vpack.c.b16 %v3808, %v3806
        %v3917 = vpack.c.b16 %v3809, %v3807
        %v3918 = vpack.c.b16 %v3812, %v3810
        %v3919 = vpack.c.b16 %v3813, %v3811
        %v3920 = vpack.c.b16 %v3816, %v3814
        %v3921 = vpack.c.b16 %v3817, %v3815
        %v3922 = vpack.c.b16 %v3820, %v3818
        %v3923 = vpack.c.b16 %v3821, %v3819
        %v3924 = vpack.c.b16 %v3824, %v3822
        %v3925 = vpack.c.b16 %v3825, %v3823
        %v3926 = vpack.c.b16 %v3828, %v3826
        %v3927 = vpack.c.b16 %v3829, %v3827
        %v3928 = vpack.c.b16 %v3832, %v3830
        %v3929 = vpack.c.b16 %v3833, %v3831
        %v3930 = vpack.c.b16 %v3836, %v3834
        %v3931 = vpack.c.b16 %v3837, %v3835
        %v3932 = vpack.c.b16 %v3840, %v3838
        %v3933 = vpack.c.b16 %v3841, %v3839
        %v3934 = vpack.c.b16 %v3844, %v3842
        %v3935 = vpack.c.b16 %v3845, %v3843
        %v3936 = vpack.c.b16 %v3848, %v3846
        %v3937 = vpack.c.b16 %v3849, %v3847
        %v3938 = vpack.c.b16 %v3852, %v3850
        %v3939 = vpack.c.b16 %v3853, %v3851
        %v3940 = vpack.c.b16 %v3856, %v3854
        %v3941 = vpack.c.b16 %v3857, %v3855
        %v3942 = vpack.c.b16 %v3860, %v3858
        %v3943 = vpack.c.b16 %v3861, %v3859
        %v3944 = vpack.c.b16 %v3864, %v3862
        %v3945 = vpack.c.b16 %v3865, %v3863
        %v3946 = vpack.c.b16 %v3868, %v3866
        %v3947 = vpack.c.b16 %v3869, %v3867
        %v3948 = vpack.c.b16 %v3872, %v3870
        %v3949 = vpack.c.b16 %v3873, %v3871
        %v3950 = vpack.c.b16 %v3876, %v3874
        %v3951 = vpack.c.b16 %v3877, %v3875
        %v3952 = vpack.c.b16 %v3880, %v3878
        %v3953 = vpack.c.b16 %v3881, %v3879
        %v3954 = vpack.c.b16 %v3884, %v3882
        %v3955 = vpack.c.b16 %v3885, %v3883
        %v3956 = vpack.c.b16 %v3888, %v3886
        %v3957 = vpack.c.b16 %v3889, %v3887
        %v3958 = vpack.c.b16 %v3892, %v3890
        %v3959 = vpack.c.b16 %v3893, %v3891
        %v3960 = vpack.c.b16 %v3896, %v3894
        %v3961 = vpack.c.b16 %v3897, %v3895
        %4026 = vmatprep.subr.bf16.mxu0 %v3899
        %4027 = vmatpush1.bf16.msra.mxu0 %v3898
        %4028 = vmatprep.subr.bf16.mxu0 %v3901
        %4029 = vmatpush1.bf16.msra.mxu0 %v3900
        %4030 = vmatprep.subr.bf16.mxu0 %v3903
        %4031 = vmatpush1.bf16.msra.mxu0 %v3902
        %4032 = vmatprep.subr.bf16.mxu0 %v3905
        %4033 = vmatpush1.bf16.msra.mxu0 %v3904
        %4034 = vmatprep.subr.bf16.mxu0 %v3907
        %4035 = vmatpush1.bf16.msra.mxu0 %v3906
        %4036 = vmatprep.subr.bf16.mxu0 %v3909
        %4037 = vmatpush1.bf16.msra.mxu0 %v3908
        %4038 = vmatprep.subr.bf16.mxu0 %v3911
        %4039 = vmatpush1.bf16.msra.mxu0 %v3910
        %4040 = vmatprep.subr.bf16.mxu0 %v3913
        %4041 = vmatpush1.bf16.msra.mxu0 %v3912
        %4042 = vmatprep.subr.bf16.mxu0 %v3915
        %4043 = vmatpush1.bf16.msra.mxu0 %v3914
        %4044 = vmatprep.subr.bf16.mxu0 %v3917
        %4045 = vmatpush1.bf16.msra.mxu0 %v3916
        %4046 = vmatprep.subr.bf16.mxu0 %v3919
        %4047 = vmatpush1.bf16.msra.mxu0 %v3918
        %4048 = vmatprep.subr.bf16.mxu0 %v3921
        %4049 = vmatpush1.bf16.msra.mxu0 %v3920
        %4050 = vmatprep.subr.bf16.mxu0 %v3923
        %4051 = vmatpush1.bf16.msra.mxu0 %v3922
        %4052 = vmatprep.subr.bf16.mxu0 %v3925
        %4053 = vmatpush1.bf16.msra.mxu0 %v3924
        %4054 = vmatprep.subr.bf16.mxu0 %v3927
        %4055 = vmatpush1.bf16.msra.mxu0 %v3926
        %4056 = vmatprep.subr.bf16.mxu0 %v3929
        %4057 = vmatpush1.bf16.msra.mxu0 %v3928
        %4058 = vmatprep.mubr.bf16.mxu0 %v3599
        %4059 = vmatmul.mubr.bf16.gmra.mrb[0].mxu0 %v3598
        %v4060 = vpop.f32.mrb[0].mxu0
        %v4061 = vadd.f32 %v3699, %v4060
        %v4062 = vpop.f32.mrb[0].mxu0
        %v4063 = vadd.f32 %v3703, %v4062
        %v4064 = vpop.f32.mrb[0].mxu0
        %v4065 = vadd.f32 %v3699, %v4064
        %v4066 = vpop.f32.mrb[0].mxu0
        %v4067 = vadd.f32 %v3703, %v4066
        %4068 = vmatprep.mubr.bf16.mxu0 %v3603
        %4069 = vmatmul.mubr.bf16.gmra.mrb[0].mxu0 %v3602
        %v4070 = vpop.f32.mrb[0].mxu0
        %v4071 = vadd.f32 %v3699, %v4070
        %v4072 = vpop.f32.mrb[0].mxu0
        %v4073 = vadd.f32 %v3703, %v4072
        %v4074 = vpop.f32.mrb[0].mxu0
        %v4075 = vadd.f32 %v3699, %v4074
        %v4076 = vpop.f32.mrb[0].mxu0
        %v4077 = vadd.f32 %v3703, %v4076
        %4078 = vmatprep.mubr.bf16.mxu0 %v3607
        %4079 = vmatmul.mubr.bf16.gmra.mrb[0].mxu0 %v3606
        %v4080 = vpop.f32.mrb[0].mxu0
        %v4081 = vadd.f32 %v3699, %v4080
        %v4082 = vpop.f32.mrb[0].mxu0
        %v4083 = vadd.f32 %v3703, %v4082
        %v4084 = vpop.f32.mrb[0].mxu0
        %v4085 = vadd.f32 %v3699, %v4084
        %v4086 = vpop.f32.mrb[0].mxu0
        %v4087 = vadd.f32 %v3703, %v4086
        %4088 = vmatprep.mubr.bf16.mxu0 %v3611
        %4089 = vmatmul.mubr.bf16.gmra.mrb[0].mxu0 %v3610
        %v4090 = vpop.f32.mrb[0].mxu0
        %v4091 = vadd.f32 %v3699, %v4090
        %v4092 = vpop.f32.mrb[0].mxu0
        %v4093 = vadd.f32 %v3703, %v4092
        %v4094 = vpop.f32.mrb[0].mxu0
        %v4095 = vadd.f32 %v3699, %v4094
        %v4096 = vpop.f32.mrb[0].mxu0
        %v4097 = vadd.f32 %v3703, %v4096
        %4098 = vmatprep.mubr.bf16.mxu0 %v3615
        %4099 = vmatmul.mubr.bf16.gmra.mrb[0].mxu0 %v3614
        %v4100 = vpop.f32.mrb[0].mxu0
        %v4101 = vadd.f32 %v3699, %v4100
        %v4102 = vpop.f32.mrb[0].mxu0
        %v4103 = vadd.f32 %v3703, %v4102
        %v4104 = vpop.f32.mrb[0].mxu0
        %v4105 = vadd.f32 %v3699, %v4104
        %v4106 = vpop.f32.mrb[0].mxu0
        %v4107 = vadd.f32 %v3703, %v4106
        %4108 = vmatprep.mubr.bf16.mxu0 %v3619
        %4109 = vmatmul.mubr.bf16.gmra.mrb[0].mxu0 %v3618
        %v4110 = vpop.f32.mrb[0].mxu0
        %v4111 = vadd.f32 %v3699, %v4110
        %v4112 = vpop.f32.mrb[0].mxu0
        %v4113 = vadd.f32 %v3703, %v4112
        %v4114 = vpop.f32.mrb[0].mxu0
        %v4115 = vadd.f32 %v3699, %v4114
        %v4116 = vpop.f32.mrb[0].mxu0
        %v4117 = vadd.f32 %v3703, %v4116
        %4118 = vmatprep.mubr.bf16.mxu0 %v3623
        %4119 = vmatmul.mubr.bf16.gmra.mrb[0].mxu0 %v3622
        %v4120 = vpop.f32.mrb[0].mxu0
        %v4121 = vadd.f32 %v3699, %v4120
        %v4122 = vpop.f32.mrb[0].mxu0
        %v4123 = vadd.f32 %v3703, %v4122
        %v4124 = vpop.f32.mrb[0].mxu0
        %v4125 = vadd.f32 %v3699, %v4124
        %v4126 = vpop.f32.mrb[0].mxu0
        %v4127 = vadd.f32 %v3703, %v4126
        %4128 = vmatprep.mubr.bf16.mxu0 %v3627
        %4129 = vmatmul.mubr.bf16.gmra.mrb[0].mxu0 %v3626
        %v4130 = vpop.f32.mrb[0].mxu0
        %v4131 = vadd.f32 %v3699, %v4130
        %v4132 = vpop.f32.mrb[0].mxu0
        %v4133 = vadd.f32 %v3703, %v4132
        %v4134 = vpop.f32.mrb[0].mxu0
        %v4135 = vadd.f32 %v3699, %v4134
        %v4136 = vpop.f32.mrb[0].mxu0
        %v4137 = vadd.f32 %v3703, %v4136
        %4138 = vdwg.mxu0
        %4139 = vmatprep.subr.bf16.mxu0 %v3931
        %4140 = vmatpush1.bf16.msra.mxu0 %v3930
        %4141 = vmatprep.subr.bf16.mxu0 %v3933
        %4142 = vmatpush1.bf16.msra.mxu0 %v3932
        %4143 = vmatprep.subr.bf16.mxu0 %v3935
        %4144 = vmatpush1.bf16.msra.mxu0 %v3934
        %4145 = vmatprep.subr.bf16.mxu0 %v3937
        %4146 = vmatpush1.bf16.msra.mxu0 %v3936
        %4147 = vmatprep.subr.bf16.mxu0 %v3939
        %4148 = vmatpush1.bf16.msra.mxu0 %v3938
        %4149 = vmatprep.subr.bf16.mxu0 %v3941
        %4150 = vmatpush1.bf16.msra.mxu0 %v3940
        %4151 = vmatprep.subr.bf16.mxu0 %v3943
        %4152 = vmatpush1.bf16.msra.mxu0 %v3942
        %4153 = vmatprep.subr.bf16.mxu0 %v3945
        %4154 = vmatpush1.bf16.msra.mxu0 %v3944
        %4155 = vmatprep.subr.bf16.mxu0 %v3947
        %4156 = vmatpush1.bf16.msra.mxu0 %v3946
        %4157 = vmatprep.subr.bf16.mxu0 %v3949
        %4158 = vmatpush1.bf16.msra.mxu0 %v3948
        %4159 = vmatprep.subr.bf16.mxu0 %v3951
        %4160 = vmatpush1.bf16.msra.mxu0 %v3950
        %4161 = vmatprep.subr.bf16.mxu0 %v3953
        %4162 = vmatpush1.bf16.msra.mxu0 %v3952
        %4163 = vmatprep.subr.bf16.mxu0 %v3955
        %4164 = vmatpush1.bf16.msra.mxu0 %v3954
        %4165 = vmatprep.subr.bf16.mxu0 %v3957
        %4166 = vmatpush1.bf16.msra.mxu0 %v3956
        %4167 = vmatprep.subr.bf16.mxu0 %v3959
        %4168 = vmatpush1.bf16.msra.mxu0 %v3958
        %4169 = vmatprep.subr.bf16.mxu0 %v3961
        %4170 = vmatpush1.bf16.msra.mxu0 %v3960
        %4171 = vmatprep.mubr.bf16.mxu0 %v3601
        %4172 = vmatmul.mubr.bf16.gmra.mrb[0].mxu0 %v3600
        %v4173 = vpop.f32.mrb[0].mxu0
        %v4174 = vadd.f32 %v4061, %v4173
        %v4175 = vpop.f32.mrb[0].mxu0
        %v4176 = vadd.f32 %v4063, %v4175
        %v4177 = vpop.f32.mrb[0].mxu0
        %v4178 = vadd.f32 %v4065, %v4177
        %v4179 = vpop.f32.mrb[0].mxu0
        %v4180 = vadd.f32 %v4067, %v4179
        %4181 = vmatprep.mubr.bf16.mxu0 %v3605
        %4182 = vmatmul.mubr.bf16.gmra.mrb[0].mxu0 %v3604
        %v4183 = vpop.f32.mrb[0].mxu0
        %v4184 = vadd.f32 %v4071, %v4183
        %v4185 = vpop.f32.mrb[0].mxu0
        %v4186 = vadd.f32 %v4073, %v4185
        %v4187 = vpop.f32.mrb[0].mxu0
        %v4188 = vadd.f32 %v4075, %v4187
        %v4189 = vpop.f32.mrb[0].mxu0
        %v4190 = vadd.f32 %v4077, %v4189
        %4191 = vmatprep.mubr.bf16.mxu0 %v3609
        %4192 = vmatmul.mubr.bf16.gmra.mrb[0].mxu0 %v3608
        %v4193 = vpop.f32.mrb[0].mxu0
        %v4194 = vadd.f32 %v4081, %v4193
        %v4195 = vpop.f32.mrb[0].mxu0
        %v4196 = vadd.f32 %v4083, %v4195
        %v4197 = vpop.f32.mrb[0].mxu0
        %v4198 = vadd.f32 %v4085, %v4197
        %v4199 = vpop.f32.mrb[0].mxu0
        %v4200 = vadd.f32 %v4087, %v4199
        %4201 = vmatprep.mubr.bf16.mxu0 %v3613
        %4202 = vmatmul.mubr.bf16.gmra.mrb[0].mxu0 %v3612
        %v4203 = vpop.f32.mrb[0].mxu0
        %v4204 = vadd.f32 %v4091, %v4203
        %v4205 = vpop.f32.mrb[0].mxu0
        %v4206 = vadd.f32 %v4093, %v4205
        %v4207 = vpop.f32.mrb[0].mxu0
        %v4208 = vadd.f32 %v4095, %v4207
        %v4209 = vpop.f32.mrb[0].mxu0
        %v4210 = vadd.f32 %v4097, %v4209
        %4211 = vmatprep.mubr.bf16.mxu0 %v3617
        %4212 = vmatmul.mubr.bf16.gmra.mrb[0].mxu0 %v3616
        %v4213 = vpop.f32.mrb[0].mxu0
        %v4214 = vadd.f32 %v4101, %v4213
        %v4215 = vpop.f32.mrb[0].mxu0
        %v4216 = vadd.f32 %v4103, %v4215
        %v4217 = vpop.f32.mrb[0].mxu0
        %v4218 = vadd.f32 %v4105, %v4217
        %v4219 = vpop.f32.mrb[0].mxu0
        %v4220 = vadd.f32 %v4107, %v4219
        %4221 = vmatprep.mubr.bf16.mxu0 %v3621
        %4222 = vmatmul.mubr.bf16.gmra.mrb[0].mxu0 %v3620
        %v4223 = vpop.f32.mrb[0].mxu0
        %v4224 = vadd.f32 %v4111, %v4223
        %v4225 = vpop.f32.mrb[0].mxu0
        %v4226 = vadd.f32 %v4113, %v4225
        %v4227 = vpop.f32.mrb[0].mxu0
        %v4228 = vadd.f32 %v4115, %v4227
        %v4229 = vpop.f32.mrb[0].mxu0
        %v4230 = vadd.f32 %v4117, %v4229
        %4231 = vmatprep.mubr.bf16.mxu0 %v3625
        %4232 = vmatmul.mubr.bf16.gmra.mrb[0].mxu0 %v3624
        %v4233 = vpop.f32.mrb[0].mxu0
        %v4234 = vadd.f32 %v4121, %v4233
        %v4235 = vpop.f32.mrb[0].mxu0
        %v4236 = vadd.f32 %v4123, %v4235
        %v4237 = vpop.f32.mrb[0].mxu0
        %v4238 = vadd.f32 %v4125, %v4237
        %v4239 = vpop.f32.mrb[0].mxu0
        %v4240 = vadd.f32 %v4127, %v4239
        %4241 = vmatprep.mubr.bf16.mxu0 %v3629
        %4242 = vmatmul.mubr.bf16.gmra.mrb[0].mxu0 %v3628
        %v4243 = vpop.f32.mrb[0].mxu0
        %v4244 = vadd.f32 %v4131, %v4243
        %v4245 = vpop.f32.mrb[0].mxu0
        %v4246 = vadd.f32 %v4133, %v4245
        %v4247 = vpop.f32.mrb[0].mxu0
        %v4248 = vadd.f32 %v4135, %v4247
        %v4249 = vpop.f32.mrb[0].mxu0
        %v4250 = vadd.f32 %v4137, %v4249
        %4251 = vdwg.mxu0
        %vm4252 = vcmp.gt.f32.partialorder %v4174, 0.0
        %vm4253 = vcmp.gt.f32.partialorder %v4176, 0.0
        %vm4254 = vcmp.gt.f32.partialorder %v4178, 0.0
        %vm4255 = vcmp.gt.f32.partialorder %v4180, 0.0
        %vm4256 = vcmp.gt.f32.partialorder %v4184, 0.0
        %vm4257 = vcmp.gt.f32.partialorder %v4186, 0.0
        %vm4258 = vcmp.gt.f32.partialorder %v4188, 0.0
        %vm4259 = vcmp.gt.f32.partialorder %v4190, 0.0
        %vm4260 = vcmp.gt.f32.partialorder %v4194, 0.0
        %vm4261 = vcmp.gt.f32.partialorder %v4196, 0.0
        %vm4262 = vcmp.gt.f32.partialorder %v4198, 0.0
        %vm4263 = vcmp.gt.f32.partialorder %v4200, 0.0
        %vm4264 = vcmp.gt.f32.partialorder %v4204, 0.0
        %vm4265 = vcmp.gt.f32.partialorder %v4206, 0.0
        %vm4266 = vcmp.gt.f32.partialorder %v4208, 0.0
        %vm4267 = vcmp.gt.f32.partialorder %v4210, 0.0
        %vm4268 = vcmp.gt.f32.partialorder %v4214, 0.0
        %vm4269 = vcmp.gt.f32.partialorder %v4216, 0.0
        %vm4270 = vcmp.gt.f32.partialorder %v4218, 0.0
        %vm4271 = vcmp.gt.f32.partialorder %v4220, 0.0
        %vm4272 = vcmp.gt.f32.partialorder %v4224, 0.0
        %vm4273 = vcmp.gt.f32.partialorder %v4226, 0.0
        %vm4274 = vcmp.gt.f32.partialorder %v4228, 0.0
        %vm4275 = vcmp.gt.f32.partialorder %v4230, 0.0
        %vm4276 = vcmp.gt.f32.partialorder %v4234, 0.0
        %vm4277 = vcmp.gt.f32.partialorder %v4236, 0.0
        %vm4278 = vcmp.gt.f32.partialorder %v4238, 0.0
        %vm4279 = vcmp.gt.f32.partialorder %v4240, 0.0
        %vm4280 = vcmp.gt.f32.partialorder %v4244, 0.0
        %vm4281 = vcmp.gt.f32.partialorder %v4246, 0.0
        %vm4282 = vcmp.gt.f32.partialorder %v4248, 0.0
        %vm4283 = vcmp.gt.f32.partialorder %v4250, 0.0
        %v4284 = vmul.f32 %v4174, 0.01
        %v4285 = vmul.f32 %v4176, 0.01
        %v4286 = vmul.f32 %v4178, 0.01
        %v4287 = vmul.f32 %v4180, 0.01
        %v4288 = vmul.f32 %v4184, 0.01
        %v4289 = vmul.f32 %v4186, 0.01
        %v4290 = vmul.f32 %v4188, 0.01
        %v4291 = vmul.f32 %v4190, 0.01
        %v4292 = vmul.f32 %v4194, 0.01
        %v4293 = vmul.f32 %v4196, 0.01
        %v4294 = vmul.f32 %v4198, 0.01
        %v4295 = vmul.f32 %v4200, 0.01
        %v4296 = vmul.f32 %v4204, 0.01
        %v4297 = vmul.f32 %v4206, 0.01
        %v4298 = vmul.f32 %v4208, 0.01
        %v4299 = vmul.f32 %v4210, 0.01
        %v4300 = vmul.f32 %v4214, 0.01
        %v4301 = vmul.f32 %v4216, 0.01
        %v4302 = vmul.f32 %v4218, 0.01
        %v4303 = vmul.f32 %v4220, 0.01
        %v4304 = vmul.f32 %v4224, 0.01
        %v4305 = vmul.f32 %v4226, 0.01
        %v4306 = vmul.f32 %v4228, 0.01
        %v4307 = vmul.f32 %v4230, 0.01
        %v4308 = vmul.f32 %v4234, 0.01
        %v4309 = vmul.f32 %v4236, 0.01
        %v4310 = vmul.f32 %v4238, 0.01
        %v4311 = vmul.f32 %v4240, 0.01
        %v4312 = vmul.f32 %v4244, 0.01
        %v4313 = vmul.f32 %v4246, 0.01
        %v4314 = vmul.f32 %v4248, 0.01
        %v4315 = vmul.f32 %v4250, 0.01
        %v4316 = vsel %vm4252, %v4174, %v4284
        %v4317 = vsel %vm4253, %v4176, %v4285
        %v4318 = vsel %vm4254, %v4178, %v4286
        %v4319 = vsel %vm4255, %v4180, %v4287
        %v4320 = vsel %vm4256, %v4184, %v4288
        %v4321 = vsel %vm4257, %v4186, %v4289
        %v4322 = vsel %vm4258, %v4188, %v4290
        %v4323 = vsel %vm4259, %v4190, %v4291
        %v4324 = vsel %vm4260, %v4194, %v4292
        %v4325 = vsel %vm4261, %v4196, %v4293
        %v4326 = vsel %vm4262, %v4198, %v4294
        %v4327 = vsel %vm4263, %v4200, %v4295
        %v4328 = vsel %vm4264, %v4204, %v4296
        %v4329 = vsel %vm4265, %v4206, %v4297
        %v4330 = vsel %vm4266, %v4208, %v4298
        %v4331 = vsel %vm4267, %v4210, %v4299
        %v4332 = vsel %vm4268, %v4214, %v4300
        %v4333 = vsel %vm4269, %v4216, %v4301
        %v4334 = vsel %vm4270, %v4218, %v4302
        %v4335 = vsel %vm4271, %v4220, %v4303
        %v4336 = vsel %vm4272, %v4224, %v4304
        %v4337 = vsel %vm4273, %v4226, %v4305
        %v4338 = vsel %vm4274, %v4228, %v4306
        %v4339 = vsel %vm4275, %v4230, %v4307
        %v4340 = vsel %vm4276, %v4234, %v4308
        %v4341 = vsel %vm4277, %v4236, %v4309
        %v4342 = vsel %vm4278, %v4238, %v4310
        %v4343 = vsel %vm4279, %v4240, %v4311
        %v4344 = vsel %vm4280, %v4244, %v4312
        %v4345 = vsel %vm4281, %v4246, %v4313
        %v4346 = vsel %vm4282, %v4248, %v4314
        %v4347 = vsel %vm4283, %v4250, %v4315
        %v4348 = vpack.c.bf16 %v4318, %v4316
        %v4349 = vpack.c.bf16 %v4319, %v4317
        %v4350 = vpack.c.bf16 %v4322, %v4320
        %v4351 = vpack.c.bf16 %v4323, %v4321
        %v4352 = vpack.c.bf16 %v4326, %v4324
        %v4353 = vpack.c.bf16 %v4327, %v4325
        %v4354 = vpack.c.bf16 %v4330, %v4328
        %v4355 = vpack.c.bf16 %v4331, %v4329
        %v4356 = vpack.c.bf16 %v4334, %v4332
        %v4357 = vpack.c.bf16 %v4335, %v4333
        %v4358 = vpack.c.bf16 %v4338, %v4336
        %v4359 = vpack.c.bf16 %v4339, %v4337
        %v4360 = vpack.c.bf16 %v4342, %v4340
        %v4361 = vpack.c.bf16 %v4343, %v4341
        %v4362 = vpack.c.bf16 %v4346, %v4344
        %v4363 = vpack.c.bf16 %v4347, %v4345
        %v4364 = vld [vmem:[%s7] sm:$0xf]
        %v4365 = vld [vmem:[%s7 + $0x4] sm:$0xf]
        %v4366 = vld [vmem:[%s7 + $0x8] sm:$0xf]
        %v4367 = vld [vmem:[%s7 + $0xc] sm:$0xf]
        %v4368 = vld [vmem:[%s7 + $0x10] sm:$0xf]
        %v4369 = vld [vmem:[%s7 + $0x14] sm:$0xf]
        %v4370 = vld [vmem:[%s7 + $0x18] sm:$0xf]
        %v4371 = vld [vmem:[%s7 + $0x1c] sm:$0xf]
        %v4372 = vld [vmem:[%s7 + $0x20] sm:$0xf]
        %v4373 = vld [vmem:[%s7 + $0x24] sm:$0xf]
        %v4374 = vld [vmem:[%s7 + $0x28] sm:$0xf]
        %v4375 = vld [vmem:[%s7 + $0x2c] sm:$0xf]
        %v4376 = vld [vmem:[%s7 + $0x30] sm:$0xf]
        %v4377 = vld [vmem:[%s7 + $0x34] sm:$0xf]
        %v4378 = vld [vmem:[%s7 + $0x38] sm:$0xf]
        %v4379 = vld [vmem:[%s7 + $0x3c] sm:$0xf]
        %v4380 = vld [vmem:[%s7 + $0x40] sm:$0xf]
        %v4381 = vld [vmem:[%s7 + $0x44] sm:$0xf]
        %v4382 = vld [vmem:[%s7 + $0x48] sm:$0xf]
        %v4383 = vld [vmem:[%s7 + $0x4c] sm:$0xf]
        %v4384 = vld [vmem:[%s7 + $0x50] sm:$0xf]
        %v4385 = vld [vmem:[%s7 + $0x54] sm:$0xf]
        %v4386 = vld [vmem:[%s7 + $0x58] sm:$0xf]
        %v4387 = vld [vmem:[%s7 + $0x5c] sm:$0xf]
        %v4388 = vld [vmem:[%s7 + $0x60] sm:$0xf]
        %v4389 = vld [vmem:[%s7 + $0x64] sm:$0xf]
        %v4390 = vld [vmem:[%s7 + $0x68] sm:$0xf]
        %v4391 = vld [vmem:[%s7 + $0x6c] sm:$0xf]
        %v4392 = vld [vmem:[%s7 + $0x70] sm:$0xf]
        %v4393 = vld [vmem:[%s7 + $0x74] sm:$0xf]
        %v4394 = vld [vmem:[%s7 + $0x78] sm:$0xf]
        %v4395 = vld [vmem:[%s7 + $0x7c] sm:$0xf]
        %v4396 = vld [vmem:[%s8] sm:$0x1]
        %v4398 = vlaneseq
        %v4399 = vshrl.u32 %v4398, 7
        %v4400 = vsub.s32 0, %v4399
        %v4401 = vrot.slane %v4396, %v4400
        %v4435 = vunpack.c.l.b16 %v4364
        %v4436 = vunpack.c.l.b16 %v4365
        %v4437 = vunpack.c.l.b16 %v4366
        %v4438 = vunpack.c.l.b16 %v4367
        %v4439 = vunpack.c.l.b16 %v4368
        %v4440 = vunpack.c.l.b16 %v4369
        %v4441 = vunpack.c.l.b16 %v4370
        %v4442 = vunpack.c.l.b16 %v4371
        %v4443 = vunpack.c.l.b16 %v4372
        %v4444 = vunpack.c.l.b16 %v4373
        %v4445 = vunpack.c.l.b16 %v4374
        %v4446 = vunpack.c.l.b16 %v4375
        %v4447 = vunpack.c.l.b16 %v4376
        %v4448 = vunpack.c.l.b16 %v4377
        %v4449 = vunpack.c.l.b16 %v4378
        %v4450 = vunpack.c.l.b16 %v4379
        %v4451 = vunpack.c.l.b16 %v4380
        %v4452 = vunpack.c.l.b16 %v4381
        %v4453 = vunpack.c.l.b16 %v4382
        %v4454 = vunpack.c.l.b16 %v4383
        %v4455 = vunpack.c.l.b16 %v4384
        %v4456 = vunpack.c.l.b16 %v4385
        %v4457 = vunpack.c.l.b16 %v4386
        %v4458 = vunpack.c.l.b16 %v4387
        %v4459 = vunpack.c.l.b16 %v4388
        %v4460 = vunpack.c.l.b16 %v4389
        %v4461 = vunpack.c.l.b16 %v4390
        %v4462 = vunpack.c.l.b16 %v4391
        %v4463 = vunpack.c.l.b16 %v4392
        %v4464 = vunpack.c.l.b16 %v4393
        %v4465 = vunpack.c.l.b16 %v4394
        %v4466 = vunpack.c.l.b16 %v4395
        %v4467 = vpack.c.b16 %v4436, %v4435
        %v4468 = vpack.c.b16 %v4438, %v4437
        %v4469 = vpack.c.b16 %v4440, %v4439
        %v4470 = vpack.c.b16 %v4442, %v4441
        %v4471 = vpack.c.b16 %v4444, %v4443
        %v4472 = vpack.c.b16 %v4446, %v4445
        %v4473 = vpack.c.b16 %v4448, %v4447
        %v4474 = vpack.c.b16 %v4450, %v4449
        %v4475 = vpack.c.b16 %v4452, %v4451
        %v4476 = vpack.c.b16 %v4454, %v4453
        %v4477 = vpack.c.b16 %v4456, %v4455
        %v4478 = vpack.c.b16 %v4458, %v4457
        %v4479 = vpack.c.b16 %v4460, %v4459
        %v4480 = vpack.c.b16 %v4462, %v4461
        %v4481 = vpack.c.b16 %v4464, %v4463
        %v4482 = vpack.c.b16 %v4466, %v4465
        %4499 = vmatprep.subr.bf16.mxu0 0
        %4500 = vmatpush1.bf16.msra.mxu0 %v4467
        %4501 = vmatprep.subr.bf16.mxu0 0
        %4502 = vmatpush1.bf16.msra.mxu0 %v4468
        %4503 = vmatprep.subr.bf16.mxu0 0
        %4504 = vmatpush1.bf16.msra.mxu0 %v4469
        %4505 = vmatprep.subr.bf16.mxu0 0
        %4506 = vmatpush1.bf16.msra.mxu0 %v4470
        %4507 = vmatprep.subr.bf16.mxu0 0
        %4508 = vmatpush1.bf16.msra.mxu0 %v4471
        %4509 = vmatprep.subr.bf16.mxu0 0
        %4510 = vmatpush1.bf16.msra.mxu0 %v4472
        %4511 = vmatprep.subr.bf16.mxu0 0
        %4512 = vmatpush1.bf16.msra.mxu0 %v4473
        %4513 = vmatprep.subr.bf16.mxu0 0
        %4514 = vmatpush1.bf16.msra.mxu0 %v4474
        %4515 = vmatprep.subr.bf16.mxu0 0
        %4516 = vmatpush1.bf16.msra.mxu0 %v4475
        %4517 = vmatprep.subr.bf16.mxu0 0
        %4518 = vmatpush1.bf16.msra.mxu0 %v4476
        %4519 = vmatprep.subr.bf16.mxu0 0
        %4520 = vmatpush1.bf16.msra.mxu0 %v4477
        %4521 = vmatprep.subr.bf16.mxu0 0
        %4522 = vmatpush1.bf16.msra.mxu0 %v4478
        %4523 = vmatprep.subr.bf16.mxu0 0
        %4524 = vmatpush1.bf16.msra.mxu0 %v4479
        %4525 = vmatprep.subr.bf16.mxu0 0
        %4526 = vmatpush1.bf16.msra.mxu0 %v4480
        %4527 = vmatprep.subr.bf16.mxu0 0
        %4528 = vmatpush1.bf16.msra.mxu0 %v4481
        %4529 = vmatprep.subr.bf16.mxu0 0
        %4530 = vmatpush1.bf16.msra.mxu0 %v4482
        %4531 = vmatprep.mubr.bf16.mxu0 %v4349
        %4532 = vmatmul.mubr.bf16.gmra.mrb[0].mxu0 %v4348
        %v4533 = vpop.f32.mrb[0].mxu0
        %v4534 = vadd.f32 %v4401, %v4533
        %v4535 = vpop.f32.mrb[0].mxu0
        %v4536 = vpop.f32.mrb[0].mxu0
        %v4537 = vadd.f32 %v4401, %v4536
        %v4538 = vpop.f32.mrb[0].mxu0
        %4539 = vmatprep.mubr.bf16.mxu0 %v4351
        %4540 = vmatmul.mubr.bf16.gmra.mrb[0].mxu0 %v4350
        %v4541 = vpop.f32.mrb[0].mxu0
        %v4542 = vadd.f32 %v4401, %v4541
        %v4543 = vpop.f32.mrb[0].mxu0
        %v4544 = vpop.f32.mrb[0].mxu0
        %v4545 = vadd.f32 %v4401, %v4544
        %v4546 = vpop.f32.mrb[0].mxu0
        %4547 = vmatprep.mubr.bf16.mxu0 %v4353
        %4548 = vmatmul.mubr.bf16.gmra.mrb[0].mxu0 %v4352
        %v4549 = vpop.f32.mrb[0].mxu0
        %v4550 = vadd.f32 %v4401, %v4549
        %v4551 = vpop.f32.mrb[0].mxu0
        %v4552 = vpop.f32.mrb[0].mxu0
        %v4553 = vadd.f32 %v4401, %v4552
        %v4554 = vpop.f32.mrb[0].mxu0
        %4555 = vmatprep.mubr.bf16.mxu0 %v4355
        %4556 = vmatmul.mubr.bf16.gmra.mrb[0].mxu0 %v4354
        %v4557 = vpop.f32.mrb[0].mxu0
        %v4558 = vadd.f32 %v4401, %v4557
        %v4559 = vpop.f32.mrb[0].mxu0
        %v4560 = vpop.f32.mrb[0].mxu0
        %v4561 = vadd.f32 %v4401, %v4560
        %v4562 = vpop.f32.mrb[0].mxu0
        %4563 = vmatprep.mubr.bf16.mxu0 %v4357
        %4564 = vmatmul.mubr.bf16.gmra.mrb[0].mxu0 %v4356
        %v4565 = vpop.f32.mrb[0].mxu0
        %v4566 = vadd.f32 %v4401, %v4565
        %v4567 = vpop.f32.mrb[0].mxu0
        %v4568 = vpop.f32.mrb[0].mxu0
        %v4569 = vadd.f32 %v4401, %v4568
        %v4570 = vpop.f32.mrb[0].mxu0
        %4571 = vmatprep.mubr.bf16.mxu0 %v4359
        %4572 = vmatmul.mubr.bf16.gmra.mrb[0].mxu0 %v4358
        %v4573 = vpop.f32.mrb[0].mxu0
        %v4574 = vadd.f32 %v4401, %v4573
        %v4575 = vpop.f32.mrb[0].mxu0
        %v4576 = vpop.f32.mrb[0].mxu0
        %v4577 = vadd.f32 %v4401, %v4576
        %v4578 = vpop.f32.mrb[0].mxu0
        %4579 = vmatprep.mubr.bf16.mxu0 %v4361
        %4580 = vmatmul.mubr.bf16.gmra.mrb[0].mxu0 %v4360
        %v4581 = vpop.f32.mrb[0].mxu0
        %v4582 = vadd.f32 %v4401, %v4581
        %v4583 = vpop.f32.mrb[0].mxu0
        %v4584 = vpop.f32.mrb[0].mxu0
        %v4585 = vadd.f32 %v4401, %v4584
        %v4586 = vpop.f32.mrb[0].mxu0
        %4587 = vmatprep.mubr.bf16.mxu0 %v4363
        %4588 = vmatmul.mubr.bf16.gmra.mrb[0].mxu0 %v4362
        %v4589 = vpop.f32.mrb[0].mxu0
        %v4590 = vadd.f32 %v4401, %v4589
        %v4591 = vpop.f32.mrb[0].mxu0
        %v4592 = vpop.f32.mrb[0].mxu0
        %v4593 = vadd.f32 %v4401, %v4592
        %v4594 = vpop.f32.mrb[0].mxu0
        %4595 = vdwg.mxu0
        %vm4596 = vcmp.gt.f32.partialorder %v4534, 0.0
        %vm4597 = vcmp.gt.f32.partialorder %v4537, 0.0
        %vm4598 = vcmp.gt.f32.partialorder %v4542, 0.0
        %vm4599 = vcmp.gt.f32.partialorder %v4545, 0.0
        %vm4600 = vcmp.gt.f32.partialorder %v4550, 0.0
        %vm4601 = vcmp.gt.f32.partialorder %v4553, 0.0
        %vm4602 = vcmp.gt.f32.partialorder %v4558, 0.0
        %vm4603 = vcmp.gt.f32.partialorder %v4561, 0.0
        %vm4604 = vcmp.gt.f32.partialorder %v4566, 0.0
        %vm4605 = vcmp.gt.f32.partialorder %v4569, 0.0
        %vm4606 = vcmp.gt.f32.partialorder %v4574, 0.0
        %vm4607 = vcmp.gt.f32.partialorder %v4577, 0.0
        %vm4608 = vcmp.gt.f32.partialorder %v4582, 0.0
        %vm4609 = vcmp.gt.f32.partialorder %v4585, 0.0
        %vm4610 = vcmp.gt.f32.partialorder %v4590, 0.0
        %vm4611 = vcmp.gt.f32.partialorder %v4593, 0.0
        %v4612 = vmul.f32 %v4534, 0.01
        %v4613 = vmul.f32 %v4537, 0.01
        %v4614 = vmul.f32 %v4542, 0.01
        %v4615 = vmul.f32 %v4545, 0.01
        %v4616 = vmul.f32 %v4550, 0.01
        %v4617 = vmul.f32 %v4553, 0.01
        %v4618 = vmul.f32 %v4558, 0.01
        %v4619 = vmul.f32 %v4561, 0.01
        %v4620 = vmul.f32 %v4566, 0.01
        %v4621 = vmul.f32 %v4569, 0.01
        %v4622 = vmul.f32 %v4574, 0.01
        %v4623 = vmul.f32 %v4577, 0.01
        %v4624 = vmul.f32 %v4582, 0.01
        %v4625 = vmul.f32 %v4585, 0.01
        %v4626 = vmul.f32 %v4590, 0.01
        %v4627 = vmul.f32 %v4593, 0.01
        %v4628 = vsel %vm4596, %v4534, %v4612
        %v4629 = vsel %vm4597, %v4537, %v4613
        %v4630 = vsel %vm4598, %v4542, %v4614
        %v4631 = vsel %vm4599, %v4545, %v4615
        %v4632 = vsel %vm4600, %v4550, %v4616
        %v4633 = vsel %vm4601, %v4553, %v4617
        %v4634 = vsel %vm4602, %v4558, %v4618
        %v4635 = vsel %vm4603, %v4561, %v4619
        %v4636 = vsel %vm4604, %v4566, %v4620
        %v4637 = vsel %vm4605, %v4569, %v4621
        %v4638 = vsel %vm4606, %v4574, %v4622
        %v4639 = vsel %vm4607, %v4577, %v4623
        %v4640 = vsel %vm4608, %v4582, %v4624
        %v4641 = vsel %vm4609, %v4585, %v4625
        %v4642 = vsel %vm4610, %v4590, %v4626
        %v4643 = vsel %vm4611, %v4593, %v4627
        %v4644 = vpack.c.bf16 %v4629, %v4628
        %v4645 = vpack.c.bf16 %v4631, %v4630
        %v4646 = vpack.c.bf16 %v4633, %v4632
        %v4647 = vpack.c.bf16 %v4635, %v4634
        %v4648 = vpack.c.bf16 %v4637, %v4636
        %v4649 = vpack.c.bf16 %v4639, %v4638
        %v4650 = vpack.c.bf16 %v4641, %v4640
        %v4651 = vpack.c.bf16 %v4643, %v4642
        %v4652 = vld [vmem:[%s9] sm:$0xf]
        %v4653 = vld [vmem:[%s9 + $0x4] sm:$0xf]
        %v4654 = vld [vmem:[%s9 + $0x8] sm:$0xf]
        %v4655 = vld [vmem:[%s9 + $0xc] sm:$0xf]
        %v4656 = vld [vmem:[%s9 + $0x10] sm:$0xf]
        %v4657 = vld [vmem:[%s9 + $0x14] sm:$0xf]
        %v4658 = vld [vmem:[%s9 + $0x18] sm:$0xf]
        %v4659 = vld [vmem:[%s9 + $0x1c] sm:$0xf]
        %v4660 = vld [vmem:[%s9 + $0x20] sm:$0xf]
        %v4661 = vld [vmem:[%s9 + $0x24] sm:$0xf]
        %v4662 = vld [vmem:[%s9 + $0x28] sm:$0xf]
        %v4663 = vld [vmem:[%s9 + $0x2c] sm:$0xf]
        %v4664 = vld [vmem:[%s9 + $0x30] sm:$0xf]
        %v4665 = vld [vmem:[%s9 + $0x34] sm:$0xf]
        %v4666 = vld [vmem:[%s9 + $0x38] sm:$0xf]
        %v4667 = vld [vmem:[%s9 + $0x3c] sm:$0xf]
        %v4668 = vld [vmem:[%s10] sm:$0x1]
        %v4670 = vlaneseq
        %v4671 = vshrl.u32 %v4670, 7
        %v4672 = vsub.s32 0, %v4671
        %v4673 = vrot.slane %v4668, %v4672
        %v4691 = vunpack.c.l.b16 %v4652
        %v4692 = vunpack.c.l.b16 %v4653
        %v4693 = vunpack.c.l.b16 %v4654
        %v4694 = vunpack.c.l.b16 %v4655
        %v4695 = vunpack.c.l.b16 %v4656
        %v4696 = vunpack.c.l.b16 %v4657
        %v4697 = vunpack.c.l.b16 %v4658
        %v4698 = vunpack.c.l.b16 %v4659
        %v4699 = vunpack.c.l.b16 %v4660
        %v4700 = vunpack.c.l.b16 %v4661
        %v4701 = vunpack.c.l.b16 %v4662
        %v4702 = vunpack.c.l.b16 %v4663
        %v4703 = vunpack.c.l.b16 %v4664
        %v4704 = vunpack.c.l.b16 %v4665
        %v4705 = vunpack.c.l.b16 %v4666
        %v4706 = vunpack.c.l.b16 %v4667
        %v4707 = vpack.c.b16 %v4692, %v4691
        %v4708 = vpack.c.b16 %v4694, %v4693
        %v4709 = vpack.c.b16 %v4696, %v4695
        %v4710 = vpack.c.b16 %v4698, %v4697
        %v4711 = vpack.c.b16 %v4700, %v4699
        %v4712 = vpack.c.b16 %v4702, %v4701
        %v4713 = vpack.c.b16 %v4704, %v4703
        %v4714 = vpack.c.b16 %v4706, %v4705
        %4723 = vmatprep.subr.bf16.mxu0 0
        %4724 = vmatpush1.bf16.msra.mxu0 %v4707
        %4725 = vmatprep.subr.bf16.mxu0 0
        %4726 = vmatpush1.bf16.msra.mxu0 %v4708
        %4727 = vmatprep.subr.bf16.mxu0 0
        %4728 = vmatpush1.bf16.msra.mxu0 %v4709
        %4729 = vmatprep.subr.bf16.mxu0 0
        %4730 = vmatpush1.bf16.msra.mxu0 %v4710
        %4731 = vmatprep.subr.bf16.mxu0 0
        %4732 = vmatpush1.bf16.msra.mxu0 %v4711
        %4733 = vmatprep.subr.bf16.mxu0 0
        %4734 = vmatpush1.bf16.msra.mxu0 %v4712
        %4735 = vmatprep.subr.bf16.mxu0 0
        %4736 = vmatpush1.bf16.msra.mxu0 %v4713
        %4737 = vmatprep.subr.bf16.mxu0 0
        %4738 = vmatpush1.bf16.msra.mxu0 %v4714
        %4739 = vmatprep.subr.bf16.mxu0 0
        %4740 = vmatpush1.bf16.msra.mxu0 0
        %4741 = vmatprep.subr.bf16.mxu0 0
        %4742 = vmatpush1.bf16.msra.mxu0 0
        %4743 = vmatprep.subr.bf16.mxu0 0
        %4744 = vmatpush1.bf16.msra.mxu0 0
        %4745 = vmatprep.subr.bf16.mxu0 0
        %4746 = vmatpush1.bf16.msra.mxu0 0
        %4747 = vmatprep.subr.bf16.mxu0 0
        %4748 = vmatpush1.bf16.msra.mxu0 0
        %4749 = vmatprep.subr.bf16.mxu0 0
        %4750 = vmatpush1.bf16.msra.mxu0 0
        %4751 = vmatprep.subr.bf16.mxu0 0
        %4752 = vmatpush1.bf16.msra.mxu0 0
        %4753 = vmatprep.subr.bf16.mxu0 0
        %4754 = vmatpush1.bf16.msra.mxu0 0
        %4755 = vmatprep.mubr.bf16.mxu0 0
        %4756 = vmatmul.mubr.bf16.gmra.mrb[0].mxu0 %v4644
        %v4757 = vpop.f32.mrb[0].mxu0
        %v4758 = vadd.f32 %v4673, %v4757
        %v4759 = vpop.f32.mrb[0].mxu0
        %v4760 = vpop.f32.mrb[0].mxu0
        %v4761 = vadd.f32 %v4673, %v4760
        %v4762 = vpop.f32.mrb[0].mxu0
        %4763 = vmatprep.mubr.bf16.mxu0 0
        %4764 = vmatmul.mubr.bf16.gmra.mrb[0].mxu0 %v4645
        %v4765 = vpop.f32.mrb[0].mxu0
        %v4766 = vadd.f32 %v4673, %v4765
        %v4767 = vpop.f32.mrb[0].mxu0
        %v4768 = vpop.f32.mrb[0].mxu0
        %v4769 = vadd.f32 %v4673, %v4768
        %v4770 = vpop.f32.mrb[0].mxu0
        %4771 = vmatprep.mubr.bf16.mxu0 0
        %4772 = vmatmul.mubr.bf16.gmra.mrb[0].mxu0 %v4646
        %v4773 = vpop.f32.mrb[0].mxu0
        %v4774 = vadd.f32 %v4673, %v4773
        %v4775 = vpop.f32.mrb[0].mxu0
        %v4776 = vpop.f32.mrb[0].mxu0
        %v4777 = vadd.f32 %v4673, %v4776
        %v4778 = vpop.f32.mrb[0].mxu0
        %4779 = vmatprep.mubr.bf16.mxu0 0
        %4780 = vmatmul.mubr.bf16.gmra.mrb[0].mxu0 %v4647
        %v4781 = vpop.f32.mrb[0].mxu0
        %v4782 = vadd.f32 %v4673, %v4781
        %v4783 = vpop.f32.mrb[0].mxu0
        %v4784 = vpop.f32.mrb[0].mxu0
        %v4785 = vadd.f32 %v4673, %v4784
        %v4786 = vpop.f32.mrb[0].mxu0
        %4787 = vmatprep.mubr.bf16.mxu0 0
        %4788 = vmatmul.mubr.bf16.gmra.mrb[0].mxu0 %v4648
        %v4789 = vpop.f32.mrb[0].mxu0
        %v4790 = vadd.f32 %v4673, %v4789
        %v4791 = vpop.f32.mrb[0].mxu0
        %v4792 = vpop.f32.mrb[0].mxu0
        %v4793 = vadd.f32 %v4673, %v4792
        %v4794 = vpop.f32.mrb[0].mxu0
        %4795 = vmatprep.mubr.bf16.mxu0 0
        %4796 = vmatmul.mubr.bf16.gmra.mrb[0].mxu0 %v4649
        %v4797 = vpop.f32.mrb[0].mxu0
        %v4798 = vadd.f32 %v4673, %v4797
        %v4799 = vpop.f32.mrb[0].mxu0
        %v4800 = vpop.f32.mrb[0].mxu0
        %v4801 = vadd.f32 %v4673, %v4800
        %v4802 = vpop.f32.mrb[0].mxu0
        %4803 = vmatprep.mubr.bf16.mxu0 0
        %4804 = vmatmul.mubr.bf16.gmra.mrb[0].mxu0 %v4650
        %v4805 = vpop.f32.mrb[0].mxu0
        %v4806 = vadd.f32 %v4673, %v4805
        %v4807 = vpop.f32.mrb[0].mxu0
        %v4808 = vpop.f32.mrb[0].mxu0
        %v4809 = vadd.f32 %v4673, %v4808
        %v4810 = vpop.f32.mrb[0].mxu0
        %4811 = vmatprep.mubr.bf16.mxu0 0
        %4812 = vmatmul.mubr.bf16.gmra.mrb[0].mxu0 %v4651
        %v4813 = vpop.f32.mrb[0].mxu0
        %v4814 = vadd.f32 %v4673, %v4813
        %v4815 = vpop.f32.mrb[0].mxu0
        %v4816 = vpop.f32.mrb[0].mxu0
        %v4817 = vadd.f32 %v4673, %v4816
        %v4818 = vpop.f32.mrb[0].mxu0
        %4819 = vdwg.mxu0
        %v4820 = vmul.f32 %v4758, %v4758
        %v4821 = vmul.f32 %v4761, %v4761
        %v4822 = vmul.f32 %v4766, %v4766
        %v4823 = vmul.f32 %v4769, %v4769
        %v4824 = vmul.f32 %v4774, %v4774
        %v4825 = vmul.f32 %v4777, %v4777
        %v4826 = vmul.f32 %v4782, %v4782
        %v4827 = vmul.f32 %v4785, %v4785
        %v4828 = vmul.f32 %v4790, %v4790
        %v4829 = vmul.f32 %v4793, %v4793
        %v4830 = vmul.f32 %v4798, %v4798
        %v4831 = vmul.f32 %v4801, %v4801
        %v4832 = vmul.f32 %v4806, %v4806
        %v4833 = vmul.f32 %v4809, %v4809
        %v4834 = vmul.f32 %v4814, %v4814
        %v4835 = vmul.f32 %v4817, %v4817
        %4836 = vadd.xlane.f32.xlu0 %v4820
        %v4837 = vpop.xlane.xlu0 %4836
        %4838 = vadd.xlane.f32.xlu0 %v4821
        %v4839 = vpop.xlane.xlu0 %4838
        %4840 = vadd.xlane.f32.xlu0 %v4822
        %v4841 = vpop.xlane.xlu0 %4840
        %4842 = vadd.xlane.f32.xlu0 %v4823
        %v4843 = vpop.xlane.xlu0 %4842
        %4844 = vadd.xlane.f32.xlu0 %v4824
        %v4845 = vpop.xlane.xlu0 %4844
        %4846 = vadd.xlane.f32.xlu0 %v4825
        %v4847 = vpop.xlane.xlu0 %4846
        %4848 = vadd.xlane.f32.xlu0 %v4826
        %v4849 = vpop.xlane.xlu0 %4848
        %4850 = vadd.xlane.f32.xlu0 %v4827
        %v4851 = vpop.xlane.xlu0 %4850
        %4852 = vadd.xlane.f32.xlu0 %v4828
        %v4853 = vpop.xlane.xlu0 %4852
        %4854 = vadd.xlane.f32.xlu0 %v4829
        %v4855 = vpop.xlane.xlu0 %4854
        %4856 = vadd.xlane.f32.xlu0 %v4830
        %v4857 = vpop.xlane.xlu0 %4856
        %4858 = vadd.xlane.f32.xlu0 %v4831
        %v4859 = vpop.xlane.xlu0 %4858
        %4860 = vadd.xlane.f32.xlu0 %v4832
        %v4861 = vpop.xlane.xlu0 %4860
        %4862 = vadd.xlane.f32.xlu0 %v4833
        %v4863 = vpop.xlane.xlu0 %4862
        %4864 = vadd.xlane.f32.xlu0 %v4834
        %v4865 = vpop.xlane.xlu0 %4864
        %4866 = vadd.xlane.f32.xlu0 %v4835
        %v4867 = vpop.xlane.xlu0 %4866
        %v4868 = vlaneseq
        %v4869 = vand.u32 %v4868, 127
        %vm4870 = vcmp.eq.s32.totalorder %v4869, 3
        %vm4871 = vcmp.eq.s32.totalorder %v4869, 4
        %v4872 = vsel %vm4870, 1, 0
        %vm4873 = vcmp.eq.s32.totalorder %v4872, 1
        %v4874 = vsel %vm4873, %v4837, 0.0
        %v4875 = vsel %vm4873, %v4839, 0.0
        %v4876 = vsel %vm4873, %v4841, 0.0
        %v4877 = vsel %vm4873, %v4843, 0.0
        %v4878 = vsel %vm4873, %v4845, 0.0
        %v4879 = vsel %vm4873, %v4847, 0.0
        %v4880 = vsel %vm4873, %v4849, 0.0
        %v4881 = vsel %vm4873, %v4851, 0.0
        %v4882 = vsel %vm4873, %v4853, 0.0
        %v4883 = vsel %vm4873, %v4855, 0.0
        %v4884 = vsel %vm4873, %v4857, 0.0
        %v4885 = vsel %vm4873, %v4859, 0.0
        %v4886 = vsel %vm4873, %v4861, 0.0
        %v4887 = vsel %vm4873, %v4863, 0.0
        %v4888 = vsel %vm4873, %v4865, 0.0
        %v4889 = vsel %vm4873, %v4867, 0.0
        %v4890 = vadd.f32 %v4758, %v4874
        %v4891 = vadd.f32 %v4761, %v4875
        %v4892 = vadd.f32 %v4766, %v4876
        %v4893 = vadd.f32 %v4769, %v4877
        %v4894 = vadd.f32 %v4774, %v4878
        %v4895 = vadd.f32 %v4777, %v4879
        %v4896 = vadd.f32 %v4782, %v4880
        %v4897 = vadd.f32 %v4785, %v4881
        %v4898 = vadd.f32 %v4790, %v4882
        %v4899 = vadd.f32 %v4793, %v4883
        %v4900 = vadd.f32 %v4798, %v4884
        %v4901 = vadd.f32 %v4801, %v4885
        %v4902 = vadd.f32 %v4806, %v4886
        %v4903 = vadd.f32 %v4809, %v4887
        %v4904 = vadd.f32 %v4814, %v4888
        %v4905 = vadd.f32 %v4817, %v4889
        %v4906 = vsel %vm4871, 1.0, 0.0
        %v4907 = vadd.f32 %v4890, %v4906
        %v4908 = vadd.f32 %v4891, %v4906
        %v4909 = vadd.f32 %v4892, %v4906
        %v4910 = vadd.f32 %v4893, %v4906
        %v4911 = vadd.f32 %v4894, %v4906
        %v4912 = vadd.f32 %v4895, %v4906
        %v4913 = vadd.f32 %v4896, %v4906
        %v4914 = vadd.f32 %v4897, %v4906
        %v4915 = vadd.f32 %v4898, %v4906
        %v4916 = vadd.f32 %v4899, %v4906
        %v4917 = vadd.f32 %v4900, %v4906
        %v4918 = vadd.f32 %v4901, %v4906
        %v4919 = vadd.f32 %v4902, %v4906
        %v4920 = vadd.f32 %v4903, %v4906
        %v4921 = vadd.f32 %v4904, %v4906
        %v4922 = vadd.f32 %v4905, %v4906
        %4923 = vst [vmem:[%s523] sm:$0xff] %v4907
        %4924 = vst [vmem:[%s523 + $0x8] sm:$0xff] %v4908
        %4925 = vst [vmem:[%s523 + $0x10] sm:$0xff] %v4909
        %4926 = vst [vmem:[%s523 + $0x18] sm:$0xff] %v4910
        %4927 = vst [vmem:[%s523 + $0x20] sm:$0xff] %v4911
        %4928 = vst [vmem:[%s523 + $0x28] sm:$0xff] %v4912
        %4929 = vst [vmem:[%s523 + $0x30] sm:$0xff] %v4913
        %4930 = vst [vmem:[%s523 + $0x38] sm:$0xff] %v4914
        %4931 = vst [vmem:[%s523 + $0x40] sm:$0xff] %v4915
        %4932 = vst [vmem:[%s523 + $0x48] sm:$0xff] %v4916
        %4933 = vst [vmem:[%s523 + $0x50] sm:$0xff] %v4917
        %4934 = vst [vmem:[%s523 + $0x58] sm:$0xff] %v4918
        %4935 = vst [vmem:[%s523 + $0x60] sm:$0xff] %v4919
        %4936 = vst [vmem:[%s523 + $0x68] sm:$0xff] %v4920
        %4937 = vst [vmem:[%s523 + $0x70] sm:$0xff] %v4921
        %4938 = vst [vmem:[%s523 + $0x78] sm:$0xff] %v4922
        %v4939 = vmul.f32 %v4758, -2.0
        %v4940 = vmul.f32 %v4761, -2.0
        %v4941 = vmul.f32 %v4766, -2.0
        %v4942 = vmul.f32 %v4769, -2.0
        %v4943 = vmul.f32 %v4774, -2.0
        %v4944 = vmul.f32 %v4777, -2.0
        %v4945 = vmul.f32 %v4782, -2.0
        %v4946 = vmul.f32 %v4785, -2.0
        %v4947 = vmul.f32 %v4790, -2.0
        %v4948 = vmul.f32 %v4793, -2.0
        %v4949 = vmul.f32 %v4798, -2.0
        %v4950 = vmul.f32 %v4801, -2.0
        %v4951 = vmul.f32 %v4806, -2.0
        %v4952 = vmul.f32 %v4809, -2.0
        %v4953 = vmul.f32 %v4814, -2.0
        %v4954 = vmul.f32 %v4817, -2.0
        %v4955 = vsel %vm4870, 1.0, 0.0
        %v4956 = vadd.f32 %v4939, %v4955
        %v4957 = vadd.f32 %v4940, %v4955
        %v4958 = vadd.f32 %v4941, %v4955
        %v4959 = vadd.f32 %v4942, %v4955
        %v4960 = vadd.f32 %v4943, %v4955
        %v4961 = vadd.f32 %v4944, %v4955
        %v4962 = vadd.f32 %v4945, %v4955
        %v4963 = vadd.f32 %v4946, %v4955
        %v4964 = vadd.f32 %v4947, %v4955
        %v4965 = vadd.f32 %v4948, %v4955
        %v4966 = vadd.f32 %v4949, %v4955
        %v4967 = vadd.f32 %v4950, %v4955
        %v4968 = vadd.f32 %v4951, %v4955
        %v4969 = vadd.f32 %v4952, %v4955
        %v4970 = vadd.f32 %v4953, %v4955
        %v4971 = vadd.f32 %v4954, %v4955
        %v4972 = vsel %vm4871, 1, 0
        %vm4973 = vcmp.eq.s32.totalorder %v4972, 1
        %v4974 = vsel %vm4973, %v4837, 0.0
        %v4975 = vsel %vm4973, %v4839, 0.0
        %v4976 = vsel %vm4973, %v4841, 0.0
        %v4977 = vsel %vm4973, %v4843, 0.0
        %v4978 = vsel %vm4973, %v4845, 0.0
        %v4979 = vsel %vm4973, %v4847, 0.0
        %v4980 = vsel %vm4973, %v4849, 0.0
        %v4981 = vsel %vm4973, %v4851, 0.0
        %v4982 = vsel %vm4973, %v4853, 0.0
        %v4983 = vsel %vm4973, %v4855, 0.0
        %v4984 = vsel %vm4973, %v4857, 0.0
        %v4985 = vsel %vm4973, %v4859, 0.0
        %v4986 = vsel %vm4973, %v4861, 0.0
        %v4987 = vsel %vm4973, %v4863, 0.0
        %v4988 = vsel %vm4973, %v4865, 0.0
        %v4989 = vsel %vm4973, %v4867, 0.0
        %v4990 = vadd.f32 %v4956, %v4974
        %v4991 = vadd.f32 %v4957, %v4975
        %v4992 = vadd.f32 %v4958, %v4976
        %v4993 = vadd.f32 %v4959, %v4977
        %v4994 = vadd.f32 %v4960, %v4978
        %v4995 = vadd.f32 %v4961, %v4979
        %v4996 = vadd.f32 %v4962, %v4980
        %v4997 = vadd.f32 %v4963, %v4981
        %v4998 = vadd.f32 %v4964, %v4982
        %v4999 = vadd.f32 %v4965, %v4983
        %v5000 = vadd.f32 %v4966, %v4984
        %v5001 = vadd.f32 %v4967, %v4985
        %v5002 = vadd.f32 %v4968, %v4986
        %v5003 = vadd.f32 %v4969, %v4987
        %v5004 = vadd.f32 %v4970, %v4988
        %v5005 = vadd.f32 %v4971, %v4989
        %5006 = vst [vmem:[%s529] sm:$0xff] %v4990
        %5007 = vst [vmem:[%s529 + $0x8] sm:$0xff] %v4991
        %5008 = vst [vmem:[%s529 + $0x10] sm:$0xff] %v4992
        %5009 = vst [vmem:[%s529 + $0x18] sm:$0xff] %v4993
        %5010 = vst [vmem:[%s529 + $0x20] sm:$0xff] %v4994
        %5011 = vst [vmem:[%s529 + $0x28] sm:$0xff] %v4995
        %5012 = vst [vmem:[%s529 + $0x30] sm:$0xff] %v4996
        %5013 = vst [vmem:[%s529 + $0x38] sm:$0xff] %v4997
        %5014 = vst [vmem:[%s529 + $0x40] sm:$0xff] %v4998
        %5015 = vst [vmem:[%s529 + $0x48] sm:$0xff] %v4999
        %5016 = vst [vmem:[%s529 + $0x50] sm:$0xff] %v5000
        %5017 = vst [vmem:[%s529 + $0x58] sm:$0xff] %v5001
        %5018 = vst [vmem:[%s529 + $0x60] sm:$0xff] %v5002
        %5019 = vst [vmem:[%s529 + $0x68] sm:$0xff] %v5003
        %5020 = vst [vmem:[%s529 + $0x70] sm:$0xff] %v5004
        %5021 = vst [vmem:[%s529 + $0x78] sm:$0xff] %v5005
      $region72: #{gatnet_forward.4} parent=63 // pred_fallthru
        _
      %s5022 = smul.u32 16, %s28
      %p5023 = scmp.lt.s32.totalorder %s5022, 31
      %s5024 = scalar_select %p5023, %s5022, 31
      %s5025 = smul.addr %s5024, 8
      %s5026 = scalar_lea.vmem %s11, %s5025
      %s5027 = smul.u32 16, %s28
      %p5028 = scmp.lt.s32.totalorder %s5027, 31
      %s5029 = scalar_select %p5028, %s5027, 31
      %s5030 = smul.addr %s5029, 8
      %s5031 = scalar_lea.vmem %s12, %s5030
      // Predicated region
      $region73: #{gatnet_forward.4} parent=63 // pred_check
        %p5032 = pneg %p307
      $region74: #{gatnet_forward.4} parent=63 // pred_check_branch
        %5034 = sbr.rel (%p5032) target = $region76
      $region75: #{gatnet_forward.4} parent=63 // pred_region
        %s5035 = smul.u32 16, %s28
      $region76: #{gatnet_forward.4} parent=63 // pred_fallthru
        _
      // Predicated region
      $region77: #{gatnet_forward.4} parent=63 // pred_check
        %p5036 = pneg %p333
      $region78: #{gatnet_forward.4} parent=63 // pred_check_branch
        %5038 = sbr.rel (%p5036) target = $region80
      $region79: #{gatnet_forward.4} parent=63 // pred_region
        %s5039 = smul.u32 16, %s28
      $region80: #{gatnet_forward.4} parent=63 // pred_fallthru
        _
    $region64: #{gatnet_forward.4} parent=5 // pred_fallthru
      _
    %p5040 = scmp.le.s32.totalorder 2, %s19
    // Predicated region
    $region81: #{gatnet_forward.4} parent=5 // pred_check
      %p5041 = pneg %p5040
    $region82: #{gatnet_forward.4} parent=5 // pred_check_branch
      %5043 = sbr.rel (%p5041) target = $region84
    $region83: #{gatnet_forward.4} parent=5 // pred_region
      %s5044 = ssub.s32 %s19, 2
      // Predicated region
      $region85: #{gatnet_forward.4} parent=83 // pred_check
        %p5045 = pneg %p313
      $region86: #{gatnet_forward.4} parent=83 // pred_check_branch
        %5047 = sbr.rel (%p5045) target = $region88
      $region87: #{gatnet_forward.4} parent=83 // pred_region
        %s5048 = smul.u32 16, %s30
        %p5049 = scmp.lt.s32.totalorder %s5048, 31
        %s5050 = scalar_select %p5049, %s5048, 31
        %s5051 = smul.addr %s5050, 8
        %s5052 = scalar_lea.vmem %s11, %s5051
      $region88: #{gatnet_forward.4} parent=83 // pred_fallthru
        _
      // Predicated region
      $region89: #{gatnet_forward.4} parent=83 // pred_check
        %p5053 = pneg %p339
      $region90: #{gatnet_forward.4} parent=83 // pred_check_branch
        %5055 = sbr.rel (%p5053) target = $region92
      $region91: #{gatnet_forward.4} parent=83 // pred_region
        %s5056 = smul.u32 16, %s30
        %p5057 = scmp.lt.s32.totalorder %s5056, 31
        %s5058 = scalar_select %p5057, %s5056, 31
        %s5059 = smul.addr %s5058, 8
        %s5060 = scalar_lea.vmem %s12, %s5059
      $region92: #{gatnet_forward.4} parent=83 // pred_fallthru
        _
    $region84: #{gatnet_forward.4} parent=5 // pred_fallthru
      _
  $region6: #{gatnet_forward.4} parent=0 // loop_footer
    %s23 = sadd.s32 1, %s19
  $region7: #{gatnet_forward.4} parent=0 // loop_footer_branch
    %18 = sbr.rel target = $region3
  $region8: #{gatnet_forward.4} parent=0 // loop_exit
    _

</llo_original>
